<compile_context>
chip_gen: v5e
topology: v5e:2x2
jax: 0.10.0
libtpu: 0.0.40
codegen_flags: <defaults>
</compile_context>

<pallas_src>
import functools

import jax
import jax.numpy as jnp
from jax.experimental import pallas as pl
from jax.experimental.pallas import tpu as pltpu


# --------------------------------------------------------------------------
# Tiled Pallas GEMM with fused bias / activation / residual epilogue
# --------------------------------------------------------------------------
def _round_up(x, m):
    return (x + m - 1) // m * m


def _choose_tile(dim, max_tile, align):
    """Pick a tile (multiple of `align`, <= max_tile) minimizing padded size."""
    padded = _round_up(dim, align)
    if padded <= max_tile:
        return padded, padded
    best_t, best_p = align, _round_up(padded, align)
    t = max_tile
    while t >= align:
        p = _round_up(padded, t)
        if p < best_p or (p == best_p and t > best_t):
            best_p, best_t = p, t
        t -= align
    return best_t, best_p


def _gemm_kernel(*refs, activation, has_residual, single_k):
    if has_residual:
        a_ref, b_ref, bias_ref, res_ref = refs[:4]
        rest = refs[4:]
    else:
        a_ref, b_ref, bias_ref = refs[:3]
        res_ref = None
        rest = refs[3:]

    def epilogue(acc_f32, o_ref):
        r = acc_f32 + bias_ref[...]
        if has_residual:
            r = r + res_ref[...].astype(jnp.float32)
        if activation == "relu6":
            r = jnp.clip(r, 0.0, 6.0)
        elif activation == "sigmoid":
            r = jax.nn.sigmoid(r)
        o_ref[...] = r.astype(o_ref.dtype)

    if single_k:
        (o_ref,) = rest
        acc = jnp.dot(a_ref[...], b_ref[...],
                      preferred_element_type=jnp.float32)
        epilogue(acc, o_ref)
    else:
        o_ref, acc_ref = rest
        k = pl.program_id(2)

        @pl.when(k == 0)
        def _():
            acc_ref[...] = jnp.zeros_like(acc_ref)

        acc_ref[...] += jnp.dot(a_ref[...], b_ref[...],
                                preferred_element_type=jnp.float32)

        @pl.when(k == pl.num_programs(2) - 1)
        def _():
            epilogue(acc_ref[...], o_ref)


def pallas_gemm_bias_act(a, b, bias, activation="none", residual=None,
                         out_dtype=jnp.bfloat16):
    """a:(M,K) @ b:(K,N) + bias:(N,) [+ residual:(M,N)] with fused activation.

    A/B/residual are fed to the MXU/VPU in bfloat16; accumulation is float32;
    the output is written in `out_dtype` (bf16 by default).
    """
    M, K = a.shape
    K2, N = b.shape
    assert K == K2
    if bias is None:
        bias = jnp.zeros((N,), jnp.float32)

    # Tile selection: M aligned to 16 (bf16 sublane packing), N/K to 128.
    tm, Mp = _choose_tile(M, 512, 16)
    tn, Np = _choose_tile(N, 512, 128)
    tk, Kp = _choose_tile(K, 1024, 128)

    # v7x megacore: guarantee >=2 blocks on a parallel axis when possible so
    # the second TensorCore is not idle (no effect on v5e/v6e single-TC).
    if Mp // tm == 1 and Np // tn == 1 and Mp >= 32:
        tm = _round_up((Mp + 1) // 2, 16)
        Mp = 2 * tm

    a16 = a.astype(jnp.bfloat16)
    b16 = b.astype(jnp.bfloat16)
    if (Mp, Kp) != (M, K):
        a16 = jnp.pad(a16, ((0, Mp - M), (0, Kp - K)))
    if (Kp, Np) != (K, N):
        b16 = jnp.pad(b16, ((0, Kp - K), (0, Np - N)))
    bias2 = bias.astype(jnp.float32).reshape(1, N)
    if Np != N:
        bias2 = jnp.pad(bias2, ((0, 0), (0, Np - N)))

    has_residual = residual is not None
    inputs = [a16, b16, bias2]
    in_specs = [
        pl.BlockSpec((tm, tk), lambda i, j, k: (i, k)),
        pl.BlockSpec((tk, tn), lambda i, j, k: (k, j)),
        pl.BlockSpec((1, tn), lambda i, j, k: (0, j)),
    ]
    if has_residual:
        r16 = residual.astype(jnp.bfloat16)
        if (Mp, Np) != (M, N):
            r16 = jnp.pad(r16, ((0, Mp - M), (0, Np - N)))
        inputs.append(r16)
        in_specs.append(pl.BlockSpec((tm, tn), lambda i, j, k: (i, j)))

    grid = (Mp // tm, Np // tn, Kp // tk)
    single_k = grid[2] == 1
    scratch = [] if single_k else [pltpu.VMEM((tm, tn), jnp.float32)]

    out_bytes = jnp.dtype(out_dtype).itemsize
    cost = pl.CostEstimate(
        flops=2 * Mp * Np * Kp,
        transcendentals=Mp * Np if activation == "sigmoid" else 0,
        bytes_accessed=(a16.size * 2 + b16.size * 2 + Mp * Np * out_bytes
                        + (Mp * Np * 2 if has_residual else 0)),
    )

    out = pl.pallas_call(
        functools.partial(_gemm_kernel, activation=activation,
                          has_residual=has_residual, single_k=single_k),
        out_shape=jax.ShapeDtypeStruct((Mp, Np), out_dtype),
        grid_spec=pltpu.PrefetchScalarGridSpec(
            num_scalar_prefetch=0,
            grid=grid,
            in_specs=in_specs,
            out_specs=pl.BlockSpec((tm, tn), lambda i, j, k: (i, j)),
            scratch_shapes=scratch,
        ),
        compiler_params=pltpu.CompilerParams(
            dimension_semantics=("parallel", "parallel", "arbitrary")),
        cost_estimate=cost,
    )(*inputs)

    if (Mp, Np) != (M, N):
        out = out[:M, :N]
    return out


# --------------------------------------------------------------------------
# Convolutions (NHWC, stride-1) on top of the Pallas GEMM
# --------------------------------------------------------------------------
def conv2d(x, w, b=None, padding=0, dilation=1, activation="none",
           residual=None):
    """NHWC stride-1 conv. Weight is PyTorch-layout (Cout, Cin, kh, kw)."""
    Nb, H, W, Cin = x.shape
    Cout, Cin_w, kh, kw = w.shape
    assert Cin_w == Cin
    x16 = x.astype(jnp.bfloat16)          # build im2col / GEMM inputs in bf16
    if kh == 1 and kw == 1 and padding == 0:
        A = x16.reshape(Nb * H * W, Cin)
        Bm = w.reshape(Cout, Cin).T
        Ho, Wo = H, W
    else:
        # TODO(synk): im2col is assembled with XLA shifted slices (lane-dense,
        # channels-last, bf16). Fusing the kh*kw tap reduction into the kernel
        # via a tap grid axis is omitted because the deep-layer spatial extents
        # (<=4) cannot satisfy (8,128) block constraints.
        xp = jnp.pad(x16, ((0, 0), (padding, padding), (padding, padding),
                           (0, 0)))
        Ho = H + 2 * padding - dilation * (kh - 1)
        Wo = W + 2 * padding - dilation * (kw - 1)
        taps = [xp[:, i * dilation:i * dilation + Ho,
                   j * dilation:j * dilation + Wo, :]
                for i in range(kh) for j in range(kw)]
        A = jnp.concatenate(taps, axis=-1).reshape(Nb * Ho * Wo, kh * kw * Cin)
        Bm = jnp.transpose(w, (2, 3, 1, 0)).reshape(kh * kw * Cin, Cout)
    res2d = None
    if residual is not None:
        res2d = residual.reshape(Nb * Ho * Wo, Cout)
    out = pallas_gemm_bias_act(A, Bm, b, activation, residual=res2d)
    return out.reshape(Nb, Ho, Wo, Cout)


def conv1x1_multi(x, convs):
    """Several 1x1 convs sharing the same input, merged into one wide GEMM."""
    Nb, H, W, Cin = x.shape
    A = x.astype(jnp.bfloat16).reshape(Nb * H * W, Cin)
    Bm = jnp.concatenate(
        [c["w"].reshape(c["w"].shape[0], Cin).T for c in convs], axis=1)
    bias = jnp.concatenate(
        [c["b"] if c["b"] is not None
         else jnp.zeros((c["w"].shape[0],), jnp.float32) for c in convs])
    out = pallas_gemm_bias_act(A, Bm, bias)
    outs, off = [], 0
    for c in convs:
        co = c["w"].shape[0]
        outs.append(out[:, off:off + co].reshape(Nb, H, W, co))
        off += co
    return outs


# --------------------------------------------------------------------------
# Plain-JAX glue ops (norms / pooling / resize / activations), NHWC, bf16 I/O
# --------------------------------------------------------------------------
def relu6(x):
    return jnp.clip(x, 0.0, 6.0)


def batchnorm_train(x, gamma, beta, eps=1e-5):
    # BatchNorm2d in training mode (fresh module): batch stats, biased var.
    xf = x.astype(jnp.float32)
    mean = xf.mean(axis=(0, 1, 2), keepdims=True)
    var = ((xf - mean) ** 2).mean(axis=(0, 1, 2), keepdims=True)
    xh = (xf - mean) * jax.lax.rsqrt(var + eps)
    return (xh * gamma + beta).astype(jnp.bfloat16)


def groupnorm(x, gamma, beta, groups, eps=1e-5):
    Nb, H, W, C = x.shape
    xf = x.astype(jnp.float32).reshape(Nb, H, W, groups, C // groups)
    mean = xf.mean(axis=(1, 2, 4), keepdims=True)
    var = ((xf - mean) ** 2).mean(axis=(1, 2, 4), keepdims=True)
    xf = (xf - mean) * jax.lax.rsqrt(var + eps)
    out = xf.reshape(Nb, H, W, C) * gamma + beta
    return out.astype(jnp.bfloat16)


def maxpool2(x):
    Nb, H, W, C = x.shape
    return x.reshape(Nb, H // 2, 2, W // 2, 2, C).max(axis=(2, 4))


def _interp_matrix(size_in):
    """2x upsample, align_corners=True linear-interpolation matrix."""
    size_out = 2 * size_in
    if size_in == 1:
        return jnp.ones((size_out, 1), jnp.float32)
    pos = jnp.arange(size_out, dtype=jnp.float32) * (size_in - 1) / (size_out - 1)
    idx = jnp.arange(size_in, dtype=jnp.float32)
    return jnp.maximum(0.0, 1.0 - jnp.abs(pos[:, None] - idx[None, :]))


def upsample_bilinear_2x(x):
    """nn.Upsample(scale_factor=2, mode='bilinear', align_corners=True), NHWC.
    Expressed as two small dense interpolation matmuls (no gathers)."""
    Nb, H, W, C = x.shape
    Wh = _interp_matrix(H)
    Ww = _interp_matrix(W)
    xf = x.astype(jnp.float32)
    xf = jnp.einsum('oh,nhwc->nowc', Wh, xf)
    xf = jnp.einsum('pw,nhwc->nhpc', Ww, xf)
    return xf.astype(jnp.bfloat16)


# --------------------------------------------------------------------------
# Parameter init (deterministic, PyTorch-like fan-in uniform)
# --------------------------------------------------------------------------
def _init_conv(key, cin, cout, k, bias=True):
    kw_, kb = jax.random.split(key)
    fan_in = cin * k * k
    scale = fan_in ** -0.5
    w = jax.random.uniform(kw_, (cout, cin, k, k), jnp.float32, -scale, scale)
    b = (jax.random.uniform(kb, (cout,), jnp.float32, -scale, scale)
         if bias else None)
    return {"w": w, "b": b}


def init_recomb(key, cin, cout):
    keys = jax.random.split(key, 6)
    expan = cout * 2
    return {
        "expansion": _init_conv(keys[0], cin, expan, 1),
        "skip": _init_conv(keys[1], cin, cout, 1),
        "zoom": _init_conv(keys[2], expan, cout, 1),
        "bn_gamma": jnp.ones((expan,), jnp.float32),
        "bn_beta": jnp.zeros((expan,), jnp.float32),
        "norm": _init_conv(keys[3], expan, expan, 3),
        "segse_dila": _init_conv(keys[4], expan, expan // 2, 3),
        "segse_conv1": _init_conv(keys[5], expan // 2, expan, 1),
    }


def init_singleconv(key, cin, cout):
    # NOTE: group count is NOT stored in the param tree (it must stay a static
    # Python int under jit); it is re-derived from gamma's shape at call time.
    return {"conv": _init_conv(key, cin, cout, 1, bias=False),
            "gn_gamma": jnp.ones((cout,), jnp.float32),
            "gn_beta": jnp.zeros((cout,), jnp.float32)}


def init_att(key, f_g, f_l, f_int):
    k = jax.random.split(key, 3)
    return {"wg": init_singleconv(k[0], f_g, f_int),
            "wx": init_singleconv(k[1], f_l, f_int),
            "psi": init_singleconv(k[2], f_int, 1)}


def init_down(key, cin, cout):
    return {"conv": init_recomb(key, cin, cout)}


def init_up(key, down_in, cin, cout):
    k = jax.random.split(key, 3)
    return {"att": init_att(k[0], cout, cout, cout // 2),
            "conv": init_recomb(k[1], cin + down_in, cout),
            "conv2": init_recomb(k[2], down_in, cout)}


def init_unet(key, in_channels, fn, class_num):
    keys = jax.random.split(key, 11)
    return {
        "inc": _init_conv(keys[0], in_channels, 16, 1),
        "down1": init_down(keys[1], 16, fn[0]),
        "down2": init_down(keys[2], fn[0], fn[1]),
        "down3": init_down(keys[3], fn[1], fn[2]),
        "down4": init_down(keys[4], fn[2], fn[3]),
        "bridge": init_recomb(keys[5], fn[3], fn[4]),
        "up1": init_up(keys[6], fn[4], fn[3], fn[3]),
        "up2": init_up(keys[7], fn[3], fn[2], fn[2]),
        "up3": init_up(keys[8], fn[2], fn[1], fn[1]),
        "up4": init_up(keys[9], fn[1], fn[0], fn[0]),
        "class": _init_conv(keys[10], fn[0], class_num, 1),
    }


# --------------------------------------------------------------------------
# Forward passes (mirroring the PyTorch modules), NHWC / bf16 internal layout
# --------------------------------------------------------------------------
def recomb_forward(p, x):
    # TODO(synk): fusing the whole RecombinationBlock into a single pallas_call
    # (pltpu.emit_pipeline over its layers, all intermediates in VMEM) would
    # remove several launch overheads at these small shapes; not done here.
    # expansion + skip share the same input -> one merged wide 1x1 GEMM
    out, skip = conv1x1_multi(x, [p["expansion"], p["skip"]])
    out = batchnorm_train(out, p["bn_gamma"], p["bn_beta"])
    out = relu6(out)
    out = conv2d(out, p["norm"]["w"], p["norm"]["b"], padding=1)
    # SegSEBlock (sigmoid fused into the 1x1 GEMM epilogue)
    se = conv2d(out, p["segse_dila"]["w"], p["segse_dila"]["b"],
                padding=2, dilation=2)
    se = conv2d(se, p["segse_conv1"]["w"], p["segse_conv1"]["b"],
                activation="sigmoid")
    out = out * se
    # zoom 1x1 conv with the residual (+skip) fused into the GEMM epilogue
    return conv2d(out, p["zoom"]["w"], p["zoom"]["b"], residual=skip)


def singleconv_forward(p, x):
    # TODO(synk): reference SingleConv uses nn.Conv3d on a 4-D NCHW tensor
    # (which errors in PyTorch 2D mode); implemented here as the pointwise
    # 1x1 conv (bias=False) + GroupNorm equivalent.
    y = conv2d(x, p["conv"]["w"], None)
    cout = p["gn_gamma"].shape[-1]
    groups = 8 if cout >= 8 else 1           # static, derived from shape
    return groupnorm(y, p["gn_gamma"], p["gn_beta"], groups)


def att_forward(p, g, x):
    g1 = singleconv_forward(p["wg"], g)
    x1 = singleconv_forward(p["wx"], x)
    psi = jnp.maximum(g1 + x1, 0.0)
    psi = singleconv_forward(p["psi"], psi)
    psi = jax.nn.sigmoid(psi.astype(jnp.float32)).astype(jnp.bfloat16)
    return x * psi


def down_forward(p, x):
    x = recomb_forward(p["conv"], x)
    return x, maxpool2(x)


def up_forward(p, down_x, x):
    up_x = upsample_bilinear_2x(down_x)
    x = jnp.concatenate([up_x, x], axis=-1)
    x = recomb_forward(p["conv"], x)
    g = recomb_forward(p["conv2"], up_x)
    return att_forward(p["att"], g, x)


def unet_forward(p, x_nchw):
    # NCHW -> NHWC once; all internal compute is channel-last (lane-dense)
    x = jnp.transpose(x_nchw, (0, 2, 3, 1)).astype(jnp.bfloat16)
    x = conv2d(x, p["inc"]["w"], p["inc"]["b"])
    c1, x = down_forward(p["down1"], x)
    c2, x = down_forward(p["down2"], x)
    c3, x = down_forward(p["down3"], x)
    c4, x = down_forward(p["down4"], x)
    x = recomb_forward(p["bridge"], x)
    x = up_forward(p["up1"], x, c4)
    x = up_forward(p["up2"], x, c3)
    x = up_forward(p["up3"], x, c2)
    x = up_forward(p["up4"], x, c1)
    x = conv2d(x, p["class"]["w"], p["class"]["b"])
    x = jax.nn.softmax(x.astype(jnp.float32), axis=-1)   # channel softmax, f32
    return jnp.transpose(x, (0, 3, 1, 2))                # back to NCHW


# --------------------------------------------------------------------------
if __name__ == "__main__":
    key = jax.random.PRNGKey(0)
    k_param, k_input = jax.random.split(key)

    in_channels = 4
    class_num = 4
    filter_num_list = [16, 32, 32, 64, 64]
    x = jax.random.normal(k_input, (2, in_channels, 16, 16), jnp.float32)

    params = init_unet(k_param, in_channels, filter_num_list, class_num)
    fwd = jax.jit(unet_forward)
    out = fwd(params, x)
    out = jax.block_until_ready(out)

    assert out.shape == (2, class_num, 16, 16), out.shape
    assert out.dtype == jnp.float32
    # softmax over channel dim sums to 1
    assert jnp.allclose(out.sum(axis=1), 1.0, atol=1e-4)
    print("KERNEL_OK")
</pallas_src>

<mosaic_0001>
module attributes {stable_mosaic.version = 11 : i64} {
  func.func @_gemm_kernel(%arg0: i32, %arg1: i32, %arg2: i32, %arg3: memref<256x128xbf16, #tpu.memory_space<vmem>>, %arg4: memref<128x128xbf16, #tpu.memory_space<vmem>>, %arg5: memref<1x128xf32, #tpu.memory_space<vmem>>, %arg6: memref<256x128xbf16, #tpu.memory_space<vmem>>) attributes {dimension_semantics = [#tpu.dimension_semantics<parallel>, #tpu.dimension_semantics<parallel>, #tpu.dimension_semantics<arbitrary>], iteration_bounds = array<i64: 2, 1, 1>, scalar_prefetch = 0 : i64, scratch_operands = 0 : i64, tpu.core_type = #tpu.core_type<tc>, window_params = [{transform_indices = @transform_0, window_bounds = array<i64: 256, 128>}, {transform_indices = @transform_1, window_bounds = array<i64: 128, 128>}, {transform_indices = @transform_2, window_bounds = array<i64: 1, 128>}, {transform_indices = @transform_3, window_bounds = array<i64: 256, 128>}]} {
    %c0 = arith.constant 0 : index
    %c0_0 = arith.constant 0 : index
    %0 = vector.load %arg3[%c0, %c0_0] : memref<256x128xbf16, #tpu.memory_space<vmem>>, vector<256x128xbf16>
    %c0_1 = arith.constant 0 : index
    %c0_2 = arith.constant 0 : index
    %1 = vector.load %arg4[%c0_1, %c0_2] : memref<128x128xbf16, #tpu.memory_space<vmem>>, vector<128x128xbf16>
    %cst = arith.constant dense<0.000000e+00> : vector<256x128xf32>
    %2 = tpu.matmul %0, %1, %cst {dimension_numbers = #tpu.dot_dimension_numbers<[1], [0], [0], [1], [0, 0, 1, 1], [], []>} : vector<256x128xbf16>, vector<128x128xbf16>, vector<256x128xf32> -> vector<256x128xf32>
    %c0_3 = arith.constant 0 : index
    %c0_4 = arith.constant 0 : index
    %3 = vector.load %arg5[%c0_3, %c0_4] : memref<1x128xf32, #tpu.memory_space<vmem>>, vector<1x128xf32>
    %4 = vector.broadcast %3 : vector<1x128xf32> to vector<256x128xf32>
    %5 = arith.addf %2, %4 : vector<256x128xf32>
    %6 = arith.truncf %5 : vector<256x128xf32> to vector<256x128xbf16>
    %c0_5 = arith.constant 0 : index
    %c0_6 = arith.constant 0 : index
    %7 = vector.load %arg6[%c0_5, %c0_6] : memref<256x128xbf16, #tpu.memory_space<vmem>>, vector<256x128xbf16>
    tpu.vector_store %arg6[%c0_5, %c0_6], %6 {strides = array<i32>} : memref<256x128xbf16, #tpu.memory_space<vmem>>, vector<256x128xbf16>,
    return
  }
  func.func @transform_0(%arg0: i32, %arg1: i32, %arg2: i32) -> (i32, i32) {
    %c0_i32 = arith.constant 0 : i32
    return %arg0, %arg2 : i32, i32
  }
  func.func @transform_1(%arg0: i32, %arg1: i32, %arg2: i32) -> (i32, i32) {
    %c0_i32 = arith.constant 0 : i32
    return %arg2, %arg1 : i32, i32
  }
  func.func @transform_2(%arg0: i32, %arg1: i32, %arg2: i32) -> (i32, i32) {
    %c0_i32 = arith.constant 0 : i32
    %c0_i32_0 = arith.constant 0 : i32
    return %c0_i32, %arg1 : i32, i32
  }
  func.func @transform_3(%arg0: i32, %arg1: i32, %arg2: i32) -> (i32, i32) {
    %c0_i32 = arith.constant 0 : i32
    return %arg0, %arg1 : i32, i32
  }
}

module attributes {stable_mosaic.version = 11 : i64} {
  func.func @_gemm_kernel(%arg0: i32, %arg1: i32, %arg2: i32, %arg3: memref<256x384xbf16, #tpu.memory_space<vmem>>, %arg4: memref<384x128xbf16, #tpu.memory_space<vmem>>, %arg5: memref<1x128xf32, #tpu.memory_space<vmem>>, %arg6: memref<256x128xbf16, #tpu.memory_space<vmem>>) attributes {dimension_semantics = [#tpu.dimension_semantics<parallel>, #tpu.dimension_semantics<parallel>, #tpu.dimension_semantics<arbitrary>], iteration_bounds = array<i64: 2, 1, 1>, scalar_prefetch = 0 : i64, scratch_operands = 0 : i64, tpu.core_type = #tpu.core_type<tc>, window_params = [{transform_indices = @transform_0, window_bounds = array<i64: 256, 384>}, {transform_indices = @transform_1, window_bounds = array<i64: 384, 128>}, {transform_indices = @transform_2, window_bounds = array<i64: 1, 128>}, {transform_indices = @transform_3, window_bounds = array<i64: 256, 128>}]} {
    %c0 = arith.constant 0 : index
    %c0_0 = arith.constant 0 : index
    %0 = vector.load %arg3[%c0, %c0_0] : memref<256x384xbf16, #tpu.memory_space<vmem>>, vector<256x384xbf16>
    %c0_1 = arith.constant 0 : index
    %c0_2 = arith.constant 0 : index
    %1 = vector.load %arg4[%c0_1, %c0_2] : memref<384x128xbf16, #tpu.memory_space<vmem>>, vector<384x128xbf16>
    %cst = arith.constant dense<0.000000e+00> : vector<256x128xf32>
    %2 = tpu.matmul %0, %1, %cst {dimension_numbers = #tpu.dot_dimension_numbers<[1], [0], [0], [1], [0, 0, 1, 1], [], []>} : vector<256x384xbf16>, vector<384x128xbf16>, vector<256x128xf32> -> vector<256x128xf32>
    %c0_3 = arith.constant 0 : index
    %c0_4 = arith.constant 0 : index
    %3 = vector.load %arg5[%c0_3, %c0_4] : memref<1x128xf32, #tpu.memory_space<vmem>>, vector<1x128xf32>
    %4 = vector.broadcast %3 : vector<1x128xf32> to vector<256x128xf32>
    %5 = arith.addf %2, %4 : vector<256x128xf32>
    %6 = arith.truncf %5 : vector<256x128xf32> to vector<256x128xbf16>
    %c0_5 = arith.constant 0 : index
    %c0_6 = arith.constant 0 : index
    %7 = vector.load %arg6[%c0_5, %c0_6] : memref<256x128xbf16, #tpu.memory_space<vmem>>, vector<256x128xbf16>
    tpu.vector_store %arg6[%c0_5, %c0_6], %6 {strides = array<i32>} : memref<256x128xbf16, #tpu.memory_space<vmem>>, vector<256x128xbf16>,
    return
  }
  func.func @transform_0(%arg0: i32, %arg1: i32, %arg2: i32) -> (i32, i32) {
    %c0_i32 = arith.constant 0 : i32
    return %arg0, %arg2 : i32, i32
  }
  func.func @transform_1(%arg0: i32, %arg1: i32, %arg2: i32) -> (i32, i32) {
    %c0_i32 = arith.constant 0 : i32
    return %arg2, %arg1 : i32, i32
  }
  func.func @transform_2(%arg0: i32, %arg1: i32, %arg2: i32) -> (i32, i32) {
    %c0_i32 = arith.constant 0 : i32
    %c0_i32_0 = arith.constant 0 : i32
    return %c0_i32, %arg1 : i32, i32
  }
  func.func @transform_3(%arg0: i32, %arg1: i32, %arg2: i32) -> (i32, i32) {
    %c0_i32 = arith.constant 0 : i32
    return %arg0, %arg1 : i32, i32
  }
}

module attributes {stable_mosaic.version = 11 : i64} {
  func.func @_gemm_kernel(%arg0: i32, %arg1: i32, %arg2: i32, %arg3: memref<256x128xbf16, #tpu.memory_space<vmem>>, %arg4: memref<128x128xbf16, #tpu.memory_space<vmem>>, %arg5: memref<1x128xf32, #tpu.memory_space<vmem>>, %arg6: memref<256x128xbf16, #tpu.memory_space<vmem>>) attributes {dimension_semantics = [#tpu.dimension_semantics<parallel>, #tpu.dimension_semantics<parallel>, #tpu.dimension_semantics<arbitrary>], iteration_bounds = array<i64: 2, 1, 1>, scalar_prefetch = 0 : i64, scratch_operands = 0 : i64, tpu.core_type = #tpu.core_type<tc>, window_params = [{transform_indices = @transform_0, window_bounds = array<i64: 256, 128>}, {transform_indices = @transform_1, window_bounds = array<i64: 128, 128>}, {transform_indices = @transform_2, window_bounds = array<i64: 1, 128>}, {transform_indices = @transform_3, window_bounds = array<i64: 256, 128>}]} {
    %c0 = arith.constant 0 : index
    %c0_0 = arith.constant 0 : index
    %0 = vector.load %arg3[%c0, %c0_0] : memref<256x128xbf16, #tpu.memory_space<vmem>>, vector<256x128xbf16>
    %c0_1 = arith.constant 0 : index
    %c0_2 = arith.constant 0 : index
    %1 = vector.load %arg4[%c0_1, %c0_2] : memref<128x128xbf16, #tpu.memory_space<vmem>>, vector<128x128xbf16>
    %cst = arith.constant dense<0.000000e+00> : vector<256x128xf32>
    %2 = tpu.matmul %0, %1, %cst {dimension_numbers = #tpu.dot_dimension_numbers<[1], [0], [0], [1], [0, 0, 1, 1], [], []>} : vector<256x128xbf16>, vector<128x128xbf16>, vector<256x128xf32> -> vector<256x128xf32>
    %c0_3 = arith.constant 0 : index
    %c0_4 = arith.constant 0 : index
    %3 = vector.load %arg5[%c0_3, %c0_4] : memref<1x128xf32, #tpu.memory_space<vmem>>, vector<1x128xf32>
    %4 = vector.broadcast %3 : vector<1x128xf32> to vector<256x128xf32>
    %5 = arith.addf %2, %4 : vector<256x128xf32>
    %6 = arith.negf %5 : vector<256x128xf32>
    %7 = math.exp %6 : vector<256x128xf32>
    %cst_5 = arith.constant 1.000000e+00 : f32
    %8 = vector.broadcast %cst_5 : f32 to vector<256x128xf32>
    %9 = arith.addf %8, %7 : vector<256x128xf32>
    %10 = arith.divf %8, %9 : vector<256x128xf32>
    %11 = arith.truncf %10 : vector<256x128xf32> to vector<256x128xbf16>
    %c0_6 = arith.constant 0 : index
    %c0_7 = arith.constant 0 : index
    %12 = vector.load %arg6[%c0_6, %c0_7] : memref<256x128xbf16, #tpu.memory_space<vmem>>, vector<256x128xbf16>
    tpu.vector_store %arg6[%c0_6, %c0_7], %11 {strides = array<i32>} : memref<256x128xbf16, #tpu.memory_space<vmem>>, vector<256x128xbf16>,
    return
  }
  func.func @transform_0(%arg0: i32, %arg1: i32, %arg2: i32) -> (i32, i32) {
    %c0_i32 = arith.constant 0 : i32
    return %arg0, %arg2 : i32, i32
  }
  func.func @transform_1(%arg0: i32, %arg1: i32, %arg2: i32) -> (i32, i32) {
    %c0_i32 = arith.constant 0 : i32
    return %arg2, %arg1 : i32, i32
  }
  func.func @transform_2(%arg0: i32, %arg1: i32, %arg2: i32) -> (i32, i32) {
    %c0_i32 = arith.constant 0 : i32
    %c0_i32_0 = arith.constant 0 : i32
    return %c0_i32, %arg1 : i32, i32
  }
  func.func @transform_3(%arg0: i32, %arg1: i32, %arg2: i32) -> (i32, i32) {
    %c0_i32 = arith.constant 0 : i32
    return %arg0, %arg1 : i32, i32
  }
}

module attributes {stable_mosaic.version = 11 : i64} {
  func.func @_gemm_kernel(%arg0: i32, %arg1: i32, %arg2: i32, %arg3: memref<256x128xbf16, #tpu.memory_space<vmem>>, %arg4: memref<128x128xbf16, #tpu.memory_space<vmem>>, %arg5: memref<1x128xf32, #tpu.memory_space<vmem>>, %arg6: memref<256x128xbf16, #tpu.memory_space<vmem>>, %arg7: memref<256x128xbf16, #tpu.memory_space<vmem>>) attributes {dimension_semantics = [#tpu.dimension_semantics<parallel>, #tpu.dimension_semantics<parallel>, #tpu.dimension_semantics<arbitrary>], iteration_bounds = array<i64: 2, 1, 1>, scalar_prefetch = 0 : i64, scratch_operands = 0 : i64, tpu.core_type = #tpu.core_type<tc>, window_params = [{transform_indices = @transform_0, window_bounds = array<i64: 256, 128>}, {transform_indices = @transform_1, window_bounds = array<i64: 128, 128>}, {transform_indices = @transform_2, window_bounds = array<i64: 1, 128>}, {transform_indices = @transform_3, window_bounds = array<i64: 256, 128>}, {transform_indices = @transform_4, window_bounds = array<i64: 256, 128>}]} {
    %c0 = arith.constant 0 : index
    %c0_0 = arith.constant 0 : index
    %0 = vector.load %arg3[%c0, %c0_0] : memref<256x128xbf16, #tpu.memory_space<vmem>>, vector<256x128xbf16>
    %c0_1 = arith.constant 0 : index
    %c0_2 = arith.constant 0 : index
    %1 = vector.load %arg4[%c0_1, %c0_2] : memref<128x128xbf16, #tpu.memory_space<vmem>>, vector<128x128xbf16>
    %cst = arith.constant dense<0.000000e+00> : vector<256x128xf32>
    %2 = tpu.matmul %0, %1, %cst {dimension_numbers = #tpu.dot_dimension_numbers<[1], [0], [0], [1], [0, 0, 1, 1], [], []>} : vector<256x128xbf16>, vector<128x128xbf16>, vector<256x128xf32> -> vector<256x128xf32>
    %c0_3 = arith.constant 0 : index
    %c0_4 = arith.constant 0 : index
    %3 = vector.load %arg5[%c0_3, %c0_4] : memref<1x128xf32, #tpu.memory_space<vmem>>, vector<1x128xf32>
    %4 = vector.broadcast %3 : vector<1x128xf32> to vector<256x128xf32>
    %5 = arith.addf %2, %4 : vector<256x128xf32>
    %c0_5 = arith.constant 0 : index
    %c0_6 = arith.constant 0 : index
    %6 = vector.load %arg6[%c0_5, %c0_6] : memref<256x128xbf16, #tpu.memory_space<vmem>>, vector<256x128xbf16>
    %7 = arith.extf %6 : vector<256x128xbf16> to vector<256x128xf32>
    %8 = arith.addf %5, %7 : vector<256x128xf32>
    %9 = arith.truncf %8 : vector<256x128xf32> to vector<256x128xbf16>
    %c0_7 = arith.constant 0 : index
    %c0_8 = arith.constant 0 : index
    %10 = vector.load %arg7[%c0_7, %c0_8] : memref<256x128xbf16, #tpu.memory_space<vmem>>, vector<256x128xbf16>
    tpu.vector_store %arg7[%c0_7, %c0_8], %9 {strides = array<i32>} : memref<256x128xbf16, #tpu.memory_space<vmem>>, vector<256x128xbf16>,
    return
  }
  func.func @transform_0(%arg0: i32, %arg1: i32, %arg2: i32) -> (i32, i32) {
    %c0_i32 = arith.constant 0 : i32
    return %arg0, %arg2 : i32, i32
  }
  func.func @transform_1(%arg0: i32, %arg1: i32, %arg2: i32) -> (i32, i32) {
    %c0_i32 = arith.constant 0 : i32
    return %arg2, %arg1 : i32, i32
  }
  func.func @transform_2(%arg0: i32, %arg1: i32, %arg2: i32) -> (i32, i32) {
    %c0_i32 = arith.constant 0 : i32
    %c0_i32_0 = arith.constant 0 : i32
    return %c0_i32, %arg1 : i32, i32
  }
  func.func @transform_3(%arg0: i32, %arg1: i32, %arg2: i32) -> (i32, i32) {
    %c0_i32 = arith.constant 0 : i32
    return %arg0, %arg1 : i32, i32
  }
  func.func @transform_4(%arg0: i32, %arg1: i32, %arg2: i32) -> (i32, i32) {
    %c0_i32 = arith.constant 0 : i32
    return %arg0, %arg1 : i32, i32
  }
}

module attributes {stable_mosaic.version = 11 : i64} {
  func.func @_gemm_kernel(%arg0: i32, %arg1: i32, %arg2: i32, %arg3: memref<64x128xbf16, #tpu.memory_space<vmem>>, %arg4: memref<128x128xbf16, #tpu.memory_space<vmem>>, %arg5: memref<1x128xf32, #tpu.memory_space<vmem>>, %arg6: memref<64x128xbf16, #tpu.memory_space<vmem>>) attributes {dimension_semantics = [#tpu.dimension_semantics<parallel>, #tpu.dimension_semantics<parallel>, #tpu.dimension_semantics<arbitrary>], iteration_bounds = array<i64: 2, 1, 1>, scalar_prefetch = 0 : i64, scratch_operands = 0 : i64, tpu.core_type = #tpu.core_type<tc>, window_params = [{transform_indices = @transform_0, window_bounds = array<i64: 64, 128>}, {transform_indices = @transform_1, window_bounds = array<i64: 128, 128>}, {transform_indices = @transform_2, window_bounds = array<i64: 1, 128>}, {transform_indices = @transform_3, window_bounds = array<i64: 64, 128>}]} {
    %c0 = arith.constant 0 : index
    %c0_0 = arith.constant 0 : index
    %0 = vector.load %arg3[%c0, %c0_0] : memref<64x128xbf16, #tpu.memory_space<vmem>>, vector<64x128xbf16>
    %c0_1 = arith.constant 0 : index
    %c0_2 = arith.constant 0 : index
    %1 = vector.load %arg4[%c0_1, %c0_2] : memref<128x128xbf16, #tpu.memory_space<vmem>>, vector<128x128xbf16>
    %cst = arith.constant dense<0.000000e+00> : vector<64x128xf32>
    %2 = tpu.matmul %0, %1, %cst {dimension_numbers = #tpu.dot_dimension_numbers<[1], [0], [0], [1], [0, 0, 1, 1], [], []>} : vector<64x128xbf16>, vector<128x128xbf16>, vector<64x128xf32> -> vector<64x128xf32>
    %c0_3 = arith.constant 0 : index
    %c0_4 = arith.constant 0 : index
    %3 = vector.load %arg5[%c0_3, %c0_4] : memref<1x128xf32, #tpu.memory_space<vmem>>, vector<1x128xf32>
    %4 = vector.broadcast %3 : vector<1x128xf32> to vector<64x128xf32>
    %5 = arith.addf %2, %4 : vector<64x128xf32>
    %6 = arith.truncf %5 : vector<64x128xf32> to vector<64x128xbf16>
    %c0_5 = arith.constant 0 : index
    %c0_6 = arith.constant 0 : index
    %7 = vector.load %arg6[%c0_5, %c0_6] : memref<64x128xbf16, #tpu.memory_space<vmem>>, vector<64x128xbf16>
    tpu.vector_store %arg6[%c0_5, %c0_6], %6 {strides = array<i32>} : memref<64x128xbf16, #tpu.memory_space<vmem>>, vector<64x128xbf16>,
    return
  }
  func.func @transform_0(%arg0: i32, %arg1: i32, %arg2: i32) -> (i32, i32) {
    %c0_i32 = arith.constant 0 : i32
    return %arg0, %arg2 : i32, i32
  }
  func.func @transform_1(%arg0: i32, %arg1: i32, %arg2: i32) -> (i32, i32) {
    %c0_i32 = arith.constant 0 : i32
    return %arg2, %arg1 : i32, i32
  }
  func.func @transform_2(%arg0: i32, %arg1: i32, %arg2: i32) -> (i32, i32) {
    %c0_i32 = arith.constant 0 : i32
    %c0_i32_0 = arith.constant 0 : i32
    return %c0_i32, %arg1 : i32, i32
  }
  func.func @transform_3(%arg0: i32, %arg1: i32, %arg2: i32) -> (i32, i32) {
    %c0_i32 = arith.constant 0 : i32
    return %arg0, %arg1 : i32, i32
  }
}

module attributes {stable_mosaic.version = 11 : i64} {
  func.func @_gemm_kernel(%arg0: i32, %arg1: i32, %arg2: i32, %arg3: memref<64x640xbf16, #tpu.memory_space<vmem>>, %arg4: memref<640x128xbf16, #tpu.memory_space<vmem>>, %arg5: memref<1x128xf32, #tpu.memory_space<vmem>>, %arg6: memref<64x128xbf16, #tpu.memory_space<vmem>>) attributes {dimension_semantics = [#tpu.dimension_semantics<parallel>, #tpu.dimension_semantics<parallel>, #tpu.dimension_semantics<arbitrary>], iteration_bounds = array<i64: 2, 1, 1>, scalar_prefetch = 0 : i64, scratch_operands = 0 : i64, tpu.core_type = #tpu.core_type<tc>, window_params = [{transform_indices = @transform_0, window_bounds = array<i64: 64, 640>}, {transform_indices = @transform_1, window_bounds = array<i64: 640, 128>}, {transform_indices = @transform_2, window_bounds = array<i64: 1, 128>}, {transform_indices = @transform_3, window_bounds = array<i64: 64, 128>}]} {
    %c0 = arith.constant 0 : index
    %c0_0 = arith.constant 0 : index
    %0 = vector.load %arg3[%c0, %c0_0] : memref<64x640xbf16, #tpu.memory_space<vmem>>, vector<64x640xbf16>
    %c0_1 = arith.constant 0 : index
    %c0_2 = arith.constant 0 : index
    %1 = vector.load %arg4[%c0_1, %c0_2] : memref<640x128xbf16, #tpu.memory_space<vmem>>, vector<640x128xbf16>
    %cst = arith.constant dense<0.000000e+00> : vector<64x128xf32>
    %2 = tpu.matmul %0, %1, %cst {dimension_numbers = #tpu.dot_dimension_numbers<[1], [0], [0], [1], [0, 0, 1, 1], [], []>} : vector<64x640xbf16>, vector<640x128xbf16>, vector<64x128xf32> -> vector<64x128xf32>
    %c0_3 = arith.constant 0 : index
    %c0_4 = arith.constant 0 : index
    %3 = vector.load %arg5[%c0_3, %c0_4] : memref<1x128xf32, #tpu.memory_space<vmem>>, vector<1x128xf32>
    %4 = vector.broadcast %3 : vector<1x128xf32> to vector<64x128xf32>
    %5 = arith.addf %2, %4 : vector<64x128xf32>
    %6 = arith.truncf %5 : vector<64x128xf32> to vector<64x128xbf16>
    %c0_5 = arith.constant 0 : index
    %c0_6 = arith.constant 0 : index
    %7 = vector.load %arg6[%c0_5, %c0_6] : memref<64x128xbf16, #tpu.memory_space<vmem>>, vector<64x128xbf16>
    tpu.vector_store %arg6[%c0_5, %c0_6], %6 {strides = array<i32>} : memref<64x128xbf16, #tpu.memory_space<vmem>>, vector<64x128xbf16>,
    return
  }
  func.func @transform_0(%arg0: i32, %arg1: i32, %arg2: i32) -> (i32, i32) {
    %c0_i32 = arith.constant 0 : i32
    return %arg0, %arg2 : i32, i32
  }
  func.func @transform_1(%arg0: i32, %arg1: i32, %arg2: i32) -> (i32, i32) {
    %c0_i32 = arith.constant 0 : i32
    return %arg2, %arg1 : i32, i32
  }
  func.func @transform_2(%arg0: i32, %arg1: i32, %arg2: i32) -> (i32, i32) {
    %c0_i32 = arith.constant 0 : i32
    %c0_i32_0 = arith.constant 0 : i32
    return %c0_i32, %arg1 : i32, i32
  }
  func.func @transform_3(%arg0: i32, %arg1: i32, %arg2: i32) -> (i32, i32) {
    %c0_i32 = arith.constant 0 : i32
    return %arg0, %arg1 : i32, i32
  }
}

module attributes {stable_mosaic.version = 11 : i64} {
  func.func @_gemm_kernel(%arg0: i32, %arg1: i32, %arg2: i32, %arg3: memref<64x128xbf16, #tpu.memory_space<vmem>>, %arg4: memref<128x128xbf16, #tpu.memory_space<vmem>>, %arg5: memref<1x128xf32, #tpu.memory_space<vmem>>, %arg6: memref<64x128xbf16, #tpu.memory_space<vmem>>) attributes {dimension_semantics = [#tpu.dimension_semantics<parallel>, #tpu.dimension_semantics<parallel>, #tpu.dimension_semantics<arbitrary>], iteration_bounds = array<i64: 2, 1, 1>, scalar_prefetch = 0 : i64, scratch_operands = 0 : i64, tpu.core_type = #tpu.core_type<tc>, window_params = [{transform_indices = @transform_0, window_bounds = array<i64: 64, 128>}, {transform_indices = @transform_1, window_bounds = array<i64: 128, 128>}, {transform_indices = @transform_2, window_bounds = array<i64: 1, 128>}, {transform_indices = @transform_3, window_bounds = array<i64: 64, 128>}]} {
    %c0 = arith.constant 0 : index
    %c0_0 = arith.constant 0 : index
    %0 = vector.load %arg3[%c0, %c0_0] : memref<64x128xbf16, #tpu.memory_space<vmem>>, vector<64x128xbf16>
    %c0_1 = arith.constant 0 : index
    %c0_2 = arith.constant 0 : index
    %1 = vector.load %arg4[%c0_1, %c0_2] : memref<128x128xbf16, #tpu.memory_space<vmem>>, vector<128x128xbf16>
    %cst = arith.constant dense<0.000000e+00> : vector<64x128xf32>
    %2 = tpu.matmul %0, %1, %cst {dimension_numbers = #tpu.dot_dimension_numbers<[1], [0], [0], [1], [0, 0, 1, 1], [], []>} : vector<64x128xbf16>, vector<128x128xbf16>, vector<64x128xf32> -> vector<64x128xf32>
    %c0_3 = arith.constant 0 : index
    %c0_4 = arith.constant 0 : index
    %3 = vector.load %arg5[%c0_3, %c0_4] : memref<1x128xf32, #tpu.memory_space<vmem>>, vector<1x128xf32>
    %4 = vector.broadcast %3 : vector<1x128xf32> to vector<64x128xf32>
    %5 = arith.addf %2, %4 : vector<64x128xf32>
    %6 = arith.negf %5 : vector<64x128xf32>
    %7 = math.exp %6 : vector<64x128xf32>
    %cst_5 = arith.constant 1.000000e+00 : f32
    %8 = vector.broadcast %cst_5 : f32 to vector<64x128xf32>
    %9 = arith.addf %8, %7 : vector<64x128xf32>
    %10 = arith.divf %8, %9 : vector<64x128xf32>
    %11 = arith.truncf %10 : vector<64x128xf32> to vector<64x128xbf16>
    %c0_6 = arith.constant 0 : index
    %c0_7 = arith.constant 0 : index
    %12 = vector.load %arg6[%c0_6, %c0_7] : memref<64x128xbf16, #tpu.memory_space<vmem>>, vector<64x128xbf16>
    tpu.vector_store %arg6[%c0_6, %c0_7], %11 {strides = array<i32>} : memref<64x128xbf16, #tpu.memory_space<vmem>>, vector<64x128xbf16>,
    return
  }
  func.func @transform_0(%arg0: i32, %arg1: i32, %arg2: i32) -> (i32, i32) {
    %c0_i32 = arith.constant 0 : i32
    return %arg0, %arg2 : i32, i32
  }
  func.func @transform_1(%arg0: i32, %arg1: i32, %arg2: i32) -> (i32, i32) {
    %c0_i32 = arith.constant 0 : i32
    return %arg2, %arg1 : i32, i32
  }
  func.func @transform_2(%arg0: i32, %arg1: i32, %arg2: i32) -> (i32, i32) {
    %c0_i32 = arith.constant 0 : i32
    %c0_i32_0 = arith.constant 0 : i32
    return %c0_i32, %arg1 : i32, i32
  }
  func.func @transform_3(%arg0: i32, %arg1: i32, %arg2: i32) -> (i32, i32) {
    %c0_i32 = arith.constant 0 : i32
    return %arg0, %arg1 : i32, i32
  }
}

module attributes {stable_mosaic.version = 11 : i64} {
  func.func @_gemm_kernel(%arg0: i32, %arg1: i32, %arg2: i32, %arg3: memref<64x128xbf16, #tpu.memory_space<vmem>>, %arg4: memref<128x128xbf16, #tpu.memory_space<vmem>>, %arg5: memref<1x128xf32, #tpu.memory_space<vmem>>, %arg6: memref<64x128xbf16, #tpu.memory_space<vmem>>, %arg7: memref<64x128xbf16, #tpu.memory_space<vmem>>) attributes {dimension_semantics = [#tpu.dimension_semantics<parallel>, #tpu.dimension_semantics<parallel>, #tpu.dimension_semantics<arbitrary>], iteration_bounds = array<i64: 2, 1, 1>, scalar_prefetch = 0 : i64, scratch_operands = 0 : i64, tpu.core_type = #tpu.core_type<tc>, window_params = [{transform_indices = @transform_0, window_bounds = array<i64: 64, 128>}, {transform_indices = @transform_1, window_bounds = array<i64: 128, 128>}, {transform_indices = @transform_2, window_bounds = array<i64: 1, 128>}, {transform_indices = @transform_3, window_bounds = array<i64: 64, 128>}, {transform_indices = @transform_4, window_bounds = array<i64: 64, 128>}]} {
    %c0 = arith.constant 0 : index
    %c0_0 = arith.constant 0 : index
    %0 = vector.load %arg3[%c0, %c0_0] : memref<64x128xbf16, #tpu.memory_space<vmem>>, vector<64x128xbf16>
    %c0_1 = arith.constant 0 : index
    %c0_2 = arith.constant 0 : index
    %1 = vector.load %arg4[%c0_1, %c0_2] : memref<128x128xbf16, #tpu.memory_space<vmem>>, vector<128x128xbf16>
    %cst = arith.constant dense<0.000000e+00> : vector<64x128xf32>
    %2 = tpu.matmul %0, %1, %cst {dimension_numbers = #tpu.dot_dimension_numbers<[1], [0], [0], [1], [0, 0, 1, 1], [], []>} : vector<64x128xbf16>, vector<128x128xbf16>, vector<64x128xf32> -> vector<64x128xf32>
    %c0_3 = arith.constant 0 : index
    %c0_4 = arith.constant 0 : index
    %3 = vector.load %arg5[%c0_3, %c0_4] : memref<1x128xf32, #tpu.memory_space<vmem>>, vector<1x128xf32>
    %4 = vector.broadcast %3 : vector<1x128xf32> to vector<64x128xf32>
    %5 = arith.addf %2, %4 : vector<64x128xf32>
    %c0_5 = arith.constant 0 : index
    %c0_6 = arith.constant 0 : index
    %6 = vector.load %arg6[%c0_5, %c0_6] : memref<64x128xbf16, #tpu.memory_space<vmem>>, vector<64x128xbf16>
    %7 = arith.extf %6 : vector<64x128xbf16> to vector<64x128xf32>
    %8 = arith.addf %5, %7 : vector<64x128xf32>
    %9 = arith.truncf %8 : vector<64x128xf32> to vector<64x128xbf16>
    %c0_7 = arith.constant 0 : index
    %c0_8 = arith.constant 0 : index
    %10 = vector.load %arg7[%c0_7, %c0_8] : memref<64x128xbf16, #tpu.memory_space<vmem>>, vector<64x128xbf16>
    tpu.vector_store %arg7[%c0_7, %c0_8], %9 {strides = array<i32>} : memref<64x128xbf16, #tpu.memory_space<vmem>>, vector<64x128xbf16>,
    return
  }
  func.func @transform_0(%arg0: i32, %arg1: i32, %arg2: i32) -> (i32, i32) {
    %c0_i32 = arith.constant 0 : i32
    return %arg0, %arg2 : i32, i32
  }
  func.func @transform_1(%arg0: i32, %arg1: i32, %arg2: i32) -> (i32, i32) {
    %c0_i32 = arith.constant 0 : i32
    return %arg2, %arg1 : i32, i32
  }
  func.func @transform_2(%arg0: i32, %arg1: i32, %arg2: i32) -> (i32, i32) {
    %c0_i32 = arith.constant 0 : i32
    %c0_i32_0 = arith.constant 0 : i32
    return %c0_i32, %arg1 : i32, i32
  }
  func.func @transform_3(%arg0: i32, %arg1: i32, %arg2: i32) -> (i32, i32) {
    %c0_i32 = arith.constant 0 : i32
    return %arg0, %arg1 : i32, i32
  }
  func.func @transform_4(%arg0: i32, %arg1: i32, %arg2: i32) -> (i32, i32) {
    %c0_i32 = arith.constant 0 : i32
    return %arg0, %arg1 : i32, i32
  }
}

module attributes {stable_mosaic.version = 11 : i64} {
  func.func @_gemm_kernel(%arg0: i32, %arg1: i32, %arg2: i32, %arg3: memref<16x128xbf16, #tpu.memory_space<vmem>>, %arg4: memref<128x128xbf16, #tpu.memory_space<vmem>>, %arg5: memref<1x128xf32, #tpu.memory_space<vmem>>, %arg6: memref<16x128xbf16, #tpu.memory_space<vmem>>) attributes {dimension_semantics = [#tpu.dimension_semantics<parallel>, #tpu.dimension_semantics<parallel>, #tpu.dimension_semantics<arbitrary>], iteration_bounds = array<i64: 2, 1, 1>, scalar_prefetch = 0 : i64, scratch_operands = 0 : i64, tpu.core_type = #tpu.core_type<tc>, window_params = [{transform_indices = @transform_0, window_bounds = array<i64: 16, 128>}, {transform_indices = @transform_1, window_bounds = array<i64: 128, 128>}, {transform_indices = @transform_2, window_bounds = array<i64: 1, 128>}, {transform_indices = @transform_3, window_bounds = array<i64: 16, 128>}]} {
    %c0 = arith.constant 0 : index
    %c0_0 = arith.constant 0 : index
    %0 = vector.load %arg3[%c0, %c0_0] : memref<16x128xbf16, #tpu.memory_space<vmem>>, vector<16x128xbf16>
    %c0_1 = arith.constant 0 : index
    %c0_2 = arith.constant 0 : index
    %1 = vector.load %arg4[%c0_1, %c0_2] : memref<128x128xbf16, #tpu.memory_space<vmem>>, vector<128x128xbf16>
    %cst = arith.constant dense<0.000000e+00> : vector<16x128xf32>
    %2 = tpu.matmul %0, %1, %cst {dimension_numbers = #tpu.dot_dimension_numbers<[1], [0], [0], [1], [0, 0, 1, 1], [], []>} : vector<16x128xbf16>, vector<128x128xbf16>, vector<16x128xf32> -> vector<16x128xf32>
    %c0_3 = arith.constant 0 : index
    %c0_4 = arith.constant 0 : index
    %3 = vector.load %arg5[%c0_3, %c0_4] : memref<1x128xf32, #tpu.memory_space<vmem>>, vector<1x128xf32>
    %4 = vector.broadcast %3 : vector<1x128xf32> to vector<16x128xf32>
    %5 = arith.addf %2, %4 : vector<16x128xf32>
    %6 = arith.truncf %5 : vector<16x128xf32> to vector<16x128xbf16>
    %c0_5 = arith.constant 0 : index
    %c0_6 = arith.constant 0 : index
    %7 = vector.load %arg6[%c0_5, %c0_6] : memref<16x128xbf16, #tpu.memory_space<vmem>>, vector<16x128xbf16>
    tpu.vector_store %arg6[%c0_5, %c0_6], %6 {strides = array<i32>} : memref<16x128xbf16, #tpu.memory_space<vmem>>, vector<16x128xbf16>,
    return
  }
  func.func @transform_0(%arg0: i32, %arg1: i32, %arg2: i32) -> (i32, i32) {
    %c0_i32 = arith.constant 0 : i32
    return %arg0, %arg2 : i32, i32
  }
  func.func @transform_1(%arg0: i32, %arg1: i32, %arg2: i32) -> (i32, i32) {
    %c0_i32 = arith.constant 0 : i32
    return %arg2, %arg1 : i32, i32
  }
  func.func @transform_2(%arg0: i32, %arg1: i32, %arg2: i32) -> (i32, i32) {
    %c0_i32 = arith.constant 0 : i32
    %c0_i32_0 = arith.constant 0 : i32
    return %c0_i32, %arg1 : i32, i32
  }
  func.func @transform_3(%arg0: i32, %arg1: i32, %arg2: i32) -> (i32, i32) {
    %c0_i32 = arith.constant 0 : i32
    return %arg0, %arg1 : i32, i32
  }
}

module attributes {stable_mosaic.version = 11 : i64} {
  func.func @_gemm_kernel(%arg0: i32, %arg1: i32, %arg2: i32, %arg3: memref<16x640xbf16, #tpu.memory_space<vmem>>, %arg4: memref<640x128xbf16, #tpu.memory_space<vmem>>, %arg5: memref<1x128xf32, #tpu.memory_space<vmem>>, %arg6: memref<16x128xbf16, #tpu.memory_space<vmem>>) attributes {dimension_semantics = [#tpu.dimension_semantics<parallel>, #tpu.dimension_semantics<parallel>, #tpu.dimension_semantics<arbitrary>], iteration_bounds = array<i64: 2, 1, 1>, scalar_prefetch = 0 : i64, scratch_operands = 0 : i64, tpu.core_type = #tpu.core_type<tc>, window_params = [{transform_indices = @transform_0, window_bounds = array<i64: 16, 640>}, {transform_indices = @transform_1, window_bounds = array<i64: 640, 128>}, {transform_indices = @transform_2, window_bounds = array<i64: 1, 128>}, {transform_indices = @transform_3, window_bounds = array<i64: 16, 128>}]} {
    %c0 = arith.constant 0 : index
    %c0_0 = arith.constant 0 : index
    %0 = vector.load %arg3[%c0, %c0_0] : memref<16x640xbf16, #tpu.memory_space<vmem>>, vector<16x640xbf16>
    %c0_1 = arith.constant 0 : index
    %c0_2 = arith.constant 0 : index
    %1 = vector.load %arg4[%c0_1, %c0_2] : memref<640x128xbf16, #tpu.memory_space<vmem>>, vector<640x128xbf16>
    %cst = arith.constant dense<0.000000e+00> : vector<16x128xf32>
    %2 = tpu.matmul %0, %1, %cst {dimension_numbers = #tpu.dot_dimension_numbers<[1], [0], [0], [1], [0, 0, 1, 1], [], []>} : vector<16x640xbf16>, vector<640x128xbf16>, vector<16x128xf32> -> vector<16x128xf32>
    %c0_3 = arith.constant 0 : index
    %c0_4 = arith.constant 0 : index
    %3 = vector.load %arg5[%c0_3, %c0_4] : memref<1x128xf32, #tpu.memory_space<vmem>>, vector<1x128xf32>
    %4 = vector.broadcast %3 : vector<1x128xf32> to vector<16x128xf32>
    %5 = arith.addf %2, %4 : vector<16x128xf32>
    %6 = arith.truncf %5 : vector<16x128xf32> to vector<16x128xbf16>
    %c0_5 = arith.constant 0 : index
    %c0_6 = arith.constant 0 : index
    %7 = vector.load %arg6[%c0_5, %c0_6] : memref<16x128xbf16, #tpu.memory_space<vmem>>, vector<16x128xbf16>
    tpu.vector_store %arg6[%c0_5, %c0_6], %6 {strides = array<i32>} : memref<16x128xbf16, #tpu.memory_space<vmem>>, vector<16x128xbf16>,
    return
  }
  func.func @transform_0(%arg0: i32, %arg1: i32, %arg2: i32) -> (i32, i32) {
    %c0_i32 = arith.constant 0 : i32
    return %arg0, %arg2 : i32, i32
  }
  func.func @transform_1(%arg0: i32, %arg1: i32, %arg2: i32) -> (i32, i32) {
    %c0_i32 = arith.constant 0 : i32
    return %arg2, %arg1 : i32, i32
  }
  func.func @transform_2(%arg0: i32, %arg1: i32, %arg2: i32) -> (i32, i32) {
    %c0_i32 = arith.constant 0 : i32
    %c0_i32_0 = arith.constant 0 : i32
    return %c0_i32, %arg1 : i32, i32
  }
  func.func @transform_3(%arg0: i32, %arg1: i32, %arg2: i32) -> (i32, i32) {
    %c0_i32 = arith.constant 0 : i32
    return %arg0, %arg1 : i32, i32
  }
}

module attributes {stable_mosaic.version = 11 : i64} {
  func.func @_gemm_kernel(%arg0: i32, %arg1: i32, %arg2: i32, %arg3: memref<16x128xbf16, #tpu.memory_space<vmem>>, %arg4: memref<128x128xbf16, #tpu.memory_space<vmem>>, %arg5: memref<1x128xf32, #tpu.memory_space<vmem>>, %arg6: memref<16x128xbf16, #tpu.memory_space<vmem>>) attributes {dimension_semantics = [#tpu.dimension_semantics<parallel>, #tpu.dimension_semantics<parallel>, #tpu.dimension_semantics<arbitrary>], iteration_bounds = array<i64: 2, 1, 1>, scalar_prefetch = 0 : i64, scratch_operands = 0 : i64, tpu.core_type = #tpu.core_type<tc>, window_params = [{transform_indices = @transform_0, window_bounds = array<i64: 16, 128>}, {transform_indices = @transform_1, window_bounds = array<i64: 128, 128>}, {transform_indices = @transform_2, window_bounds = array<i64: 1, 128>}, {transform_indices = @transform_3, window_bounds = array<i64: 16, 128>}]} {
    %c0 = arith.constant 0 : index
    %c0_0 = arith.constant 0 : index
    %0 = vector.load %arg3[%c0, %c0_0] : memref<16x128xbf16, #tpu.memory_space<vmem>>, vector<16x128xbf16>
    %c0_1 = arith.constant 0 : index
    %c0_2 = arith.constant 0 : index
    %1 = vector.load %arg4[%c0_1, %c0_2] : memref<128x128xbf16, #tpu.memory_space<vmem>>, vector<128x128xbf16>
    %cst = arith.constant dense<0.000000e+00> : vector<16x128xf32>
    %2 = tpu.matmul %0, %1, %cst {dimension_numbers = #tpu.dot_dimension_numbers<[1], [0], [0], [1], [0, 0, 1, 1], [], []>} : vector<16x128xbf16>, vector<128x128xbf16>, vector<16x128xf32> -> vector<16x128xf32>
    %c0_3 = arith.constant 0 : index
    %c0_4 = arith.constant 0 : index
    %3 = vector.load %arg5[%c0_3, %c0_4] : memref<1x128xf32, #tpu.memory_space<vmem>>, vector<1x128xf32>
    %4 = vector.broadcast %3 : vector<1x128xf32> to vector<16x128xf32>
    %5 = arith.addf %2, %4 : vector<16x128xf32>
    %6 = arith.negf %5 : vector<16x128xf32>
    %7 = math.exp %6 : vector<16x128xf32>
    %cst_5 = arith.constant 1.000000e+00 : f32
    %8 = vector.broadcast %cst_5 : f32 to vector<16x128xf32>
    %9 = arith.addf %8, %7 : vector<16x128xf32>
    %10 = arith.divf %8, %9 : vector<16x128xf32>
    %11 = arith.truncf %10 : vector<16x128xf32> to vector<16x128xbf16>
    %c0_6 = arith.constant 0 : index
    %c0_7 = arith.constant 0 : index
    %12 = vector.load %arg6[%c0_6, %c0_7] : memref<16x128xbf16, #tpu.memory_space<vmem>>, vector<16x128xbf16>
    tpu.vector_store %arg6[%c0_6, %c0_7], %11 {strides = array<i32>} : memref<16x128xbf16, #tpu.memory_space<vmem>>, vector<16x128xbf16>,
    return
  }
  func.func @transform_0(%arg0: i32, %arg1: i32, %arg2: i32) -> (i32, i32) {
    %c0_i32 = arith.constant 0 : i32
    return %arg0, %arg2 : i32, i32
  }
  func.func @transform_1(%arg0: i32, %arg1: i32, %arg2: i32) -> (i32, i32) {
    %c0_i32 = arith.constant 0 : i32
    return %arg2, %arg1 : i32, i32
  }
  func.func @transform_2(%arg0: i32, %arg1: i32, %arg2: i32) -> (i32, i32) {
    %c0_i32 = arith.constant 0 : i32
    %c0_i32_0 = arith.constant 0 : i32
    return %c0_i32, %arg1 : i32, i32
  }
  func.func @transform_3(%arg0: i32, %arg1: i32, %arg2: i32) -> (i32, i32) {
    %c0_i32 = arith.constant 0 : i32
    return %arg0, %arg1 : i32, i32
  }
}

module attributes {stable_mosaic.version = 11 : i64} {
  func.func @_gemm_kernel(%arg0: i32, %arg1: i32, %arg2: i32, %arg3: memref<16x128xbf16, #tpu.memory_space<vmem>>, %arg4: memref<128x128xbf16, #tpu.memory_space<vmem>>, %arg5: memref<1x128xf32, #tpu.memory_space<vmem>>, %arg6: memref<16x128xbf16, #tpu.memory_space<vmem>>, %arg7: memref<16x128xbf16, #tpu.memory_space<vmem>>) attributes {dimension_semantics = [#tpu.dimension_semantics<parallel>, #tpu.dimension_semantics<parallel>, #tpu.dimension_semantics<arbitrary>], iteration_bounds = array<i64: 2, 1, 1>, scalar_prefetch = 0 : i64, scratch_operands = 0 : i64, tpu.core_type = #tpu.core_type<tc>, window_params = [{transform_indices = @transform_0, window_bounds = array<i64: 16, 128>}, {transform_indices = @transform_1, window_bounds = array<i64: 128, 128>}, {transform_indices = @transform_2, window_bounds = array<i64: 1, 128>}, {transform_indices = @transform_3, window_bounds = array<i64: 16, 128>}, {transform_indices = @transform_4, window_bounds = array<i64: 16, 128>}]} {
    %c0 = arith.constant 0 : index
    %c0_0 = arith.constant 0 : index
    %0 = vector.load %arg3[%c0, %c0_0] : memref<16x128xbf16, #tpu.memory_space<vmem>>, vector<16x128xbf16>
    %c0_1 = arith.constant 0 : index
    %c0_2 = arith.constant 0 : index
    %1 = vector.load %arg4[%c0_1, %c0_2] : memref<128x128xbf16, #tpu.memory_space<vmem>>, vector<128x128xbf16>
    %cst = arith.constant dense<0.000000e+00> : vector<16x128xf32>
    %2 = tpu.matmul %0, %1, %cst {dimension_numbers = #tpu.dot_dimension_numbers<[1], [0], [0], [1], [0, 0, 1, 1], [], []>} : vector<16x128xbf16>, vector<128x128xbf16>, vector<16x128xf32> -> vector<16x128xf32>
    %c0_3 = arith.constant 0 : index
    %c0_4 = arith.constant 0 : index
    %3 = vector.load %arg5[%c0_3, %c0_4] : memref<1x128xf32, #tpu.memory_space<vmem>>, vector<1x128xf32>
    %4 = vector.broadcast %3 : vector<1x128xf32> to vector<16x128xf32>
    %5 = arith.addf %2, %4 : vector<16x128xf32>
    %c0_5 = arith.constant 0 : index
    %c0_6 = arith.constant 0 : index
    %6 = vector.load %arg6[%c0_5, %c0_6] : memref<16x128xbf16, #tpu.memory_space<vmem>>, vector<16x128xbf16>
    %7 = arith.extf %6 : vector<16x128xbf16> to vector<16x128xf32>
    %8 = arith.addf %5, %7 : vector<16x128xf32>
    %9 = arith.truncf %8 : vector<16x128xf32> to vector<16x128xbf16>
    %c0_7 = arith.constant 0 : index
    %c0_8 = arith.constant 0 : index
    %10 = vector.load %arg7[%c0_7, %c0_8] : memref<16x128xbf16, #tpu.memory_space<vmem>>, vector<16x128xbf16>
    tpu.vector_store %arg7[%c0_7, %c0_8], %9 {strides = array<i32>} : memref<16x128xbf16, #tpu.memory_space<vmem>>, vector<16x128xbf16>,
    return
  }
  func.func @transform_0(%arg0: i32, %arg1: i32, %arg2: i32) -> (i32, i32) {
    %c0_i32 = arith.constant 0 : i32
    return %arg0, %arg2 : i32, i32
  }
  func.func @transform_1(%arg0: i32, %arg1: i32, %arg2: i32) -> (i32, i32) {
    %c0_i32 = arith.constant 0 : i32
    return %arg2, %arg1 : i32, i32
  }
  func.func @transform_2(%arg0: i32, %arg1: i32, %arg2: i32) -> (i32, i32) {
    %c0_i32 = arith.constant 0 : i32
    %c0_i32_0 = arith.constant 0 : i32
    return %c0_i32, %arg1 : i32, i32
  }
  func.func @transform_3(%arg0: i32, %arg1: i32, %arg2: i32) -> (i32, i32) {
    %c0_i32 = arith.constant 0 : i32
    return %arg0, %arg1 : i32, i32
  }
  func.func @transform_4(%arg0: i32, %arg1: i32, %arg2: i32) -> (i32, i32) {
    %c0_i32 = arith.constant 0 : i32
    return %arg0, %arg1 : i32, i32
  }
}

module attributes {stable_mosaic.version = 11 : i64} {
  func.func @_gemm_kernel(%arg0: i32, %arg1: i32, %arg2: i32, %arg3: memref<16x128xbf16, #tpu.memory_space<vmem>>, %arg4: memref<128x256xbf16, #tpu.memory_space<vmem>>, %arg5: memref<1x256xf32, #tpu.memory_space<vmem>>, %arg6: memref<16x256xbf16, #tpu.memory_space<vmem>>) attributes {dimension_semantics = [#tpu.dimension_semantics<parallel>, #tpu.dimension_semantics<parallel>, #tpu.dimension_semantics<arbitrary>], iteration_bounds = array<i64: 1, 1, 1>, scalar_prefetch = 0 : i64, scratch_operands = 0 : i64, tpu.core_type = #tpu.core_type<tc>, window_params = [{transform_indices = @transform_0, window_bounds = array<i64: 16, 128>}, {transform_indices = @transform_1, window_bounds = array<i64: 128, 256>}, {transform_indices = @transform_2, window_bounds = array<i64: 1, 256>}, {transform_indices = @transform_3, window_bounds = array<i64: 16, 256>}]} {
    %c0 = arith.constant 0 : index
    %c0_0 = arith.constant 0 : index
    %0 = vector.load %arg3[%c0, %c0_0] : memref<16x128xbf16, #tpu.memory_space<vmem>>, vector<16x128xbf16>
    %c0_1 = arith.constant 0 : index
    %c0_2 = arith.constant 0 : index
    %1 = vector.load %arg4[%c0_1, %c0_2] : memref<128x256xbf16, #tpu.memory_space<vmem>>, vector<128x256xbf16>
    %cst = arith.constant dense<0.000000e+00> : vector<16x256xf32>
    %2 = tpu.matmul %0, %1, %cst {dimension_numbers = #tpu.dot_dimension_numbers<[1], [0], [0], [1], [0, 0, 1, 1], [], []>} : vector<16x128xbf16>, vector<128x256xbf16>, vector<16x256xf32> -> vector<16x256xf32>
    %c0_3 = arith.constant 0 : index
    %c0_4 = arith.constant 0 : index
    %3 = vector.load %arg5[%c0_3, %c0_4] : memref<1x256xf32, #tpu.memory_space<vmem>>, vector<1x256xf32>
    %4 = vector.broadcast %3 : vector<1x256xf32> to vector<16x256xf32>
    %5 = arith.addf %2, %4 : vector<16x256xf32>
    %6 = arith.truncf %5 : vector<16x256xf32> to vector<16x256xbf16>
    %c0_5 = arith.constant 0 : index
    %c0_6 = arith.constant 0 : index
    %7 = vector.load %arg6[%c0_5, %c0_6] : memref<16x256xbf16, #tpu.memory_space<vmem>>, vector<16x256xbf16>
    tpu.vector_store %arg6[%c0_5, %c0_6], %6 {strides = array<i32>} : memref<16x256xbf16, #tpu.memory_space<vmem>>, vector<16x256xbf16>,
    return
  }
  func.func @transform_0(%arg0: i32, %arg1: i32, %arg2: i32) -> (i32, i32) {
    %c0_i32 = arith.constant 0 : i32
    return %arg0, %arg2 : i32, i32
  }
  func.func @transform_1(%arg0: i32, %arg1: i32, %arg2: i32) -> (i32, i32) {
    %c0_i32 = arith.constant 0 : i32
    return %arg2, %arg1 : i32, i32
  }
  func.func @transform_2(%arg0: i32, %arg1: i32, %arg2: i32) -> (i32, i32) {
    %c0_i32 = arith.constant 0 : i32
    %c0_i32_0 = arith.constant 0 : i32
    return %c0_i32, %arg1 : i32, i32
  }
  func.func @transform_3(%arg0: i32, %arg1: i32, %arg2: i32) -> (i32, i32) {
    %c0_i32 = arith.constant 0 : i32
    return %arg0, %arg1 : i32, i32
  }
}

module attributes {stable_mosaic.version = 11 : i64} {
  func.func @_gemm_kernel(%arg0: i32, %arg1: i32, %arg2: i32, %arg3: memref<16x384xbf16, #tpu.memory_space<vmem>>, %arg4: memref<384x128xbf16, #tpu.memory_space<vmem>>, %arg5: memref<1x128xf32, #tpu.memory_space<vmem>>, %arg6: memref<16x128xbf16, #tpu.memory_space<vmem>>, %arg7: memref<16x128xf32, #tpu.memory_space<vmem>>) attributes {dimension_semantics = [#tpu.dimension_semantics<parallel>, #tpu.dimension_semantics<parallel>, #tpu.dimension_semantics<arbitrary>], iteration_bounds = array<i64: 1, 1, 3>, scalar_prefetch = 0 : i64, scratch_operands = 1 : i64, tpu.core_type = #tpu.core_type<tc>, window_params = [{transform_indices = @transform_0, window_bounds = array<i64: 16, 384>}, {transform_indices = @transform_1, window_bounds = array<i64: 384, 128>}, {transform_indices = @transform_2, window_bounds = array<i64: 1, 128>}, {transform_indices = @transform_3, window_bounds = array<i64: 16, 128>}]} {
    %c0_i32 = arith.constant 0 : i32
    %0 = arith.cmpi eq, %arg2, %c0_i32 : i32
    %1 = arith.extui %0 : i1 to i32
    %c0_i32_0 = arith.constant 0 : i32
    %2 = arith.cmpi ne, %1, %c0_i32_0 : i32
    scf.if %2 {
      %cst_9 = arith.constant 0.000000e+00 : f32
      %12 = vector.broadcast %cst_9 : f32 to vector<16x128xf32>
      %c0_10 = arith.constant 0 : index
      %c0_11 = arith.constant 0 : index
      %13 = vector.load %arg7[%c0_10, %c0_11] : memref<16x128xf32, #tpu.memory_space<vmem>>, vector<16x128xf32>
      tpu.vector_store %arg7[%c0_10, %c0_11], %12 {strides = array<i32>} : memref<16x128xf32, #tpu.memory_space<vmem>>, vector<16x128xf32>,
    } else {
    }
    %c0 = arith.constant 0 : index
    %c0_1 = arith.constant 0 : index
    %3 = vector.load %arg7[%c0, %c0_1] : memref<16x128xf32, #tpu.memory_space<vmem>>, vector<16x128xf32>
    %c0_2 = arith.constant 0 : index
    %c0_3 = arith.constant 0 : index
    %4 = vector.load %arg3[%c0_2, %c0_3] : memref<16x384xbf16, #tpu.memory_space<vmem>>, vector<16x384xbf16>
    %c0_4 = arith.constant 0 : index
    %c0_5 = arith.constant 0 : index
    %5 = vector.load %arg4[%c0_4, %c0_5] : memref<384x128xbf16, #tpu.memory_space<vmem>>, vector<384x128xbf16>
    %cst = arith.constant dense<0.000000e+00> : vector<16x128xf32>
    %6 = tpu.matmul %4, %5, %cst {dimension_numbers = #tpu.dot_dimension_numbers<[1], [0], [0], [1], [0, 0, 1, 1], [], []>} : vector<16x384xbf16>, vector<384x128xbf16>, vector<16x128xf32> -> vector<16x128xf32>
    %7 = arith.addf %3, %6 : vector<16x128xf32>
    %c0_6 = arith.constant 0 : index
    %c0_7 = arith.constant 0 : index
    %8 = vector.load %arg7[%c0_6, %c0_7] : memref<16x128xf32, #tpu.memory_space<vmem>>, vector<16x128xf32>
    tpu.vector_store %arg7[%c0_6, %c0_7], %7 {strides = array<i32>} : memref<16x128xf32, #tpu.memory_space<vmem>>, vector<16x128xf32>,
    %c2_i32 = arith.constant 2 : i32
    %9 = arith.cmpi eq, %arg2, %c2_i32 : i32
    %10 = arith.extui %9 : i1 to i32
    %c0_i32_8 = arith.constant 0 : i32
    %11 = arith.cmpi ne, %10, %c0_i32_8 : i32
    scf.if %11 {
      %c0_9 = arith.constant 0 : index
      %c0_10 = arith.constant 0 : index
      %12 = vector.load %arg7[%c0_9, %c0_10] : memref<16x128xf32, #tpu.memory_space<vmem>>, vector<16x128xf32>
      %c0_11 = arith.constant 0 : index
      %c0_12 = arith.constant 0 : index
      %13 = vector.load %arg5[%c0_11, %c0_12] : memref<1x128xf32, #tpu.memory_space<vmem>>, vector<1x128xf32>
      %14 = vector.broadcast %13 : vector<1x128xf32> to vector<16x128xf32>
      %15 = arith.addf %12, %14 : vector<16x128xf32>
      %16 = arith.truncf %15 : vector<16x128xf32> to vector<16x128xbf16>
      %c0_13 = arith.constant 0 : index
      %c0_14 = arith.constant 0 : index
      %17 = vector.load %arg6[%c0_13, %c0_14] : memref<16x128xbf16, #tpu.memory_space<vmem>>, vector<16x128xbf16>
      tpu.vector_store %arg6[%c0_13, %c0_14], %16 {strides = array<i32>} : memref<16x128xbf16, #tpu.memory_space<vmem>>, vector<16x128xbf16>,
    } else {
    }
    return
  }
  func.func @transform_0(%arg0: i32, %arg1: i32, %arg2: i32) -> (i32, i32) {
    %c0_i32 = arith.constant 0 : i32
    return %arg0, %arg2 : i32, i32
  }
  func.func @transform_1(%arg0: i32, %arg1: i32, %arg2: i32) -> (i32, i32) {
    %c0_i32 = arith.constant 0 : i32
    return %arg2, %arg1 : i32, i32
  }
  func.func @transform_2(%arg0: i32, %arg1: i32, %arg2: i32) -> (i32, i32) {
    %c0_i32 = arith.constant 0 : i32
    %c0_i32_0 = arith.constant 0 : i32
    return %c0_i32, %arg1 : i32, i32
  }
  func.func @transform_3(%arg0: i32, %arg1: i32, %arg2: i32) -> (i32, i32) {
    %c0_i32 = arith.constant 0 : i32
    return %arg0, %arg1 : i32, i32
  }
}

module attributes {stable_mosaic.version = 11 : i64} {
  func.func @_gemm_kernel(%arg0: i32, %arg1: i32, %arg2: i32, %arg3: memref<16x128xbf16, #tpu.memory_space<vmem>>, %arg4: memref<128x128xbf16, #tpu.memory_space<vmem>>, %arg5: memref<1x128xf32, #tpu.memory_space<vmem>>, %arg6: memref<16x128xbf16, #tpu.memory_space<vmem>>) attributes {dimension_semantics = [#tpu.dimension_semantics<parallel>, #tpu.dimension_semantics<parallel>, #tpu.dimension_semantics<arbitrary>], iteration_bounds = array<i64: 1, 1, 1>, scalar_prefetch = 0 : i64, scratch_operands = 0 : i64, tpu.core_type = #tpu.core_type<tc>, window_params = [{transform_indices = @transform_0, window_bounds = array<i64: 16, 128>}, {transform_indices = @transform_1, window_bounds = array<i64: 128, 128>}, {transform_indices = @transform_2, window_bounds = array<i64: 1, 128>}, {transform_indices = @transform_3, window_bounds = array<i64: 16, 128>}]} {
    %c0 = arith.constant 0 : index
    %c0_0 = arith.constant 0 : index
    %0 = vector.load %arg3[%c0, %c0_0] : memref<16x128xbf16, #tpu.memory_space<vmem>>, vector<16x128xbf16>
    %c0_1 = arith.constant 0 : index
    %c0_2 = arith.constant 0 : index
    %1 = vector.load %arg4[%c0_1, %c0_2] : memref<128x128xbf16, #tpu.memory_space<vmem>>, vector<128x128xbf16>
    %cst = arith.constant dense<0.000000e+00> : vector<16x128xf32>
    %2 = tpu.matmul %0, %1, %cst {dimension_numbers = #tpu.dot_dimension_numbers<[1], [0], [0], [1], [0, 0, 1, 1], [], []>} : vector<16x128xbf16>, vector<128x128xbf16>, vector<16x128xf32> -> vector<16x128xf32>
    %c0_3 = arith.constant 0 : index
    %c0_4 = arith.constant 0 : index
    %3 = vector.load %arg5[%c0_3, %c0_4] : memref<1x128xf32, #tpu.memory_space<vmem>>, vector<1x128xf32>
    %4 = vector.broadcast %3 : vector<1x128xf32> to vector<16x128xf32>
    %5 = arith.addf %2, %4 : vector<16x128xf32>
    %6 = arith.negf %5 : vector<16x128xf32>
    %7 = math.exp %6 : vector<16x128xf32>
    %cst_5 = arith.constant 1.000000e+00 : f32
    %8 = vector.broadcast %cst_5 : f32 to vector<16x128xf32>
    %9 = arith.addf %8, %7 : vector<16x128xf32>
    %10 = arith.divf %8, %9 : vector<16x128xf32>
    %11 = arith.truncf %10 : vector<16x128xf32> to vector<16x128xbf16>
    %c0_6 = arith.constant 0 : index
    %c0_7 = arith.constant 0 : index
    %12 = vector.load %arg6[%c0_6, %c0_7] : memref<16x128xbf16, #tpu.memory_space<vmem>>, vector<16x128xbf16>
    tpu.vector_store %arg6[%c0_6, %c0_7], %11 {strides = array<i32>} : memref<16x128xbf16, #tpu.memory_space<vmem>>, vector<16x128xbf16>,
    return
  }
  func.func @transform_0(%arg0: i32, %arg1: i32, %arg2: i32) -> (i32, i32) {
    %c0_i32 = arith.constant 0 : i32
    return %arg0, %arg2 : i32, i32
  }
  func.func @transform_1(%arg0: i32, %arg1: i32, %arg2: i32) -> (i32, i32) {
    %c0_i32 = arith.constant 0 : i32
    return %arg2, %arg1 : i32, i32
  }
  func.func @transform_2(%arg0: i32, %arg1: i32, %arg2: i32) -> (i32, i32) {
    %c0_i32 = arith.constant 0 : i32
    %c0_i32_0 = arith.constant 0 : i32
    return %c0_i32, %arg1 : i32, i32
  }
  func.func @transform_3(%arg0: i32, %arg1: i32, %arg2: i32) -> (i32, i32) {
    %c0_i32 = arith.constant 0 : i32
    return %arg0, %arg1 : i32, i32
  }
}

module attributes {stable_mosaic.version = 11 : i64} {
  func.func @_gemm_kernel(%arg0: i32, %arg1: i32, %arg2: i32, %arg3: memref<16x128xbf16, #tpu.memory_space<vmem>>, %arg4: memref<128x128xbf16, #tpu.memory_space<vmem>>, %arg5: memref<1x128xf32, #tpu.memory_space<vmem>>, %arg6: memref<16x128xbf16, #tpu.memory_space<vmem>>, %arg7: memref<16x128xbf16, #tpu.memory_space<vmem>>) attributes {dimension_semantics = [#tpu.dimension_semantics<parallel>, #tpu.dimension_semantics<parallel>, #tpu.dimension_semantics<arbitrary>], iteration_bounds = array<i64: 1, 1, 1>, scalar_prefetch = 0 : i64, scratch_operands = 0 : i64, tpu.core_type = #tpu.core_type<tc>, window_params = [{transform_indices = @transform_0, window_bounds = array<i64: 16, 128>}, {transform_indices = @transform_1, window_bounds = array<i64: 128, 128>}, {transform_indices = @transform_2, window_bounds = array<i64: 1, 128>}, {transform_indices = @transform_3, window_bounds = array<i64: 16, 128>}, {transform_indices = @transform_4, window_bounds = array<i64: 16, 128>}]} {
    %c0 = arith.constant 0 : index
    %c0_0 = arith.constant 0 : index
    %0 = vector.load %arg3[%c0, %c0_0] : memref<16x128xbf16, #tpu.memory_space<vmem>>, vector<16x128xbf16>
    %c0_1 = arith.constant 0 : index
    %c0_2 = arith.constant 0 : index
    %1 = vector.load %arg4[%c0_1, %c0_2] : memref<128x128xbf16, #tpu.memory_space<vmem>>, vector<128x128xbf16>
    %cst = arith.constant dense<0.000000e+00> : vector<16x128xf32>
    %2 = tpu.matmul %0, %1, %cst {dimension_numbers = #tpu.dot_dimension_numbers<[1], [0], [0], [1], [0, 0, 1, 1], [], []>} : vector<16x128xbf16>, vector<128x128xbf16>, vector<16x128xf32> -> vector<16x128xf32>
    %c0_3 = arith.constant 0 : index
    %c0_4 = arith.constant 0 : index
    %3 = vector.load %arg5[%c0_3, %c0_4] : memref<1x128xf32, #tpu.memory_space<vmem>>, vector<1x128xf32>
    %4 = vector.broadcast %3 : vector<1x128xf32> to vector<16x128xf32>
    %5 = arith.addf %2, %4 : vector<16x128xf32>
    %c0_5 = arith.constant 0 : index
    %c0_6 = arith.constant 0 : index
    %6 = vector.load %arg6[%c0_5, %c0_6] : memref<16x128xbf16, #tpu.memory_space<vmem>>, vector<16x128xbf16>
    %7 = arith.extf %6 : vector<16x128xbf16> to vector<16x128xf32>
    %8 = arith.addf %5, %7 : vector<16x128xf32>
    %9 = arith.truncf %8 : vector<16x128xf32> to vector<16x128xbf16>
    %c0_7 = arith.constant 0 : index
    %c0_8 = arith.constant 0 : index
    %10 = vector.load %arg7[%c0_7, %c0_8] : memref<16x128xbf16, #tpu.memory_space<vmem>>, vector<16x128xbf16>
    tpu.vector_store %arg7[%c0_7, %c0_8], %9 {strides = array<i32>} : memref<16x128xbf16, #tpu.memory_space<vmem>>, vector<16x128xbf16>,
    return
  }
  func.func @transform_0(%arg0: i32, %arg1: i32, %arg2: i32) -> (i32, i32) {
    %c0_i32 = arith.constant 0 : i32
    return %arg0, %arg2 : i32, i32
  }
  func.func @transform_1(%arg0: i32, %arg1: i32, %arg2: i32) -> (i32, i32) {
    %c0_i32 = arith.constant 0 : i32
    return %arg2, %arg1 : i32, i32
  }
  func.func @transform_2(%arg0: i32, %arg1: i32, %arg2: i32) -> (i32, i32) {
    %c0_i32 = arith.constant 0 : i32
    %c0_i32_0 = arith.constant 0 : i32
    return %c0_i32, %arg1 : i32, i32
  }
  func.func @transform_3(%arg0: i32, %arg1: i32, %arg2: i32) -> (i32, i32) {
    %c0_i32 = arith.constant 0 : i32
    return %arg0, %arg1 : i32, i32
  }
  func.func @transform_4(%arg0: i32, %arg1: i32, %arg2: i32) -> (i32, i32) {
    %c0_i32 = arith.constant 0 : i32
    return %arg0, %arg1 : i32, i32
  }
}

module attributes {stable_mosaic.version = 11 : i64} {
  func.func @_gemm_kernel(%arg0: i32, %arg1: i32, %arg2: i32, %arg3: memref<16x128xbf16, #tpu.memory_space<vmem>>, %arg4: memref<128x128xbf16, #tpu.memory_space<vmem>>, %arg5: memref<1x128xf32, #tpu.memory_space<vmem>>, %arg6: memref<16x128xbf16, #tpu.memory_space<vmem>>) attributes {dimension_semantics = [#tpu.dimension_semantics<parallel>, #tpu.dimension_semantics<parallel>, #tpu.dimension_semantics<arbitrary>], iteration_bounds = array<i64: 1, 1, 1>, scalar_prefetch = 0 : i64, scratch_operands = 0 : i64, tpu.core_type = #tpu.core_type<tc>, window_params = [{transform_indices = @transform_0, window_bounds = array<i64: 16, 128>}, {transform_indices = @transform_1, window_bounds = array<i64: 128, 128>}, {transform_indices = @transform_2, window_bounds = array<i64: 1, 128>}, {transform_indices = @transform_3, window_bounds = array<i64: 16, 128>}]} {
    %c0 = arith.constant 0 : index
    %c0_0 = arith.constant 0 : index
    %0 = vector.load %arg3[%c0, %c0_0] : memref<16x128xbf16, #tpu.memory_space<vmem>>, vector<16x128xbf16>
    %c0_1 = arith.constant 0 : index
    %c0_2 = arith.constant 0 : index
    %1 = vector.load %arg4[%c0_1, %c0_2] : memref<128x128xbf16, #tpu.memory_space<vmem>>, vector<128x128xbf16>
    %cst = arith.constant dense<0.000000e+00> : vector<16x128xf32>
    %2 = tpu.matmul %0, %1, %cst {dimension_numbers = #tpu.dot_dimension_numbers<[1], [0], [0], [1], [0, 0, 1, 1], [], []>} : vector<16x128xbf16>, vector<128x128xbf16>, vector<16x128xf32> -> vector<16x128xf32>
    %c0_3 = arith.constant 0 : index
    %c0_4 = arith.constant 0 : index
    %3 = vector.load %arg5[%c0_3, %c0_4] : memref<1x128xf32, #tpu.memory_space<vmem>>, vector<1x128xf32>
    %4 = vector.broadcast %3 : vector<1x128xf32> to vector<16x128xf32>
    %5 = arith.addf %2, %4 : vector<16x128xf32>
    %6 = arith.truncf %5 : vector<16x128xf32> to vector<16x128xbf16>
    %c0_5 = arith.constant 0 : index
    %c0_6 = arith.constant 0 : index
    %7 = vector.load %arg6[%c0_5, %c0_6] : memref<16x128xbf16, #tpu.memory_space<vmem>>, vector<16x128xbf16>
    tpu.vector_store %arg6[%c0_5, %c0_6], %6 {strides = array<i32>} : memref<16x128xbf16, #tpu.memory_space<vmem>>, vector<16x128xbf16>,
    return
  }
  func.func @transform_0(%arg0: i32, %arg1: i32, %arg2: i32) -> (i32, i32) {
    %c0_i32 = arith.constant 0 : i32
    return %arg0, %arg2 : i32, i32
  }
  func.func @transform_1(%arg0: i32, %arg1: i32, %arg2: i32) -> (i32, i32) {
    %c0_i32 = arith.constant 0 : i32
    return %arg2, %arg1 : i32, i32
  }
  func.func @transform_2(%arg0: i32, %arg1: i32, %arg2: i32) -> (i32, i32) {
    %c0_i32 = arith.constant 0 : i32
    %c0_i32_0 = arith.constant 0 : i32
    return %c0_i32, %arg1 : i32, i32
  }
  func.func @transform_3(%arg0: i32, %arg1: i32, %arg2: i32) -> (i32, i32) {
    %c0_i32 = arith.constant 0 : i32
    return %arg0, %arg1 : i32, i32
  }
}

</mosaic_0001>

<llo_original>
// kernel: unet_forward.79
$region0: #{unet_forward.79}
  #allocation0 [shape = 'u32[]', space=smem, size = 0x4, offset = 0x4, fixed_abs, tag = 'smem constant byte address 0x4 - core index']
  #allocation1 [shape = 'u32[72,128]{1,0:T(1,128)}', space=vmem, size = 0x9000, scoped, tag = 'internal scratch']
  %s0 = inlined_call_operand.vmem [shape: bf16[512,128], index: 0, kind: input, shape index: {}]
  %s1 = inlined_call_operand.vmem [shape: bf16[128,128], index: 1, kind: input, shape index: {}]
  %s2 = inlined_call_operand.vmem [shape: f32[1,128], index: 2, kind: input, shape index: {}]
  %s3 = inlined_call_operand.vmem [shape: bf16[512,128], index: 3, kind: output, shape index: {}]
  %s4 = sld [smem:[#allocation0]]
  $region45: #{unet_forward.79} parent=0
    _
  %s6 = ssub.s32 1, %s4
  %s7 = scalar_select 0, %s6, %s4
  loop: start=0, step=1, limit=4
  $region2: #{unet_forward.79} parent=0 // loop_pre_header
    _
  $region3: #{unet_forward.79} parent=0 // loop_header
    %s9 = sphi 0, %s13
    %p10 = scmp.ge.s32.totalorder %s9, 4
    %s16 = sphi 0, %s35
    %s17 = sphi 0, %s31
    %s18 = sphi 0, %s27
    %s19 = sphi 0, %s16
    %s20 = sphi 0, %s17
    %s21 = sphi 0, %s18
    %s22 = sphi 0, %s19
    %s23 = sphi 0, %s20
    %s24 = sphi 0, %s21
    %s40 = sphi 0, %s42
    %s43 = sphi 0, %s40
    %s44 = sphi 0, %s43
    %s60 = sphi 0, %s44
    %s68 = sphi 0, %s70
    %s71 = sphi 0, %s68
    %s72 = sphi 0, %s71
    %s88 = sphi 0, %s72
    %s94 = sphi 0, %s96
    %s97 = sphi 0, %s94
    %s98 = sphi 0, %s97
    %s114 = sphi 0, %s98
    %s122 = sphi 0, %s124
    %s125 = sphi 0, %s122
    %s126 = sphi 0, %s125
    %s142 = sphi 0, %s126
  $region4: #{unet_forward.79} parent=0 // loop_header_branch
    %12 = sbr.rel (%p10) target = $region8
  $region5: #{unet_forward.79} parent=0 // loop_body
    %s14 = ssub.s32 %s9, 1
    %s15 = ssub.s32 %s9, 2
    %s25 = sadd.s32 1, %s18
    %p26 = scmp.ge.s32.totalorder %s25, 1
    %s27 = scalar_select %p26, 0, %s25
    %s28 = sadd.s32 1, %s17
    %s29 = scalar_select %p26, %s28, %s17
    %p30 = scmp.ge.s32.totalorder %s29, 1
    %s31 = scalar_select %p30, 0, %s29
    %s32 = sadd.s32 1, %s16
    %s33 = scalar_select %p30, %s32, %s16
    %p34 = scmp.ge.s32.totalorder %s33, 2
    %s35 = scalar_select %p34, 0, %s33
    %s36 = ssub.s32 %s16, %s35
    %s37 = ssub.s32 %s18, %s27
    %s38 = sor.u32 %s36, %s37
    %p39 = scmp.eq.s32.totalorder %s38, 0
    %s41 = sadd.s32 %s40, 1
    %s42 = scalar_select %p39, %s40, %s41
    %p45 = pneg %p39
    %p46 = scmp.eq.s32.totalorder %s9, 1
    %p47 = por %p45, %p46
    %p48 = scmp.ne.s32.totalorder %s40, %s43
    %p49 = scmp.eq.s32.totalorder %s9, 0
    %p50 = por %p48, %p49
    %p51 = scmp.ne.s32.totalorder %s40, %s43
    %p52 = scmp.eq.s32.totalorder %s14, 1
    %p53 = por %p51, %p52
    %p54 = scmp.ne.s32.totalorder %s43, %s44
    %p55 = scmp.eq.s32.totalorder %s14, 0
    %p56 = por %p54, %p55
    %p57 = scmp.ne.s32.totalorder %s43, %s44
    %p58 = scmp.eq.s32.totalorder %s15, 1
    %p59 = por %p57, %p58
    %p61 = scmp.ne.s32.totalorder %s44, %s60
    %p62 = scmp.eq.s32.totalorder %s15, 0
    %p63 = por %p61, %p62
    %s64 = ssub.s32 %s18, %s27
    %s65 = ssub.s32 %s17, %s31
    %s66 = sor.u32 %s64, %s65
    %p67 = scmp.eq.s32.totalorder %s66, 0
    %s69 = sadd.s32 %s68, 1
    %s70 = scalar_select %p67, %s68, %s69
    %p73 = pneg %p67
    %p74 = scmp.eq.s32.totalorder %s9, 1
    %p75 = por %p73, %p74
    %p76 = scmp.ne.s32.totalorder %s68, %s71
    %p77 = scmp.eq.s32.totalorder %s9, 0
    %p78 = por %p76, %p77
    %p79 = scmp.ne.s32.totalorder %s68, %s71
    %p80 = scmp.eq.s32.totalorder %s14, 1
    %p81 = por %p79, %p80
    %p82 = scmp.ne.s32.totalorder %s71, %s72
    %p83 = scmp.eq.s32.totalorder %s14, 0
    %p84 = por %p82, %p83
    %p85 = scmp.ne.s32.totalorder %s71, %s72
    %p86 = scmp.eq.s32.totalorder %s15, 1
    %p87 = por %p85, %p86
    %p89 = scmp.ne.s32.totalorder %s72, %s88
    %p90 = scmp.eq.s32.totalorder %s15, 0
    %p91 = por %p89, %p90
    %s92 = ssub.s32 %s17, %s31
    %p93 = scmp.eq.s32.totalorder %s92, 0
    %s95 = sadd.s32 %s94, 1
    %s96 = scalar_select %p93, %s94, %s95
    %p99 = pneg %p93
    %p100 = scmp.eq.s32.totalorder %s9, 1
    %p101 = por %p99, %p100
    %p102 = scmp.ne.s32.totalorder %s94, %s97
    %p103 = scmp.eq.s32.totalorder %s9, 0
    %p104 = por %p102, %p103
    %p105 = scmp.ne.s32.totalorder %s94, %s97
    %p106 = scmp.eq.s32.totalorder %s14, 1
    %p107 = por %p105, %p106
    %p108 = scmp.ne.s32.totalorder %s97, %s98
    %p109 = scmp.eq.s32.totalorder %s14, 0
    %p110 = por %p108, %p109
    %p111 = scmp.ne.s32.totalorder %s97, %s98
    %p112 = scmp.eq.s32.totalorder %s15, 1
    %p113 = por %p111, %p112
    %p115 = scmp.ne.s32.totalorder %s98, %s114
    %p116 = scmp.eq.s32.totalorder %s15, 0
    %p117 = por %p115, %p116
    %s118 = ssub.s32 %s16, %s35
    %s119 = ssub.s32 %s17, %s31
    %s120 = sor.u32 %s118, %s119
    %p121 = scmp.eq.s32.totalorder %s120, 0
    %s123 = sadd.s32 %s122, 1
    %s124 = scalar_select %p121, %s122, %s123
    %p127 = pneg %p121
    %p128 = scmp.eq.s32.totalorder %s9, 1
    %p129 = por %p127, %p128
    %p130 = scmp.ne.s32.totalorder %s122, %s125
    %p131 = scmp.eq.s32.totalorder %s9, 0
    %p132 = por %p130, %p131
    %p133 = scmp.ne.s32.totalorder %s122, %s125
    %p134 = scmp.eq.s32.totalorder %s14, 1
    %p135 = por %p133, %p134
    %p136 = scmp.ne.s32.totalorder %s125, %s126
    %p137 = scmp.eq.s32.totalorder %s14, 0
    %p138 = por %p136, %p137
    %p139 = scmp.ne.s32.totalorder %s125, %s126
    %p140 = scmp.eq.s32.totalorder %s15, 1
    %p141 = por %p139, %p140
    %p143 = scmp.ne.s32.totalorder %s126, %s142
    %p144 = scmp.eq.s32.totalorder %s15, 0
    %p145 = por %p143, %p144
    %p146 = scmp.le.s32.totalorder 1, %s9
    %p147 = scmp.lt.s32.totalorder %s9, 3
    %p148 = pnand %p146, %p147
    %p149 = pneg %p148
    // Predicated region
    $region9: #{unet_forward.79} parent=5 // pred_check
      _
    $region10: #{unet_forward.79} parent=5 // pred_check_branch
      %151 = sbr.rel (%p148) target = $region12
    $region11: #{unet_forward.79} parent=5 // pred_region
      %s152 = ssub.s32 %s9, 1
      // Predicated region
      $region13: #{unet_forward.79} parent=11 // pred_check
        %p153 = pneg %p84
      $region14: #{unet_forward.79} parent=11 // pred_check_branch
        %155 = sbr.rel (%p153) target = $region16
      $region15: #{unet_forward.79} parent=11 // pred_region
        %s156 = smul.u32 16, %s21
        %p157 = scmp.lt.s32.totalorder %s156, 15
        %s158 = scalar_select %p157, %s156, 15
        %p159 = scmp.lt.s32.totalorder %s20, 0
        %s160 = scalar_select %p159, %s20, 0
        %s161 = sadd.s32 %s160, %s158
        %s162 = smul.addr %s161, 4
        %s163 = scalar_lea.vmem %s1, %s162
        %s164 = smul.u32 16, %s21
      $region16: #{unet_forward.79} parent=11 // pred_fallthru
        _
      // Predicated region
      $region17: #{unet_forward.79} parent=11 // pred_check
        %p165 = pneg %p110
      $region18: #{unet_forward.79} parent=11 // pred_check_branch
        %167 = sbr.rel (%p165) target = $region20
      $region19: #{unet_forward.79} parent=11 // pred_region
        %p168 = scmp.lt.s32.totalorder %s20, 0
        %s169 = scalar_select %p168, %s20, 0
        %s170 = scalar_lea.vmem %s2, %s169
      $region20: #{unet_forward.79} parent=11 // pred_fallthru
        _
    $region12: #{unet_forward.79} parent=5 // pred_fallthru
      _
    %p171 = scmp.lt.s32.totalorder %s9, 2
    // Predicated region
    $region21: #{unet_forward.79} parent=5 // pred_check
      %p172 = pneg %p171
    $region22: #{unet_forward.79} parent=5 // pred_check_branch
      %174 = sbr.rel (%p172) target = $region24
    $region23: #{unet_forward.79} parent=5 // pred_region
      // Predicated region
      $region25: #{unet_forward.79} parent=23 // pred_check
        %p175 = pneg %p50
      $region26: #{unet_forward.79} parent=23 // pred_check_branch
        %177 = sbr.rel (%p175) target = $region28
      $region27: #{unet_forward.79} parent=23 // pred_region
        %s178 = smul.u32 32, %s16
        %p179 = scmp.lt.s32.totalorder %s178, 63
        %s180 = scalar_select %p179, %s178, 63
        %p181 = scmp.lt.s32.totalorder %s18, 0
        %s182 = scalar_select %p181, %s18, 0
        %s183 = sadd.s32 %s182, %s180
        %s184 = smul.addr %s183, 4
        %s185 = scalar_lea.vmem %s0, %s184
        %s186 = smul.u32 32, %s16
      $region28: #{unet_forward.79} parent=23 // pred_fallthru
        _
    $region24: #{unet_forward.79} parent=5 // pred_fallthru
      _
    %p187 = scmp.le.s32.totalorder 1, %s9
    %p188 = scmp.lt.s32.totalorder %s9, 3
    %p189 = pnand %p187, %p188
    %p190 = pneg %p189
    // Predicated region
    $region29: #{unet_forward.79} parent=5 // pred_check
      _
    $region30: #{unet_forward.79} parent=5 // pred_check_branch
      %192 = sbr.rel (%p189) target = $region32
    $region31: #{unet_forward.79} parent=5 // pred_region
      %s193 = ssub.s32 %s9, 1
      %s194 = smul.u32 32, %s19
      %p195 = scmp.lt.s32.totalorder %s194, 63
      %s196 = scalar_select %p195, %s194, 63
      %p197 = scmp.lt.s32.totalorder %s21, 0
      %s198 = scalar_select %p197, %s21, 0
      %s199 = sadd.s32 %s198, %s196
      %s200 = smul.addr %s199, 4
      %s201 = scalar_lea.vmem %s0, %s200
      %p202 = pneg %p56
      %p203 = pneg %p53
      %s204 = smul.u32 16, %s21
      %p205 = scmp.lt.s32.totalorder %s204, 15
      %s206 = scalar_select %p205, %s204, 15
      %p207 = scmp.lt.s32.totalorder %s20, 0
      %s208 = scalar_select %p207, %s20, 0
      %s209 = sadd.s32 %s208, %s206
      %s210 = smul.addr %s209, 4
      %s211 = scalar_lea.vmem %s1, %s210
      %p212 = pneg %p84
      %p213 = pneg %p81
      %p214 = scmp.lt.s32.totalorder %s20, 0
      %s215 = scalar_select %p214, %s20, 0
      %s216 = scalar_lea.vmem %s2, %s215
      %p217 = pneg %p110
      %p218 = pneg %p107
      %p219 = pneg %p138
      %p220 = pneg %p135
      %s221 = smul.u32 32, %s19
      %p222 = scmp.lt.s32.totalorder %s221, 63
      %s223 = scalar_select %p222, %s221, 63
      %p224 = scmp.lt.s32.totalorder %s20, 0
      %s225 = scalar_select %p224, %s20, 0
      %s226 = sadd.s32 %s225, %s223
      %s227 = smul.addr %s226, 4
      %s228 = scalar_lea.vmem %s3, %s227
      %s229 = smul.u32 32, %s19
      %p230 = scmp.lt.s32.totalorder %s229, 63
      %s231 = scalar_select %p230, %s229, 63
      %p232 = scmp.lt.s32.totalorder %s21, 0
      %s233 = scalar_select %p232, %s21, 0
      %s234 = sadd.s32 %s233, %s231
      %s235 = smul.addr %s234, 4
      %s236 = scalar_lea.vmem %s0, %s235
      %s237 = smul.u32 32, %s19
      %s238 = smul.u32 16, %s21
      %p239 = scmp.lt.s32.totalorder %s238, 15
      %s240 = scalar_select %p239, %s238, 15
      %p241 = scmp.lt.s32.totalorder %s20, 0
      %s242 = scalar_select %p241, %s20, 0
      %s243 = sadd.s32 %s242, %s240
      %s244 = smul.addr %s243, 4
      %s245 = scalar_lea.vmem %s1, %s244
      %s246 = smul.u32 16, %s21
      %p247 = scmp.lt.s32.totalorder %s20, 0
      %s248 = scalar_select %p247, %s20, 0
      %s249 = scalar_lea.vmem %s2, %s248
      %s250 = smul.u32 32, %s19
      %p251 = scmp.lt.s32.totalorder %s250, 63
      %s252 = scalar_select %p251, %s250, 63
      %p253 = scmp.lt.s32.totalorder %s20, 0
      %s254 = scalar_select %p253, %s20, 0
      %s255 = sadd.s32 %s254, %s252
      %s256 = smul.addr %s255, 4
      %s257 = scalar_lea.vmem %s3, %s256
      %s258 = smul.u32 32, %s19
      %v259 = vld [vmem:[%s236] sm:$0xf]
      %v260 = vld [vmem:[%s236 + $0x4] sm:$0xf]
      %v261 = vld [vmem:[%s236 + $0x8] sm:$0xf]
      %v262 = vld [vmem:[%s236 + $0xc] sm:$0xf]
      %v263 = vld [vmem:[%s236 + $0x10] sm:$0xf]
      %v264 = vld [vmem:[%s236 + $0x14] sm:$0xf]
      %v265 = vld [vmem:[%s236 + $0x18] sm:$0xf]
      %v266 = vld [vmem:[%s236 + $0x1c] sm:$0xf]
      %v267 = vld [vmem:[%s236 + $0x20] sm:$0xf]
      %v268 = vld [vmem:[%s236 + $0x24] sm:$0xf]
      %v269 = vld [vmem:[%s236 + $0x28] sm:$0xf]
      %v270 = vld [vmem:[%s236 + $0x2c] sm:$0xf]
      %v271 = vld [vmem:[%s236 + $0x30] sm:$0xf]
      %v272 = vld [vmem:[%s236 + $0x34] sm:$0xf]
      %v273 = vld [vmem:[%s236 + $0x38] sm:$0xf]
      %v274 = vld [vmem:[%s236 + $0x3c] sm:$0xf]
      %v275 = vld [vmem:[%s236 + $0x40] sm:$0xf]
      %v276 = vld [vmem:[%s236 + $0x44] sm:$0xf]
      %v277 = vld [vmem:[%s236 + $0x48] sm:$0xf]
      %v278 = vld [vmem:[%s236 + $0x4c] sm:$0xf]
      %v279 = vld [vmem:[%s236 + $0x50] sm:$0xf]
      %v280 = vld [vmem:[%s236 + $0x54] sm:$0xf]
      %v281 = vld [vmem:[%s236 + $0x58] sm:$0xf]
      %v282 = vld [vmem:[%s236 + $0x5c] sm:$0xf]
      %v283 = vld [vmem:[%s236 + $0x60] sm:$0xf]
      %v284 = vld [vmem:[%s236 + $0x64] sm:$0xf]
      %v285 = vld [vmem:[%s236 + $0x68] sm:$0xf]
      %v286 = vld [vmem:[%s236 + $0x6c] sm:$0xf]
      %v287 = vld [vmem:[%s236 + $0x70] sm:$0xf]
      %v288 = vld [vmem:[%s236 + $0x74] sm:$0xf]
      %v289 = vld [vmem:[%s236 + $0x78] sm:$0xf]
      %v290 = vld [vmem:[%s236 + $0x7c] sm:$0xf]
      %v291 = vld [vmem:[%s245] sm:$0xf]
      %v292 = vld [vmem:[%s245 + $0x4] sm:$0xf]
      %v293 = vld [vmem:[%s245 + $0x8] sm:$0xf]
      %v294 = vld [vmem:[%s245 + $0xc] sm:$0xf]
      %v295 = vld [vmem:[%s245 + $0x10] sm:$0xf]
      %v296 = vld [vmem:[%s245 + $0x14] sm:$0xf]
      %v297 = vld [vmem:[%s245 + $0x18] sm:$0xf]
      %v298 = vld [vmem:[%s245 + $0x1c] sm:$0xf]
      %v299 = vld [vmem:[%s245 + $0x20] sm:$0xf]
      %v300 = vld [vmem:[%s245 + $0x24] sm:$0xf]
      %v301 = vld [vmem:[%s245 + $0x28] sm:$0xf]
      %v302 = vld [vmem:[%s245 + $0x2c] sm:$0xf]
      %v303 = vld [vmem:[%s245 + $0x30] sm:$0xf]
      %v304 = vld [vmem:[%s245 + $0x34] sm:$0xf]
      %v305 = vld [vmem:[%s245 + $0x38] sm:$0xf]
      %v306 = vld [vmem:[%s245 + $0x3c] sm:$0xf]
      %v307 = vld [vmem:[%s249] sm:$0x1]
      %v309 = vperm.slane %v307, 0
      %v343 = vunpack.c.l.b16 %v259
      %v344 = vunpack.c.l.b16 %v260
      %v345 = vunpack.c.l.b16 %v261
      %v346 = vunpack.c.l.b16 %v262
      %v347 = vunpack.c.l.b16 %v263
      %v348 = vunpack.c.l.b16 %v264
      %v349 = vunpack.c.l.b16 %v265
      %v350 = vunpack.c.l.b16 %v266
      %v351 = vunpack.c.l.b16 %v267
      %v352 = vunpack.c.l.b16 %v268
      %v353 = vunpack.c.l.b16 %v269
      %v354 = vunpack.c.l.b16 %v270
      %v355 = vunpack.c.l.b16 %v271
      %v356 = vunpack.c.l.b16 %v272
      %v357 = vunpack.c.l.b16 %v273
      %v358 = vunpack.c.l.b16 %v274
      %v359 = vunpack.c.l.b16 %v275
      %v360 = vunpack.c.l.b16 %v276
      %v361 = vunpack.c.l.b16 %v277
      %v362 = vunpack.c.l.b16 %v278
      %v363 = vunpack.c.l.b16 %v279
      %v364 = vunpack.c.l.b16 %v280
      %v365 = vunpack.c.l.b16 %v281
      %v366 = vunpack.c.l.b16 %v282
      %v367 = vunpack.c.l.b16 %v283
      %v368 = vunpack.c.l.b16 %v284
      %v369 = vunpack.c.l.b16 %v285
      %v370 = vunpack.c.l.b16 %v286
      %v371 = vunpack.c.l.b16 %v287
      %v372 = vunpack.c.l.b16 %v288
      %v373 = vunpack.c.l.b16 %v289
      %v374 = vunpack.c.l.b16 %v290
      %v375 = vpack.c.b16 %v344, %v343
      %v376 = vpack.c.b16 %v346, %v345
      %v377 = vpack.c.b16 %v348, %v347
      %v378 = vpack.c.b16 %v350, %v349
      %v379 = vpack.c.b16 %v352, %v351
      %v380 = vpack.c.b16 %v354, %v353
      %v381 = vpack.c.b16 %v356, %v355
      %v382 = vpack.c.b16 %v358, %v357
      %v383 = vpack.c.b16 %v360, %v359
      %v384 = vpack.c.b16 %v362, %v361
      %v385 = vpack.c.b16 %v364, %v363
      %v386 = vpack.c.b16 %v366, %v365
      %v387 = vpack.c.b16 %v368, %v367
      %v388 = vpack.c.b16 %v370, %v369
      %v389 = vpack.c.b16 %v372, %v371
      %v390 = vpack.c.b16 %v374, %v373
      %v423 = vunpack.c.l.b16 %v291
      %v424 = vunpack.c.l.b16 %v292
      %v425 = vunpack.c.l.b16 %v293
      %v426 = vunpack.c.l.b16 %v294
      %v427 = vunpack.c.l.b16 %v295
      %v428 = vunpack.c.l.b16 %v296
      %v429 = vunpack.c.l.b16 %v297
      %v430 = vunpack.c.l.b16 %v298
      %v431 = vunpack.c.l.b16 %v299
      %v432 = vunpack.c.l.b16 %v300
      %v433 = vunpack.c.l.b16 %v301
      %v434 = vunpack.c.l.b16 %v302
      %v435 = vunpack.c.l.b16 %v303
      %v436 = vunpack.c.l.b16 %v304
      %v437 = vunpack.c.l.b16 %v305
      %v438 = vunpack.c.l.b16 %v306
      %v439 = vpack.c.b16 %v424, %v423
      %v440 = vpack.c.b16 %v426, %v425
      %v441 = vpack.c.b16 %v428, %v427
      %v442 = vpack.c.b16 %v430, %v429
      %v443 = vpack.c.b16 %v432, %v431
      %v444 = vpack.c.b16 %v434, %v433
      %v445 = vpack.c.b16 %v436, %v435
      %v446 = vpack.c.b16 %v438, %v437
      %455 = vmatpush.bf16.msra.mxu0 %v446
      %456 = vmatpush.bf16.msra.mxu0 %v445
      %457 = vmatpush.bf16.msra.mxu0 %v444
      %458 = vmatpush.bf16.msra.mxu0 %v443
      %459 = vmatpush.bf16.msra.mxu0 %v442
      %460 = vmatpush.bf16.msra.mxu0 %v441
      %461 = vmatpush.bf16.msra.mxu0 %v440
      %462 = vmatpush.bf16.msra.mxu0 %v439
      %463 = vmatmul.bf16.gmra.mxu0 %v375
      %v464 = vpop.f32.mrf.mxu0
      %v465 = vadd.f32 %v309, %v464
      %v466 = vpop.f32.mrf.mxu0
      %v467 = vadd.f32 %v309, %v466
      %468 = vmatmul.bf16.gmra.mxu0 %v376
      %v469 = vpop.f32.mrf.mxu0
      %v470 = vadd.f32 %v309, %v469
      %v471 = vpop.f32.mrf.mxu0
      %v472 = vadd.f32 %v309, %v471
      %473 = vmatmul.bf16.gmra.mxu0 %v377
      %v474 = vpop.f32.mrf.mxu0
      %v475 = vadd.f32 %v309, %v474
      %v476 = vpop.f32.mrf.mxu0
      %v477 = vadd.f32 %v309, %v476
      %478 = vmatmul.bf16.gmra.mxu0 %v378
      %v479 = vpop.f32.mrf.mxu0
      %v480 = vadd.f32 %v309, %v479
      %v481 = vpop.f32.mrf.mxu0
      %v482 = vadd.f32 %v309, %v481
      %483 = vmatmul.bf16.gmra.mxu0 %v379
      %v484 = vpop.f32.mrf.mxu0
      %v485 = vadd.f32 %v309, %v484
      %v486 = vpop.f32.mrf.mxu0
      %v487 = vadd.f32 %v309, %v486
      %488 = vmatmul.bf16.gmra.mxu0 %v380
      %v489 = vpop.f32.mrf.mxu0
      %v490 = vadd.f32 %v309, %v489
      %v491 = vpop.f32.mrf.mxu0
      %v492 = vadd.f32 %v309, %v491
      %493 = vmatmul.bf16.gmra.mxu0 %v381
      %v494 = vpop.f32.mrf.mxu0
      %v495 = vadd.f32 %v309, %v494
      %v496 = vpop.f32.mrf.mxu0
      %v497 = vadd.f32 %v309, %v496
      %498 = vmatmul.bf16.gmra.mxu0 %v382
      %v499 = vpop.f32.mrf.mxu0
      %v500 = vadd.f32 %v309, %v499
      %v501 = vpop.f32.mrf.mxu0
      %v502 = vadd.f32 %v309, %v501
      %503 = vmatmul.bf16.gmra.mxu0 %v383
      %v504 = vpop.f32.mrf.mxu0
      %v505 = vadd.f32 %v309, %v504
      %v506 = vpop.f32.mrf.mxu0
      %v507 = vadd.f32 %v309, %v506
      %508 = vmatmul.bf16.gmra.mxu0 %v384
      %v509 = vpop.f32.mrf.mxu0
      %v510 = vadd.f32 %v309, %v509
      %v511 = vpop.f32.mrf.mxu0
      %v512 = vadd.f32 %v309, %v511
      %513 = vmatmul.bf16.gmra.mxu0 %v385
      %v514 = vpop.f32.mrf.mxu0
      %v515 = vadd.f32 %v309, %v514
      %v516 = vpop.f32.mrf.mxu0
      %v517 = vadd.f32 %v309, %v516
      %518 = vmatmul.bf16.gmra.mxu0 %v386
      %v519 = vpop.f32.mrf.mxu0
      %v520 = vadd.f32 %v309, %v519
      %v521 = vpop.f32.mrf.mxu0
      %v522 = vadd.f32 %v309, %v521
      %523 = vmatmul.bf16.gmra.mxu0 %v387
      %v524 = vpop.f32.mrf.mxu0
      %v525 = vadd.f32 %v309, %v524
      %v526 = vpop.f32.mrf.mxu0
      %v527 = vadd.f32 %v309, %v526
      %528 = vmatmul.bf16.gmra.mxu0 %v388
      %v529 = vpop.f32.mrf.mxu0
      %v530 = vadd.f32 %v309, %v529
      %v531 = vpop.f32.mrf.mxu0
      %v532 = vadd.f32 %v309, %v531
      %533 = vmatmul.bf16.gmra.mxu0 %v389
      %v534 = vpop.f32.mrf.mxu0
      %v535 = vadd.f32 %v309, %v534
      %v536 = vpop.f32.mrf.mxu0
      %v537 = vadd.f32 %v309, %v536
      %538 = vmatmul.bf16.gmra.mxu0 %v390
      %v539 = vpop.f32.mrf.mxu0
      %v540 = vadd.f32 %v309, %v539
      %v541 = vpop.f32.mrf.mxu0
      %v542 = vadd.f32 %v309, %v541
      %543 = vdwg.mxu0
      %v544 = vpack.c.bf16 %v465, %v465
      %v545 = vpack.c.bf16 %v467, %v467
      %v546 = vpack.c.bf16 %v470, %v470
      %v547 = vpack.c.bf16 %v472, %v472
      %v548 = vpack.c.bf16 %v475, %v475
      %v549 = vpack.c.bf16 %v477, %v477
      %v550 = vpack.c.bf16 %v480, %v480
      %v551 = vpack.c.bf16 %v482, %v482
      %v552 = vpack.c.bf16 %v485, %v485
      %v553 = vpack.c.bf16 %v487, %v487
      %v554 = vpack.c.bf16 %v490, %v490
      %v555 = vpack.c.bf16 %v492, %v492
      %v556 = vpack.c.bf16 %v495, %v495
      %v557 = vpack.c.bf16 %v497, %v497
      %v558 = vpack.c.bf16 %v500, %v500
      %v559 = vpack.c.bf16 %v502, %v502
      %v560 = vpack.c.bf16 %v505, %v505
      %v561 = vpack.c.bf16 %v507, %v507
      %v562 = vpack.c.bf16 %v510, %v510
      %v563 = vpack.c.bf16 %v512, %v512
      %v564 = vpack.c.bf16 %v515, %v515
      %v565 = vpack.c.bf16 %v517, %v517
      %v566 = vpack.c.bf16 %v520, %v520
      %v567 = vpack.c.bf16 %v522, %v522
      %v568 = vpack.c.bf16 %v525, %v525
      %v569 = vpack.c.bf16 %v527, %v527
      %v570 = vpack.c.bf16 %v530, %v530
      %v571 = vpack.c.bf16 %v532, %v532
      %v572 = vpack.c.bf16 %v535, %v535
      %v573 = vpack.c.bf16 %v537, %v537
      %v574 = vpack.c.bf16 %v540, %v540
      %v575 = vpack.c.bf16 %v542, %v542
      %576 = vst [vmem:[%s257] sm:$0xf] %v544
      %577 = vst [vmem:[%s257 + $0x4] sm:$0xf] %v545
      %578 = vst [vmem:[%s257 + $0x8] sm:$0xf] %v546
      %579 = vst [vmem:[%s257 + $0xc] sm:$0xf] %v547
      %580 = vst [vmem:[%s257 + $0x10] sm:$0xf] %v548
      %581 = vst [vmem:[%s257 + $0x14] sm:$0xf] %v549
      %582 = vst [vmem:[%s257 + $0x18] sm:$0xf] %v550
      %583 = vst [vmem:[%s257 + $0x1c] sm:$0xf] %v551
      %584 = vst [vmem:[%s257 + $0x20] sm:$0xf] %v552
      %585 = vst [vmem:[%s257 + $0x24] sm:$0xf] %v553
      %586 = vst [vmem:[%s257 + $0x28] sm:$0xf] %v554
      %587 = vst [vmem:[%s257 + $0x2c] sm:$0xf] %v555
      %588 = vst [vmem:[%s257 + $0x30] sm:$0xf] %v556
      %589 = vst [vmem:[%s257 + $0x34] sm:$0xf] %v557
      %590 = vst [vmem:[%s257 + $0x38] sm:$0xf] %v558
      %591 = vst [vmem:[%s257 + $0x3c] sm:$0xf] %v559
      %592 = vst [vmem:[%s257 + $0x40] sm:$0xf] %v560
      %593 = vst [vmem:[%s257 + $0x44] sm:$0xf] %v561
      %594 = vst [vmem:[%s257 + $0x48] sm:$0xf] %v562
      %595 = vst [vmem:[%s257 + $0x4c] sm:$0xf] %v563
      %596 = vst [vmem:[%s257 + $0x50] sm:$0xf] %v564
      %597 = vst [vmem:[%s257 + $0x54] sm:$0xf] %v565
      %598 = vst [vmem:[%s257 + $0x58] sm:$0xf] %v566
      %599 = vst [vmem:[%s257 + $0x5c] sm:$0xf] %v567
      %600 = vst [vmem:[%s257 + $0x60] sm:$0xf] %v568
      %601 = vst [vmem:[%s257 + $0x64] sm:$0xf] %v569
      %602 = vst [vmem:[%s257 + $0x68] sm:$0xf] %v570
      %603 = vst [vmem:[%s257 + $0x6c] sm:$0xf] %v571
      %604 = vst [vmem:[%s257 + $0x70] sm:$0xf] %v572
      %605 = vst [vmem:[%s257 + $0x74] sm:$0xf] %v573
      %606 = vst [vmem:[%s257 + $0x78] sm:$0xf] %v574
      %607 = vst [vmem:[%s257 + $0x7c] sm:$0xf] %v575
      %s608 = smul.u32 32, %s19
      %p609 = scmp.lt.s32.totalorder %s608, 63
      %s610 = scalar_select %p609, %s608, 63
      %p611 = scmp.lt.s32.totalorder %s20, 0
      %s612 = scalar_select %p611, %s20, 0
      %s613 = sadd.s32 %s612, %s610
      %s614 = smul.addr %s613, 4
      %s615 = scalar_lea.vmem %s3, %s614
      // Predicated region
      $region33: #{unet_forward.79} parent=31 // pred_check
        %p616 = pneg %p135
      $region34: #{unet_forward.79} parent=31 // pred_check_branch
        %618 = sbr.rel (%p616) target = $region36
      $region35: #{unet_forward.79} parent=31 // pred_region
        %s619 = smul.u32 32, %s19
      $region36: #{unet_forward.79} parent=31 // pred_fallthru
        _
    $region32: #{unet_forward.79} parent=5 // pred_fallthru
      _
    %p620 = scmp.le.s32.totalorder 2, %s9
    // Predicated region
    $region37: #{unet_forward.79} parent=5 // pred_check
      %p621 = pneg %p620
    $region38: #{unet_forward.79} parent=5 // pred_check_branch
      %623 = sbr.rel (%p621) target = $region40
    $region39: #{unet_forward.79} parent=5 // pred_region
      %s624 = ssub.s32 %s9, 2
      // Predicated region
      $region41: #{unet_forward.79} parent=39 // pred_check
        %p625 = pneg %p141
      $region42: #{unet_forward.79} parent=39 // pred_check_branch
        %627 = sbr.rel (%p625) target = $region44
      $region43: #{unet_forward.79} parent=39 // pred_region
        %s628 = smul.u32 32, %s22
        %p629 = scmp.lt.s32.totalorder %s628, 63
        %s630 = scalar_select %p629, %s628, 63
        %p631 = scmp.lt.s32.totalorder %s23, 0
        %s632 = scalar_select %p631, %s23, 0
        %s633 = sadd.s32 %s632, %s630
        %s634 = smul.addr %s633, 4
        %s635 = scalar_lea.vmem %s3, %s634
      $region44: #{unet_forward.79} parent=39 // pred_fallthru
        _
    $region40: #{unet_forward.79} parent=5 // pred_fallthru
      _
  $region6: #{unet_forward.79} parent=0 // loop_footer
    %s13 = sadd.s32 1, %s9
  $region7: #{unet_forward.79} parent=0 // loop_footer_branch
    %8 = sbr.rel target = $region3
  $region8: #{unet_forward.79} parent=0 // loop_exit
    _

// kernel: unet_forward.81
$region0: #{unet_forward.81}
  #allocation0 [shape = 'u32[]', space=smem, size = 0x4, offset = 0x4, fixed_abs, tag = 'smem constant byte address 0x4 - core index']
  #allocation1 [shape = 'u32[72,128]{1,0:T(1,128)}', space=vmem, size = 0x9000, scoped, tag = 'internal scratch']
  %s0 = inlined_call_operand.vmem [shape: bf16[512,384], index: 0, kind: input, shape index: {}]
  %s1 = inlined_call_operand.vmem [shape: bf16[384,128], index: 1, kind: input, shape index: {}]
  %s2 = inlined_call_operand.vmem [shape: f32[1,128], index: 2, kind: input, shape index: {}]
  %s3 = inlined_call_operand.vmem [shape: bf16[512,128], index: 3, kind: output, shape index: {}]
  %s4 = sld [smem:[#allocation0]]
  $region45: #{unet_forward.81} parent=0
    _
  %s6 = ssub.s32 1, %s4
  %s7 = scalar_select 0, %s6, %s4
  loop: start=0, step=1, limit=4
  $region2: #{unet_forward.81} parent=0 // loop_pre_header
    _
  $region3: #{unet_forward.81} parent=0 // loop_header
    %s9 = sphi 0, %s13
    %p10 = scmp.ge.s32.totalorder %s9, 4
    %s16 = sphi 0, %s35
    %s17 = sphi 0, %s31
    %s18 = sphi 0, %s27
    %s19 = sphi 0, %s16
    %s20 = sphi 0, %s17
    %s21 = sphi 0, %s18
    %s22 = sphi 0, %s19
    %s23 = sphi 0, %s20
    %s24 = sphi 0, %s21
    %s40 = sphi 0, %s42
    %s43 = sphi 0, %s40
    %s44 = sphi 0, %s43
    %s60 = sphi 0, %s44
    %s68 = sphi 0, %s70
    %s71 = sphi 0, %s68
    %s72 = sphi 0, %s71
    %s88 = sphi 0, %s72
    %s94 = sphi 0, %s96
    %s97 = sphi 0, %s94
    %s98 = sphi 0, %s97
    %s114 = sphi 0, %s98
    %s122 = sphi 0, %s124
    %s125 = sphi 0, %s122
    %s126 = sphi 0, %s125
    %s142 = sphi 0, %s126
  $region4: #{unet_forward.81} parent=0 // loop_header_branch
    %12 = sbr.rel (%p10) target = $region8
  $region5: #{unet_forward.81} parent=0 // loop_body
    %s14 = ssub.s32 %s9, 1
    %s15 = ssub.s32 %s9, 2
    %s25 = sadd.s32 1, %s18
    %p26 = scmp.ge.s32.totalorder %s25, 1
    %s27 = scalar_select %p26, 0, %s25
    %s28 = sadd.s32 1, %s17
    %s29 = scalar_select %p26, %s28, %s17
    %p30 = scmp.ge.s32.totalorder %s29, 1
    %s31 = scalar_select %p30, 0, %s29
    %s32 = sadd.s32 1, %s16
    %s33 = scalar_select %p30, %s32, %s16
    %p34 = scmp.ge.s32.totalorder %s33, 2
    %s35 = scalar_select %p34, 0, %s33
    %s36 = ssub.s32 %s16, %s35
    %s37 = ssub.s32 %s18, %s27
    %s38 = sor.u32 %s36, %s37
    %p39 = scmp.eq.s32.totalorder %s38, 0
    %s41 = sadd.s32 %s40, 1
    %s42 = scalar_select %p39, %s40, %s41
    %p45 = pneg %p39
    %p46 = scmp.eq.s32.totalorder %s9, 1
    %p47 = por %p45, %p46
    %p48 = scmp.ne.s32.totalorder %s40, %s43
    %p49 = scmp.eq.s32.totalorder %s9, 0
    %p50 = por %p48, %p49
    %p51 = scmp.ne.s32.totalorder %s40, %s43
    %p52 = scmp.eq.s32.totalorder %s14, 1
    %p53 = por %p51, %p52
    %p54 = scmp.ne.s32.totalorder %s43, %s44
    %p55 = scmp.eq.s32.totalorder %s14, 0
    %p56 = por %p54, %p55
    %p57 = scmp.ne.s32.totalorder %s43, %s44
    %p58 = scmp.eq.s32.totalorder %s15, 1
    %p59 = por %p57, %p58
    %p61 = scmp.ne.s32.totalorder %s44, %s60
    %p62 = scmp.eq.s32.totalorder %s15, 0
    %p63 = por %p61, %p62
    %s64 = ssub.s32 %s18, %s27
    %s65 = ssub.s32 %s17, %s31
    %s66 = sor.u32 %s64, %s65
    %p67 = scmp.eq.s32.totalorder %s66, 0
    %s69 = sadd.s32 %s68, 1
    %s70 = scalar_select %p67, %s68, %s69
    %p73 = pneg %p67
    %p74 = scmp.eq.s32.totalorder %s9, 1
    %p75 = por %p73, %p74
    %p76 = scmp.ne.s32.totalorder %s68, %s71
    %p77 = scmp.eq.s32.totalorder %s9, 0
    %p78 = por %p76, %p77
    %p79 = scmp.ne.s32.totalorder %s68, %s71
    %p80 = scmp.eq.s32.totalorder %s14, 1
    %p81 = por %p79, %p80
    %p82 = scmp.ne.s32.totalorder %s71, %s72
    %p83 = scmp.eq.s32.totalorder %s14, 0
    %p84 = por %p82, %p83
    %p85 = scmp.ne.s32.totalorder %s71, %s72
    %p86 = scmp.eq.s32.totalorder %s15, 1
    %p87 = por %p85, %p86
    %p89 = scmp.ne.s32.totalorder %s72, %s88
    %p90 = scmp.eq.s32.totalorder %s15, 0
    %p91 = por %p89, %p90
    %s92 = ssub.s32 %s17, %s31
    %p93 = scmp.eq.s32.totalorder %s92, 0
    %s95 = sadd.s32 %s94, 1
    %s96 = scalar_select %p93, %s94, %s95
    %p99 = pneg %p93
    %p100 = scmp.eq.s32.totalorder %s9, 1
    %p101 = por %p99, %p100
    %p102 = scmp.ne.s32.totalorder %s94, %s97
    %p103 = scmp.eq.s32.totalorder %s9, 0
    %p104 = por %p102, %p103
    %p105 = scmp.ne.s32.totalorder %s94, %s97
    %p106 = scmp.eq.s32.totalorder %s14, 1
    %p107 = por %p105, %p106
    %p108 = scmp.ne.s32.totalorder %s97, %s98
    %p109 = scmp.eq.s32.totalorder %s14, 0
    %p110 = por %p108, %p109
    %p111 = scmp.ne.s32.totalorder %s97, %s98
    %p112 = scmp.eq.s32.totalorder %s15, 1
    %p113 = por %p111, %p112
    %p115 = scmp.ne.s32.totalorder %s98, %s114
    %p116 = scmp.eq.s32.totalorder %s15, 0
    %p117 = por %p115, %p116
    %s118 = ssub.s32 %s16, %s35
    %s119 = ssub.s32 %s17, %s31
    %s120 = sor.u32 %s118, %s119
    %p121 = scmp.eq.s32.totalorder %s120, 0
    %s123 = sadd.s32 %s122, 1
    %s124 = scalar_select %p121, %s122, %s123
    %p127 = pneg %p121
    %p128 = scmp.eq.s32.totalorder %s9, 1
    %p129 = por %p127, %p128
    %p130 = scmp.ne.s32.totalorder %s122, %s125
    %p131 = scmp.eq.s32.totalorder %s9, 0
    %p132 = por %p130, %p131
    %p133 = scmp.ne.s32.totalorder %s122, %s125
    %p134 = scmp.eq.s32.totalorder %s14, 1
    %p135 = por %p133, %p134
    %p136 = scmp.ne.s32.totalorder %s125, %s126
    %p137 = scmp.eq.s32.totalorder %s14, 0
    %p138 = por %p136, %p137
    %p139 = scmp.ne.s32.totalorder %s125, %s126
    %p140 = scmp.eq.s32.totalorder %s15, 1
    %p141 = por %p139, %p140
    %p143 = scmp.ne.s32.totalorder %s126, %s142
    %p144 = scmp.eq.s32.totalorder %s15, 0
    %p145 = por %p143, %p144
    %p146 = scmp.le.s32.totalorder 1, %s9
    %p147 = scmp.lt.s32.totalorder %s9, 3
    %p148 = pnand %p146, %p147
    %p149 = pneg %p148
    // Predicated region
    $region9: #{unet_forward.81} parent=5 // pred_check
      _
    $region10: #{unet_forward.81} parent=5 // pred_check_branch
      %151 = sbr.rel (%p148) target = $region12
    $region11: #{unet_forward.81} parent=5 // pred_region
      %s152 = ssub.s32 %s9, 1
      // Predicated region
      $region13: #{unet_forward.81} parent=11 // pred_check
        %p153 = pneg %p84
      $region14: #{unet_forward.81} parent=11 // pred_check_branch
        %155 = sbr.rel (%p153) target = $region16
      $region15: #{unet_forward.81} parent=11 // pred_region
        %s156 = smul.u32 48, %s21
        %p157 = scmp.lt.s32.totalorder %s156, 47
        %s158 = scalar_select %p157, %s156, 47
        %p159 = scmp.lt.s32.totalorder %s20, 0
        %s160 = scalar_select %p159, %s20, 0
        %s161 = sadd.s32 %s160, %s158
        %s162 = smul.addr %s161, 4
        %s163 = scalar_lea.vmem %s1, %s162
        %s164 = smul.u32 48, %s21
      $region16: #{unet_forward.81} parent=11 // pred_fallthru
        _
      // Predicated region
      $region17: #{unet_forward.81} parent=11 // pred_check
        %p165 = pneg %p110
      $region18: #{unet_forward.81} parent=11 // pred_check_branch
        %167 = sbr.rel (%p165) target = $region20
      $region19: #{unet_forward.81} parent=11 // pred_region
        %p168 = scmp.lt.s32.totalorder %s20, 0
        %s169 = scalar_select %p168, %s20, 0
        %s170 = scalar_lea.vmem %s2, %s169
      $region20: #{unet_forward.81} parent=11 // pred_fallthru
        _
    $region12: #{unet_forward.81} parent=5 // pred_fallthru
      _
    %p171 = scmp.lt.s32.totalorder %s9, 2
    // Predicated region
    $region21: #{unet_forward.81} parent=5 // pred_check
      %p172 = pneg %p171
    $region22: #{unet_forward.81} parent=5 // pred_check_branch
      %174 = sbr.rel (%p172) target = $region24
    $region23: #{unet_forward.81} parent=5 // pred_region
      // Predicated region
      $region25: #{unet_forward.81} parent=23 // pred_check
        %p175 = pneg %p50
      $region26: #{unet_forward.81} parent=23 // pred_check_branch
        %177 = sbr.rel (%p175) target = $region28
      $region27: #{unet_forward.81} parent=23 // pred_region
        %s178 = smul.u32 32, %s16
        %s179 = smul.u32 3, %s18
        %p180 = scmp.lt.s32.totalorder %s178, 63
        %s181 = scalar_select %p180, %s178, 63
        %p182 = scmp.lt.s32.totalorder %s179, 2
        %s183 = scalar_select %p182, %s179, 2
        %s184 = smul.addr %s181, 3
        %s185 = sadd.s32 %s183, %s184
        %s186 = smul.addr %s185, 4
        %s187 = scalar_lea.vmem %s0, %s186
        %s188 = smul.u32 32, %s16
        %s189 = smul.u32 3, %s18
      $region28: #{unet_forward.81} parent=23 // pred_fallthru
        _
    $region24: #{unet_forward.81} parent=5 // pred_fallthru
      _
    %p190 = scmp.le.s32.totalorder 1, %s9
    %p191 = scmp.lt.s32.totalorder %s9, 3
    %p192 = pnand %p190, %p191
    %p193 = pneg %p192
    // Predicated region
    $region29: #{unet_forward.81} parent=5 // pred_check
      _
    $region30: #{unet_forward.81} parent=5 // pred_check_branch
      %195 = sbr.rel (%p192) target = $region32
    $region31: #{unet_forward.81} parent=5 // pred_region
      %s196 = ssub.s32 %s9, 1
      %s197 = smul.u32 32, %s19
      %s198 = smul.u32 3, %s21
      %p199 = scmp.lt.s32.totalorder %s197, 63
      %s200 = scalar_select %p199, %s197, 63
      %p201 = scmp.lt.s32.totalorder %s198, 2
      %s202 = scalar_select %p201, %s198, 2
      %s203 = smul.addr %s200, 3
      %s204 = sadd.s32 %s202, %s203
      %s205 = smul.addr %s204, 4
      %s206 = scalar_lea.vmem %s0, %s205
      %p207 = pneg %p56
      %p208 = pneg %p53
      %s209 = smul.u32 48, %s21
      %p210 = scmp.lt.s32.totalorder %s209, 47
      %s211 = scalar_select %p210, %s209, 47
      %p212 = scmp.lt.s32.totalorder %s20, 0
      %s213 = scalar_select %p212, %s20, 0
      %s214 = sadd.s32 %s213, %s211
      %s215 = smul.addr %s214, 4
      %s216 = scalar_lea.vmem %s1, %s215
      %p217 = pneg %p84
      %p218 = pneg %p81
      %p219 = scmp.lt.s32.totalorder %s20, 0
      %s220 = scalar_select %p219, %s20, 0
      %s221 = scalar_lea.vmem %s2, %s220
      %p222 = pneg %p110
      %p223 = pneg %p107
      %p224 = pneg %p138
      %p225 = pneg %p135
      %s226 = smul.u32 32, %s19
      %p227 = scmp.lt.s32.totalorder %s226, 63
      %s228 = scalar_select %p227, %s226, 63
      %p229 = scmp.lt.s32.totalorder %s20, 0
      %s230 = scalar_select %p229, %s20, 0
      %s231 = sadd.s32 %s230, %s228
      %s232 = smul.addr %s231, 4
      %s233 = scalar_lea.vmem %s3, %s232
      %s234 = smul.u32 32, %s19
      %s235 = smul.u32 3, %s21
      %p236 = scmp.lt.s32.totalorder %s234, 63
      %s237 = scalar_select %p236, %s234, 63
      %p238 = scmp.lt.s32.totalorder %s235, 2
      %s239 = scalar_select %p238, %s235, 2
      %s240 = smul.addr %s237, 3
      %s241 = sadd.s32 %s239, %s240
      %s242 = smul.addr %s241, 4
      %s243 = scalar_lea.vmem %s0, %s242
      %s244 = smul.u32 32, %s19
      %s245 = smul.u32 3, %s21
      %s246 = smul.u32 48, %s21
      %p247 = scmp.lt.s32.totalorder %s246, 47
      %s248 = scalar_select %p247, %s246, 47
      %p249 = scmp.lt.s32.totalorder %s20, 0
      %s250 = scalar_select %p249, %s20, 0
      %s251 = sadd.s32 %s250, %s248
      %s252 = smul.addr %s251, 4
      %s253 = scalar_lea.vmem %s1, %s252
      %s254 = smul.u32 48, %s21
      %p255 = scmp.lt.s32.totalorder %s20, 0
      %s256 = scalar_select %p255, %s20, 0
      %s257 = scalar_lea.vmem %s2, %s256
      %s258 = smul.u32 32, %s19
      %p259 = scmp.lt.s32.totalorder %s258, 63
      %s260 = scalar_select %p259, %s258, 63
      %p261 = scmp.lt.s32.totalorder %s20, 0
      %s262 = scalar_select %p261, %s20, 0
      %s263 = sadd.s32 %s262, %s260
      %s264 = smul.addr %s263, 4
      %s265 = scalar_lea.vmem %s3, %s264
      %s266 = smul.u32 32, %s19
      %v267 = vld [vmem:[%s243] sm:$0xff]
      %v268 = vld [vmem:[%s243 + $0x8] sm:$0xf]
      %v269 = vld [vmem:[%s243 + $0xc] sm:$0xff]
      %v270 = vld [vmem:[%s243 + $0x14] sm:$0xf]
      %v271 = vld [vmem:[%s243 + $0x18] sm:$0xff]
      %v272 = vld [vmem:[%s243 + $0x20] sm:$0xf]
      %v273 = vld [vmem:[%s243 + $0x24] sm:$0xff]
      %v274 = vld [vmem:[%s243 + $0x2c] sm:$0xf]
      %v275 = vld [vmem:[%s243 + $0x30] sm:$0xff]
      %v276 = vld [vmem:[%s243 + $0x38] sm:$0xf]
      %v277 = vld [vmem:[%s243 + $0x3c] sm:$0xff]
      %v278 = vld [vmem:[%s243 + $0x44] sm:$0xf]
      %v279 = vld [vmem:[%s243 + $0x48] sm:$0xff]
      %v280 = vld [vmem:[%s243 + $0x50] sm:$0xf]
      %v281 = vld [vmem:[%s243 + $0x54] sm:$0xff]
      %v282 = vld [vmem:[%s243 + $0x5c] sm:$0xf]
      %v283 = vld [vmem:[%s243 + $0x60] sm:$0xff]
      %v284 = vld [vmem:[%s243 + $0x68] sm:$0xf]
      %v285 = vld [vmem:[%s243 + $0x6c] sm:$0xff]
      %v286 = vld [vmem:[%s243 + $0x74] sm:$0xf]
      %v287 = vld [vmem:[%s243 + $0x78] sm:$0xff]
      %v288 = vld [vmem:[%s243 + $0x80] sm:$0xf]
      %v289 = vld [vmem:[%s243 + $0x84] sm:$0xff]
      %v290 = vld [vmem:[%s243 + $0x8c] sm:$0xf]
      %v291 = vld [vmem:[%s243 + $0x90] sm:$0xff]
      %v292 = vld [vmem:[%s243 + $0x98] sm:$0xf]
      %v293 = vld [vmem:[%s243 + $0x9c] sm:$0xff]
      %v294 = vld [vmem:[%s243 + $0xa4] sm:$0xf]
      %v295 = vld [vmem:[%s243 + $0xa8] sm:$0xff]
      %v296 = vld [vmem:[%s243 + $0xb0] sm:$0xf]
      %v297 = vld [vmem:[%s243 + $0xb4] sm:$0xff]
      %v298 = vld [vmem:[%s243 + $0xbc] sm:$0xf]
      %v299 = vld [vmem:[%s243 + $0xc0] sm:$0xff]
      %v300 = vld [vmem:[%s243 + $0xc8] sm:$0xf]
      %v301 = vld [vmem:[%s243 + $0xcc] sm:$0xff]
      %v302 = vld [vmem:[%s243 + $0xd4] sm:$0xf]
      %v303 = vld [vmem:[%s243 + $0xd8] sm:$0xff]
      %v304 = vld [vmem:[%s243 + $0xe0] sm:$0xf]
      %v305 = vld [vmem:[%s243 + $0xe4] sm:$0xff]
      %v306 = vld [vmem:[%s243 + $0xec] sm:$0xf]
      %v307 = vld [vmem:[%s243 + $0xf0] sm:$0xff]
      %v308 = vld [vmem:[%s243 + $0xf8] sm:$0xf]
      %v309 = vld [vmem:[%s243 + $0xfc] sm:$0xff]
      %v310 = vld [vmem:[%s243 + $0x104] sm:$0xf]
      %v311 = vld [vmem:[%s243 + $0x108] sm:$0xff]
      %v312 = vld [vmem:[%s243 + $0x110] sm:$0xf]
      %v313 = vld [vmem:[%s243 + $0x114] sm:$0xff]
      %v314 = vld [vmem:[%s243 + $0x11c] sm:$0xf]
      %v315 = vld [vmem:[%s243 + $0x120] sm:$0xff]
      %v316 = vld [vmem:[%s243 + $0x128] sm:$0xf]
      %v317 = vld [vmem:[%s243 + $0x12c] sm:$0xff]
      %v318 = vld [vmem:[%s243 + $0x134] sm:$0xf]
      %v319 = vld [vmem:[%s243 + $0x138] sm:$0xff]
      %v320 = vld [vmem:[%s243 + $0x140] sm:$0xf]
      %v321 = vld [vmem:[%s243 + $0x144] sm:$0xff]
      %v322 = vld [vmem:[%s243 + $0x14c] sm:$0xf]
      %v323 = vld [vmem:[%s243 + $0x150] sm:$0xff]
      %v324 = vld [vmem:[%s243 + $0x158] sm:$0xf]
      %v325 = vld [vmem:[%s243 + $0x15c] sm:$0xff]
      %v326 = vld [vmem:[%s243 + $0x164] sm:$0xf]
      %v327 = vld [vmem:[%s243 + $0x168] sm:$0xff]
      %v328 = vld [vmem:[%s243 + $0x170] sm:$0xf]
      %v329 = vld [vmem:[%s243 + $0x174] sm:$0xff]
      %v330 = vld [vmem:[%s243 + $0x17c] sm:$0xf]
      %v331 = vld [vmem:[%s253] sm:$0xf]
      %v332 = vld [vmem:[%s253 + $0x4] sm:$0xf]
      %v333 = vld [vmem:[%s253 + $0x8] sm:$0xf]
      %v334 = vld [vmem:[%s253 + $0xc] sm:$0xf]
      %v335 = vld [vmem:[%s253 + $0x10] sm:$0xf]
      %v336 = vld [vmem:[%s253 + $0x14] sm:$0xf]
      %v337 = vld [vmem:[%s253 + $0x18] sm:$0xf]
      %v338 = vld [vmem:[%s253 + $0x1c] sm:$0xf]
      %v339 = vld [vmem:[%s253 + $0x20] sm:$0xf]
      %v340 = vld [vmem:[%s253 + $0x24] sm:$0xf]
      %v341 = vld [vmem:[%s253 + $0x28] sm:$0xf]
      %v342 = vld [vmem:[%s253 + $0x2c] sm:$0xf]
      %v343 = vld [vmem:[%s253 + $0x30] sm:$0xf]
      %v344 = vld [vmem:[%s253 + $0x34] sm:$0xf]
      %v345 = vld [vmem:[%s253 + $0x38] sm:$0xf]
      %v346 = vld [vmem:[%s253 + $0x3c] sm:$0xf]
      %v347 = vld [vmem:[%s253 + $0x40] sm:$0xf]
      %v348 = vld [vmem:[%s253 + $0x44] sm:$0xf]
      %v349 = vld [vmem:[%s253 + $0x48] sm:$0xf]
      %v350 = vld [vmem:[%s253 + $0x4c] sm:$0xf]
      %v351 = vld [vmem:[%s253 + $0x50] sm:$0xf]
      %v352 = vld [vmem:[%s253 + $0x54] sm:$0xf]
      %v353 = vld [vmem:[%s253 + $0x58] sm:$0xf]
      %v354 = vld [vmem:[%s253 + $0x5c] sm:$0xf]
      %v355 = vld [vmem:[%s253 + $0x60] sm:$0xf]
      %v356 = vld [vmem:[%s253 + $0x64] sm:$0xf]
      %v357 = vld [vmem:[%s253 + $0x68] sm:$0xf]
      %v358 = vld [vmem:[%s253 + $0x6c] sm:$0xf]
      %v359 = vld [vmem:[%s253 + $0x70] sm:$0xf]
      %v360 = vld [vmem:[%s253 + $0x74] sm:$0xf]
      %v361 = vld [vmem:[%s253 + $0x78] sm:$0xf]
      %v362 = vld [vmem:[%s253 + $0x7c] sm:$0xf]
      %v363 = vld [vmem:[%s253 + $0x80] sm:$0xf]
      %v364 = vld [vmem:[%s253 + $0x84] sm:$0xf]
      %v365 = vld [vmem:[%s253 + $0x88] sm:$0xf]
      %v366 = vld [vmem:[%s253 + $0x8c] sm:$0xf]
      %v367 = vld [vmem:[%s253 + $0x90] sm:$0xf]
      %v368 = vld [vmem:[%s253 + $0x94] sm:$0xf]
      %v369 = vld [vmem:[%s253 + $0x98] sm:$0xf]
      %v370 = vld [vmem:[%s253 + $0x9c] sm:$0xf]
      %v371 = vld [vmem:[%s253 + $0xa0] sm:$0xf]
      %v372 = vld [vmem:[%s253 + $0xa4] sm:$0xf]
      %v373 = vld [vmem:[%s253 + $0xa8] sm:$0xf]
      %v374 = vld [vmem:[%s253 + $0xac] sm:$0xf]
      %v375 = vld [vmem:[%s253 + $0xb0] sm:$0xf]
      %v376 = vld [vmem:[%s253 + $0xb4] sm:$0xf]
      %v377 = vld [vmem:[%s253 + $0xb8] sm:$0xf]
      %v378 = vld [vmem:[%s253 + $0xbc] sm:$0xf]
      %v379 = vld [vmem:[%s257] sm:$0x1]
      %v381 = vperm.slane %v379, 0
      %v447 = vunpack.c.l.b16 %v267
      %v448 = vunpack.c.h.b16 %v267
      %v449 = vunpack.c.l.b16 %v268
      %v450 = vunpack.c.l.b16 %v269
      %v451 = vunpack.c.h.b16 %v269
      %v452 = vunpack.c.l.b16 %v270
      %v453 = vunpack.c.l.b16 %v271
      %v454 = vunpack.c.h.b16 %v271
      %v455 = vunpack.c.l.b16 %v272
      %v456 = vunpack.c.l.b16 %v273
      %v457 = vunpack.c.h.b16 %v273
      %v458 = vunpack.c.l.b16 %v274
      %v459 = vunpack.c.l.b16 %v275
      %v460 = vunpack.c.h.b16 %v275
      %v461 = vunpack.c.l.b16 %v276
      %v462 = vunpack.c.l.b16 %v277
      %v463 = vunpack.c.h.b16 %v277
      %v464 = vunpack.c.l.b16 %v278
      %v465 = vunpack.c.l.b16 %v279
      %v466 = vunpack.c.h.b16 %v279
      %v467 = vunpack.c.l.b16 %v280
      %v468 = vunpack.c.l.b16 %v281
      %v469 = vunpack.c.h.b16 %v281
      %v470 = vunpack.c.l.b16 %v282
      %v471 = vunpack.c.l.b16 %v283
      %v472 = vunpack.c.h.b16 %v283
      %v473 = vunpack.c.l.b16 %v284
      %v474 = vunpack.c.l.b16 %v285
      %v475 = vunpack.c.h.b16 %v285
      %v476 = vunpack.c.l.b16 %v286
      %v477 = vunpack.c.l.b16 %v287
      %v478 = vunpack.c.h.b16 %v287
      %v479 = vunpack.c.l.b16 %v288
      %v480 = vunpack.c.l.b16 %v289
      %v481 = vunpack.c.h.b16 %v289
      %v482 = vunpack.c.l.b16 %v290
      %v483 = vunpack.c.l.b16 %v291
      %v484 = vunpack.c.h.b16 %v291
      %v485 = vunpack.c.l.b16 %v292
      %v486 = vunpack.c.l.b16 %v293
      %v487 = vunpack.c.h.b16 %v293
      %v488 = vunpack.c.l.b16 %v294
      %v489 = vunpack.c.l.b16 %v295
      %v490 = vunpack.c.h.b16 %v295
      %v491 = vunpack.c.l.b16 %v296
      %v492 = vunpack.c.l.b16 %v297
      %v493 = vunpack.c.h.b16 %v297
      %v494 = vunpack.c.l.b16 %v298
      %v495 = vunpack.c.l.b16 %v299
      %v496 = vunpack.c.h.b16 %v299
      %v497 = vunpack.c.l.b16 %v300
      %v498 = vunpack.c.l.b16 %v301
      %v499 = vunpack.c.h.b16 %v301
      %v500 = vunpack.c.l.b16 %v302
      %v501 = vunpack.c.l.b16 %v303
      %v502 = vunpack.c.h.b16 %v303
      %v503 = vunpack.c.l.b16 %v304
      %v504 = vunpack.c.l.b16 %v305
      %v505 = vunpack.c.h.b16 %v305
      %v506 = vunpack.c.l.b16 %v306
      %v507 = vunpack.c.l.b16 %v307
      %v508 = vunpack.c.h.b16 %v307
      %v509 = vunpack.c.l.b16 %v308
      %v510 = vunpack.c.l.b16 %v309
      %v511 = vunpack.c.h.b16 %v309
      %v512 = vunpack.c.l.b16 %v310
      %v513 = vunpack.c.l.b16 %v311
      %v514 = vunpack.c.h.b16 %v311
      %v515 = vunpack.c.l.b16 %v312
      %v516 = vunpack.c.l.b16 %v313
      %v517 = vunpack.c.h.b16 %v313
      %v518 = vunpack.c.l.b16 %v314
      %v519 = vunpack.c.l.b16 %v315
      %v520 = vunpack.c.h.b16 %v315
      %v521 = vunpack.c.l.b16 %v316
      %v522 = vunpack.c.l.b16 %v317
      %v523 = vunpack.c.h.b16 %v317
      %v524 = vunpack.c.l.b16 %v318
      %v525 = vunpack.c.l.b16 %v319
      %v526 = vunpack.c.h.b16 %v319
      %v527 = vunpack.c.l.b16 %v320
      %v528 = vunpack.c.l.b16 %v321
      %v529 = vunpack.c.h.b16 %v321
      %v530 = vunpack.c.l.b16 %v322
      %v531 = vunpack.c.l.b16 %v323
      %v532 = vunpack.c.h.b16 %v323
      %v533 = vunpack.c.l.b16 %v324
      %v534 = vunpack.c.l.b16 %v325
      %v535 = vunpack.c.h.b16 %v325
      %v536 = vunpack.c.l.b16 %v326
      %v537 = vunpack.c.l.b16 %v327
      %v538 = vunpack.c.h.b16 %v327
      %v539 = vunpack.c.l.b16 %v328
      %v540 = vunpack.c.l.b16 %v329
      %v541 = vunpack.c.h.b16 %v329
      %v542 = vunpack.c.l.b16 %v330
      %v543 = vpack.c.b16 %v450, %v447
      %v544 = vpack.c.b16 %v451, %v448
      %v545 = vpack.c.b16 %v452, %v449
      %v546 = vpack.c.b16 %v456, %v453
      %v547 = vpack.c.b16 %v457, %v454
      %v548 = vpack.c.b16 %v458, %v455
      %v549 = vpack.c.b16 %v462, %v459
      %v550 = vpack.c.b16 %v463, %v460
      %v551 = vpack.c.b16 %v464, %v461
      %v552 = vpack.c.b16 %v468, %v465
      %v553 = vpack.c.b16 %v469, %v466
      %v554 = vpack.c.b16 %v470, %v467
      %v555 = vpack.c.b16 %v474, %v471
      %v556 = vpack.c.b16 %v475, %v472
      %v557 = vpack.c.b16 %v476, %v473
      %v558 = vpack.c.b16 %v480, %v477
      %v559 = vpack.c.b16 %v481, %v478
      %v560 = vpack.c.b16 %v482, %v479
      %v561 = vpack.c.b16 %v486, %v483
      %v562 = vpack.c.b16 %v487, %v484
      %v563 = vpack.c.b16 %v488, %v485
      %v564 = vpack.c.b16 %v492, %v489
      %v565 = vpack.c.b16 %v493, %v490
      %v566 = vpack.c.b16 %v494, %v491
      %v567 = vpack.c.b16 %v498, %v495
      %v568 = vpack.c.b16 %v499, %v496
      %v569 = vpack.c.b16 %v500, %v497
      %v570 = vpack.c.b16 %v504, %v501
      %v571 = vpack.c.b16 %v505, %v502
      %v572 = vpack.c.b16 %v506, %v503
      %v573 = vpack.c.b16 %v510, %v507
      %v574 = vpack.c.b16 %v511, %v508
      %v575 = vpack.c.b16 %v512, %v509
      %v576 = vpack.c.b16 %v516, %v513
      %v577 = vpack.c.b16 %v517, %v514
      %v578 = vpack.c.b16 %v518, %v515
      %v579 = vpack.c.b16 %v522, %v519
      %v580 = vpack.c.b16 %v523, %v520
      %v581 = vpack.c.b16 %v524, %v521
      %v582 = vpack.c.b16 %v528, %v525
      %v583 = vpack.c.b16 %v529, %v526
      %v584 = vpack.c.b16 %v530, %v527
      %v585 = vpack.c.b16 %v534, %v531
      %v586 = vpack.c.b16 %v535, %v532
      %v587 = vpack.c.b16 %v536, %v533
      %v588 = vpack.c.b16 %v540, %v537
      %v589 = vpack.c.b16 %v541, %v538
      %v590 = vpack.c.b16 %v542, %v539
      %v687 = vunpack.c.l.b16 %v331
      %v688 = vunpack.c.l.b16 %v332
      %v689 = vunpack.c.l.b16 %v333
      %v690 = vunpack.c.l.b16 %v334
      %v691 = vunpack.c.l.b16 %v335
      %v692 = vunpack.c.l.b16 %v336
      %v693 = vunpack.c.l.b16 %v337
      %v694 = vunpack.c.l.b16 %v338
      %v695 = vunpack.c.l.b16 %v339
      %v696 = vunpack.c.l.b16 %v340
      %v697 = vunpack.c.l.b16 %v341
      %v698 = vunpack.c.l.b16 %v342
      %v699 = vunpack.c.l.b16 %v343
      %v700 = vunpack.c.l.b16 %v344
      %v701 = vunpack.c.l.b16 %v345
      %v702 = vunpack.c.l.b16 %v346
      %v703 = vunpack.c.l.b16 %v347
      %v704 = vunpack.c.l.b16 %v348
      %v705 = vunpack.c.l.b16 %v349
      %v706 = vunpack.c.l.b16 %v350
      %v707 = vunpack.c.l.b16 %v351
      %v708 = vunpack.c.l.b16 %v352
      %v709 = vunpack.c.l.b16 %v353
      %v710 = vunpack.c.l.b16 %v354
      %v711 = vunpack.c.l.b16 %v355
      %v712 = vunpack.c.l.b16 %v356
      %v713 = vunpack.c.l.b16 %v357
      %v714 = vunpack.c.l.b16 %v358
      %v715 = vunpack.c.l.b16 %v359
      %v716 = vunpack.c.l.b16 %v360
      %v717 = vunpack.c.l.b16 %v361
      %v718 = vunpack.c.l.b16 %v362
      %v719 = vunpack.c.l.b16 %v363
      %v720 = vunpack.c.l.b16 %v364
      %v721 = vunpack.c.l.b16 %v365
      %v722 = vunpack.c.l.b16 %v366
      %v723 = vunpack.c.l.b16 %v367
      %v724 = vunpack.c.l.b16 %v368
      %v725 = vunpack.c.l.b16 %v369
      %v726 = vunpack.c.l.b16 %v370
      %v727 = vunpack.c.l.b16 %v371
      %v728 = vunpack.c.l.b16 %v372
      %v729 = vunpack.c.l.b16 %v373
      %v730 = vunpack.c.l.b16 %v374
      %v731 = vunpack.c.l.b16 %v375
      %v732 = vunpack.c.l.b16 %v376
      %v733 = vunpack.c.l.b16 %v377
      %v734 = vunpack.c.l.b16 %v378
      %v735 = vpack.c.b16 %v688, %v687
      %v736 = vpack.c.b16 %v690, %v689
      %v737 = vpack.c.b16 %v692, %v691
      %v738 = vpack.c.b16 %v694, %v693
      %v739 = vpack.c.b16 %v696, %v695
      %v740 = vpack.c.b16 %v698, %v697
      %v741 = vpack.c.b16 %v700, %v699
      %v742 = vpack.c.b16 %v702, %v701
      %v743 = vpack.c.b16 %v704, %v703
      %v744 = vpack.c.b16 %v706, %v705
      %v745 = vpack.c.b16 %v708, %v707
      %v746 = vpack.c.b16 %v710, %v709
      %v747 = vpack.c.b16 %v712, %v711
      %v748 = vpack.c.b16 %v714, %v713
      %v749 = vpack.c.b16 %v716, %v715
      %v750 = vpack.c.b16 %v718, %v717
      %v751 = vpack.c.b16 %v720, %v719
      %v752 = vpack.c.b16 %v722, %v721
      %v753 = vpack.c.b16 %v724, %v723
      %v754 = vpack.c.b16 %v726, %v725
      %v755 = vpack.c.b16 %v728, %v727
      %v756 = vpack.c.b16 %v730, %v729
      %v757 = vpack.c.b16 %v732, %v731
      %v758 = vpack.c.b16 %v734, %v733
      %783 = vmatpush.bf16.msra.mxu0 %v742
      %784 = vmatpush.bf16.msra.mxu0 %v741
      %785 = vmatpush.bf16.msra.mxu0 %v740
      %786 = vmatpush.bf16.msra.mxu0 %v739
      %787 = vmatpush.bf16.msra.mxu0 %v738
      %788 = vmatpush.bf16.msra.mxu0 %v737
      %789 = vmatpush.bf16.msra.mxu0 %v736
      %790 = vmatpush.bf16.msra.mxu0 %v735
      %791 = vmatmul.bf16.gmra.mxu0 %v543
      %v792 = vpop.f32.mrf.mxu0
      %v793 = vadd.f32 %v381, %v792
      %v794 = vpop.f32.mrf.mxu0
      %v795 = vadd.f32 %v381, %v794
      %796 = vmatmul.bf16.gmra.mxu0 %v546
      %v797 = vpop.f32.mrf.mxu0
      %v798 = vadd.f32 %v381, %v797
      %v799 = vpop.f32.mrf.mxu0
      %v800 = vadd.f32 %v381, %v799
      %801 = vmatmul.bf16.gmra.mxu0 %v549
      %v802 = vpop.f32.mrf.mxu0
      %v803 = vadd.f32 %v381, %v802
      %v804 = vpop.f32.mrf.mxu0
      %v805 = vadd.f32 %v381, %v804
      %806 = vmatmul.bf16.gmra.mxu0 %v552
      %v807 = vpop.f32.mrf.mxu0
      %v808 = vadd.f32 %v381, %v807
      %v809 = vpop.f32.mrf.mxu0
      %v810 = vadd.f32 %v381, %v809
      %811 = vmatmul.bf16.gmra.mxu0 %v555
      %v812 = vpop.f32.mrf.mxu0
      %v813 = vadd.f32 %v381, %v812
      %v814 = vpop.f32.mrf.mxu0
      %v815 = vadd.f32 %v381, %v814
      %816 = vmatmul.bf16.gmra.mxu0 %v558
      %v817 = vpop.f32.mrf.mxu0
      %v818 = vadd.f32 %v381, %v817
      %v819 = vpop.f32.mrf.mxu0
      %v820 = vadd.f32 %v381, %v819
      %821 = vmatmul.bf16.gmra.mxu0 %v561
      %v822 = vpop.f32.mrf.mxu0
      %v823 = vadd.f32 %v381, %v822
      %v824 = vpop.f32.mrf.mxu0
      %v825 = vadd.f32 %v381, %v824
      %826 = vmatmul.bf16.gmra.mxu0 %v564
      %v827 = vpop.f32.mrf.mxu0
      %v828 = vadd.f32 %v381, %v827
      %v829 = vpop.f32.mrf.mxu0
      %v830 = vadd.f32 %v381, %v829
      %831 = vmatmul.bf16.gmra.mxu0 %v567
      %v832 = vpop.f32.mrf.mxu0
      %v833 = vadd.f32 %v381, %v832
      %v834 = vpop.f32.mrf.mxu0
      %v835 = vadd.f32 %v381, %v834
      %836 = vmatmul.bf16.gmra.mxu0 %v570
      %v837 = vpop.f32.mrf.mxu0
      %v838 = vadd.f32 %v381, %v837
      %v839 = vpop.f32.mrf.mxu0
      %v840 = vadd.f32 %v381, %v839
      %841 = vmatmul.bf16.gmra.mxu0 %v573
      %v842 = vpop.f32.mrf.mxu0
      %v843 = vadd.f32 %v381, %v842
      %v844 = vpop.f32.mrf.mxu0
      %v845 = vadd.f32 %v381, %v844
      %846 = vmatmul.bf16.gmra.mxu0 %v576
      %v847 = vpop.f32.mrf.mxu0
      %v848 = vadd.f32 %v381, %v847
      %v849 = vpop.f32.mrf.mxu0
      %v850 = vadd.f32 %v381, %v849
      %851 = vmatmul.bf16.gmra.mxu0 %v579
      %v852 = vpop.f32.mrf.mxu0
      %v853 = vadd.f32 %v381, %v852
      %v854 = vpop.f32.mrf.mxu0
      %v855 = vadd.f32 %v381, %v854
      %856 = vmatmul.bf16.gmra.mxu0 %v582
      %v857 = vpop.f32.mrf.mxu0
      %v858 = vadd.f32 %v381, %v857
      %v859 = vpop.f32.mrf.mxu0
      %v860 = vadd.f32 %v381, %v859
      %861 = vmatmul.bf16.gmra.mxu0 %v585
      %v862 = vpop.f32.mrf.mxu0
      %v863 = vadd.f32 %v381, %v862
      %v864 = vpop.f32.mrf.mxu0
      %v865 = vadd.f32 %v381, %v864
      %866 = vmatmul.bf16.gmra.mxu0 %v588
      %v867 = vpop.f32.mrf.mxu0
      %v868 = vadd.f32 %v381, %v867
      %v869 = vpop.f32.mrf.mxu0
      %v870 = vadd.f32 %v381, %v869
      %871 = vdwg.mxu0
      %872 = vmatpush.bf16.msra.mxu0 %v750
      %873 = vmatpush.bf16.msra.mxu0 %v749
      %874 = vmatpush.bf16.msra.mxu0 %v748
      %875 = vmatpush.bf16.msra.mxu0 %v747
      %876 = vmatpush.bf16.msra.mxu0 %v746
      %877 = vmatpush.bf16.msra.mxu0 %v745
      %878 = vmatpush.bf16.msra.mxu0 %v744
      %879 = vmatpush.bf16.msra.mxu0 %v743
      %880 = vmatmul.bf16.gmra.mxu0 %v544
      %v881 = vpop.f32.mrf.mxu0
      %v882 = vadd.f32 %v793, %v881
      %v883 = vpop.f32.mrf.mxu0
      %v884 = vadd.f32 %v795, %v883
      %885 = vmatmul.bf16.gmra.mxu0 %v547
      %v886 = vpop.f32.mrf.mxu0
      %v887 = vadd.f32 %v798, %v886
      %v888 = vpop.f32.mrf.mxu0
      %v889 = vadd.f32 %v800, %v888
      %890 = vmatmul.bf16.gmra.mxu0 %v550
      %v891 = vpop.f32.mrf.mxu0
      %v892 = vadd.f32 %v803, %v891
      %v893 = vpop.f32.mrf.mxu0
      %v894 = vadd.f32 %v805, %v893
      %895 = vmatmul.bf16.gmra.mxu0 %v553
      %v896 = vpop.f32.mrf.mxu0
      %v897 = vadd.f32 %v808, %v896
      %v898 = vpop.f32.mrf.mxu0
      %v899 = vadd.f32 %v810, %v898
      %900 = vmatmul.bf16.gmra.mxu0 %v556
      %v901 = vpop.f32.mrf.mxu0
      %v902 = vadd.f32 %v813, %v901
      %v903 = vpop.f32.mrf.mxu0
      %v904 = vadd.f32 %v815, %v903
      %905 = vmatmul.bf16.gmra.mxu0 %v559
      %v906 = vpop.f32.mrf.mxu0
      %v907 = vadd.f32 %v818, %v906
      %v908 = vpop.f32.mrf.mxu0
      %v909 = vadd.f32 %v820, %v908
      %910 = vmatmul.bf16.gmra.mxu0 %v562
      %v911 = vpop.f32.mrf.mxu0
      %v912 = vadd.f32 %v823, %v911
      %v913 = vpop.f32.mrf.mxu0
      %v914 = vadd.f32 %v825, %v913
      %915 = vmatmul.bf16.gmra.mxu0 %v565
      %v916 = vpop.f32.mrf.mxu0
      %v917 = vadd.f32 %v828, %v916
      %v918 = vpop.f32.mrf.mxu0
      %v919 = vadd.f32 %v830, %v918
      %920 = vmatmul.bf16.gmra.mxu0 %v568
      %v921 = vpop.f32.mrf.mxu0
      %v922 = vadd.f32 %v833, %v921
      %v923 = vpop.f32.mrf.mxu0
      %v924 = vadd.f32 %v835, %v923
      %925 = vmatmul.bf16.gmra.mxu0 %v571
      %v926 = vpop.f32.mrf.mxu0
      %v927 = vadd.f32 %v838, %v926
      %v928 = vpop.f32.mrf.mxu0
      %v929 = vadd.f32 %v840, %v928
      %930 = vmatmul.bf16.gmra.mxu0 %v574
      %v931 = vpop.f32.mrf.mxu0
      %v932 = vadd.f32 %v843, %v931
      %v933 = vpop.f32.mrf.mxu0
      %v934 = vadd.f32 %v845, %v933
      %935 = vmatmul.bf16.gmra.mxu0 %v577
      %v936 = vpop.f32.mrf.mxu0
      %v937 = vadd.f32 %v848, %v936
      %v938 = vpop.f32.mrf.mxu0
      %v939 = vadd.f32 %v850, %v938
      %940 = vmatmul.bf16.gmra.mxu0 %v580
      %v941 = vpop.f32.mrf.mxu0
      %v942 = vadd.f32 %v853, %v941
      %v943 = vpop.f32.mrf.mxu0
      %v944 = vadd.f32 %v855, %v943
      %945 = vmatmul.bf16.gmra.mxu0 %v583
      %v946 = vpop.f32.mrf.mxu0
      %v947 = vadd.f32 %v858, %v946
      %v948 = vpop.f32.mrf.mxu0
      %v949 = vadd.f32 %v860, %v948
      %950 = vmatmul.bf16.gmra.mxu0 %v586
      %v951 = vpop.f32.mrf.mxu0
      %v952 = vadd.f32 %v863, %v951
      %v953 = vpop.f32.mrf.mxu0
      %v954 = vadd.f32 %v865, %v953
      %955 = vmatmul.bf16.gmra.mxu0 %v589
      %v956 = vpop.f32.mrf.mxu0
      %v957 = vadd.f32 %v868, %v956
      %v958 = vpop.f32.mrf.mxu0
      %v959 = vadd.f32 %v870, %v958
      %960 = vdwg.mxu0
      %961 = vmatpush.bf16.msra.mxu0 %v758
      %962 = vmatpush.bf16.msra.mxu0 %v757
      %963 = vmatpush.bf16.msra.mxu0 %v756
      %964 = vmatpush.bf16.msra.mxu0 %v755
      %965 = vmatpush.bf16.msra.mxu0 %v754
      %966 = vmatpush.bf16.msra.mxu0 %v753
      %967 = vmatpush.bf16.msra.mxu0 %v752
      %968 = vmatpush.bf16.msra.mxu0 %v751
      %969 = vmatmul.bf16.gmra.mxu0 %v545
      %v970 = vpop.f32.mrf.mxu0
      %v971 = vadd.f32 %v882, %v970
      %v972 = vpop.f32.mrf.mxu0
      %v973 = vadd.f32 %v884, %v972
      %974 = vmatmul.bf16.gmra.mxu0 %v548
      %v975 = vpop.f32.mrf.mxu0
      %v976 = vadd.f32 %v887, %v975
      %v977 = vpop.f32.mrf.mxu0
      %v978 = vadd.f32 %v889, %v977
      %979 = vmatmul.bf16.gmra.mxu0 %v551
      %v980 = vpop.f32.mrf.mxu0
      %v981 = vadd.f32 %v892, %v980
      %v982 = vpop.f32.mrf.mxu0
      %v983 = vadd.f32 %v894, %v982
      %984 = vmatmul.bf16.gmra.mxu0 %v554
      %v985 = vpop.f32.mrf.mxu0
      %v986 = vadd.f32 %v897, %v985
      %v987 = vpop.f32.mrf.mxu0
      %v988 = vadd.f32 %v899, %v987
      %989 = vmatmul.bf16.gmra.mxu0 %v557
      %v990 = vpop.f32.mrf.mxu0
      %v991 = vadd.f32 %v902, %v990
      %v992 = vpop.f32.mrf.mxu0
      %v993 = vadd.f32 %v904, %v992
      %994 = vmatmul.bf16.gmra.mxu0 %v560
      %v995 = vpop.f32.mrf.mxu0
      %v996 = vadd.f32 %v907, %v995
      %v997 = vpop.f32.mrf.mxu0
      %v998 = vadd.f32 %v909, %v997
      %999 = vmatmul.bf16.gmra.mxu0 %v563
      %v1000 = vpop.f32.mrf.mxu0
      %v1001 = vadd.f32 %v912, %v1000
      %v1002 = vpop.f32.mrf.mxu0
      %v1003 = vadd.f32 %v914, %v1002
      %1004 = vmatmul.bf16.gmra.mxu0 %v566
      %v1005 = vpop.f32.mrf.mxu0
      %v1006 = vadd.f32 %v917, %v1005
      %v1007 = vpop.f32.mrf.mxu0
      %v1008 = vadd.f32 %v919, %v1007
      %1009 = vmatmul.bf16.gmra.mxu0 %v569
      %v1010 = vpop.f32.mrf.mxu0
      %v1011 = vadd.f32 %v922, %v1010
      %v1012 = vpop.f32.mrf.mxu0
      %v1013 = vadd.f32 %v924, %v1012
      %1014 = vmatmul.bf16.gmra.mxu0 %v572
      %v1015 = vpop.f32.mrf.mxu0
      %v1016 = vadd.f32 %v927, %v1015
      %v1017 = vpop.f32.mrf.mxu0
      %v1018 = vadd.f32 %v929, %v1017
      %1019 = vmatmul.bf16.gmra.mxu0 %v575
      %v1020 = vpop.f32.mrf.mxu0
      %v1021 = vadd.f32 %v932, %v1020
      %v1022 = vpop.f32.mrf.mxu0
      %v1023 = vadd.f32 %v934, %v1022
      %1024 = vmatmul.bf16.gmra.mxu0 %v578
      %v1025 = vpop.f32.mrf.mxu0
      %v1026 = vadd.f32 %v937, %v1025
      %v1027 = vpop.f32.mrf.mxu0
      %v1028 = vadd.f32 %v939, %v1027
      %1029 = vmatmul.bf16.gmra.mxu0 %v581
      %v1030 = vpop.f32.mrf.mxu0
      %v1031 = vadd.f32 %v942, %v1030
      %v1032 = vpop.f32.mrf.mxu0
      %v1033 = vadd.f32 %v944, %v1032
      %1034 = vmatmul.bf16.gmra.mxu0 %v584
      %v1035 = vpop.f32.mrf.mxu0
      %v1036 = vadd.f32 %v947, %v1035
      %v1037 = vpop.f32.mrf.mxu0
      %v1038 = vadd.f32 %v949, %v1037
      %1039 = vmatmul.bf16.gmra.mxu0 %v587
      %v1040 = vpop.f32.mrf.mxu0
      %v1041 = vadd.f32 %v952, %v1040
      %v1042 = vpop.f32.mrf.mxu0
      %v1043 = vadd.f32 %v954, %v1042
      %1044 = vmatmul.bf16.gmra.mxu0 %v590
      %v1045 = vpop.f32.mrf.mxu0
      %v1046 = vadd.f32 %v957, %v1045
      %v1047 = vpop.f32.mrf.mxu0
      %v1048 = vadd.f32 %v959, %v1047
      %1049 = vdwg.mxu0
      %v1050 = vpack.c.bf16 %v971, %v971
      %v1051 = vpack.c.bf16 %v973, %v973
      %v1052 = vpack.c.bf16 %v976, %v976
      %v1053 = vpack.c.bf16 %v978, %v978
      %v1054 = vpack.c.bf16 %v981, %v981
      %v1055 = vpack.c.bf16 %v983, %v983
      %v1056 = vpack.c.bf16 %v986, %v986
      %v1057 = vpack.c.bf16 %v988, %v988
      %v1058 = vpack.c.bf16 %v991, %v991
      %v1059 = vpack.c.bf16 %v993, %v993
      %v1060 = vpack.c.bf16 %v996, %v996
      %v1061 = vpack.c.bf16 %v998, %v998
      %v1062 = vpack.c.bf16 %v1001, %v1001
      %v1063 = vpack.c.bf16 %v1003, %v1003
      %v1064 = vpack.c.bf16 %v1006, %v1006
      %v1065 = vpack.c.bf16 %v1008, %v1008
      %v1066 = vpack.c.bf16 %v1011, %v1011
      %v1067 = vpack.c.bf16 %v1013, %v1013
      %v1068 = vpack.c.bf16 %v1016, %v1016
      %v1069 = vpack.c.bf16 %v1018, %v1018
      %v1070 = vpack.c.bf16 %v1021, %v1021
      %v1071 = vpack.c.bf16 %v1023, %v1023
      %v1072 = vpack.c.bf16 %v1026, %v1026
      %v1073 = vpack.c.bf16 %v1028, %v1028
      %v1074 = vpack.c.bf16 %v1031, %v1031
      %v1075 = vpack.c.bf16 %v1033, %v1033
      %v1076 = vpack.c.bf16 %v1036, %v1036
      %v1077 = vpack.c.bf16 %v1038, %v1038
      %v1078 = vpack.c.bf16 %v1041, %v1041
      %v1079 = vpack.c.bf16 %v1043, %v1043
      %v1080 = vpack.c.bf16 %v1046, %v1046
      %v1081 = vpack.c.bf16 %v1048, %v1048
      %1082 = vst [vmem:[%s265] sm:$0xf] %v1050
      %1083 = vst [vmem:[%s265 + $0x4] sm:$0xf] %v1051
      %1084 = vst [vmem:[%s265 + $0x8] sm:$0xf] %v1052
      %1085 = vst [vmem:[%s265 + $0xc] sm:$0xf] %v1053
      %1086 = vst [vmem:[%s265 + $0x10] sm:$0xf] %v1054
      %1087 = vst [vmem:[%s265 + $0x14] sm:$0xf] %v1055
      %1088 = vst [vmem:[%s265 + $0x18] sm:$0xf] %v1056
      %1089 = vst [vmem:[%s265 + $0x1c] sm:$0xf] %v1057
      %1090 = vst [vmem:[%s265 + $0x20] sm:$0xf] %v1058
      %1091 = vst [vmem:[%s265 + $0x24] sm:$0xf] %v1059
      %1092 = vst [vmem:[%s265 + $0x28] sm:$0xf] %v1060
      %1093 = vst [vmem:[%s265 + $0x2c] sm:$0xf] %v1061
      %1094 = vst [vmem:[%s265 + $0x30] sm:$0xf] %v1062
      %1095 = vst [vmem:[%s265 + $0x34] sm:$0xf] %v1063
      %1096 = vst [vmem:[%s265 + $0x38] sm:$0xf] %v1064
      %1097 = vst [vmem:[%s265 + $0x3c] sm:$0xf] %v1065
      %1098 = vst [vmem:[%s265 + $0x40] sm:$0xf] %v1066
      %1099 = vst [vmem:[%s265 + $0x44] sm:$0xf] %v1067
      %1100 = vst [vmem:[%s265 + $0x48] sm:$0xf] %v1068
      %1101 = vst [vmem:[%s265 + $0x4c] sm:$0xf] %v1069
      %1102 = vst [vmem:[%s265 + $0x50] sm:$0xf] %v1070
      %1103 = vst [vmem:[%s265 + $0x54] sm:$0xf] %v1071
      %1104 = vst [vmem:[%s265 + $0x58] sm:$0xf] %v1072
      %1105 = vst [vmem:[%s265 + $0x5c] sm:$0xf] %v1073
      %1106 = vst [vmem:[%s265 + $0x60] sm:$0xf] %v1074
      %1107 = vst [vmem:[%s265 + $0x64] sm:$0xf] %v1075
      %1108 = vst [vmem:[%s265 + $0x68] sm:$0xf] %v1076
      %1109 = vst [vmem:[%s265 + $0x6c] sm:$0xf] %v1077
      %1110 = vst [vmem:[%s265 + $0x70] sm:$0xf] %v1078
      %1111 = vst [vmem:[%s265 + $0x74] sm:$0xf] %v1079
      %1112 = vst [vmem:[%s265 + $0x78] sm:$0xf] %v1080
      %1113 = vst [vmem:[%s265 + $0x7c] sm:$0xf] %v1081
      %s1114 = smul.u32 32, %s19
      %p1115 = scmp.lt.s32.totalorder %s1114, 63
      %s1116 = scalar_select %p1115, %s1114, 63
      %p1117 = scmp.lt.s32.totalorder %s20, 0
      %s1118 = scalar_select %p1117, %s20, 0
      %s1119 = sadd.s32 %s1118, %s1116
      %s1120 = smul.addr %s1119, 4
      %s1121 = scalar_lea.vmem %s3, %s1120
      // Predicated region
      $region33: #{unet_forward.81} parent=31 // pred_check
        %p1122 = pneg %p135
      $region34: #{unet_forward.81} parent=31 // pred_check_branch
        %1124 = sbr.rel (%p1122) target = $region36
      $region35: #{unet_forward.81} parent=31 // pred_region
        %s1125 = smul.u32 32, %s19
      $region36: #{unet_forward.81} parent=31 // pred_fallthru
        _
    $region32: #{unet_forward.81} parent=5 // pred_fallthru
      _
    %p1126 = scmp.le.s32.totalorder 2, %s9
    // Predicated region
    $region37: #{unet_forward.81} parent=5 // pred_check
      %p1127 = pneg %p1126
    $region38: #{unet_forward.81} parent=5 // pred_check_branch
      %1129 = sbr.rel (%p1127) target = $region40
    $region39: #{unet_forward.81} parent=5 // pred_region
      %s1130 = ssub.s32 %s9, 2
      // Predicated region
      $region41: #{unet_forward.81} parent=39 // pred_check
        %p1131 = pneg %p141
      $region42: #{unet_forward.81} parent=39 // pred_check_branch
        %1133 = sbr.rel (%p1131) target = $region44
      $region43: #{unet_forward.81} parent=39 // pred_region
        %s1134 = smul.u32 32, %s22
        %p1135 = scmp.lt.s32.totalorder %s1134, 63
        %s1136 = scalar_select %p1135, %s1134, 63
        %p1137 = scmp.lt.s32.totalorder %s23, 0
        %s1138 = scalar_select %p1137, %s23, 0
        %s1139 = sadd.s32 %s1138, %s1136
        %s1140 = smul.addr %s1139, 4
        %s1141 = scalar_lea.vmem %s3, %s1140
      $region44: #{unet_forward.81} parent=39 // pred_fallthru
        _
    $region40: #{unet_forward.81} parent=5 // pred_fallthru
      _
  $region6: #{unet_forward.81} parent=0 // loop_footer
    %s13 = sadd.s32 1, %s9
  $region7: #{unet_forward.81} parent=0 // loop_footer_branch
    %8 = sbr.rel target = $region3
  $region8: #{unet_forward.81} parent=0 // loop_exit
    _

// kernel: unet_forward.83
$region0: #{unet_forward.83}
  #allocation0 [shape = 'u32[]', space=smem, size = 0x4, offset = 0x4, fixed_abs, tag = 'smem constant byte address 0x4 - core index']
  #allocation1 [shape = 'u32[72,128]{1,0:T(1,128)}', space=vmem, size = 0x9000, scoped, tag = 'internal scratch']
  %s0 = inlined_call_operand.vmem [shape: bf16[512,128], index: 0, kind: input, shape index: {}]
  %s1 = inlined_call_operand.vmem [shape: bf16[128,128], index: 1, kind: input, shape index: {}]
  %s2 = inlined_call_operand.vmem [shape: f32[1,128], index: 2, kind: input, shape index: {}]
  %s3 = inlined_call_operand.vmem [shape: bf16[512,128], index: 3, kind: output, shape index: {}]
  %s4 = sld [smem:[#allocation0]]
  $region45: #{unet_forward.83} parent=0
    _
  %s6 = ssub.s32 1, %s4
  %s7 = scalar_select 0, %s6, %s4
  loop: start=0, step=1, limit=4
  $region2: #{unet_forward.83} parent=0 // loop_pre_header
    _
  $region3: #{unet_forward.83} parent=0 // loop_header
    %s9 = sphi 0, %s13
    %p10 = scmp.ge.s32.totalorder %s9, 4
    %s16 = sphi 0, %s35
    %s17 = sphi 0, %s31
    %s18 = sphi 0, %s27
    %s19 = sphi 0, %s16
    %s20 = sphi 0, %s17
    %s21 = sphi 0, %s18
    %s22 = sphi 0, %s19
    %s23 = sphi 0, %s20
    %s24 = sphi 0, %s21
    %s40 = sphi 0, %s42
    %s43 = sphi 0, %s40
    %s44 = sphi 0, %s43
    %s60 = sphi 0, %s44
    %s68 = sphi 0, %s70
    %s71 = sphi 0, %s68
    %s72 = sphi 0, %s71
    %s88 = sphi 0, %s72
    %s94 = sphi 0, %s96
    %s97 = sphi 0, %s94
    %s98 = sphi 0, %s97
    %s114 = sphi 0, %s98
    %s122 = sphi 0, %s124
    %s125 = sphi 0, %s122
    %s126 = sphi 0, %s125
    %s142 = sphi 0, %s126
  $region4: #{unet_forward.83} parent=0 // loop_header_branch
    %12 = sbr.rel (%p10) target = $region8
  $region5: #{unet_forward.83} parent=0 // loop_body
    %s14 = ssub.s32 %s9, 1
    %s15 = ssub.s32 %s9, 2
    %s25 = sadd.s32 1, %s18
    %p26 = scmp.ge.s32.totalorder %s25, 1
    %s27 = scalar_select %p26, 0, %s25
    %s28 = sadd.s32 1, %s17
    %s29 = scalar_select %p26, %s28, %s17
    %p30 = scmp.ge.s32.totalorder %s29, 1
    %s31 = scalar_select %p30, 0, %s29
    %s32 = sadd.s32 1, %s16
    %s33 = scalar_select %p30, %s32, %s16
    %p34 = scmp.ge.s32.totalorder %s33, 2
    %s35 = scalar_select %p34, 0, %s33
    %s36 = ssub.s32 %s16, %s35
    %s37 = ssub.s32 %s18, %s27
    %s38 = sor.u32 %s36, %s37
    %p39 = scmp.eq.s32.totalorder %s38, 0
    %s41 = sadd.s32 %s40, 1
    %s42 = scalar_select %p39, %s40, %s41
    %p45 = pneg %p39
    %p46 = scmp.eq.s32.totalorder %s9, 1
    %p47 = por %p45, %p46
    %p48 = scmp.ne.s32.totalorder %s40, %s43
    %p49 = scmp.eq.s32.totalorder %s9, 0
    %p50 = por %p48, %p49
    %p51 = scmp.ne.s32.totalorder %s40, %s43
    %p52 = scmp.eq.s32.totalorder %s14, 1
    %p53 = por %p51, %p52
    %p54 = scmp.ne.s32.totalorder %s43, %s44
    %p55 = scmp.eq.s32.totalorder %s14, 0
    %p56 = por %p54, %p55
    %p57 = scmp.ne.s32.totalorder %s43, %s44
    %p58 = scmp.eq.s32.totalorder %s15, 1
    %p59 = por %p57, %p58
    %p61 = scmp.ne.s32.totalorder %s44, %s60
    %p62 = scmp.eq.s32.totalorder %s15, 0
    %p63 = por %p61, %p62
    %s64 = ssub.s32 %s18, %s27
    %s65 = ssub.s32 %s17, %s31
    %s66 = sor.u32 %s64, %s65
    %p67 = scmp.eq.s32.totalorder %s66, 0
    %s69 = sadd.s32 %s68, 1
    %s70 = scalar_select %p67, %s68, %s69
    %p73 = pneg %p67
    %p74 = scmp.eq.s32.totalorder %s9, 1
    %p75 = por %p73, %p74
    %p76 = scmp.ne.s32.totalorder %s68, %s71
    %p77 = scmp.eq.s32.totalorder %s9, 0
    %p78 = por %p76, %p77
    %p79 = scmp.ne.s32.totalorder %s68, %s71
    %p80 = scmp.eq.s32.totalorder %s14, 1
    %p81 = por %p79, %p80
    %p82 = scmp.ne.s32.totalorder %s71, %s72
    %p83 = scmp.eq.s32.totalorder %s14, 0
    %p84 = por %p82, %p83
    %p85 = scmp.ne.s32.totalorder %s71, %s72
    %p86 = scmp.eq.s32.totalorder %s15, 1
    %p87 = por %p85, %p86
    %p89 = scmp.ne.s32.totalorder %s72, %s88
    %p90 = scmp.eq.s32.totalorder %s15, 0
    %p91 = por %p89, %p90
    %s92 = ssub.s32 %s17, %s31
    %p93 = scmp.eq.s32.totalorder %s92, 0
    %s95 = sadd.s32 %s94, 1
    %s96 = scalar_select %p93, %s94, %s95
    %p99 = pneg %p93
    %p100 = scmp.eq.s32.totalorder %s9, 1
    %p101 = por %p99, %p100
    %p102 = scmp.ne.s32.totalorder %s94, %s97
    %p103 = scmp.eq.s32.totalorder %s9, 0
    %p104 = por %p102, %p103
    %p105 = scmp.ne.s32.totalorder %s94, %s97
    %p106 = scmp.eq.s32.totalorder %s14, 1
    %p107 = por %p105, %p106
    %p108 = scmp.ne.s32.totalorder %s97, %s98
    %p109 = scmp.eq.s32.totalorder %s14, 0
    %p110 = por %p108, %p109
    %p111 = scmp.ne.s32.totalorder %s97, %s98
    %p112 = scmp.eq.s32.totalorder %s15, 1
    %p113 = por %p111, %p112
    %p115 = scmp.ne.s32.totalorder %s98, %s114
    %p116 = scmp.eq.s32.totalorder %s15, 0
    %p117 = por %p115, %p116
    %s118 = ssub.s32 %s16, %s35
    %s119 = ssub.s32 %s17, %s31
    %s120 = sor.u32 %s118, %s119
    %p121 = scmp.eq.s32.totalorder %s120, 0
    %s123 = sadd.s32 %s122, 1
    %s124 = scalar_select %p121, %s122, %s123
    %p127 = pneg %p121
    %p128 = scmp.eq.s32.totalorder %s9, 1
    %p129 = por %p127, %p128
    %p130 = scmp.ne.s32.totalorder %s122, %s125
    %p131 = scmp.eq.s32.totalorder %s9, 0
    %p132 = por %p130, %p131
    %p133 = scmp.ne.s32.totalorder %s122, %s125
    %p134 = scmp.eq.s32.totalorder %s14, 1
    %p135 = por %p133, %p134
    %p136 = scmp.ne.s32.totalorder %s125, %s126
    %p137 = scmp.eq.s32.totalorder %s14, 0
    %p138 = por %p136, %p137
    %p139 = scmp.ne.s32.totalorder %s125, %s126
    %p140 = scmp.eq.s32.totalorder %s15, 1
    %p141 = por %p139, %p140
    %p143 = scmp.ne.s32.totalorder %s126, %s142
    %p144 = scmp.eq.s32.totalorder %s15, 0
    %p145 = por %p143, %p144
    %p146 = scmp.le.s32.totalorder 1, %s9
    %p147 = scmp.lt.s32.totalorder %s9, 3
    %p148 = pnand %p146, %p147
    %p149 = pneg %p148
    // Predicated region
    $region9: #{unet_forward.83} parent=5 // pred_check
      _
    $region10: #{unet_forward.83} parent=5 // pred_check_branch
      %151 = sbr.rel (%p148) target = $region12
    $region11: #{unet_forward.83} parent=5 // pred_region
      %s152 = ssub.s32 %s9, 1
      // Predicated region
      $region13: #{unet_forward.83} parent=11 // pred_check
        %p153 = pneg %p84
      $region14: #{unet_forward.83} parent=11 // pred_check_branch
        %155 = sbr.rel (%p153) target = $region16
      $region15: #{unet_forward.83} parent=11 // pred_region
        %s156 = smul.u32 16, %s21
        %p157 = scmp.lt.s32.totalorder %s156, 15
        %s158 = scalar_select %p157, %s156, 15
        %p159 = scmp.lt.s32.totalorder %s20, 0
        %s160 = scalar_select %p159, %s20, 0
        %s161 = sadd.s32 %s160, %s158
        %s162 = smul.addr %s161, 4
        %s163 = scalar_lea.vmem %s1, %s162
        %s164 = smul.u32 16, %s21
      $region16: #{unet_forward.83} parent=11 // pred_fallthru
        _
      // Predicated region
      $region17: #{unet_forward.83} parent=11 // pred_check
        %p165 = pneg %p110
      $region18: #{unet_forward.83} parent=11 // pred_check_branch
        %167 = sbr.rel (%p165) target = $region20
      $region19: #{unet_forward.83} parent=11 // pred_region
        %p168 = scmp.lt.s32.totalorder %s20, 0
        %s169 = scalar_select %p168, %s20, 0
        %s170 = scalar_lea.vmem %s2, %s169
      $region20: #{unet_forward.83} parent=11 // pred_fallthru
        _
    $region12: #{unet_forward.83} parent=5 // pred_fallthru
      _
    %p171 = scmp.lt.s32.totalorder %s9, 2
    // Predicated region
    $region21: #{unet_forward.83} parent=5 // pred_check
      %p172 = pneg %p171
    $region22: #{unet_forward.83} parent=5 // pred_check_branch
      %174 = sbr.rel (%p172) target = $region24
    $region23: #{unet_forward.83} parent=5 // pred_region
      // Predicated region
      $region25: #{unet_forward.83} parent=23 // pred_check
        %p175 = pneg %p50
      $region26: #{unet_forward.83} parent=23 // pred_check_branch
        %177 = sbr.rel (%p175) target = $region28
      $region27: #{unet_forward.83} parent=23 // pred_region
        %s178 = smul.u32 32, %s16
        %p179 = scmp.lt.s32.totalorder %s178, 63
        %s180 = scalar_select %p179, %s178, 63
        %p181 = scmp.lt.s32.totalorder %s18, 0
        %s182 = scalar_select %p181, %s18, 0
        %s183 = sadd.s32 %s182, %s180
        %s184 = smul.addr %s183, 4
        %s185 = scalar_lea.vmem %s0, %s184
        %s186 = smul.u32 32, %s16
      $region28: #{unet_forward.83} parent=23 // pred_fallthru
        _
    $region24: #{unet_forward.83} parent=5 // pred_fallthru
      _
    %p187 = scmp.le.s32.totalorder 1, %s9
    %p188 = scmp.lt.s32.totalorder %s9, 3
    %p189 = pnand %p187, %p188
    %p190 = pneg %p189
    // Predicated region
    $region29: #{unet_forward.83} parent=5 // pred_check
      _
    $region30: #{unet_forward.83} parent=5 // pred_check_branch
      %192 = sbr.rel (%p189) target = $region32
    $region31: #{unet_forward.83} parent=5 // pred_region
      %s193 = ssub.s32 %s9, 1
      %s194 = smul.u32 32, %s19
      %p195 = scmp.lt.s32.totalorder %s194, 63
      %s196 = scalar_select %p195, %s194, 63
      %p197 = scmp.lt.s32.totalorder %s21, 0
      %s198 = scalar_select %p197, %s21, 0
      %s199 = sadd.s32 %s198, %s196
      %s200 = smul.addr %s199, 4
      %s201 = scalar_lea.vmem %s0, %s200
      %p202 = pneg %p56
      %p203 = pneg %p53
      %s204 = smul.u32 16, %s21
      %p205 = scmp.lt.s32.totalorder %s204, 15
      %s206 = scalar_select %p205, %s204, 15
      %p207 = scmp.lt.s32.totalorder %s20, 0
      %s208 = scalar_select %p207, %s20, 0
      %s209 = sadd.s32 %s208, %s206
      %s210 = smul.addr %s209, 4
      %s211 = scalar_lea.vmem %s1, %s210
      %p212 = pneg %p84
      %p213 = pneg %p81
      %p214 = scmp.lt.s32.totalorder %s20, 0
      %s215 = scalar_select %p214, %s20, 0
      %s216 = scalar_lea.vmem %s2, %s215
      %p217 = pneg %p110
      %p218 = pneg %p107
      %p219 = pneg %p138
      %p220 = pneg %p135
      %s221 = smul.u32 32, %s19
      %p222 = scmp.lt.s32.totalorder %s221, 63
      %s223 = scalar_select %p222, %s221, 63
      %p224 = scmp.lt.s32.totalorder %s20, 0
      %s225 = scalar_select %p224, %s20, 0
      %s226 = sadd.s32 %s225, %s223
      %s227 = smul.addr %s226, 4
      %s228 = scalar_lea.vmem %s3, %s227
      %s229 = smul.u32 32, %s19
      %p230 = scmp.lt.s32.totalorder %s229, 63
      %s231 = scalar_select %p230, %s229, 63
      %p232 = scmp.lt.s32.totalorder %s21, 0
      %s233 = scalar_select %p232, %s21, 0
      %s234 = sadd.s32 %s233, %s231
      %s235 = smul.addr %s234, 4
      %s236 = scalar_lea.vmem %s0, %s235
      %s237 = smul.u32 32, %s19
      %s238 = smul.u32 16, %s21
      %p239 = scmp.lt.s32.totalorder %s238, 15
      %s240 = scalar_select %p239, %s238, 15
      %p241 = scmp.lt.s32.totalorder %s20, 0
      %s242 = scalar_select %p241, %s20, 0
      %s243 = sadd.s32 %s242, %s240
      %s244 = smul.addr %s243, 4
      %s245 = scalar_lea.vmem %s1, %s244
      %s246 = smul.u32 16, %s21
      %p247 = scmp.lt.s32.totalorder %s20, 0
      %s248 = scalar_select %p247, %s20, 0
      %s249 = scalar_lea.vmem %s2, %s248
      %s250 = smul.u32 32, %s19
      %p251 = scmp.lt.s32.totalorder %s250, 63
      %s252 = scalar_select %p251, %s250, 63
      %p253 = scmp.lt.s32.totalorder %s20, 0
      %s254 = scalar_select %p253, %s20, 0
      %s255 = sadd.s32 %s254, %s252
      %s256 = smul.addr %s255, 4
      %s257 = scalar_lea.vmem %s3, %s256
      %s258 = smul.u32 32, %s19
      %v259 = vld [vmem:[%s236] sm:$0xf]
      %v260 = vld [vmem:[%s236 + $0x4] sm:$0xf]
      %v261 = vld [vmem:[%s236 + $0x8] sm:$0xf]
      %v262 = vld [vmem:[%s236 + $0xc] sm:$0xf]
      %v263 = vld [vmem:[%s236 + $0x10] sm:$0xf]
      %v264 = vld [vmem:[%s236 + $0x14] sm:$0xf]
      %v265 = vld [vmem:[%s236 + $0x18] sm:$0xf]
      %v266 = vld [vmem:[%s236 + $0x1c] sm:$0xf]
      %v267 = vld [vmem:[%s236 + $0x20] sm:$0xf]
      %v268 = vld [vmem:[%s236 + $0x24] sm:$0xf]
      %v269 = vld [vmem:[%s236 + $0x28] sm:$0xf]
      %v270 = vld [vmem:[%s236 + $0x2c] sm:$0xf]
      %v271 = vld [vmem:[%s236 + $0x30] sm:$0xf]
      %v272 = vld [vmem:[%s236 + $0x34] sm:$0xf]
      %v273 = vld [vmem:[%s236 + $0x38] sm:$0xf]
      %v274 = vld [vmem:[%s236 + $0x3c] sm:$0xf]
      %v275 = vld [vmem:[%s236 + $0x40] sm:$0xf]
      %v276 = vld [vmem:[%s236 + $0x44] sm:$0xf]
      %v277 = vld [vmem:[%s236 + $0x48] sm:$0xf]
      %v278 = vld [vmem:[%s236 + $0x4c] sm:$0xf]
      %v279 = vld [vmem:[%s236 + $0x50] sm:$0xf]
      %v280 = vld [vmem:[%s236 + $0x54] sm:$0xf]
      %v281 = vld [vmem:[%s236 + $0x58] sm:$0xf]
      %v282 = vld [vmem:[%s236 + $0x5c] sm:$0xf]
      %v283 = vld [vmem:[%s236 + $0x60] sm:$0xf]
      %v284 = vld [vmem:[%s236 + $0x64] sm:$0xf]
      %v285 = vld [vmem:[%s236 + $0x68] sm:$0xf]
      %v286 = vld [vmem:[%s236 + $0x6c] sm:$0xf]
      %v287 = vld [vmem:[%s236 + $0x70] sm:$0xf]
      %v288 = vld [vmem:[%s236 + $0x74] sm:$0xf]
      %v289 = vld [vmem:[%s236 + $0x78] sm:$0xf]
      %v290 = vld [vmem:[%s236 + $0x7c] sm:$0xf]
      %v291 = vld [vmem:[%s245] sm:$0xf]
      %v292 = vld [vmem:[%s245 + $0x4] sm:$0xf]
      %v293 = vld [vmem:[%s245 + $0x8] sm:$0xf]
      %v294 = vld [vmem:[%s245 + $0xc] sm:$0xf]
      %v295 = vld [vmem:[%s245 + $0x10] sm:$0xf]
      %v296 = vld [vmem:[%s245 + $0x14] sm:$0xf]
      %v297 = vld [vmem:[%s245 + $0x18] sm:$0xf]
      %v298 = vld [vmem:[%s245 + $0x1c] sm:$0xf]
      %v299 = vld [vmem:[%s245 + $0x20] sm:$0xf]
      %v300 = vld [vmem:[%s245 + $0x24] sm:$0xf]
      %v301 = vld [vmem:[%s245 + $0x28] sm:$0xf]
      %v302 = vld [vmem:[%s245 + $0x2c] sm:$0xf]
      %v303 = vld [vmem:[%s245 + $0x30] sm:$0xf]
      %v304 = vld [vmem:[%s245 + $0x34] sm:$0xf]
      %v305 = vld [vmem:[%s245 + $0x38] sm:$0xf]
      %v306 = vld [vmem:[%s245 + $0x3c] sm:$0xf]
      %v307 = vld [vmem:[%s249] sm:$0x1]
      %v309 = vperm.slane %v307, 0
      %v343 = vunpack.c.l.b16 %v259
      %v344 = vunpack.c.l.b16 %v260
      %v345 = vunpack.c.l.b16 %v261
      %v346 = vunpack.c.l.b16 %v262
      %v347 = vunpack.c.l.b16 %v263
      %v348 = vunpack.c.l.b16 %v264
      %v349 = vunpack.c.l.b16 %v265
      %v350 = vunpack.c.l.b16 %v266
      %v351 = vunpack.c.l.b16 %v267
      %v352 = vunpack.c.l.b16 %v268
      %v353 = vunpack.c.l.b16 %v269
      %v354 = vunpack.c.l.b16 %v270
      %v355 = vunpack.c.l.b16 %v271
      %v356 = vunpack.c.l.b16 %v272
      %v357 = vunpack.c.l.b16 %v273
      %v358 = vunpack.c.l.b16 %v274
      %v359 = vunpack.c.l.b16 %v275
      %v360 = vunpack.c.l.b16 %v276
      %v361 = vunpack.c.l.b16 %v277
      %v362 = vunpack.c.l.b16 %v278
      %v363 = vunpack.c.l.b16 %v279
      %v364 = vunpack.c.l.b16 %v280
      %v365 = vunpack.c.l.b16 %v281
      %v366 = vunpack.c.l.b16 %v282
      %v367 = vunpack.c.l.b16 %v283
      %v368 = vunpack.c.l.b16 %v284
      %v369 = vunpack.c.l.b16 %v285
      %v370 = vunpack.c.l.b16 %v286
      %v371 = vunpack.c.l.b16 %v287
      %v372 = vunpack.c.l.b16 %v288
      %v373 = vunpack.c.l.b16 %v289
      %v374 = vunpack.c.l.b16 %v290
      %v375 = vpack.c.b16 %v344, %v343
      %v376 = vpack.c.b16 %v346, %v345
      %v377 = vpack.c.b16 %v348, %v347
      %v378 = vpack.c.b16 %v350, %v349
      %v379 = vpack.c.b16 %v352, %v351
      %v380 = vpack.c.b16 %v354, %v353
      %v381 = vpack.c.b16 %v356, %v355
      %v382 = vpack.c.b16 %v358, %v357
      %v383 = vpack.c.b16 %v360, %v359
      %v384 = vpack.c.b16 %v362, %v361
      %v385 = vpack.c.b16 %v364, %v363
      %v386 = vpack.c.b16 %v366, %v365
      %v387 = vpack.c.b16 %v368, %v367
      %v388 = vpack.c.b16 %v370, %v369
      %v389 = vpack.c.b16 %v372, %v371
      %v390 = vpack.c.b16 %v374, %v373
      %v423 = vunpack.c.l.b16 %v291
      %v424 = vunpack.c.l.b16 %v292
      %v425 = vunpack.c.l.b16 %v293
      %v426 = vunpack.c.l.b16 %v294
      %v427 = vunpack.c.l.b16 %v295
      %v428 = vunpack.c.l.b16 %v296
      %v429 = vunpack.c.l.b16 %v297
      %v430 = vunpack.c.l.b16 %v298
      %v431 = vunpack.c.l.b16 %v299
      %v432 = vunpack.c.l.b16 %v300
      %v433 = vunpack.c.l.b16 %v301
      %v434 = vunpack.c.l.b16 %v302
      %v435 = vunpack.c.l.b16 %v303
      %v436 = vunpack.c.l.b16 %v304
      %v437 = vunpack.c.l.b16 %v305
      %v438 = vunpack.c.l.b16 %v306
      %v439 = vpack.c.b16 %v424, %v423
      %v440 = vpack.c.b16 %v426, %v425
      %v441 = vpack.c.b16 %v428, %v427
      %v442 = vpack.c.b16 %v430, %v429
      %v443 = vpack.c.b16 %v432, %v431
      %v444 = vpack.c.b16 %v434, %v433
      %v445 = vpack.c.b16 %v436, %v435
      %v446 = vpack.c.b16 %v438, %v437
      %455 = vmatpush.bf16.msra.mxu0 %v446
      %456 = vmatpush.bf16.msra.mxu0 %v445
      %457 = vmatpush.bf16.msra.mxu0 %v444
      %458 = vmatpush.bf16.msra.mxu0 %v443
      %459 = vmatpush.bf16.msra.mxu0 %v442
      %460 = vmatpush.bf16.msra.mxu0 %v441
      %461 = vmatpush.bf16.msra.mxu0 %v440
      %462 = vmatpush.bf16.msra.mxu0 %v439
      %463 = vmatmul.bf16.gmra.mxu0 %v375
      %v464 = vpop.f32.mrf.mxu0
      %v465 = vadd.f32 %v309, %v464
      %v466 = vpop.f32.mrf.mxu0
      %v467 = vadd.f32 %v309, %v466
      %468 = vmatmul.bf16.gmra.mxu0 %v376
      %v469 = vpop.f32.mrf.mxu0
      %v470 = vadd.f32 %v309, %v469
      %v471 = vpop.f32.mrf.mxu0
      %v472 = vadd.f32 %v309, %v471
      %473 = vmatmul.bf16.gmra.mxu0 %v377
      %v474 = vpop.f32.mrf.mxu0
      %v475 = vadd.f32 %v309, %v474
      %v476 = vpop.f32.mrf.mxu0
      %v477 = vadd.f32 %v309, %v476
      %478 = vmatmul.bf16.gmra.mxu0 %v378
      %v479 = vpop.f32.mrf.mxu0
      %v480 = vadd.f32 %v309, %v479
      %v481 = vpop.f32.mrf.mxu0
      %v482 = vadd.f32 %v309, %v481
      %483 = vmatmul.bf16.gmra.mxu0 %v379
      %v484 = vpop.f32.mrf.mxu0
      %v485 = vadd.f32 %v309, %v484
      %v486 = vpop.f32.mrf.mxu0
      %v487 = vadd.f32 %v309, %v486
      %488 = vmatmul.bf16.gmra.mxu0 %v380
      %v489 = vpop.f32.mrf.mxu0
      %v490 = vadd.f32 %v309, %v489
      %v491 = vpop.f32.mrf.mxu0
      %v492 = vadd.f32 %v309, %v491
      %493 = vmatmul.bf16.gmra.mxu0 %v381
      %v494 = vpop.f32.mrf.mxu0
      %v495 = vadd.f32 %v309, %v494
      %v496 = vpop.f32.mrf.mxu0
      %v497 = vadd.f32 %v309, %v496
      %498 = vmatmul.bf16.gmra.mxu0 %v382
      %v499 = vpop.f32.mrf.mxu0
      %v500 = vadd.f32 %v309, %v499
      %v501 = vpop.f32.mrf.mxu0
      %v502 = vadd.f32 %v309, %v501
      %503 = vmatmul.bf16.gmra.mxu0 %v383
      %v504 = vpop.f32.mrf.mxu0
      %v505 = vadd.f32 %v309, %v504
      %v506 = vpop.f32.mrf.mxu0
      %v507 = vadd.f32 %v309, %v506
      %508 = vmatmul.bf16.gmra.mxu0 %v384
      %v509 = vpop.f32.mrf.mxu0
      %v510 = vadd.f32 %v309, %v509
      %v511 = vpop.f32.mrf.mxu0
      %v512 = vadd.f32 %v309, %v511
      %513 = vmatmul.bf16.gmra.mxu0 %v385
      %v514 = vpop.f32.mrf.mxu0
      %v515 = vadd.f32 %v309, %v514
      %v516 = vpop.f32.mrf.mxu0
      %v517 = vadd.f32 %v309, %v516
      %518 = vmatmul.bf16.gmra.mxu0 %v386
      %v519 = vpop.f32.mrf.mxu0
      %v520 = vadd.f32 %v309, %v519
      %v521 = vpop.f32.mrf.mxu0
      %v522 = vadd.f32 %v309, %v521
      %523 = vmatmul.bf16.gmra.mxu0 %v387
      %v524 = vpop.f32.mrf.mxu0
      %v525 = vadd.f32 %v309, %v524
      %v526 = vpop.f32.mrf.mxu0
      %v527 = vadd.f32 %v309, %v526
      %528 = vmatmul.bf16.gmra.mxu0 %v388
      %v529 = vpop.f32.mrf.mxu0
      %v530 = vadd.f32 %v309, %v529
      %v531 = vpop.f32.mrf.mxu0
      %v532 = vadd.f32 %v309, %v531
      %533 = vmatmul.bf16.gmra.mxu0 %v389
      %v534 = vpop.f32.mrf.mxu0
      %v535 = vadd.f32 %v309, %v534
      %v536 = vpop.f32.mrf.mxu0
      %v537 = vadd.f32 %v309, %v536
      %538 = vmatmul.bf16.gmra.mxu0 %v390
      %v539 = vpop.f32.mrf.mxu0
      %v540 = vadd.f32 %v309, %v539
      %v541 = vpop.f32.mrf.mxu0
      %v542 = vadd.f32 %v309, %v541
      %543 = vdwg.mxu0
      %v544 = vxor.u32 %v465, 2147483648
      %v545 = vxor.u32 %v467, 2147483648
      %v546 = vxor.u32 %v470, 2147483648
      %v547 = vxor.u32 %v472, 2147483648
      %v548 = vxor.u32 %v475, 2147483648
      %v549 = vxor.u32 %v477, 2147483648
      %v550 = vxor.u32 %v480, 2147483648
      %v551 = vxor.u32 %v482, 2147483648
      %v552 = vxor.u32 %v485, 2147483648
      %v553 = vxor.u32 %v487, 2147483648
      %v554 = vxor.u32 %v490, 2147483648
      %v555 = vxor.u32 %v492, 2147483648
      %v556 = vxor.u32 %v495, 2147483648
      %v557 = vxor.u32 %v497, 2147483648
      %v558 = vxor.u32 %v500, 2147483648
      %v559 = vxor.u32 %v502, 2147483648
      %v560 = vxor.u32 %v505, 2147483648
      %v561 = vxor.u32 %v507, 2147483648
      %v562 = vxor.u32 %v510, 2147483648
      %v563 = vxor.u32 %v512, 2147483648
      %v564 = vxor.u32 %v515, 2147483648
      %v565 = vxor.u32 %v517, 2147483648
      %v566 = vxor.u32 %v520, 2147483648
      %v567 = vxor.u32 %v522, 2147483648
      %v568 = vxor.u32 %v525, 2147483648
      %v569 = vxor.u32 %v527, 2147483648
      %v570 = vxor.u32 %v530, 2147483648
      %v571 = vxor.u32 %v532, 2147483648
      %v572 = vxor.u32 %v535, 2147483648
      %v573 = vxor.u32 %v537, 2147483648
      %v574 = vxor.u32 %v540, 2147483648
      %v575 = vxor.u32 %v542, 2147483648
      %v576 = vmul.f32 %v544, 1.442695
      %v577 = vpow.pop %v576
      %v578 = vmul.f32 %v545, 1.442695
      %v579 = vpow.pop %v578
      %v580 = vmul.f32 %v546, 1.442695
      %v581 = vpow.pop %v580
      %v582 = vmul.f32 %v547, 1.442695
      %v583 = vpow.pop %v582
      %v584 = vmul.f32 %v548, 1.442695
      %v585 = vpow.pop %v584
      %v586 = vmul.f32 %v549, 1.442695
      %v587 = vpow.pop %v586
      %v588 = vmul.f32 %v550, 1.442695
      %v589 = vpow.pop %v588
      %v590 = vmul.f32 %v551, 1.442695
      %v591 = vpow.pop %v590
      %v592 = vmul.f32 %v552, 1.442695
      %v593 = vpow.pop %v592
      %v594 = vmul.f32 %v553, 1.442695
      %v595 = vpow.pop %v594
      %v596 = vmul.f32 %v554, 1.442695
      %v597 = vpow.pop %v596
      %v598 = vmul.f32 %v555, 1.442695
      %v599 = vpow.pop %v598
      %v600 = vmul.f32 %v556, 1.442695
      %v601 = vpow.pop %v600
      %v602 = vmul.f32 %v557, 1.442695
      %v603 = vpow.pop %v602
      %v604 = vmul.f32 %v558, 1.442695
      %v605 = vpow.pop %v604
      %v606 = vmul.f32 %v559, 1.442695
      %v607 = vpow.pop %v606
      %v608 = vmul.f32 %v560, 1.442695
      %v609 = vpow.pop %v608
      %v610 = vmul.f32 %v561, 1.442695
      %v611 = vpow.pop %v610
      %v612 = vmul.f32 %v562, 1.442695
      %v613 = vpow.pop %v612
      %v614 = vmul.f32 %v563, 1.442695
      %v615 = vpow.pop %v614
      %v616 = vmul.f32 %v564, 1.442695
      %v617 = vpow.pop %v616
      %v618 = vmul.f32 %v565, 1.442695
      %v619 = vpow.pop %v618
      %v620 = vmul.f32 %v566, 1.442695
      %v621 = vpow.pop %v620
      %v622 = vmul.f32 %v567, 1.442695
      %v623 = vpow.pop %v622
      %v624 = vmul.f32 %v568, 1.442695
      %v625 = vpow.pop %v624
      %v626 = vmul.f32 %v569, 1.442695
      %v627 = vpow.pop %v626
      %v628 = vmul.f32 %v570, 1.442695
      %v629 = vpow.pop %v628
      %v630 = vmul.f32 %v571, 1.442695
      %v631 = vpow.pop %v630
      %v632 = vmul.f32 %v572, 1.442695
      %v633 = vpow.pop %v632
      %v634 = vmul.f32 %v573, 1.442695
      %v635 = vpow.pop %v634
      %v636 = vmul.f32 %v574, 1.442695
      %v637 = vpow.pop %v636
      %v638 = vmul.f32 %v575, 1.442695
      %v639 = vpow.pop %v638
      %v640 = vadd.f32 %v577, 1.0
      %v641 = vadd.f32 %v579, 1.0
      %v642 = vadd.f32 %v581, 1.0
      %v643 = vadd.f32 %v583, 1.0
      %v644 = vadd.f32 %v585, 1.0
      %v645 = vadd.f32 %v587, 1.0
      %v646 = vadd.f32 %v589, 1.0
      %v647 = vadd.f32 %v591, 1.0
      %v648 = vadd.f32 %v593, 1.0
      %v649 = vadd.f32 %v595, 1.0
      %v650 = vadd.f32 %v597, 1.0
      %v651 = vadd.f32 %v599, 1.0
      %v652 = vadd.f32 %v601, 1.0
      %v653 = vadd.f32 %v603, 1.0
      %v654 = vadd.f32 %v605, 1.0
      %v655 = vadd.f32 %v607, 1.0
      %v656 = vadd.f32 %v609, 1.0
      %v657 = vadd.f32 %v611, 1.0
      %v658 = vadd.f32 %v613, 1.0
      %v659 = vadd.f32 %v615, 1.0
      %v660 = vadd.f32 %v617, 1.0
      %v661 = vadd.f32 %v619, 1.0
      %v662 = vadd.f32 %v621, 1.0
      %v663 = vadd.f32 %v623, 1.0
      %v664 = vadd.f32 %v625, 1.0
      %v665 = vadd.f32 %v627, 1.0
      %v666 = vadd.f32 %v629, 1.0
      %v667 = vadd.f32 %v631, 1.0
      %v668 = vadd.f32 %v633, 1.0
      %v669 = vadd.f32 %v635, 1.0
      %v670 = vadd.f32 %v637, 1.0
      %v671 = vadd.f32 %v639, 1.0
      %v672 = vrcp.pop %v640
      %v673 = vmul.f32 %v640, %v672
      %v674 = vsub.f32 1.0, %v673
      %v675 = vmul.f32 %v672, %v674
      %v676 = vadd.f32 %v672, %v675
      %vm677 = vweird.f32 %v640
      %vm678 = vweird.f32 %v672
      %vm679 = vmor %vm677, %vm678
      %v680 = vsel %vm679, %v672, %v676
      %v681 = vand.u32 2147483647, %v640
      %vm682 = vcmp.eq.f32.partialorder %v681, 8.507059e+37
      %v683 = vand.u32 %v640, 2147483648
      %v684 = vor.u32 1.1754944e-38, %v683
      %v685 = vsel %vm682, %v684, %v680
      %v686 = vmul.f32 1.0, %v685
      %v687 = vrcp.pop %v641
      %v688 = vmul.f32 %v641, %v687
      %v689 = vsub.f32 1.0, %v688
      %v690 = vmul.f32 %v687, %v689
      %v691 = vadd.f32 %v687, %v690
      %vm692 = vweird.f32 %v641
      %vm693 = vweird.f32 %v687
      %vm694 = vmor %vm692, %vm693
      %v695 = vsel %vm694, %v687, %v691
      %v696 = vand.u32 2147483647, %v641
      %vm697 = vcmp.eq.f32.partialorder %v696, 8.507059e+37
      %v698 = vand.u32 %v641, 2147483648
      %v699 = vor.u32 1.1754944e-38, %v698
      %v700 = vsel %vm697, %v699, %v695
      %v701 = vmul.f32 1.0, %v700
      %v702 = vrcp.pop %v642
      %v703 = vmul.f32 %v642, %v702
      %v704 = vsub.f32 1.0, %v703
      %v705 = vmul.f32 %v702, %v704
      %v706 = vadd.f32 %v702, %v705
      %vm707 = vweird.f32 %v642
      %vm708 = vweird.f32 %v702
      %vm709 = vmor %vm707, %vm708
      %v710 = vsel %vm709, %v702, %v706
      %v711 = vand.u32 2147483647, %v642
      %vm712 = vcmp.eq.f32.partialorder %v711, 8.507059e+37
      %v713 = vand.u32 %v642, 2147483648
      %v714 = vor.u32 1.1754944e-38, %v713
      %v715 = vsel %vm712, %v714, %v710
      %v716 = vmul.f32 1.0, %v715
      %v717 = vrcp.pop %v643
      %v718 = vmul.f32 %v643, %v717
      %v719 = vsub.f32 1.0, %v718
      %v720 = vmul.f32 %v717, %v719
      %v721 = vadd.f32 %v717, %v720
      %vm722 = vweird.f32 %v643
      %vm723 = vweird.f32 %v717
      %vm724 = vmor %vm722, %vm723
      %v725 = vsel %vm724, %v717, %v721
      %v726 = vand.u32 2147483647, %v643
      %vm727 = vcmp.eq.f32.partialorder %v726, 8.507059e+37
      %v728 = vand.u32 %v643, 2147483648
      %v729 = vor.u32 1.1754944e-38, %v728
      %v730 = vsel %vm727, %v729, %v725
      %v731 = vmul.f32 1.0, %v730
      %v732 = vrcp.pop %v644
      %v733 = vmul.f32 %v644, %v732
      %v734 = vsub.f32 1.0, %v733
      %v735 = vmul.f32 %v732, %v734
      %v736 = vadd.f32 %v732, %v735
      %vm737 = vweird.f32 %v644
      %vm738 = vweird.f32 %v732
      %vm739 = vmor %vm737, %vm738
      %v740 = vsel %vm739, %v732, %v736
      %v741 = vand.u32 2147483647, %v644
      %vm742 = vcmp.eq.f32.partialorder %v741, 8.507059e+37
      %v743 = vand.u32 %v644, 2147483648
      %v744 = vor.u32 1.1754944e-38, %v743
      %v745 = vsel %vm742, %v744, %v740
      %v746 = vmul.f32 1.0, %v745
      %v747 = vrcp.pop %v645
      %v748 = vmul.f32 %v645, %v747
      %v749 = vsub.f32 1.0, %v748
      %v750 = vmul.f32 %v747, %v749
      %v751 = vadd.f32 %v747, %v750
      %vm752 = vweird.f32 %v645
      %vm753 = vweird.f32 %v747
      %vm754 = vmor %vm752, %vm753
      %v755 = vsel %vm754, %v747, %v751
      %v756 = vand.u32 2147483647, %v645
      %vm757 = vcmp.eq.f32.partialorder %v756, 8.507059e+37
      %v758 = vand.u32 %v645, 2147483648
      %v759 = vor.u32 1.1754944e-38, %v758
      %v760 = vsel %vm757, %v759, %v755
      %v761 = vmul.f32 1.0, %v760
      %v762 = vrcp.pop %v646
      %v763 = vmul.f32 %v646, %v762
      %v764 = vsub.f32 1.0, %v763
      %v765 = vmul.f32 %v762, %v764
      %v766 = vadd.f32 %v762, %v765
      %vm767 = vweird.f32 %v646
      %vm768 = vweird.f32 %v762
      %vm769 = vmor %vm767, %vm768
      %v770 = vsel %vm769, %v762, %v766
      %v771 = vand.u32 2147483647, %v646
      %vm772 = vcmp.eq.f32.partialorder %v771, 8.507059e+37
      %v773 = vand.u32 %v646, 2147483648
      %v774 = vor.u32 1.1754944e-38, %v773
      %v775 = vsel %vm772, %v774, %v770
      %v776 = vmul.f32 1.0, %v775
      %v777 = vrcp.pop %v647
      %v778 = vmul.f32 %v647, %v777
      %v779 = vsub.f32 1.0, %v778
      %v780 = vmul.f32 %v777, %v779
      %v781 = vadd.f32 %v777, %v780
      %vm782 = vweird.f32 %v647
      %vm783 = vweird.f32 %v777
      %vm784 = vmor %vm782, %vm783
      %v785 = vsel %vm784, %v777, %v781
      %v786 = vand.u32 2147483647, %v647
      %vm787 = vcmp.eq.f32.partialorder %v786, 8.507059e+37
      %v788 = vand.u32 %v647, 2147483648
      %v789 = vor.u32 1.1754944e-38, %v788
      %v790 = vsel %vm787, %v789, %v785
      %v791 = vmul.f32 1.0, %v790
      %v792 = vrcp.pop %v648
      %v793 = vmul.f32 %v648, %v792
      %v794 = vsub.f32 1.0, %v793
      %v795 = vmul.f32 %v792, %v794
      %v796 = vadd.f32 %v792, %v795
      %vm797 = vweird.f32 %v648
      %vm798 = vweird.f32 %v792
      %vm799 = vmor %vm797, %vm798
      %v800 = vsel %vm799, %v792, %v796
      %v801 = vand.u32 2147483647, %v648
      %vm802 = vcmp.eq.f32.partialorder %v801, 8.507059e+37
      %v803 = vand.u32 %v648, 2147483648
      %v804 = vor.u32 1.1754944e-38, %v803
      %v805 = vsel %vm802, %v804, %v800
      %v806 = vmul.f32 1.0, %v805
      %v807 = vrcp.pop %v649
      %v808 = vmul.f32 %v649, %v807
      %v809 = vsub.f32 1.0, %v808
      %v810 = vmul.f32 %v807, %v809
      %v811 = vadd.f32 %v807, %v810
      %vm812 = vweird.f32 %v649
      %vm813 = vweird.f32 %v807
      %vm814 = vmor %vm812, %vm813
      %v815 = vsel %vm814, %v807, %v811
      %v816 = vand.u32 2147483647, %v649
      %vm817 = vcmp.eq.f32.partialorder %v816, 8.507059e+37
      %v818 = vand.u32 %v649, 2147483648
      %v819 = vor.u32 1.1754944e-38, %v818
      %v820 = vsel %vm817, %v819, %v815
      %v821 = vmul.f32 1.0, %v820
      %v822 = vrcp.pop %v650
      %v823 = vmul.f32 %v650, %v822
      %v824 = vsub.f32 1.0, %v823
      %v825 = vmul.f32 %v822, %v824
      %v826 = vadd.f32 %v822, %v825
      %vm827 = vweird.f32 %v650
      %vm828 = vweird.f32 %v822
      %vm829 = vmor %vm827, %vm828
      %v830 = vsel %vm829, %v822, %v826
      %v831 = vand.u32 2147483647, %v650
      %vm832 = vcmp.eq.f32.partialorder %v831, 8.507059e+37
      %v833 = vand.u32 %v650, 2147483648
      %v834 = vor.u32 1.1754944e-38, %v833
      %v835 = vsel %vm832, %v834, %v830
      %v836 = vmul.f32 1.0, %v835
      %v837 = vrcp.pop %v651
      %v838 = vmul.f32 %v651, %v837
      %v839 = vsub.f32 1.0, %v838
      %v840 = vmul.f32 %v837, %v839
      %v841 = vadd.f32 %v837, %v840
      %vm842 = vweird.f32 %v651
      %vm843 = vweird.f32 %v837
      %vm844 = vmor %vm842, %vm843
      %v845 = vsel %vm844, %v837, %v841
      %v846 = vand.u32 2147483647, %v651
      %vm847 = vcmp.eq.f32.partialorder %v846, 8.507059e+37
      %v848 = vand.u32 %v651, 2147483648
      %v849 = vor.u32 1.1754944e-38, %v848
      %v850 = vsel %vm847, %v849, %v845
      %v851 = vmul.f32 1.0, %v850
      %v852 = vrcp.pop %v652
      %v853 = vmul.f32 %v652, %v852
      %v854 = vsub.f32 1.0, %v853
      %v855 = vmul.f32 %v852, %v854
      %v856 = vadd.f32 %v852, %v855
      %vm857 = vweird.f32 %v652
      %vm858 = vweird.f32 %v852
      %vm859 = vmor %vm857, %vm858
      %v860 = vsel %vm859, %v852, %v856
      %v861 = vand.u32 2147483647, %v652
      %vm862 = vcmp.eq.f32.partialorder %v861, 8.507059e+37
      %v863 = vand.u32 %v652, 2147483648
      %v864 = vor.u32 1.1754944e-38, %v863
      %v865 = vsel %vm862, %v864, %v860
      %v866 = vmul.f32 1.0, %v865
      %v867 = vrcp.pop %v653
      %v868 = vmul.f32 %v653, %v867
      %v869 = vsub.f32 1.0, %v868
      %v870 = vmul.f32 %v867, %v869
      %v871 = vadd.f32 %v867, %v870
      %vm872 = vweird.f32 %v653
      %vm873 = vweird.f32 %v867
      %vm874 = vmor %vm872, %vm873
      %v875 = vsel %vm874, %v867, %v871
      %v876 = vand.u32 2147483647, %v653
      %vm877 = vcmp.eq.f32.partialorder %v876, 8.507059e+37
      %v878 = vand.u32 %v653, 2147483648
      %v879 = vor.u32 1.1754944e-38, %v878
      %v880 = vsel %vm877, %v879, %v875
      %v881 = vmul.f32 1.0, %v880
      %v882 = vrcp.pop %v654
      %v883 = vmul.f32 %v654, %v882
      %v884 = vsub.f32 1.0, %v883
      %v885 = vmul.f32 %v882, %v884
      %v886 = vadd.f32 %v882, %v885
      %vm887 = vweird.f32 %v654
      %vm888 = vweird.f32 %v882
      %vm889 = vmor %vm887, %vm888
      %v890 = vsel %vm889, %v882, %v886
      %v891 = vand.u32 2147483647, %v654
      %vm892 = vcmp.eq.f32.partialorder %v891, 8.507059e+37
      %v893 = vand.u32 %v654, 2147483648
      %v894 = vor.u32 1.1754944e-38, %v893
      %v895 = vsel %vm892, %v894, %v890
      %v896 = vmul.f32 1.0, %v895
      %v897 = vrcp.pop %v655
      %v898 = vmul.f32 %v655, %v897
      %v899 = vsub.f32 1.0, %v898
      %v900 = vmul.f32 %v897, %v899
      %v901 = vadd.f32 %v897, %v900
      %vm902 = vweird.f32 %v655
      %vm903 = vweird.f32 %v897
      %vm904 = vmor %vm902, %vm903
      %v905 = vsel %vm904, %v897, %v901
      %v906 = vand.u32 2147483647, %v655
      %vm907 = vcmp.eq.f32.partialorder %v906, 8.507059e+37
      %v908 = vand.u32 %v655, 2147483648
      %v909 = vor.u32 1.1754944e-38, %v908
      %v910 = vsel %vm907, %v909, %v905
      %v911 = vmul.f32 1.0, %v910
      %v912 = vrcp.pop %v656
      %v913 = vmul.f32 %v656, %v912
      %v914 = vsub.f32 1.0, %v913
      %v915 = vmul.f32 %v912, %v914
      %v916 = vadd.f32 %v912, %v915
      %vm917 = vweird.f32 %v656
      %vm918 = vweird.f32 %v912
      %vm919 = vmor %vm917, %vm918
      %v920 = vsel %vm919, %v912, %v916
      %v921 = vand.u32 2147483647, %v656
      %vm922 = vcmp.eq.f32.partialorder %v921, 8.507059e+37
      %v923 = vand.u32 %v656, 2147483648
      %v924 = vor.u32 1.1754944e-38, %v923
      %v925 = vsel %vm922, %v924, %v920
      %v926 = vmul.f32 1.0, %v925
      %v927 = vrcp.pop %v657
      %v928 = vmul.f32 %v657, %v927
      %v929 = vsub.f32 1.0, %v928
      %v930 = vmul.f32 %v927, %v929
      %v931 = vadd.f32 %v927, %v930
      %vm932 = vweird.f32 %v657
      %vm933 = vweird.f32 %v927
      %vm934 = vmor %vm932, %vm933
      %v935 = vsel %vm934, %v927, %v931
      %v936 = vand.u32 2147483647, %v657
      %vm937 = vcmp.eq.f32.partialorder %v936, 8.507059e+37
      %v938 = vand.u32 %v657, 2147483648
      %v939 = vor.u32 1.1754944e-38, %v938
      %v940 = vsel %vm937, %v939, %v935
      %v941 = vmul.f32 1.0, %v940
      %v942 = vrcp.pop %v658
      %v943 = vmul.f32 %v658, %v942
      %v944 = vsub.f32 1.0, %v943
      %v945 = vmul.f32 %v942, %v944
      %v946 = vadd.f32 %v942, %v945
      %vm947 = vweird.f32 %v658
      %vm948 = vweird.f32 %v942
      %vm949 = vmor %vm947, %vm948
      %v950 = vsel %vm949, %v942, %v946
      %v951 = vand.u32 2147483647, %v658
      %vm952 = vcmp.eq.f32.partialorder %v951, 8.507059e+37
      %v953 = vand.u32 %v658, 2147483648
      %v954 = vor.u32 1.1754944e-38, %v953
      %v955 = vsel %vm952, %v954, %v950
      %v956 = vmul.f32 1.0, %v955
      %v957 = vrcp.pop %v659
      %v958 = vmul.f32 %v659, %v957
      %v959 = vsub.f32 1.0, %v958
      %v960 = vmul.f32 %v957, %v959
      %v961 = vadd.f32 %v957, %v960
      %vm962 = vweird.f32 %v659
      %vm963 = vweird.f32 %v957
      %vm964 = vmor %vm962, %vm963
      %v965 = vsel %vm964, %v957, %v961
      %v966 = vand.u32 2147483647, %v659
      %vm967 = vcmp.eq.f32.partialorder %v966, 8.507059e+37
      %v968 = vand.u32 %v659, 2147483648
      %v969 = vor.u32 1.1754944e-38, %v968
      %v970 = vsel %vm967, %v969, %v965
      %v971 = vmul.f32 1.0, %v970
      %v972 = vrcp.pop %v660
      %v973 = vmul.f32 %v660, %v972
      %v974 = vsub.f32 1.0, %v973
      %v975 = vmul.f32 %v972, %v974
      %v976 = vadd.f32 %v972, %v975
      %vm977 = vweird.f32 %v660
      %vm978 = vweird.f32 %v972
      %vm979 = vmor %vm977, %vm978
      %v980 = vsel %vm979, %v972, %v976
      %v981 = vand.u32 2147483647, %v660
      %vm982 = vcmp.eq.f32.partialorder %v981, 8.507059e+37
      %v983 = vand.u32 %v660, 2147483648
      %v984 = vor.u32 1.1754944e-38, %v983
      %v985 = vsel %vm982, %v984, %v980
      %v986 = vmul.f32 1.0, %v985
      %v987 = vrcp.pop %v661
      %v988 = vmul.f32 %v661, %v987
      %v989 = vsub.f32 1.0, %v988
      %v990 = vmul.f32 %v987, %v989
      %v991 = vadd.f32 %v987, %v990
      %vm992 = vweird.f32 %v661
      %vm993 = vweird.f32 %v987
      %vm994 = vmor %vm992, %vm993
      %v995 = vsel %vm994, %v987, %v991
      %v996 = vand.u32 2147483647, %v661
      %vm997 = vcmp.eq.f32.partialorder %v996, 8.507059e+37
      %v998 = vand.u32 %v661, 2147483648
      %v999 = vor.u32 1.1754944e-38, %v998
      %v1000 = vsel %vm997, %v999, %v995
      %v1001 = vmul.f32 1.0, %v1000
      %v1002 = vrcp.pop %v662
      %v1003 = vmul.f32 %v662, %v1002
      %v1004 = vsub.f32 1.0, %v1003
      %v1005 = vmul.f32 %v1002, %v1004
      %v1006 = vadd.f32 %v1002, %v1005
      %vm1007 = vweird.f32 %v662
      %vm1008 = vweird.f32 %v1002
      %vm1009 = vmor %vm1007, %vm1008
      %v1010 = vsel %vm1009, %v1002, %v1006
      %v1011 = vand.u32 2147483647, %v662
      %vm1012 = vcmp.eq.f32.partialorder %v1011, 8.507059e+37
      %v1013 = vand.u32 %v662, 2147483648
      %v1014 = vor.u32 1.1754944e-38, %v1013
      %v1015 = vsel %vm1012, %v1014, %v1010
      %v1016 = vmul.f32 1.0, %v1015
      %v1017 = vrcp.pop %v663
      %v1018 = vmul.f32 %v663, %v1017
      %v1019 = vsub.f32 1.0, %v1018
      %v1020 = vmul.f32 %v1017, %v1019
      %v1021 = vadd.f32 %v1017, %v1020
      %vm1022 = vweird.f32 %v663
      %vm1023 = vweird.f32 %v1017
      %vm1024 = vmor %vm1022, %vm1023
      %v1025 = vsel %vm1024, %v1017, %v1021
      %v1026 = vand.u32 2147483647, %v663
      %vm1027 = vcmp.eq.f32.partialorder %v1026, 8.507059e+37
      %v1028 = vand.u32 %v663, 2147483648
      %v1029 = vor.u32 1.1754944e-38, %v1028
      %v1030 = vsel %vm1027, %v1029, %v1025
      %v1031 = vmul.f32 1.0, %v1030
      %v1032 = vrcp.pop %v664
      %v1033 = vmul.f32 %v664, %v1032
      %v1034 = vsub.f32 1.0, %v1033
      %v1035 = vmul.f32 %v1032, %v1034
      %v1036 = vadd.f32 %v1032, %v1035
      %vm1037 = vweird.f32 %v664
      %vm1038 = vweird.f32 %v1032
      %vm1039 = vmor %vm1037, %vm1038
      %v1040 = vsel %vm1039, %v1032, %v1036
      %v1041 = vand.u32 2147483647, %v664
      %vm1042 = vcmp.eq.f32.partialorder %v1041, 8.507059e+37
      %v1043 = vand.u32 %v664, 2147483648
      %v1044 = vor.u32 1.1754944e-38, %v1043
      %v1045 = vsel %vm1042, %v1044, %v1040
      %v1046 = vmul.f32 1.0, %v1045
      %v1047 = vrcp.pop %v665
      %v1048 = vmul.f32 %v665, %v1047
      %v1049 = vsub.f32 1.0, %v1048
      %v1050 = vmul.f32 %v1047, %v1049
      %v1051 = vadd.f32 %v1047, %v1050
      %vm1052 = vweird.f32 %v665
      %vm1053 = vweird.f32 %v1047
      %vm1054 = vmor %vm1052, %vm1053
      %v1055 = vsel %vm1054, %v1047, %v1051
      %v1056 = vand.u32 2147483647, %v665
      %vm1057 = vcmp.eq.f32.partialorder %v1056, 8.507059e+37
      %v1058 = vand.u32 %v665, 2147483648
      %v1059 = vor.u32 1.1754944e-38, %v1058
      %v1060 = vsel %vm1057, %v1059, %v1055
      %v1061 = vmul.f32 1.0, %v1060
      %v1062 = vrcp.pop %v666
      %v1063 = vmul.f32 %v666, %v1062
      %v1064 = vsub.f32 1.0, %v1063
      %v1065 = vmul.f32 %v1062, %v1064
      %v1066 = vadd.f32 %v1062, %v1065
      %vm1067 = vweird.f32 %v666
      %vm1068 = vweird.f32 %v1062
      %vm1069 = vmor %vm1067, %vm1068
      %v1070 = vsel %vm1069, %v1062, %v1066
      %v1071 = vand.u32 2147483647, %v666
      %vm1072 = vcmp.eq.f32.partialorder %v1071, 8.507059e+37
      %v1073 = vand.u32 %v666, 2147483648
      %v1074 = vor.u32 1.1754944e-38, %v1073
      %v1075 = vsel %vm1072, %v1074, %v1070
      %v1076 = vmul.f32 1.0, %v1075
      %v1077 = vrcp.pop %v667
      %v1078 = vmul.f32 %v667, %v1077
      %v1079 = vsub.f32 1.0, %v1078
      %v1080 = vmul.f32 %v1077, %v1079
      %v1081 = vadd.f32 %v1077, %v1080
      %vm1082 = vweird.f32 %v667
      %vm1083 = vweird.f32 %v1077
      %vm1084 = vmor %vm1082, %vm1083
      %v1085 = vsel %vm1084, %v1077, %v1081
      %v1086 = vand.u32 2147483647, %v667
      %vm1087 = vcmp.eq.f32.partialorder %v1086, 8.507059e+37
      %v1088 = vand.u32 %v667, 2147483648
      %v1089 = vor.u32 1.1754944e-38, %v1088
      %v1090 = vsel %vm1087, %v1089, %v1085
      %v1091 = vmul.f32 1.0, %v1090
      %v1092 = vrcp.pop %v668
      %v1093 = vmul.f32 %v668, %v1092
      %v1094 = vsub.f32 1.0, %v1093
      %v1095 = vmul.f32 %v1092, %v1094
      %v1096 = vadd.f32 %v1092, %v1095
      %vm1097 = vweird.f32 %v668
      %vm1098 = vweird.f32 %v1092
      %vm1099 = vmor %vm1097, %vm1098
      %v1100 = vsel %vm1099, %v1092, %v1096
      %v1101 = vand.u32 2147483647, %v668
      %vm1102 = vcmp.eq.f32.partialorder %v1101, 8.507059e+37
      %v1103 = vand.u32 %v668, 2147483648
      %v1104 = vor.u32 1.1754944e-38, %v1103
      %v1105 = vsel %vm1102, %v1104, %v1100
      %v1106 = vmul.f32 1.0, %v1105
      %v1107 = vrcp.pop %v669
      %v1108 = vmul.f32 %v669, %v1107
      %v1109 = vsub.f32 1.0, %v1108
      %v1110 = vmul.f32 %v1107, %v1109
      %v1111 = vadd.f32 %v1107, %v1110
      %vm1112 = vweird.f32 %v669
      %vm1113 = vweird.f32 %v1107
      %vm1114 = vmor %vm1112, %vm1113
      %v1115 = vsel %vm1114, %v1107, %v1111
      %v1116 = vand.u32 2147483647, %v669
      %vm1117 = vcmp.eq.f32.partialorder %v1116, 8.507059e+37
      %v1118 = vand.u32 %v669, 2147483648
      %v1119 = vor.u32 1.1754944e-38, %v1118
      %v1120 = vsel %vm1117, %v1119, %v1115
      %v1121 = vmul.f32 1.0, %v1120
      %v1122 = vrcp.pop %v670
      %v1123 = vmul.f32 %v670, %v1122
      %v1124 = vsub.f32 1.0, %v1123
      %v1125 = vmul.f32 %v1122, %v1124
      %v1126 = vadd.f32 %v1122, %v1125
      %vm1127 = vweird.f32 %v670
      %vm1128 = vweird.f32 %v1122
      %vm1129 = vmor %vm1127, %vm1128
      %v1130 = vsel %vm1129, %v1122, %v1126
      %v1131 = vand.u32 2147483647, %v670
      %vm1132 = vcmp.eq.f32.partialorder %v1131, 8.507059e+37
      %v1133 = vand.u32 %v670, 2147483648
      %v1134 = vor.u32 1.1754944e-38, %v1133
      %v1135 = vsel %vm1132, %v1134, %v1130
      %v1136 = vmul.f32 1.0, %v1135
      %v1137 = vrcp.pop %v671
      %v1138 = vmul.f32 %v671, %v1137
      %v1139 = vsub.f32 1.0, %v1138
      %v1140 = vmul.f32 %v1137, %v1139
      %v1141 = vadd.f32 %v1137, %v1140
      %vm1142 = vweird.f32 %v671
      %vm1143 = vweird.f32 %v1137
      %vm1144 = vmor %vm1142, %vm1143
      %v1145 = vsel %vm1144, %v1137, %v1141
      %v1146 = vand.u32 2147483647, %v671
      %vm1147 = vcmp.eq.f32.partialorder %v1146, 8.507059e+37
      %v1148 = vand.u32 %v671, 2147483648
      %v1149 = vor.u32 1.1754944e-38, %v1148
      %v1150 = vsel %vm1147, %v1149, %v1145
      %v1151 = vmul.f32 1.0, %v1150
      %v1152 = vpack.c.bf16 %v686, %v686
      %v1153 = vpack.c.bf16 %v701, %v701
      %v1154 = vpack.c.bf16 %v716, %v716
      %v1155 = vpack.c.bf16 %v731, %v731
      %v1156 = vpack.c.bf16 %v746, %v746
      %v1157 = vpack.c.bf16 %v761, %v761
      %v1158 = vpack.c.bf16 %v776, %v776
      %v1159 = vpack.c.bf16 %v791, %v791
      %v1160 = vpack.c.bf16 %v806, %v806
      %v1161 = vpack.c.bf16 %v821, %v821
      %v1162 = vpack.c.bf16 %v836, %v836
      %v1163 = vpack.c.bf16 %v851, %v851
      %v1164 = vpack.c.bf16 %v866, %v866
      %v1165 = vpack.c.bf16 %v881, %v881
      %v1166 = vpack.c.bf16 %v896, %v896
      %v1167 = vpack.c.bf16 %v911, %v911
      %v1168 = vpack.c.bf16 %v926, %v926
      %v1169 = vpack.c.bf16 %v941, %v941
      %v1170 = vpack.c.bf16 %v956, %v956
      %v1171 = vpack.c.bf16 %v971, %v971
      %v1172 = vpack.c.bf16 %v986, %v986
      %v1173 = vpack.c.bf16 %v1001, %v1001
      %v1174 = vpack.c.bf16 %v1016, %v1016
      %v1175 = vpack.c.bf16 %v1031, %v1031
      %v1176 = vpack.c.bf16 %v1046, %v1046
      %v1177 = vpack.c.bf16 %v1061, %v1061
      %v1178 = vpack.c.bf16 %v1076, %v1076
      %v1179 = vpack.c.bf16 %v1091, %v1091
      %v1180 = vpack.c.bf16 %v1106, %v1106
      %v1181 = vpack.c.bf16 %v1121, %v1121
      %v1182 = vpack.c.bf16 %v1136, %v1136
      %v1183 = vpack.c.bf16 %v1151, %v1151
      %1184 = vst [vmem:[%s257] sm:$0xf] %v1152
      %1185 = vst [vmem:[%s257 + $0x4] sm:$0xf] %v1153
      %1186 = vst [vmem:[%s257 + $0x8] sm:$0xf] %v1154
      %1187 = vst [vmem:[%s257 + $0xc] sm:$0xf] %v1155
      %1188 = vst [vmem:[%s257 + $0x10] sm:$0xf] %v1156
      %1189 = vst [vmem:[%s257 + $0x14] sm:$0xf] %v1157
      %1190 = vst [vmem:[%s257 + $0x18] sm:$0xf] %v1158
      %1191 = vst [vmem:[%s257 + $0x1c] sm:$0xf] %v1159
      %1192 = vst [vmem:[%s257 + $0x20] sm:$0xf] %v1160
      %1193 = vst [vmem:[%s257 + $0x24] sm:$0xf] %v1161
      %1194 = vst [vmem:[%s257 + $0x28] sm:$0xf] %v1162
      %1195 = vst [vmem:[%s257 + $0x2c] sm:$0xf] %v1163
      %1196 = vst [vmem:[%s257 + $0x30] sm:$0xf] %v1164
      %1197 = vst [vmem:[%s257 + $0x34] sm:$0xf] %v1165
      %1198 = vst [vmem:[%s257 + $0x38] sm:$0xf] %v1166
      %1199 = vst [vmem:[%s257 + $0x3c] sm:$0xf] %v1167
      %1200 = vst [vmem:[%s257 + $0x40] sm:$0xf] %v1168
      %1201 = vst [vmem:[%s257 + $0x44] sm:$0xf] %v1169
      %1202 = vst [vmem:[%s257 + $0x48] sm:$0xf] %v1170
      %1203 = vst [vmem:[%s257 + $0x4c] sm:$0xf] %v1171
      %1204 = vst [vmem:[%s257 + $0x50] sm:$0xf] %v1172
      %1205 = vst [vmem:[%s257 + $0x54] sm:$0xf] %v1173
      %1206 = vst [vmem:[%s257 + $0x58] sm:$0xf] %v1174
      %1207 = vst [vmem:[%s257 + $0x5c] sm:$0xf] %v1175
      %1208 = vst [vmem:[%s257 + $0x60] sm:$0xf] %v1176
      %1209 = vst [vmem:[%s257 + $0x64] sm:$0xf] %v1177
      %1210 = vst [vmem:[%s257 + $0x68] sm:$0xf] %v1178
      %1211 = vst [vmem:[%s257 + $0x6c] sm:$0xf] %v1179
      %1212 = vst [vmem:[%s257 + $0x70] sm:$0xf] %v1180
      %1213 = vst [vmem:[%s257 + $0x74] sm:$0xf] %v1181
      %1214 = vst [vmem:[%s257 + $0x78] sm:$0xf] %v1182
      %1215 = vst [vmem:[%s257 + $0x7c] sm:$0xf] %v1183
      %s1216 = smul.u32 32, %s19
      %p1217 = scmp.lt.s32.totalorder %s1216, 63
      %s1218 = scalar_select %p1217, %s1216, 63
      %p1219 = scmp.lt.s32.totalorder %s20, 0
      %s1220 = scalar_select %p1219, %s20, 0
      %s1221 = sadd.s32 %s1220, %s1218
      %s1222 = smul.addr %s1221, 4
      %s1223 = scalar_lea.vmem %s3, %s1222
      // Predicated region
      $region33: #{unet_forward.83} parent=31 // pred_check
        %p1224 = pneg %p135
      $region34: #{unet_forward.83} parent=31 // pred_check_branch
        %1226 = sbr.rel (%p1224) target = $region36
      $region35: #{unet_forward.83} parent=31 // pred_region
        %s1227 = smul.u32 32, %s19
      $region36: #{unet_forward.83} parent=31 // pred_fallthru
        _
    $region32: #{unet_forward.83} parent=5 // pred_fallthru
      _
    %p1228 = scmp.le.s32.totalorder 2, %s9
    // Predicated region
    $region37: #{unet_forward.83} parent=5 // pred_check
      %p1229 = pneg %p1228
    $region38: #{unet_forward.83} parent=5 // pred_check_branch
      %1231 = sbr.rel (%p1229) target = $region40
    $region39: #{unet_forward.83} parent=5 // pred_region
      %s1232 = ssub.s32 %s9, 2
      // Predicated region
      $region41: #{unet_forward.83} parent=39 // pred_check
        %p1233 = pneg %p141
      $region42: #{unet_forward.83} parent=39 // pred_check_branch
        %1235 = sbr.rel (%p1233) target = $region44
      $region43: #{unet_forward.83} parent=39 // pred_region
        %s1236 = smul.u32 32, %s22
        %p1237 = scmp.lt.s32.totalorder %s1236, 63
        %s1238 = scalar_select %p1237, %s1236, 63
        %p1239 = scmp.lt.s32.totalorder %s23, 0
        %s1240 = scalar_select %p1239, %s23, 0
        %s1241 = sadd.s32 %s1240, %s1238
        %s1242 = smul.addr %s1241, 4
        %s1243 = scalar_lea.vmem %s3, %s1242
      $region44: #{unet_forward.83} parent=39 // pred_fallthru
        _
    $region40: #{unet_forward.83} parent=5 // pred_fallthru
      _
  $region6: #{unet_forward.83} parent=0 // loop_footer
    %s13 = sadd.s32 1, %s9
  $region7: #{unet_forward.83} parent=0 // loop_footer_branch
    %8 = sbr.rel target = $region3
  $region8: #{unet_forward.83} parent=0 // loop_exit
    _

// kernel: unet_forward.84
$region0: #{unet_forward.84}
  #allocation0 [shape = 'u32[]', space=smem, size = 0x4, offset = 0x4, fixed_abs, tag = 'smem constant byte address 0x4 - core index']
  #allocation1 [shape = 'u32[72,128]{1,0:T(1,128)}', space=vmem, size = 0x9000, scoped, tag = 'internal scratch']
  %s0 = inlined_call_operand.vmem [shape: bf16[512,128], index: 0, kind: input, shape index: {}]
  %s1 = inlined_call_operand.vmem [shape: bf16[128,128], index: 1, kind: input, shape index: {}]
  %s2 = inlined_call_operand.vmem [shape: f32[1,128], index: 2, kind: input, shape index: {}]
  %s3 = inlined_call_operand.vmem [shape: bf16[512,128], index: 3, kind: input, shape index: {}]
  %s4 = inlined_call_operand.vmem [shape: bf16[512,128], index: 4, kind: output, shape index: {}]
  %s5 = sld [smem:[#allocation0]]
  $region49: #{unet_forward.84} parent=0
    _
  %s7 = ssub.s32 1, %s5
  %s8 = scalar_select 0, %s7, %s5
  loop: start=0, step=1, limit=4
  $region2: #{unet_forward.84} parent=0 // loop_pre_header
    _
  $region3: #{unet_forward.84} parent=0 // loop_header
    %s10 = sphi 0, %s14
    %p11 = scmp.ge.s32.totalorder %s10, 4
    %s17 = sphi 0, %s36
    %s18 = sphi 0, %s32
    %s19 = sphi 0, %s28
    %s20 = sphi 0, %s17
    %s21 = sphi 0, %s18
    %s22 = sphi 0, %s19
    %s23 = sphi 0, %s20
    %s24 = sphi 0, %s21
    %s25 = sphi 0, %s22
    %s41 = sphi 0, %s43
    %s44 = sphi 0, %s41
    %s45 = sphi 0, %s44
    %s61 = sphi 0, %s45
    %s69 = sphi 0, %s71
    %s72 = sphi 0, %s69
    %s73 = sphi 0, %s72
    %s89 = sphi 0, %s73
    %s95 = sphi 0, %s97
    %s98 = sphi 0, %s95
    %s99 = sphi 0, %s98
    %s115 = sphi 0, %s99
    %s123 = sphi 0, %s125
    %s126 = sphi 0, %s123
    %s127 = sphi 0, %s126
    %s143 = sphi 0, %s127
    %s151 = sphi 0, %s153
    %s154 = sphi 0, %s151
    %s155 = sphi 0, %s154
    %s171 = sphi 0, %s155
  $region4: #{unet_forward.84} parent=0 // loop_header_branch
    %13 = sbr.rel (%p11) target = $region8
  $region5: #{unet_forward.84} parent=0 // loop_body
    %s15 = ssub.s32 %s10, 1
    %s16 = ssub.s32 %s10, 2
    %s26 = sadd.s32 1, %s19
    %p27 = scmp.ge.s32.totalorder %s26, 1
    %s28 = scalar_select %p27, 0, %s26
    %s29 = sadd.s32 1, %s18
    %s30 = scalar_select %p27, %s29, %s18
    %p31 = scmp.ge.s32.totalorder %s30, 1
    %s32 = scalar_select %p31, 0, %s30
    %s33 = sadd.s32 1, %s17
    %s34 = scalar_select %p31, %s33, %s17
    %p35 = scmp.ge.s32.totalorder %s34, 2
    %s36 = scalar_select %p35, 0, %s34
    %s37 = ssub.s32 %s17, %s36
    %s38 = ssub.s32 %s19, %s28
    %s39 = sor.u32 %s37, %s38
    %p40 = scmp.eq.s32.totalorder %s39, 0
    %s42 = sadd.s32 %s41, 1
    %s43 = scalar_select %p40, %s41, %s42
    %p46 = pneg %p40
    %p47 = scmp.eq.s32.totalorder %s10, 1
    %p48 = por %p46, %p47
    %p49 = scmp.ne.s32.totalorder %s41, %s44
    %p50 = scmp.eq.s32.totalorder %s10, 0
    %p51 = por %p49, %p50
    %p52 = scmp.ne.s32.totalorder %s41, %s44
    %p53 = scmp.eq.s32.totalorder %s15, 1
    %p54 = por %p52, %p53
    %p55 = scmp.ne.s32.totalorder %s44, %s45
    %p56 = scmp.eq.s32.totalorder %s15, 0
    %p57 = por %p55, %p56
    %p58 = scmp.ne.s32.totalorder %s44, %s45
    %p59 = scmp.eq.s32.totalorder %s16, 1
    %p60 = por %p58, %p59
    %p62 = scmp.ne.s32.totalorder %s45, %s61
    %p63 = scmp.eq.s32.totalorder %s16, 0
    %p64 = por %p62, %p63
    %s65 = ssub.s32 %s19, %s28
    %s66 = ssub.s32 %s18, %s32
    %s67 = sor.u32 %s65, %s66
    %p68 = scmp.eq.s32.totalorder %s67, 0
    %s70 = sadd.s32 %s69, 1
    %s71 = scalar_select %p68, %s69, %s70
    %p74 = pneg %p68
    %p75 = scmp.eq.s32.totalorder %s10, 1
    %p76 = por %p74, %p75
    %p77 = scmp.ne.s32.totalorder %s69, %s72
    %p78 = scmp.eq.s32.totalorder %s10, 0
    %p79 = por %p77, %p78
    %p80 = scmp.ne.s32.totalorder %s69, %s72
    %p81 = scmp.eq.s32.totalorder %s15, 1
    %p82 = por %p80, %p81
    %p83 = scmp.ne.s32.totalorder %s72, %s73
    %p84 = scmp.eq.s32.totalorder %s15, 0
    %p85 = por %p83, %p84
    %p86 = scmp.ne.s32.totalorder %s72, %s73
    %p87 = scmp.eq.s32.totalorder %s16, 1
    %p88 = por %p86, %p87
    %p90 = scmp.ne.s32.totalorder %s73, %s89
    %p91 = scmp.eq.s32.totalorder %s16, 0
    %p92 = por %p90, %p91
    %s93 = ssub.s32 %s18, %s32
    %p94 = scmp.eq.s32.totalorder %s93, 0
    %s96 = sadd.s32 %s95, 1
    %s97 = scalar_select %p94, %s95, %s96
    %p100 = pneg %p94
    %p101 = scmp.eq.s32.totalorder %s10, 1
    %p102 = por %p100, %p101
    %p103 = scmp.ne.s32.totalorder %s95, %s98
    %p104 = scmp.eq.s32.totalorder %s10, 0
    %p105 = por %p103, %p104
    %p106 = scmp.ne.s32.totalorder %s95, %s98
    %p107 = scmp.eq.s32.totalorder %s15, 1
    %p108 = por %p106, %p107
    %p109 = scmp.ne.s32.totalorder %s98, %s99
    %p110 = scmp.eq.s32.totalorder %s15, 0
    %p111 = por %p109, %p110
    %p112 = scmp.ne.s32.totalorder %s98, %s99
    %p113 = scmp.eq.s32.totalorder %s16, 1
    %p114 = por %p112, %p113
    %p116 = scmp.ne.s32.totalorder %s99, %s115
    %p117 = scmp.eq.s32.totalorder %s16, 0
    %p118 = por %p116, %p117
    %s119 = ssub.s32 %s17, %s36
    %s120 = ssub.s32 %s18, %s32
    %s121 = sor.u32 %s119, %s120
    %p122 = scmp.eq.s32.totalorder %s121, 0
    %s124 = sadd.s32 %s123, 1
    %s125 = scalar_select %p122, %s123, %s124
    %p128 = pneg %p122
    %p129 = scmp.eq.s32.totalorder %s10, 1
    %p130 = por %p128, %p129
    %p131 = scmp.ne.s32.totalorder %s123, %s126
    %p132 = scmp.eq.s32.totalorder %s10, 0
    %p133 = por %p131, %p132
    %p134 = scmp.ne.s32.totalorder %s123, %s126
    %p135 = scmp.eq.s32.totalorder %s15, 1
    %p136 = por %p134, %p135
    %p137 = scmp.ne.s32.totalorder %s126, %s127
    %p138 = scmp.eq.s32.totalorder %s15, 0
    %p139 = por %p137, %p138
    %p140 = scmp.ne.s32.totalorder %s126, %s127
    %p141 = scmp.eq.s32.totalorder %s16, 1
    %p142 = por %p140, %p141
    %p144 = scmp.ne.s32.totalorder %s127, %s143
    %p145 = scmp.eq.s32.totalorder %s16, 0
    %p146 = por %p144, %p145
    %s147 = ssub.s32 %s17, %s36
    %s148 = ssub.s32 %s18, %s32
    %s149 = sor.u32 %s147, %s148
    %p150 = scmp.eq.s32.totalorder %s149, 0
    %s152 = sadd.s32 %s151, 1
    %s153 = scalar_select %p150, %s151, %s152
    %p156 = pneg %p150
    %p157 = scmp.eq.s32.totalorder %s10, 1
    %p158 = por %p156, %p157
    %p159 = scmp.ne.s32.totalorder %s151, %s154
    %p160 = scmp.eq.s32.totalorder %s10, 0
    %p161 = por %p159, %p160
    %p162 = scmp.ne.s32.totalorder %s151, %s154
    %p163 = scmp.eq.s32.totalorder %s15, 1
    %p164 = por %p162, %p163
    %p165 = scmp.ne.s32.totalorder %s154, %s155
    %p166 = scmp.eq.s32.totalorder %s15, 0
    %p167 = por %p165, %p166
    %p168 = scmp.ne.s32.totalorder %s154, %s155
    %p169 = scmp.eq.s32.totalorder %s16, 1
    %p170 = por %p168, %p169
    %p172 = scmp.ne.s32.totalorder %s155, %s171
    %p173 = scmp.eq.s32.totalorder %s16, 0
    %p174 = por %p172, %p173
    %p175 = scmp.le.s32.totalorder 1, %s10
    %p176 = scmp.lt.s32.totalorder %s10, 3
    %p177 = pnand %p175, %p176
    %p178 = pneg %p177
    // Predicated region
    $region9: #{unet_forward.84} parent=5 // pred_check
      _
    $region10: #{unet_forward.84} parent=5 // pred_check_branch
      %180 = sbr.rel (%p177) target = $region12
    $region11: #{unet_forward.84} parent=5 // pred_region
      %s181 = ssub.s32 %s10, 1
      // Predicated region
      $region13: #{unet_forward.84} parent=11 // pred_check
        %p182 = pneg %p85
      $region14: #{unet_forward.84} parent=11 // pred_check_branch
        %184 = sbr.rel (%p182) target = $region16
      $region15: #{unet_forward.84} parent=11 // pred_region
        %s185 = smul.u32 16, %s22
        %p186 = scmp.lt.s32.totalorder %s185, 15
        %s187 = scalar_select %p186, %s185, 15
        %p188 = scmp.lt.s32.totalorder %s21, 0
        %s189 = scalar_select %p188, %s21, 0
        %s190 = sadd.s32 %s189, %s187
        %s191 = smul.addr %s190, 4
        %s192 = scalar_lea.vmem %s1, %s191
        %s193 = smul.u32 16, %s22
      $region16: #{unet_forward.84} parent=11 // pred_fallthru
        _
      // Predicated region
      $region17: #{unet_forward.84} parent=11 // pred_check
        %p194 = pneg %p111
      $region18: #{unet_forward.84} parent=11 // pred_check_branch
        %196 = sbr.rel (%p194) target = $region20
      $region19: #{unet_forward.84} parent=11 // pred_region
        %p197 = scmp.lt.s32.totalorder %s21, 0
        %s198 = scalar_select %p197, %s21, 0
        %s199 = scalar_lea.vmem %s2, %s198
      $region20: #{unet_forward.84} parent=11 // pred_fallthru
        _
    $region12: #{unet_forward.84} parent=5 // pred_fallthru
      _
    %p200 = scmp.lt.s32.totalorder %s10, 2
    // Predicated region
    $region21: #{unet_forward.84} parent=5 // pred_check
      %p201 = pneg %p200
    $region22: #{unet_forward.84} parent=5 // pred_check_branch
      %203 = sbr.rel (%p201) target = $region24
    $region23: #{unet_forward.84} parent=5 // pred_region
      // Predicated region
      $region25: #{unet_forward.84} parent=23 // pred_check
        %p204 = pneg %p51
      $region26: #{unet_forward.84} parent=23 // pred_check_branch
        %206 = sbr.rel (%p204) target = $region28
      $region27: #{unet_forward.84} parent=23 // pred_region
        %s207 = smul.u32 32, %s17
        %p208 = scmp.lt.s32.totalorder %s207, 63
        %s209 = scalar_select %p208, %s207, 63
        %p210 = scmp.lt.s32.totalorder %s19, 0
        %s211 = scalar_select %p210, %s19, 0
        %s212 = sadd.s32 %s211, %s209
        %s213 = smul.addr %s212, 4
        %s214 = scalar_lea.vmem %s0, %s213
        %s215 = smul.u32 32, %s17
      $region28: #{unet_forward.84} parent=23 // pred_fallthru
        _
      // Predicated region
      $region29: #{unet_forward.84} parent=23 // pred_check
        %p216 = pneg %p133
      $region30: #{unet_forward.84} parent=23 // pred_check_branch
        %218 = sbr.rel (%p216) target = $region32
      $region31: #{unet_forward.84} parent=23 // pred_region
        %s219 = smul.u32 32, %s17
        %p220 = scmp.lt.s32.totalorder %s219, 63
        %s221 = scalar_select %p220, %s219, 63
        %p222 = scmp.lt.s32.totalorder %s18, 0
        %s223 = scalar_select %p222, %s18, 0
        %s224 = sadd.s32 %s223, %s221
        %s225 = smul.addr %s224, 4
        %s226 = scalar_lea.vmem %s3, %s225
        %s227 = smul.u32 32, %s17
      $region32: #{unet_forward.84} parent=23 // pred_fallthru
        _
    $region24: #{unet_forward.84} parent=5 // pred_fallthru
      _
    %p228 = scmp.le.s32.totalorder 1, %s10
    %p229 = scmp.lt.s32.totalorder %s10, 3
    %p230 = pnand %p228, %p229
    %p231 = pneg %p230
    // Predicated region
    $region33: #{unet_forward.84} parent=5 // pred_check
      _
    $region34: #{unet_forward.84} parent=5 // pred_check_branch
      %233 = sbr.rel (%p230) target = $region36
    $region35: #{unet_forward.84} parent=5 // pred_region
      %s234 = ssub.s32 %s10, 1
      %s235 = smul.u32 32, %s20
      %p236 = scmp.lt.s32.totalorder %s235, 63
      %s237 = scalar_select %p236, %s235, 63
      %p238 = scmp.lt.s32.totalorder %s22, 0
      %s239 = scalar_select %p238, %s22, 0
      %s240 = sadd.s32 %s239, %s237
      %s241 = smul.addr %s240, 4
      %s242 = scalar_lea.vmem %s0, %s241
      %p243 = pneg %p57
      %p244 = pneg %p54
      %s245 = smul.u32 16, %s22
      %p246 = scmp.lt.s32.totalorder %s245, 15
      %s247 = scalar_select %p246, %s245, 15
      %p248 = scmp.lt.s32.totalorder %s21, 0
      %s249 = scalar_select %p248, %s21, 0
      %s250 = sadd.s32 %s249, %s247
      %s251 = smul.addr %s250, 4
      %s252 = scalar_lea.vmem %s1, %s251
      %p253 = pneg %p85
      %p254 = pneg %p82
      %p255 = scmp.lt.s32.totalorder %s21, 0
      %s256 = scalar_select %p255, %s21, 0
      %s257 = scalar_lea.vmem %s2, %s256
      %p258 = pneg %p111
      %p259 = pneg %p108
      %s260 = smul.u32 32, %s20
      %p261 = scmp.lt.s32.totalorder %s260, 63
      %s262 = scalar_select %p261, %s260, 63
      %p263 = scmp.lt.s32.totalorder %s21, 0
      %s264 = scalar_select %p263, %s21, 0
      %s265 = sadd.s32 %s264, %s262
      %s266 = smul.addr %s265, 4
      %s267 = scalar_lea.vmem %s3, %s266
      %p268 = pneg %p139
      %p269 = pneg %p136
      %p270 = pneg %p167
      %p271 = pneg %p164
      %s272 = smul.u32 32, %s20
      %p273 = scmp.lt.s32.totalorder %s272, 63
      %s274 = scalar_select %p273, %s272, 63
      %p275 = scmp.lt.s32.totalorder %s21, 0
      %s276 = scalar_select %p275, %s21, 0
      %s277 = sadd.s32 %s276, %s274
      %s278 = smul.addr %s277, 4
      %s279 = scalar_lea.vmem %s4, %s278
      %s280 = smul.u32 32, %s20
      %p281 = scmp.lt.s32.totalorder %s280, 63
      %s282 = scalar_select %p281, %s280, 63
      %p283 = scmp.lt.s32.totalorder %s22, 0
      %s284 = scalar_select %p283, %s22, 0
      %s285 = sadd.s32 %s284, %s282
      %s286 = smul.addr %s285, 4
      %s287 = scalar_lea.vmem %s0, %s286
      %s288 = smul.u32 32, %s20
      %s289 = smul.u32 16, %s22
      %p290 = scmp.lt.s32.totalorder %s289, 15
      %s291 = scalar_select %p290, %s289, 15
      %p292 = scmp.lt.s32.totalorder %s21, 0
      %s293 = scalar_select %p292, %s21, 0
      %s294 = sadd.s32 %s293, %s291
      %s295 = smul.addr %s294, 4
      %s296 = scalar_lea.vmem %s1, %s295
      %s297 = smul.u32 16, %s22
      %p298 = scmp.lt.s32.totalorder %s21, 0
      %s299 = scalar_select %p298, %s21, 0
      %s300 = scalar_lea.vmem %s2, %s299
      %s301 = smul.u32 32, %s20
      %p302 = scmp.lt.s32.totalorder %s301, 63
      %s303 = scalar_select %p302, %s301, 63
      %p304 = scmp.lt.s32.totalorder %s21, 0
      %s305 = scalar_select %p304, %s21, 0
      %s306 = sadd.s32 %s305, %s303
      %s307 = smul.addr %s306, 4
      %s308 = scalar_lea.vmem %s3, %s307
      %s309 = smul.u32 32, %s20
      %s310 = smul.u32 32, %s20
      %p311 = scmp.lt.s32.totalorder %s310, 63
      %s312 = scalar_select %p311, %s310, 63
      %p313 = scmp.lt.s32.totalorder %s21, 0
      %s314 = scalar_select %p313, %s21, 0
      %s315 = sadd.s32 %s314, %s312
      %s316 = smul.addr %s315, 4
      %s317 = scalar_lea.vmem %s4, %s316
      %s318 = smul.u32 32, %s20
      %v319 = vld [vmem:[%s287] sm:$0xf]
      %v320 = vld [vmem:[%s287 + $0x4] sm:$0xf]
      %v321 = vld [vmem:[%s287 + $0x8] sm:$0xf]
      %v322 = vld [vmem:[%s287 + $0xc] sm:$0xf]
      %v323 = vld [vmem:[%s287 + $0x10] sm:$0xf]
      %v324 = vld [vmem:[%s287 + $0x14] sm:$0xf]
      %v325 = vld [vmem:[%s287 + $0x18] sm:$0xf]
      %v326 = vld [vmem:[%s287 + $0x1c] sm:$0xf]
      %v327 = vld [vmem:[%s287 + $0x20] sm:$0xf]
      %v328 = vld [vmem:[%s287 + $0x24] sm:$0xf]
      %v329 = vld [vmem:[%s287 + $0x28] sm:$0xf]
      %v330 = vld [vmem:[%s287 + $0x2c] sm:$0xf]
      %v331 = vld [vmem:[%s287 + $0x30] sm:$0xf]
      %v332 = vld [vmem:[%s287 + $0x34] sm:$0xf]
      %v333 = vld [vmem:[%s287 + $0x38] sm:$0xf]
      %v334 = vld [vmem:[%s287 + $0x3c] sm:$0xf]
      %v335 = vld [vmem:[%s287 + $0x40] sm:$0xf]
      %v336 = vld [vmem:[%s287 + $0x44] sm:$0xf]
      %v337 = vld [vmem:[%s287 + $0x48] sm:$0xf]
      %v338 = vld [vmem:[%s287 + $0x4c] sm:$0xf]
      %v339 = vld [vmem:[%s287 + $0x50] sm:$0xf]
      %v340 = vld [vmem:[%s287 + $0x54] sm:$0xf]
      %v341 = vld [vmem:[%s287 + $0x58] sm:$0xf]
      %v342 = vld [vmem:[%s287 + $0x5c] sm:$0xf]
      %v343 = vld [vmem:[%s287 + $0x60] sm:$0xf]
      %v344 = vld [vmem:[%s287 + $0x64] sm:$0xf]
      %v345 = vld [vmem:[%s287 + $0x68] sm:$0xf]
      %v346 = vld [vmem:[%s287 + $0x6c] sm:$0xf]
      %v347 = vld [vmem:[%s287 + $0x70] sm:$0xf]
      %v348 = vld [vmem:[%s287 + $0x74] sm:$0xf]
      %v349 = vld [vmem:[%s287 + $0x78] sm:$0xf]
      %v350 = vld [vmem:[%s287 + $0x7c] sm:$0xf]
      %v351 = vld [vmem:[%s296] sm:$0xf]
      %v352 = vld [vmem:[%s296 + $0x4] sm:$0xf]
      %v353 = vld [vmem:[%s296 + $0x8] sm:$0xf]
      %v354 = vld [vmem:[%s296 + $0xc] sm:$0xf]
      %v355 = vld [vmem:[%s296 + $0x10] sm:$0xf]
      %v356 = vld [vmem:[%s296 + $0x14] sm:$0xf]
      %v357 = vld [vmem:[%s296 + $0x18] sm:$0xf]
      %v358 = vld [vmem:[%s296 + $0x1c] sm:$0xf]
      %v359 = vld [vmem:[%s296 + $0x20] sm:$0xf]
      %v360 = vld [vmem:[%s296 + $0x24] sm:$0xf]
      %v361 = vld [vmem:[%s296 + $0x28] sm:$0xf]
      %v362 = vld [vmem:[%s296 + $0x2c] sm:$0xf]
      %v363 = vld [vmem:[%s296 + $0x30] sm:$0xf]
      %v364 = vld [vmem:[%s296 + $0x34] sm:$0xf]
      %v365 = vld [vmem:[%s296 + $0x38] sm:$0xf]
      %v366 = vld [vmem:[%s296 + $0x3c] sm:$0xf]
      %v367 = vld [vmem:[%s300] sm:$0x1]
      %v369 = vperm.slane %v367, 0
      %v403 = vunpack.c.l.b16 %v319
      %v404 = vunpack.c.l.b16 %v320
      %v405 = vunpack.c.l.b16 %v321
      %v406 = vunpack.c.l.b16 %v322
      %v407 = vunpack.c.l.b16 %v323
      %v408 = vunpack.c.l.b16 %v324
      %v409 = vunpack.c.l.b16 %v325
      %v410 = vunpack.c.l.b16 %v326
      %v411 = vunpack.c.l.b16 %v327
      %v412 = vunpack.c.l.b16 %v328
      %v413 = vunpack.c.l.b16 %v329
      %v414 = vunpack.c.l.b16 %v330
      %v415 = vunpack.c.l.b16 %v331
      %v416 = vunpack.c.l.b16 %v332
      %v417 = vunpack.c.l.b16 %v333
      %v418 = vunpack.c.l.b16 %v334
      %v419 = vunpack.c.l.b16 %v335
      %v420 = vunpack.c.l.b16 %v336
      %v421 = vunpack.c.l.b16 %v337
      %v422 = vunpack.c.l.b16 %v338
      %v423 = vunpack.c.l.b16 %v339
      %v424 = vunpack.c.l.b16 %v340
      %v425 = vunpack.c.l.b16 %v341
      %v426 = vunpack.c.l.b16 %v342
      %v427 = vunpack.c.l.b16 %v343
      %v428 = vunpack.c.l.b16 %v344
      %v429 = vunpack.c.l.b16 %v345
      %v430 = vunpack.c.l.b16 %v346
      %v431 = vunpack.c.l.b16 %v347
      %v432 = vunpack.c.l.b16 %v348
      %v433 = vunpack.c.l.b16 %v349
      %v434 = vunpack.c.l.b16 %v350
      %v435 = vpack.c.b16 %v404, %v403
      %v436 = vpack.c.b16 %v406, %v405
      %v437 = vpack.c.b16 %v408, %v407
      %v438 = vpack.c.b16 %v410, %v409
      %v439 = vpack.c.b16 %v412, %v411
      %v440 = vpack.c.b16 %v414, %v413
      %v441 = vpack.c.b16 %v416, %v415
      %v442 = vpack.c.b16 %v418, %v417
      %v443 = vpack.c.b16 %v420, %v419
      %v444 = vpack.c.b16 %v422, %v421
      %v445 = vpack.c.b16 %v424, %v423
      %v446 = vpack.c.b16 %v426, %v425
      %v447 = vpack.c.b16 %v428, %v427
      %v448 = vpack.c.b16 %v430, %v429
      %v449 = vpack.c.b16 %v432, %v431
      %v450 = vpack.c.b16 %v434, %v433
      %v483 = vunpack.c.l.b16 %v351
      %v484 = vunpack.c.l.b16 %v352
      %v485 = vunpack.c.l.b16 %v353
      %v486 = vunpack.c.l.b16 %v354
      %v487 = vunpack.c.l.b16 %v355
      %v488 = vunpack.c.l.b16 %v356
      %v489 = vunpack.c.l.b16 %v357
      %v490 = vunpack.c.l.b16 %v358
      %v491 = vunpack.c.l.b16 %v359
      %v492 = vunpack.c.l.b16 %v360
      %v493 = vunpack.c.l.b16 %v361
      %v494 = vunpack.c.l.b16 %v362
      %v495 = vunpack.c.l.b16 %v363
      %v496 = vunpack.c.l.b16 %v364
      %v497 = vunpack.c.l.b16 %v365
      %v498 = vunpack.c.l.b16 %v366
      %v499 = vpack.c.b16 %v484, %v483
      %v500 = vpack.c.b16 %v486, %v485
      %v501 = vpack.c.b16 %v488, %v487
      %v502 = vpack.c.b16 %v490, %v489
      %v503 = vpack.c.b16 %v492, %v491
      %v504 = vpack.c.b16 %v494, %v493
      %v505 = vpack.c.b16 %v496, %v495
      %v506 = vpack.c.b16 %v498, %v497
      %515 = vmatpush.bf16.msra.mxu0 %v506
      %516 = vmatpush.bf16.msra.mxu0 %v505
      %517 = vmatpush.bf16.msra.mxu0 %v504
      %518 = vmatpush.bf16.msra.mxu0 %v503
      %519 = vmatpush.bf16.msra.mxu0 %v502
      %520 = vmatpush.bf16.msra.mxu0 %v501
      %521 = vmatpush.bf16.msra.mxu0 %v500
      %522 = vmatpush.bf16.msra.mxu0 %v499
      %523 = vmatmul.bf16.gmra.mxu0 %v435
      %v524 = vpop.f32.mrf.mxu0
      %v525 = vadd.f32 %v369, %v524
      %v526 = vpop.f32.mrf.mxu0
      %v527 = vadd.f32 %v369, %v526
      %528 = vmatmul.bf16.gmra.mxu0 %v436
      %v529 = vpop.f32.mrf.mxu0
      %v530 = vadd.f32 %v369, %v529
      %v531 = vpop.f32.mrf.mxu0
      %v532 = vadd.f32 %v369, %v531
      %533 = vmatmul.bf16.gmra.mxu0 %v437
      %v534 = vpop.f32.mrf.mxu0
      %v535 = vadd.f32 %v369, %v534
      %v536 = vpop.f32.mrf.mxu0
      %v537 = vadd.f32 %v369, %v536
      %538 = vmatmul.bf16.gmra.mxu0 %v438
      %v539 = vpop.f32.mrf.mxu0
      %v540 = vadd.f32 %v369, %v539
      %v541 = vpop.f32.mrf.mxu0
      %v542 = vadd.f32 %v369, %v541
      %543 = vmatmul.bf16.gmra.mxu0 %v439
      %v544 = vpop.f32.mrf.mxu0
      %v545 = vadd.f32 %v369, %v544
      %v546 = vpop.f32.mrf.mxu0
      %v547 = vadd.f32 %v369, %v546
      %548 = vmatmul.bf16.gmra.mxu0 %v440
      %v549 = vpop.f32.mrf.mxu0
      %v550 = vadd.f32 %v369, %v549
      %v551 = vpop.f32.mrf.mxu0
      %v552 = vadd.f32 %v369, %v551
      %553 = vmatmul.bf16.gmra.mxu0 %v441
      %v554 = vpop.f32.mrf.mxu0
      %v555 = vadd.f32 %v369, %v554
      %v556 = vpop.f32.mrf.mxu0
      %v557 = vadd.f32 %v369, %v556
      %558 = vmatmul.bf16.gmra.mxu0 %v442
      %v559 = vpop.f32.mrf.mxu0
      %v560 = vadd.f32 %v369, %v559
      %v561 = vpop.f32.mrf.mxu0
      %v562 = vadd.f32 %v369, %v561
      %563 = vmatmul.bf16.gmra.mxu0 %v443
      %v564 = vpop.f32.mrf.mxu0
      %v565 = vadd.f32 %v369, %v564
      %v566 = vpop.f32.mrf.mxu0
      %v567 = vadd.f32 %v369, %v566
      %568 = vmatmul.bf16.gmra.mxu0 %v444
      %v569 = vpop.f32.mrf.mxu0
      %v570 = vadd.f32 %v369, %v569
      %v571 = vpop.f32.mrf.mxu0
      %v572 = vadd.f32 %v369, %v571
      %573 = vmatmul.bf16.gmra.mxu0 %v445
      %v574 = vpop.f32.mrf.mxu0
      %v575 = vadd.f32 %v369, %v574
      %v576 = vpop.f32.mrf.mxu0
      %v577 = vadd.f32 %v369, %v576
      %578 = vmatmul.bf16.gmra.mxu0 %v446
      %v579 = vpop.f32.mrf.mxu0
      %v580 = vadd.f32 %v369, %v579
      %v581 = vpop.f32.mrf.mxu0
      %v582 = vadd.f32 %v369, %v581
      %583 = vmatmul.bf16.gmra.mxu0 %v447
      %v584 = vpop.f32.mrf.mxu0
      %v585 = vadd.f32 %v369, %v584
      %v586 = vpop.f32.mrf.mxu0
      %v587 = vadd.f32 %v369, %v586
      %588 = vmatmul.bf16.gmra.mxu0 %v448
      %v589 = vpop.f32.mrf.mxu0
      %v590 = vadd.f32 %v369, %v589
      %v591 = vpop.f32.mrf.mxu0
      %v592 = vadd.f32 %v369, %v591
      %593 = vmatmul.bf16.gmra.mxu0 %v449
      %v594 = vpop.f32.mrf.mxu0
      %v595 = vadd.f32 %v369, %v594
      %v596 = vpop.f32.mrf.mxu0
      %v597 = vadd.f32 %v369, %v596
      %598 = vmatmul.bf16.gmra.mxu0 %v450
      %v599 = vpop.f32.mrf.mxu0
      %v600 = vadd.f32 %v369, %v599
      %v601 = vpop.f32.mrf.mxu0
      %v602 = vadd.f32 %v369, %v601
      %603 = vdwg.mxu0
      %v604 = vld [vmem:[%s308] sm:$0xf]
      %v605 = vld [vmem:[%s308 + $0x4] sm:$0xf]
      %v606 = vld [vmem:[%s308 + $0x8] sm:$0xf]
      %v607 = vld [vmem:[%s308 + $0xc] sm:$0xf]
      %v608 = vld [vmem:[%s308 + $0x10] sm:$0xf]
      %v609 = vld [vmem:[%s308 + $0x14] sm:$0xf]
      %v610 = vld [vmem:[%s308 + $0x18] sm:$0xf]
      %v611 = vld [vmem:[%s308 + $0x1c] sm:$0xf]
      %v612 = vld [vmem:[%s308 + $0x20] sm:$0xf]
      %v613 = vld [vmem:[%s308 + $0x24] sm:$0xf]
      %v614 = vld [vmem:[%s308 + $0x28] sm:$0xf]
      %v615 = vld [vmem:[%s308 + $0x2c] sm:$0xf]
      %v616 = vld [vmem:[%s308 + $0x30] sm:$0xf]
      %v617 = vld [vmem:[%s308 + $0x34] sm:$0xf]
      %v618 = vld [vmem:[%s308 + $0x38] sm:$0xf]
      %v619 = vld [vmem:[%s308 + $0x3c] sm:$0xf]
      %v620 = vld [vmem:[%s308 + $0x40] sm:$0xf]
      %v621 = vld [vmem:[%s308 + $0x44] sm:$0xf]
      %v622 = vld [vmem:[%s308 + $0x48] sm:$0xf]
      %v623 = vld [vmem:[%s308 + $0x4c] sm:$0xf]
      %v624 = vld [vmem:[%s308 + $0x50] sm:$0xf]
      %v625 = vld [vmem:[%s308 + $0x54] sm:$0xf]
      %v626 = vld [vmem:[%s308 + $0x58] sm:$0xf]
      %v627 = vld [vmem:[%s308 + $0x5c] sm:$0xf]
      %v628 = vld [vmem:[%s308 + $0x60] sm:$0xf]
      %v629 = vld [vmem:[%s308 + $0x64] sm:$0xf]
      %v630 = vld [vmem:[%s308 + $0x68] sm:$0xf]
      %v631 = vld [vmem:[%s308 + $0x6c] sm:$0xf]
      %v632 = vld [vmem:[%s308 + $0x70] sm:$0xf]
      %v633 = vld [vmem:[%s308 + $0x74] sm:$0xf]
      %v634 = vld [vmem:[%s308 + $0x78] sm:$0xf]
      %v635 = vld [vmem:[%s308 + $0x7c] sm:$0xf]
      %v636 = vunpack.c.l.bf16 %v604
      %v637 = vunpack.c.l.bf16 %v605
      %v638 = vunpack.c.l.bf16 %v606
      %v639 = vunpack.c.l.bf16 %v607
      %v640 = vunpack.c.l.bf16 %v608
      %v641 = vunpack.c.l.bf16 %v609
      %v642 = vunpack.c.l.bf16 %v610
      %v643 = vunpack.c.l.bf16 %v611
      %v644 = vunpack.c.l.bf16 %v612
      %v645 = vunpack.c.l.bf16 %v613
      %v646 = vunpack.c.l.bf16 %v614
      %v647 = vunpack.c.l.bf16 %v615
      %v648 = vunpack.c.l.bf16 %v616
      %v649 = vunpack.c.l.bf16 %v617
      %v650 = vunpack.c.l.bf16 %v618
      %v651 = vunpack.c.l.bf16 %v619
      %v652 = vunpack.c.l.bf16 %v620
      %v653 = vunpack.c.l.bf16 %v621
      %v654 = vunpack.c.l.bf16 %v622
      %v655 = vunpack.c.l.bf16 %v623
      %v656 = vunpack.c.l.bf16 %v624
      %v657 = vunpack.c.l.bf16 %v625
      %v658 = vunpack.c.l.bf16 %v626
      %v659 = vunpack.c.l.bf16 %v627
      %v660 = vunpack.c.l.bf16 %v628
      %v661 = vunpack.c.l.bf16 %v629
      %v662 = vunpack.c.l.bf16 %v630
      %v663 = vunpack.c.l.bf16 %v631
      %v664 = vunpack.c.l.bf16 %v632
      %v665 = vunpack.c.l.bf16 %v633
      %v666 = vunpack.c.l.bf16 %v634
      %v667 = vunpack.c.l.bf16 %v635
      %v668 = vadd.f32 %v525, %v636
      %v669 = vadd.f32 %v527, %v637
      %v670 = vadd.f32 %v530, %v638
      %v671 = vadd.f32 %v532, %v639
      %v672 = vadd.f32 %v535, %v640
      %v673 = vadd.f32 %v537, %v641
      %v674 = vadd.f32 %v540, %v642
      %v675 = vadd.f32 %v542, %v643
      %v676 = vadd.f32 %v545, %v644
      %v677 = vadd.f32 %v547, %v645
      %v678 = vadd.f32 %v550, %v646
      %v679 = vadd.f32 %v552, %v647
      %v680 = vadd.f32 %v555, %v648
      %v681 = vadd.f32 %v557, %v649
      %v682 = vadd.f32 %v560, %v650
      %v683 = vadd.f32 %v562, %v651
      %v684 = vadd.f32 %v565, %v652
      %v685 = vadd.f32 %v567, %v653
      %v686 = vadd.f32 %v570, %v654
      %v687 = vadd.f32 %v572, %v655
      %v688 = vadd.f32 %v575, %v656
      %v689 = vadd.f32 %v577, %v657
      %v690 = vadd.f32 %v580, %v658
      %v691 = vadd.f32 %v582, %v659
      %v692 = vadd.f32 %v585, %v660
      %v693 = vadd.f32 %v587, %v661
      %v694 = vadd.f32 %v590, %v662
      %v695 = vadd.f32 %v592, %v663
      %v696 = vadd.f32 %v595, %v664
      %v697 = vadd.f32 %v597, %v665
      %v698 = vadd.f32 %v600, %v666
      %v699 = vadd.f32 %v602, %v667
      %v700 = vpack.c.bf16 %v668, %v668
      %v701 = vpack.c.bf16 %v669, %v669
      %v702 = vpack.c.bf16 %v670, %v670
      %v703 = vpack.c.bf16 %v671, %v671
      %v704 = vpack.c.bf16 %v672, %v672
      %v705 = vpack.c.bf16 %v673, %v673
      %v706 = vpack.c.bf16 %v674, %v674
      %v707 = vpack.c.bf16 %v675, %v675
      %v708 = vpack.c.bf16 %v676, %v676
      %v709 = vpack.c.bf16 %v677, %v677
      %v710 = vpack.c.bf16 %v678, %v678
      %v711 = vpack.c.bf16 %v679, %v679
      %v712 = vpack.c.bf16 %v680, %v680
      %v713 = vpack.c.bf16 %v681, %v681
      %v714 = vpack.c.bf16 %v682, %v682
      %v715 = vpack.c.bf16 %v683, %v683
      %v716 = vpack.c.bf16 %v684, %v684
      %v717 = vpack.c.bf16 %v685, %v685
      %v718 = vpack.c.bf16 %v686, %v686
      %v719 = vpack.c.bf16 %v687, %v687
      %v720 = vpack.c.bf16 %v688, %v688
      %v721 = vpack.c.bf16 %v689, %v689
      %v722 = vpack.c.bf16 %v690, %v690
      %v723 = vpack.c.bf16 %v691, %v691
      %v724 = vpack.c.bf16 %v692, %v692
      %v725 = vpack.c.bf16 %v693, %v693
      %v726 = vpack.c.bf16 %v694, %v694
      %v727 = vpack.c.bf16 %v695, %v695
      %v728 = vpack.c.bf16 %v696, %v696
      %v729 = vpack.c.bf16 %v697, %v697
      %v730 = vpack.c.bf16 %v698, %v698
      %v731 = vpack.c.bf16 %v699, %v699
      %732 = vst [vmem:[%s317] sm:$0xf] %v700
      %733 = vst [vmem:[%s317 + $0x4] sm:$0xf] %v701
      %734 = vst [vmem:[%s317 + $0x8] sm:$0xf] %v702
      %735 = vst [vmem:[%s317 + $0xc] sm:$0xf] %v703
      %736 = vst [vmem:[%s317 + $0x10] sm:$0xf] %v704
      %737 = vst [vmem:[%s317 + $0x14] sm:$0xf] %v705
      %738 = vst [vmem:[%s317 + $0x18] sm:$0xf] %v706
      %739 = vst [vmem:[%s317 + $0x1c] sm:$0xf] %v707
      %740 = vst [vmem:[%s317 + $0x20] sm:$0xf] %v708
      %741 = vst [vmem:[%s317 + $0x24] sm:$0xf] %v709
      %742 = vst [vmem:[%s317 + $0x28] sm:$0xf] %v710
      %743 = vst [vmem:[%s317 + $0x2c] sm:$0xf] %v711
      %744 = vst [vmem:[%s317 + $0x30] sm:$0xf] %v712
      %745 = vst [vmem:[%s317 + $0x34] sm:$0xf] %v713
      %746 = vst [vmem:[%s317 + $0x38] sm:$0xf] %v714
      %747 = vst [vmem:[%s317 + $0x3c] sm:$0xf] %v715
      %748 = vst [vmem:[%s317 + $0x40] sm:$0xf] %v716
      %749 = vst [vmem:[%s317 + $0x44] sm:$0xf] %v717
      %750 = vst [vmem:[%s317 + $0x48] sm:$0xf] %v718
      %751 = vst [vmem:[%s317 + $0x4c] sm:$0xf] %v719
      %752 = vst [vmem:[%s317 + $0x50] sm:$0xf] %v720
      %753 = vst [vmem:[%s317 + $0x54] sm:$0xf] %v721
      %754 = vst [vmem:[%s317 + $0x58] sm:$0xf] %v722
      %755 = vst [vmem:[%s317 + $0x5c] sm:$0xf] %v723
      %756 = vst [vmem:[%s317 + $0x60] sm:$0xf] %v724
      %757 = vst [vmem:[%s317 + $0x64] sm:$0xf] %v725
      %758 = vst [vmem:[%s317 + $0x68] sm:$0xf] %v726
      %759 = vst [vmem:[%s317 + $0x6c] sm:$0xf] %v727
      %760 = vst [vmem:[%s317 + $0x70] sm:$0xf] %v728
      %761 = vst [vmem:[%s317 + $0x74] sm:$0xf] %v729
      %762 = vst [vmem:[%s317 + $0x78] sm:$0xf] %v730
      %763 = vst [vmem:[%s317 + $0x7c] sm:$0xf] %v731
      %s764 = smul.u32 32, %s20
      %p765 = scmp.lt.s32.totalorder %s764, 63
      %s766 = scalar_select %p765, %s764, 63
      %p767 = scmp.lt.s32.totalorder %s21, 0
      %s768 = scalar_select %p767, %s21, 0
      %s769 = sadd.s32 %s768, %s766
      %s770 = smul.addr %s769, 4
      %s771 = scalar_lea.vmem %s4, %s770
      // Predicated region
      $region37: #{unet_forward.84} parent=35 // pred_check
        %p772 = pneg %p164
      $region38: #{unet_forward.84} parent=35 // pred_check_branch
        %774 = sbr.rel (%p772) target = $region40
      $region39: #{unet_forward.84} parent=35 // pred_region
        %s775 = smul.u32 32, %s20
      $region40: #{unet_forward.84} parent=35 // pred_fallthru
        _
    $region36: #{unet_forward.84} parent=5 // pred_fallthru
      _
    %p776 = scmp.le.s32.totalorder 2, %s10
    // Predicated region
    $region41: #{unet_forward.84} parent=5 // pred_check
      %p777 = pneg %p776
    $region42: #{unet_forward.84} parent=5 // pred_check_branch
      %779 = sbr.rel (%p777) target = $region44
    $region43: #{unet_forward.84} parent=5 // pred_region
      %s780 = ssub.s32 %s10, 2
      // Predicated region
      $region45: #{unet_forward.84} parent=43 // pred_check
        %p781 = pneg %p170
      $region46: #{unet_forward.84} parent=43 // pred_check_branch
        %783 = sbr.rel (%p781) target = $region48
      $region47: #{unet_forward.84} parent=43 // pred_region
        %s784 = smul.u32 32, %s23
        %p785 = scmp.lt.s32.totalorder %s784, 63
        %s786 = scalar_select %p785, %s784, 63
        %p787 = scmp.lt.s32.totalorder %s24, 0
        %s788 = scalar_select %p787, %s24, 0
        %s789 = sadd.s32 %s788, %s786
        %s790 = smul.addr %s789, 4
        %s791 = scalar_lea.vmem %s4, %s790
      $region48: #{unet_forward.84} parent=43 // pred_fallthru
        _
    $region44: #{unet_forward.84} parent=5 // pred_fallthru
      _
  $region6: #{unet_forward.84} parent=0 // loop_footer
    %s14 = sadd.s32 1, %s10
  $region7: #{unet_forward.84} parent=0 // loop_footer_branch
    %9 = sbr.rel target = $region3
  $region8: #{unet_forward.84} parent=0 // loop_exit
    _

// kernel: unet_forward.85
$region0: #{unet_forward.85}
  #allocation0 [shape = 'u32[]', space=smem, size = 0x4, offset = 0x4, fixed_abs, tag = 'smem constant byte address 0x4 - core index']
  #allocation1 [shape = 'u32[72,128]{1,0:T(1,128)}', space=vmem, size = 0x9000, scoped, tag = 'internal scratch']
  %s0 = inlined_call_operand.vmem [shape: bf16[128,128], index: 0, kind: input, shape index: {}]
  %s1 = inlined_call_operand.vmem [shape: bf16[128,128], index: 1, kind: input, shape index: {}]
  %s2 = inlined_call_operand.vmem [shape: f32[1,128], index: 2, kind: input, shape index: {}]
  %s3 = inlined_call_operand.vmem [shape: bf16[128,128], index: 3, kind: output, shape index: {}]
  %s4 = sld [smem:[#allocation0]]
  $region45: #{unet_forward.85} parent=0
    _
  %s6 = ssub.s32 1, %s4
  %s7 = scalar_select 0, %s6, %s4
  loop: start=0, step=1, limit=4
  $region2: #{unet_forward.85} parent=0 // loop_pre_header
    _
  $region3: #{unet_forward.85} parent=0 // loop_header
    %s9 = sphi 0, %s13
    %p10 = scmp.ge.s32.totalorder %s9, 4
    %s16 = sphi 0, %s35
    %s17 = sphi 0, %s31
    %s18 = sphi 0, %s27
    %s19 = sphi 0, %s16
    %s20 = sphi 0, %s17
    %s21 = sphi 0, %s18
    %s22 = sphi 0, %s19
    %s23 = sphi 0, %s20
    %s24 = sphi 0, %s21
    %s40 = sphi 0, %s42
    %s43 = sphi 0, %s40
    %s44 = sphi 0, %s43
    %s60 = sphi 0, %s44
    %s68 = sphi 0, %s70
    %s71 = sphi 0, %s68
    %s72 = sphi 0, %s71
    %s88 = sphi 0, %s72
    %s94 = sphi 0, %s96
    %s97 = sphi 0, %s94
    %s98 = sphi 0, %s97
    %s114 = sphi 0, %s98
    %s122 = sphi 0, %s124
    %s125 = sphi 0, %s122
    %s126 = sphi 0, %s125
    %s142 = sphi 0, %s126
  $region4: #{unet_forward.85} parent=0 // loop_header_branch
    %12 = sbr.rel (%p10) target = $region8
  $region5: #{unet_forward.85} parent=0 // loop_body
    %s14 = ssub.s32 %s9, 1
    %s15 = ssub.s32 %s9, 2
    %s25 = sadd.s32 1, %s18
    %p26 = scmp.ge.s32.totalorder %s25, 1
    %s27 = scalar_select %p26, 0, %s25
    %s28 = sadd.s32 1, %s17
    %s29 = scalar_select %p26, %s28, %s17
    %p30 = scmp.ge.s32.totalorder %s29, 1
    %s31 = scalar_select %p30, 0, %s29
    %s32 = sadd.s32 1, %s16
    %s33 = scalar_select %p30, %s32, %s16
    %p34 = scmp.ge.s32.totalorder %s33, 2
    %s35 = scalar_select %p34, 0, %s33
    %s36 = ssub.s32 %s16, %s35
    %s37 = ssub.s32 %s18, %s27
    %s38 = sor.u32 %s36, %s37
    %p39 = scmp.eq.s32.totalorder %s38, 0
    %s41 = sadd.s32 %s40, 1
    %s42 = scalar_select %p39, %s40, %s41
    %p45 = pneg %p39
    %p46 = scmp.eq.s32.totalorder %s9, 1
    %p47 = por %p45, %p46
    %p48 = scmp.ne.s32.totalorder %s40, %s43
    %p49 = scmp.eq.s32.totalorder %s9, 0
    %p50 = por %p48, %p49
    %p51 = scmp.ne.s32.totalorder %s40, %s43
    %p52 = scmp.eq.s32.totalorder %s14, 1
    %p53 = por %p51, %p52
    %p54 = scmp.ne.s32.totalorder %s43, %s44
    %p55 = scmp.eq.s32.totalorder %s14, 0
    %p56 = por %p54, %p55
    %p57 = scmp.ne.s32.totalorder %s43, %s44
    %p58 = scmp.eq.s32.totalorder %s15, 1
    %p59 = por %p57, %p58
    %p61 = scmp.ne.s32.totalorder %s44, %s60
    %p62 = scmp.eq.s32.totalorder %s15, 0
    %p63 = por %p61, %p62
    %s64 = ssub.s32 %s18, %s27
    %s65 = ssub.s32 %s17, %s31
    %s66 = sor.u32 %s64, %s65
    %p67 = scmp.eq.s32.totalorder %s66, 0
    %s69 = sadd.s32 %s68, 1
    %s70 = scalar_select %p67, %s68, %s69
    %p73 = pneg %p67
    %p74 = scmp.eq.s32.totalorder %s9, 1
    %p75 = por %p73, %p74
    %p76 = scmp.ne.s32.totalorder %s68, %s71
    %p77 = scmp.eq.s32.totalorder %s9, 0
    %p78 = por %p76, %p77
    %p79 = scmp.ne.s32.totalorder %s68, %s71
    %p80 = scmp.eq.s32.totalorder %s14, 1
    %p81 = por %p79, %p80
    %p82 = scmp.ne.s32.totalorder %s71, %s72
    %p83 = scmp.eq.s32.totalorder %s14, 0
    %p84 = por %p82, %p83
    %p85 = scmp.ne.s32.totalorder %s71, %s72
    %p86 = scmp.eq.s32.totalorder %s15, 1
    %p87 = por %p85, %p86
    %p89 = scmp.ne.s32.totalorder %s72, %s88
    %p90 = scmp.eq.s32.totalorder %s15, 0
    %p91 = por %p89, %p90
    %s92 = ssub.s32 %s17, %s31
    %p93 = scmp.eq.s32.totalorder %s92, 0
    %s95 = sadd.s32 %s94, 1
    %s96 = scalar_select %p93, %s94, %s95
    %p99 = pneg %p93
    %p100 = scmp.eq.s32.totalorder %s9, 1
    %p101 = por %p99, %p100
    %p102 = scmp.ne.s32.totalorder %s94, %s97
    %p103 = scmp.eq.s32.totalorder %s9, 0
    %p104 = por %p102, %p103
    %p105 = scmp.ne.s32.totalorder %s94, %s97
    %p106 = scmp.eq.s32.totalorder %s14, 1
    %p107 = por %p105, %p106
    %p108 = scmp.ne.s32.totalorder %s97, %s98
    %p109 = scmp.eq.s32.totalorder %s14, 0
    %p110 = por %p108, %p109
    %p111 = scmp.ne.s32.totalorder %s97, %s98
    %p112 = scmp.eq.s32.totalorder %s15, 1
    %p113 = por %p111, %p112
    %p115 = scmp.ne.s32.totalorder %s98, %s114
    %p116 = scmp.eq.s32.totalorder %s15, 0
    %p117 = por %p115, %p116
    %s118 = ssub.s32 %s16, %s35
    %s119 = ssub.s32 %s17, %s31
    %s120 = sor.u32 %s118, %s119
    %p121 = scmp.eq.s32.totalorder %s120, 0
    %s123 = sadd.s32 %s122, 1
    %s124 = scalar_select %p121, %s122, %s123
    %p127 = pneg %p121
    %p128 = scmp.eq.s32.totalorder %s9, 1
    %p129 = por %p127, %p128
    %p130 = scmp.ne.s32.totalorder %s122, %s125
    %p131 = scmp.eq.s32.totalorder %s9, 0
    %p132 = por %p130, %p131
    %p133 = scmp.ne.s32.totalorder %s122, %s125
    %p134 = scmp.eq.s32.totalorder %s14, 1
    %p135 = por %p133, %p134
    %p136 = scmp.ne.s32.totalorder %s125, %s126
    %p137 = scmp.eq.s32.totalorder %s14, 0
    %p138 = por %p136, %p137
    %p139 = scmp.ne.s32.totalorder %s125, %s126
    %p140 = scmp.eq.s32.totalorder %s15, 1
    %p141 = por %p139, %p140
    %p143 = scmp.ne.s32.totalorder %s126, %s142
    %p144 = scmp.eq.s32.totalorder %s15, 0
    %p145 = por %p143, %p144
    %p146 = scmp.le.s32.totalorder 1, %s9
    %p147 = scmp.lt.s32.totalorder %s9, 3
    %p148 = pnand %p146, %p147
    %p149 = pneg %p148
    // Predicated region
    $region9: #{unet_forward.85} parent=5 // pred_check
      _
    $region10: #{unet_forward.85} parent=5 // pred_check_branch
      %151 = sbr.rel (%p148) target = $region12
    $region11: #{unet_forward.85} parent=5 // pred_region
      %s152 = ssub.s32 %s9, 1
      // Predicated region
      $region13: #{unet_forward.85} parent=11 // pred_check
        %p153 = pneg %p84
      $region14: #{unet_forward.85} parent=11 // pred_check_branch
        %155 = sbr.rel (%p153) target = $region16
      $region15: #{unet_forward.85} parent=11 // pred_region
        %s156 = smul.u32 16, %s21
        %p157 = scmp.lt.s32.totalorder %s156, 15
        %s158 = scalar_select %p157, %s156, 15
        %p159 = scmp.lt.s32.totalorder %s20, 0
        %s160 = scalar_select %p159, %s20, 0
        %s161 = sadd.s32 %s160, %s158
        %s162 = smul.addr %s161, 4
        %s163 = scalar_lea.vmem %s1, %s162
        %s164 = smul.u32 16, %s21
      $region16: #{unet_forward.85} parent=11 // pred_fallthru
        _
      // Predicated region
      $region17: #{unet_forward.85} parent=11 // pred_check
        %p165 = pneg %p110
      $region18: #{unet_forward.85} parent=11 // pred_check_branch
        %167 = sbr.rel (%p165) target = $region20
      $region19: #{unet_forward.85} parent=11 // pred_region
        %p168 = scmp.lt.s32.totalorder %s20, 0
        %s169 = scalar_select %p168, %s20, 0
        %s170 = scalar_lea.vmem %s2, %s169
      $region20: #{unet_forward.85} parent=11 // pred_fallthru
        _
    $region12: #{unet_forward.85} parent=5 // pred_fallthru
      _
    %p171 = scmp.lt.s32.totalorder %s9, 2
    // Predicated region
    $region21: #{unet_forward.85} parent=5 // pred_check
      %p172 = pneg %p171
    $region22: #{unet_forward.85} parent=5 // pred_check_branch
      %174 = sbr.rel (%p172) target = $region24
    $region23: #{unet_forward.85} parent=5 // pred_region
      // Predicated region
      $region25: #{unet_forward.85} parent=23 // pred_check
        %p175 = pneg %p50
      $region26: #{unet_forward.85} parent=23 // pred_check_branch
        %177 = sbr.rel (%p175) target = $region28
      $region27: #{unet_forward.85} parent=23 // pred_region
        %s178 = smul.u32 8, %s16
        %p179 = scmp.lt.s32.totalorder %s178, 15
        %s180 = scalar_select %p179, %s178, 15
        %p181 = scmp.lt.s32.totalorder %s18, 0
        %s182 = scalar_select %p181, %s18, 0
        %s183 = sadd.s32 %s182, %s180
        %s184 = smul.addr %s183, 4
        %s185 = scalar_lea.vmem %s0, %s184
        %s186 = smul.u32 8, %s16
      $region28: #{unet_forward.85} parent=23 // pred_fallthru
        _
    $region24: #{unet_forward.85} parent=5 // pred_fallthru
      _
    %p187 = scmp.le.s32.totalorder 1, %s9
    %p188 = scmp.lt.s32.totalorder %s9, 3
    %p189 = pnand %p187, %p188
    %p190 = pneg %p189
    // Predicated region
    $region29: #{unet_forward.85} parent=5 // pred_check
      _
    $region30: #{unet_forward.85} parent=5 // pred_check_branch
      %192 = sbr.rel (%p189) target = $region32
    $region31: #{unet_forward.85} parent=5 // pred_region
      %s193 = ssub.s32 %s9, 1
      %s194 = smul.u32 8, %s19
      %p195 = scmp.lt.s32.totalorder %s194, 15
      %s196 = scalar_select %p195, %s194, 15
      %p197 = scmp.lt.s32.totalorder %s21, 0
      %s198 = scalar_select %p197, %s21, 0
      %s199 = sadd.s32 %s198, %s196
      %s200 = smul.addr %s199, 4
      %s201 = scalar_lea.vmem %s0, %s200
      %p202 = pneg %p56
      %p203 = pneg %p53
      %s204 = smul.u32 16, %s21
      %p205 = scmp.lt.s32.totalorder %s204, 15
      %s206 = scalar_select %p205, %s204, 15
      %p207 = scmp.lt.s32.totalorder %s20, 0
      %s208 = scalar_select %p207, %s20, 0
      %s209 = sadd.s32 %s208, %s206
      %s210 = smul.addr %s209, 4
      %s211 = scalar_lea.vmem %s1, %s210
      %p212 = pneg %p84
      %p213 = pneg %p81
      %p214 = scmp.lt.s32.totalorder %s20, 0
      %s215 = scalar_select %p214, %s20, 0
      %s216 = scalar_lea.vmem %s2, %s215
      %p217 = pneg %p110
      %p218 = pneg %p107
      %p219 = pneg %p138
      %p220 = pneg %p135
      %s221 = smul.u32 8, %s19
      %p222 = scmp.lt.s32.totalorder %s221, 15
      %s223 = scalar_select %p222, %s221, 15
      %p224 = scmp.lt.s32.totalorder %s20, 0
      %s225 = scalar_select %p224, %s20, 0
      %s226 = sadd.s32 %s225, %s223
      %s227 = smul.addr %s226, 4
      %s228 = scalar_lea.vmem %s3, %s227
      %s229 = smul.u32 8, %s19
      %p230 = scmp.lt.s32.totalorder %s229, 15
      %s231 = scalar_select %p230, %s229, 15
      %p232 = scmp.lt.s32.totalorder %s21, 0
      %s233 = scalar_select %p232, %s21, 0
      %s234 = sadd.s32 %s233, %s231
      %s235 = smul.addr %s234, 4
      %s236 = scalar_lea.vmem %s0, %s235
      %s237 = smul.u32 8, %s19
      %s238 = smul.u32 16, %s21
      %p239 = scmp.lt.s32.totalorder %s238, 15
      %s240 = scalar_select %p239, %s238, 15
      %p241 = scmp.lt.s32.totalorder %s20, 0
      %s242 = scalar_select %p241, %s20, 0
      %s243 = sadd.s32 %s242, %s240
      %s244 = smul.addr %s243, 4
      %s245 = scalar_lea.vmem %s1, %s244
      %s246 = smul.u32 16, %s21
      %p247 = scmp.lt.s32.totalorder %s20, 0
      %s248 = scalar_select %p247, %s20, 0
      %s249 = scalar_lea.vmem %s2, %s248
      %s250 = smul.u32 8, %s19
      %p251 = scmp.lt.s32.totalorder %s250, 15
      %s252 = scalar_select %p251, %s250, 15
      %p253 = scmp.lt.s32.totalorder %s20, 0
      %s254 = scalar_select %p253, %s20, 0
      %s255 = sadd.s32 %s254, %s252
      %s256 = smul.addr %s255, 4
      %s257 = scalar_lea.vmem %s3, %s256
      %s258 = smul.u32 8, %s19
      %v259 = vld [vmem:[%s236] sm:$0xf]
      %v260 = vld [vmem:[%s236 + $0x4] sm:$0xf]
      %v261 = vld [vmem:[%s236 + $0x8] sm:$0xf]
      %v262 = vld [vmem:[%s236 + $0xc] sm:$0xf]
      %v263 = vld [vmem:[%s236 + $0x10] sm:$0xf]
      %v264 = vld [vmem:[%s236 + $0x14] sm:$0xf]
      %v265 = vld [vmem:[%s236 + $0x18] sm:$0xf]
      %v266 = vld [vmem:[%s236 + $0x1c] sm:$0xf]
      %v267 = vld [vmem:[%s245] sm:$0xf]
      %v268 = vld [vmem:[%s245 + $0x4] sm:$0xf]
      %v269 = vld [vmem:[%s245 + $0x8] sm:$0xf]
      %v270 = vld [vmem:[%s245 + $0xc] sm:$0xf]
      %v271 = vld [vmem:[%s245 + $0x10] sm:$0xf]
      %v272 = vld [vmem:[%s245 + $0x14] sm:$0xf]
      %v273 = vld [vmem:[%s245 + $0x18] sm:$0xf]
      %v274 = vld [vmem:[%s245 + $0x1c] sm:$0xf]
      %v275 = vld [vmem:[%s245 + $0x20] sm:$0xf]
      %v276 = vld [vmem:[%s245 + $0x24] sm:$0xf]
      %v277 = vld [vmem:[%s245 + $0x28] sm:$0xf]
      %v278 = vld [vmem:[%s245 + $0x2c] sm:$0xf]
      %v279 = vld [vmem:[%s245 + $0x30] sm:$0xf]
      %v280 = vld [vmem:[%s245 + $0x34] sm:$0xf]
      %v281 = vld [vmem:[%s245 + $0x38] sm:$0xf]
      %v282 = vld [vmem:[%s245 + $0x3c] sm:$0xf]
      %v283 = vld [vmem:[%s249] sm:$0x1]
      %v285 = vperm.slane %v283, 0
      %v295 = vunpack.c.l.b16 %v259
      %v296 = vunpack.c.l.b16 %v260
      %v297 = vunpack.c.l.b16 %v261
      %v298 = vunpack.c.l.b16 %v262
      %v299 = vunpack.c.l.b16 %v263
      %v300 = vunpack.c.l.b16 %v264
      %v301 = vunpack.c.l.b16 %v265
      %v302 = vunpack.c.l.b16 %v266
      %v303 = vpack.c.b16 %v296, %v295
      %v304 = vpack.c.b16 %v298, %v297
      %v305 = vpack.c.b16 %v300, %v299
      %v306 = vpack.c.b16 %v302, %v301
      %v327 = vunpack.c.l.b16 %v267
      %v328 = vunpack.c.l.b16 %v268
      %v329 = vunpack.c.l.b16 %v269
      %v330 = vunpack.c.l.b16 %v270
      %v331 = vunpack.c.l.b16 %v271
      %v332 = vunpack.c.l.b16 %v272
      %v333 = vunpack.c.l.b16 %v273
      %v334 = vunpack.c.l.b16 %v274
      %v335 = vunpack.c.l.b16 %v275
      %v336 = vunpack.c.l.b16 %v276
      %v337 = vunpack.c.l.b16 %v277
      %v338 = vunpack.c.l.b16 %v278
      %v339 = vunpack.c.l.b16 %v279
      %v340 = vunpack.c.l.b16 %v280
      %v341 = vunpack.c.l.b16 %v281
      %v342 = vunpack.c.l.b16 %v282
      %v343 = vpack.c.b16 %v328, %v327
      %v344 = vpack.c.b16 %v330, %v329
      %v345 = vpack.c.b16 %v332, %v331
      %v346 = vpack.c.b16 %v334, %v333
      %v347 = vpack.c.b16 %v336, %v335
      %v348 = vpack.c.b16 %v338, %v337
      %v349 = vpack.c.b16 %v340, %v339
      %v350 = vpack.c.b16 %v342, %v341
      %359 = vmatpush.bf16.msra.mxu0 %v350
      %360 = vmatpush.bf16.msra.mxu0 %v349
      %361 = vmatpush.bf16.msra.mxu0 %v348
      %362 = vmatpush.bf16.msra.mxu0 %v347
      %363 = vmatpush.bf16.msra.mxu0 %v346
      %364 = vmatpush.bf16.msra.mxu0 %v345
      %365 = vmatpush.bf16.msra.mxu0 %v344
      %366 = vmatpush.bf16.msra.mxu0 %v343
      %367 = vmatmul.bf16.gmra.mxu0 %v303
      %v368 = vpop.f32.mrf.mxu0
      %v369 = vadd.f32 %v285, %v368
      %v370 = vpop.f32.mrf.mxu0
      %v371 = vadd.f32 %v285, %v370
      %372 = vmatmul.bf16.gmra.mxu0 %v304
      %v373 = vpop.f32.mrf.mxu0
      %v374 = vadd.f32 %v285, %v373
      %v375 = vpop.f32.mrf.mxu0
      %v376 = vadd.f32 %v285, %v375
      %377 = vmatmul.bf16.gmra.mxu0 %v305
      %v378 = vpop.f32.mrf.mxu0
      %v379 = vadd.f32 %v285, %v378
      %v380 = vpop.f32.mrf.mxu0
      %v381 = vadd.f32 %v285, %v380
      %382 = vmatmul.bf16.gmra.mxu0 %v306
      %v383 = vpop.f32.mrf.mxu0
      %v384 = vadd.f32 %v285, %v383
      %v385 = vpop.f32.mrf.mxu0
      %v386 = vadd.f32 %v285, %v385
      %387 = vdwg.mxu0
      %v388 = vpack.c.bf16 %v369, %v369
      %v389 = vpack.c.bf16 %v371, %v371
      %v390 = vpack.c.bf16 %v374, %v374
      %v391 = vpack.c.bf16 %v376, %v376
      %v392 = vpack.c.bf16 %v379, %v379
      %v393 = vpack.c.bf16 %v381, %v381
      %v394 = vpack.c.bf16 %v384, %v384
      %v395 = vpack.c.bf16 %v386, %v386
      %396 = vst [vmem:[%s257] sm:$0xf] %v388
      %397 = vst [vmem:[%s257 + $0x4] sm:$0xf] %v389
      %398 = vst [vmem:[%s257 + $0x8] sm:$0xf] %v390
      %399 = vst [vmem:[%s257 + $0xc] sm:$0xf] %v391
      %400 = vst [vmem:[%s257 + $0x10] sm:$0xf] %v392
      %401 = vst [vmem:[%s257 + $0x14] sm:$0xf] %v393
      %402 = vst [vmem:[%s257 + $0x18] sm:$0xf] %v394
      %403 = vst [vmem:[%s257 + $0x1c] sm:$0xf] %v395
      %s404 = smul.u32 8, %s19
      %p405 = scmp.lt.s32.totalorder %s404, 15
      %s406 = scalar_select %p405, %s404, 15
      %p407 = scmp.lt.s32.totalorder %s20, 0
      %s408 = scalar_select %p407, %s20, 0
      %s409 = sadd.s32 %s408, %s406
      %s410 = smul.addr %s409, 4
      %s411 = scalar_lea.vmem %s3, %s410
      // Predicated region
      $region33: #{unet_forward.85} parent=31 // pred_check
        %p412 = pneg %p135
      $region34: #{unet_forward.85} parent=31 // pred_check_branch
        %414 = sbr.rel (%p412) target = $region36
      $region35: #{unet_forward.85} parent=31 // pred_region
        %s415 = smul.u32 8, %s19
      $region36: #{unet_forward.85} parent=31 // pred_fallthru
        _
    $region32: #{unet_forward.85} parent=5 // pred_fallthru
      _
    %p416 = scmp.le.s32.totalorder 2, %s9
    // Predicated region
    $region37: #{unet_forward.85} parent=5 // pred_check
      %p417 = pneg %p416
    $region38: #{unet_forward.85} parent=5 // pred_check_branch
      %419 = sbr.rel (%p417) target = $region40
    $region39: #{unet_forward.85} parent=5 // pred_region
      %s420 = ssub.s32 %s9, 2
      // Predicated region
      $region41: #{unet_forward.85} parent=39 // pred_check
        %p421 = pneg %p141
      $region42: #{unet_forward.85} parent=39 // pred_check_branch
        %423 = sbr.rel (%p421) target = $region44
      $region43: #{unet_forward.85} parent=39 // pred_region
        %s424 = smul.u32 8, %s22
        %p425 = scmp.lt.s32.totalorder %s424, 15
        %s426 = scalar_select %p425, %s424, 15
        %p427 = scmp.lt.s32.totalorder %s23, 0
        %s428 = scalar_select %p427, %s23, 0
        %s429 = sadd.s32 %s428, %s426
        %s430 = smul.addr %s429, 4
        %s431 = scalar_lea.vmem %s3, %s430
      $region44: #{unet_forward.85} parent=39 // pred_fallthru
        _
    $region40: #{unet_forward.85} parent=5 // pred_fallthru
      _
  $region6: #{unet_forward.85} parent=0 // loop_footer
    %s13 = sadd.s32 1, %s9
  $region7: #{unet_forward.85} parent=0 // loop_footer_branch
    %8 = sbr.rel target = $region3
  $region8: #{unet_forward.85} parent=0 // loop_exit
    _

// kernel: unet_forward.86
$region0: #{unet_forward.86}
  #allocation0 [shape = 'u32[]', space=smem, size = 0x4, offset = 0x4, fixed_abs, tag = 'smem constant byte address 0x4 - core index']
  #allocation1 [shape = 'u32[72,128]{1,0:T(1,128)}', space=vmem, size = 0x9000, scoped, tag = 'internal scratch']
  %s0 = inlined_call_operand.vmem [shape: bf16[128,640], index: 0, kind: input, shape index: {}]
  %s1 = inlined_call_operand.vmem [shape: bf16[640,128], index: 1, kind: input, shape index: {}]
  %s2 = inlined_call_operand.vmem [shape: f32[1,128], index: 2, kind: input, shape index: {}]
  %s3 = inlined_call_operand.vmem [shape: bf16[128,128], index: 3, kind: output, shape index: {}]
  %s4 = sld [smem:[#allocation0]]
  $region45: #{unet_forward.86} parent=0
    _
  %s6 = ssub.s32 1, %s4
  %s7 = scalar_select 0, %s6, %s4
  loop: start=0, step=1, limit=4
  $region2: #{unet_forward.86} parent=0 // loop_pre_header
    _
  $region3: #{unet_forward.86} parent=0 // loop_header
    %s9 = sphi 0, %s13
    %p10 = scmp.ge.s32.totalorder %s9, 4
    %s16 = sphi 0, %s35
    %s17 = sphi 0, %s31
    %s18 = sphi 0, %s27
    %s19 = sphi 0, %s16
    %s20 = sphi 0, %s17
    %s21 = sphi 0, %s18
    %s22 = sphi 0, %s19
    %s23 = sphi 0, %s20
    %s24 = sphi 0, %s21
    %s40 = sphi 0, %s42
    %s43 = sphi 0, %s40
    %s44 = sphi 0, %s43
    %s60 = sphi 0, %s44
    %s68 = sphi 0, %s70
    %s71 = sphi 0, %s68
    %s72 = sphi 0, %s71
    %s88 = sphi 0, %s72
    %s94 = sphi 0, %s96
    %s97 = sphi 0, %s94
    %s98 = sphi 0, %s97
    %s114 = sphi 0, %s98
    %s122 = sphi 0, %s124
    %s125 = sphi 0, %s122
    %s126 = sphi 0, %s125
    %s142 = sphi 0, %s126
  $region4: #{unet_forward.86} parent=0 // loop_header_branch
    %12 = sbr.rel (%p10) target = $region8
  $region5: #{unet_forward.86} parent=0 // loop_body
    %s14 = ssub.s32 %s9, 1
    %s15 = ssub.s32 %s9, 2
    %s25 = sadd.s32 1, %s18
    %p26 = scmp.ge.s32.totalorder %s25, 1
    %s27 = scalar_select %p26, 0, %s25
    %s28 = sadd.s32 1, %s17
    %s29 = scalar_select %p26, %s28, %s17
    %p30 = scmp.ge.s32.totalorder %s29, 1
    %s31 = scalar_select %p30, 0, %s29
    %s32 = sadd.s32 1, %s16
    %s33 = scalar_select %p30, %s32, %s16
    %p34 = scmp.ge.s32.totalorder %s33, 2
    %s35 = scalar_select %p34, 0, %s33
    %s36 = ssub.s32 %s16, %s35
    %s37 = ssub.s32 %s18, %s27
    %s38 = sor.u32 %s36, %s37
    %p39 = scmp.eq.s32.totalorder %s38, 0
    %s41 = sadd.s32 %s40, 1
    %s42 = scalar_select %p39, %s40, %s41
    %p45 = pneg %p39
    %p46 = scmp.eq.s32.totalorder %s9, 1
    %p47 = por %p45, %p46
    %p48 = scmp.ne.s32.totalorder %s40, %s43
    %p49 = scmp.eq.s32.totalorder %s9, 0
    %p50 = por %p48, %p49
    %p51 = scmp.ne.s32.totalorder %s40, %s43
    %p52 = scmp.eq.s32.totalorder %s14, 1
    %p53 = por %p51, %p52
    %p54 = scmp.ne.s32.totalorder %s43, %s44
    %p55 = scmp.eq.s32.totalorder %s14, 0
    %p56 = por %p54, %p55
    %p57 = scmp.ne.s32.totalorder %s43, %s44
    %p58 = scmp.eq.s32.totalorder %s15, 1
    %p59 = por %p57, %p58
    %p61 = scmp.ne.s32.totalorder %s44, %s60
    %p62 = scmp.eq.s32.totalorder %s15, 0
    %p63 = por %p61, %p62
    %s64 = ssub.s32 %s18, %s27
    %s65 = ssub.s32 %s17, %s31
    %s66 = sor.u32 %s64, %s65
    %p67 = scmp.eq.s32.totalorder %s66, 0
    %s69 = sadd.s32 %s68, 1
    %s70 = scalar_select %p67, %s68, %s69
    %p73 = pneg %p67
    %p74 = scmp.eq.s32.totalorder %s9, 1
    %p75 = por %p73, %p74
    %p76 = scmp.ne.s32.totalorder %s68, %s71
    %p77 = scmp.eq.s32.totalorder %s9, 0
    %p78 = por %p76, %p77
    %p79 = scmp.ne.s32.totalorder %s68, %s71
    %p80 = scmp.eq.s32.totalorder %s14, 1
    %p81 = por %p79, %p80
    %p82 = scmp.ne.s32.totalorder %s71, %s72
    %p83 = scmp.eq.s32.totalorder %s14, 0
    %p84 = por %p82, %p83
    %p85 = scmp.ne.s32.totalorder %s71, %s72
    %p86 = scmp.eq.s32.totalorder %s15, 1
    %p87 = por %p85, %p86
    %p89 = scmp.ne.s32.totalorder %s72, %s88
    %p90 = scmp.eq.s32.totalorder %s15, 0
    %p91 = por %p89, %p90
    %s92 = ssub.s32 %s17, %s31
    %p93 = scmp.eq.s32.totalorder %s92, 0
    %s95 = sadd.s32 %s94, 1
    %s96 = scalar_select %p93, %s94, %s95
    %p99 = pneg %p93
    %p100 = scmp.eq.s32.totalorder %s9, 1
    %p101 = por %p99, %p100
    %p102 = scmp.ne.s32.totalorder %s94, %s97
    %p103 = scmp.eq.s32.totalorder %s9, 0
    %p104 = por %p102, %p103
    %p105 = scmp.ne.s32.totalorder %s94, %s97
    %p106 = scmp.eq.s32.totalorder %s14, 1
    %p107 = por %p105, %p106
    %p108 = scmp.ne.s32.totalorder %s97, %s98
    %p109 = scmp.eq.s32.totalorder %s14, 0
    %p110 = por %p108, %p109
    %p111 = scmp.ne.s32.totalorder %s97, %s98
    %p112 = scmp.eq.s32.totalorder %s15, 1
    %p113 = por %p111, %p112
    %p115 = scmp.ne.s32.totalorder %s98, %s114
    %p116 = scmp.eq.s32.totalorder %s15, 0
    %p117 = por %p115, %p116
    %s118 = ssub.s32 %s16, %s35
    %s119 = ssub.s32 %s17, %s31
    %s120 = sor.u32 %s118, %s119
    %p121 = scmp.eq.s32.totalorder %s120, 0
    %s123 = sadd.s32 %s122, 1
    %s124 = scalar_select %p121, %s122, %s123
    %p127 = pneg %p121
    %p128 = scmp.eq.s32.totalorder %s9, 1
    %p129 = por %p127, %p128
    %p130 = scmp.ne.s32.totalorder %s122, %s125
    %p131 = scmp.eq.s32.totalorder %s9, 0
    %p132 = por %p130, %p131
    %p133 = scmp.ne.s32.totalorder %s122, %s125
    %p134 = scmp.eq.s32.totalorder %s14, 1
    %p135 = por %p133, %p134
    %p136 = scmp.ne.s32.totalorder %s125, %s126
    %p137 = scmp.eq.s32.totalorder %s14, 0
    %p138 = por %p136, %p137
    %p139 = scmp.ne.s32.totalorder %s125, %s126
    %p140 = scmp.eq.s32.totalorder %s15, 1
    %p141 = por %p139, %p140
    %p143 = scmp.ne.s32.totalorder %s126, %s142
    %p144 = scmp.eq.s32.totalorder %s15, 0
    %p145 = por %p143, %p144
    %p146 = scmp.le.s32.totalorder 1, %s9
    %p147 = scmp.lt.s32.totalorder %s9, 3
    %p148 = pnand %p146, %p147
    %p149 = pneg %p148
    // Predicated region
    $region9: #{unet_forward.86} parent=5 // pred_check
      _
    $region10: #{unet_forward.86} parent=5 // pred_check_branch
      %151 = sbr.rel (%p148) target = $region12
    $region11: #{unet_forward.86} parent=5 // pred_region
      %s152 = ssub.s32 %s9, 1
      // Predicated region
      $region13: #{unet_forward.86} parent=11 // pred_check
        %p153 = pneg %p84
      $region14: #{unet_forward.86} parent=11 // pred_check_branch
        %155 = sbr.rel (%p153) target = $region16
      $region15: #{unet_forward.86} parent=11 // pred_region
        %s156 = smul.u32 80, %s21
        %p157 = scmp.lt.s32.totalorder %s156, 79
        %s158 = scalar_select %p157, %s156, 79
        %p159 = scmp.lt.s32.totalorder %s20, 0
        %s160 = scalar_select %p159, %s20, 0
        %s161 = sadd.s32 %s160, %s158
        %s162 = smul.addr %s161, 4
        %s163 = scalar_lea.vmem %s1, %s162
        %s164 = smul.u32 80, %s21
      $region16: #{unet_forward.86} parent=11 // pred_fallthru
        _
      // Predicated region
      $region17: #{unet_forward.86} parent=11 // pred_check
        %p165 = pneg %p110
      $region18: #{unet_forward.86} parent=11 // pred_check_branch
        %167 = sbr.rel (%p165) target = $region20
      $region19: #{unet_forward.86} parent=11 // pred_region
        %p168 = scmp.lt.s32.totalorder %s20, 0
        %s169 = scalar_select %p168, %s20, 0
        %s170 = scalar_lea.vmem %s2, %s169
      $region20: #{unet_forward.86} parent=11 // pred_fallthru
        _
    $region12: #{unet_forward.86} parent=5 // pred_fallthru
      _
    %p171 = scmp.lt.s32.totalorder %s9, 2
    // Predicated region
    $region21: #{unet_forward.86} parent=5 // pred_check
      %p172 = pneg %p171
    $region22: #{unet_forward.86} parent=5 // pred_check_branch
      %174 = sbr.rel (%p172) target = $region24
    $region23: #{unet_forward.86} parent=5 // pred_region
      // Predicated region
      $region25: #{unet_forward.86} parent=23 // pred_check
        %p175 = pneg %p50
      $region26: #{unet_forward.86} parent=23 // pred_check_branch
        %177 = sbr.rel (%p175) target = $region28
      $region27: #{unet_forward.86} parent=23 // pred_region
        %s178 = smul.u32 8, %s16
        %s179 = smul.u32 5, %s18
        %p180 = scmp.lt.s32.totalorder %s178, 15
        %s181 = scalar_select %p180, %s178, 15
        %p182 = scmp.lt.s32.totalorder %s179, 4
        %s183 = scalar_select %p182, %s179, 4
        %s184 = smul.addr %s181, 5
        %s185 = sadd.s32 %s183, %s184
        %s186 = smul.addr %s185, 4
        %s187 = scalar_lea.vmem %s0, %s186
        %s188 = smul.u32 8, %s16
        %s189 = smul.u32 5, %s18
      $region28: #{unet_forward.86} parent=23 // pred_fallthru
        _
    $region24: #{unet_forward.86} parent=5 // pred_fallthru
      _
    %p190 = scmp.le.s32.totalorder 1, %s9
    %p191 = scmp.lt.s32.totalorder %s9, 3
    %p192 = pnand %p190, %p191
    %p193 = pneg %p192
    // Predicated region
    $region29: #{unet_forward.86} parent=5 // pred_check
      _
    $region30: #{unet_forward.86} parent=5 // pred_check_branch
      %195 = sbr.rel (%p192) target = $region32
    $region31: #{unet_forward.86} parent=5 // pred_region
      %s196 = ssub.s32 %s9, 1
      %s197 = smul.u32 8, %s19
      %s198 = smul.u32 5, %s21
      %p199 = scmp.lt.s32.totalorder %s197, 15
      %s200 = scalar_select %p199, %s197, 15
      %p201 = scmp.lt.s32.totalorder %s198, 4
      %s202 = scalar_select %p201, %s198, 4
      %s203 = smul.addr %s200, 5
      %s204 = sadd.s32 %s202, %s203
      %s205 = smul.addr %s204, 4
      %s206 = scalar_lea.vmem %s0, %s205
      %p207 = pneg %p56
      %p208 = pneg %p53
      %s209 = smul.u32 80, %s21
      %p210 = scmp.lt.s32.totalorder %s209, 79
      %s211 = scalar_select %p210, %s209, 79
      %p212 = scmp.lt.s32.totalorder %s20, 0
      %s213 = scalar_select %p212, %s20, 0
      %s214 = sadd.s32 %s213, %s211
      %s215 = smul.addr %s214, 4
      %s216 = scalar_lea.vmem %s1, %s215
      %p217 = pneg %p84
      %p218 = pneg %p81
      %p219 = scmp.lt.s32.totalorder %s20, 0
      %s220 = scalar_select %p219, %s20, 0
      %s221 = scalar_lea.vmem %s2, %s220
      %p222 = pneg %p110
      %p223 = pneg %p107
      %p224 = pneg %p138
      %p225 = pneg %p135
      %s226 = smul.u32 8, %s19
      %p227 = scmp.lt.s32.totalorder %s226, 15
      %s228 = scalar_select %p227, %s226, 15
      %p229 = scmp.lt.s32.totalorder %s20, 0
      %s230 = scalar_select %p229, %s20, 0
      %s231 = sadd.s32 %s230, %s228
      %s232 = smul.addr %s231, 4
      %s233 = scalar_lea.vmem %s3, %s232
      %s234 = smul.u32 8, %s19
      %s235 = smul.u32 5, %s21
      %p236 = scmp.lt.s32.totalorder %s234, 15
      %s237 = scalar_select %p236, %s234, 15
      %p238 = scmp.lt.s32.totalorder %s235, 4
      %s239 = scalar_select %p238, %s235, 4
      %s240 = smul.addr %s237, 5
      %s241 = sadd.s32 %s239, %s240
      %s242 = smul.addr %s241, 4
      %s243 = scalar_lea.vmem %s0, %s242
      %s244 = smul.u32 8, %s19
      %s245 = smul.u32 5, %s21
      %s246 = smul.u32 80, %s21
      %p247 = scmp.lt.s32.totalorder %s246, 79
      %s248 = scalar_select %p247, %s246, 79
      %p249 = scmp.lt.s32.totalorder %s20, 0
      %s250 = scalar_select %p249, %s20, 0
      %s251 = sadd.s32 %s250, %s248
      %s252 = smul.addr %s251, 4
      %s253 = scalar_lea.vmem %s1, %s252
      %s254 = smul.u32 80, %s21
      %p255 = scmp.lt.s32.totalorder %s20, 0
      %s256 = scalar_select %p255, %s20, 0
      %s257 = scalar_lea.vmem %s2, %s256
      %s258 = smul.u32 8, %s19
      %p259 = scmp.lt.s32.totalorder %s258, 15
      %s260 = scalar_select %p259, %s258, 15
      %p261 = scmp.lt.s32.totalorder %s20, 0
      %s262 = scalar_select %p261, %s20, 0
      %s263 = sadd.s32 %s262, %s260
      %s264 = smul.addr %s263, 4
      %s265 = scalar_lea.vmem %s3, %s264
      %s266 = smul.u32 8, %s19
      %v267 = vld [vmem:[%s243] sm:$0xff]
      %v268 = vld [vmem:[%s243 + $0x8] sm:$0xff]
      %v269 = vld [vmem:[%s243 + $0x10] sm:$0xf]
      %v270 = vld [vmem:[%s243 + $0x14] sm:$0xff]
      %v271 = vld [vmem:[%s243 + $0x1c] sm:$0xff]
      %v272 = vld [vmem:[%s243 + $0x24] sm:$0xf]
      %v273 = vld [vmem:[%s243 + $0x28] sm:$0xff]
      %v274 = vld [vmem:[%s243 + $0x30] sm:$0xff]
      %v275 = vld [vmem:[%s243 + $0x38] sm:$0xf]
      %v276 = vld [vmem:[%s243 + $0x3c] sm:$0xff]
      %v277 = vld [vmem:[%s243 + $0x44] sm:$0xff]
      %v278 = vld [vmem:[%s243 + $0x4c] sm:$0xf]
      %v279 = vld [vmem:[%s243 + $0x50] sm:$0xff]
      %v280 = vld [vmem:[%s243 + $0x58] sm:$0xff]
      %v281 = vld [vmem:[%s243 + $0x60] sm:$0xf]
      %v282 = vld [vmem:[%s243 + $0x64] sm:$0xff]
      %v283 = vld [vmem:[%s243 + $0x6c] sm:$0xff]
      %v284 = vld [vmem:[%s243 + $0x74] sm:$0xf]
      %v285 = vld [vmem:[%s243 + $0x78] sm:$0xff]
      %v286 = vld [vmem:[%s243 + $0x80] sm:$0xff]
      %v287 = vld [vmem:[%s243 + $0x88] sm:$0xf]
      %v288 = vld [vmem:[%s243 + $0x8c] sm:$0xff]
      %v289 = vld [vmem:[%s243 + $0x94] sm:$0xff]
      %v290 = vld [vmem:[%s243 + $0x9c] sm:$0xf]
      %v291 = vld [vmem:[%s253] sm:$0xf]
      %v292 = vld [vmem:[%s253 + $0x4] sm:$0xf]
      %v293 = vld [vmem:[%s253 + $0x8] sm:$0xf]
      %v294 = vld [vmem:[%s253 + $0xc] sm:$0xf]
      %v295 = vld [vmem:[%s253 + $0x10] sm:$0xf]
      %v296 = vld [vmem:[%s253 + $0x14] sm:$0xf]
      %v297 = vld [vmem:[%s253 + $0x18] sm:$0xf]
      %v298 = vld [vmem:[%s253 + $0x1c] sm:$0xf]
      %v299 = vld [vmem:[%s253 + $0x20] sm:$0xf]
      %v300 = vld [vmem:[%s253 + $0x24] sm:$0xf]
      %v301 = vld [vmem:[%s253 + $0x28] sm:$0xf]
      %v302 = vld [vmem:[%s253 + $0x2c] sm:$0xf]
      %v303 = vld [vmem:[%s253 + $0x30] sm:$0xf]
      %v304 = vld [vmem:[%s253 + $0x34] sm:$0xf]
      %v305 = vld [vmem:[%s253 + $0x38] sm:$0xf]
      %v306 = vld [vmem:[%s253 + $0x3c] sm:$0xf]
      %v307 = vld [vmem:[%s253 + $0x40] sm:$0xf]
      %v308 = vld [vmem:[%s253 + $0x44] sm:$0xf]
      %v309 = vld [vmem:[%s253 + $0x48] sm:$0xf]
      %v310 = vld [vmem:[%s253 + $0x4c] sm:$0xf]
      %v311 = vld [vmem:[%s253 + $0x50] sm:$0xf]
      %v312 = vld [vmem:[%s253 + $0x54] sm:$0xf]
      %v313 = vld [vmem:[%s253 + $0x58] sm:$0xf]
      %v314 = vld [vmem:[%s253 + $0x5c] sm:$0xf]
      %v315 = vld [vmem:[%s253 + $0x60] sm:$0xf]
      %v316 = vld [vmem:[%s253 + $0x64] sm:$0xf]
      %v317 = vld [vmem:[%s253 + $0x68] sm:$0xf]
      %v318 = vld [vmem:[%s253 + $0x6c] sm:$0xf]
      %v319 = vld [vmem:[%s253 + $0x70] sm:$0xf]
      %v320 = vld [vmem:[%s253 + $0x74] sm:$0xf]
      %v321 = vld [vmem:[%s253 + $0x78] sm:$0xf]
      %v322 = vld [vmem:[%s253 + $0x7c] sm:$0xf]
      %v323 = vld [vmem:[%s253 + $0x80] sm:$0xf]
      %v324 = vld [vmem:[%s253 + $0x84] sm:$0xf]
      %v325 = vld [vmem:[%s253 + $0x88] sm:$0xf]
      %v326 = vld [vmem:[%s253 + $0x8c] sm:$0xf]
      %v327 = vld [vmem:[%s253 + $0x90] sm:$0xf]
      %v328 = vld [vmem:[%s253 + $0x94] sm:$0xf]
      %v329 = vld [vmem:[%s253 + $0x98] sm:$0xf]
      %v330 = vld [vmem:[%s253 + $0x9c] sm:$0xf]
      %v331 = vld [vmem:[%s253 + $0xa0] sm:$0xf]
      %v332 = vld [vmem:[%s253 + $0xa4] sm:$0xf]
      %v333 = vld [vmem:[%s253 + $0xa8] sm:$0xf]
      %v334 = vld [vmem:[%s253 + $0xac] sm:$0xf]
      %v335 = vld [vmem:[%s253 + $0xb0] sm:$0xf]
      %v336 = vld [vmem:[%s253 + $0xb4] sm:$0xf]
      %v337 = vld [vmem:[%s253 + $0xb8] sm:$0xf]
      %v338 = vld [vmem:[%s253 + $0xbc] sm:$0xf]
      %v339 = vld [vmem:[%s253 + $0xc0] sm:$0xf]
      %v340 = vld [vmem:[%s253 + $0xc4] sm:$0xf]
      %v341 = vld [vmem:[%s253 + $0xc8] sm:$0xf]
      %v342 = vld [vmem:[%s253 + $0xcc] sm:$0xf]
      %v343 = vld [vmem:[%s253 + $0xd0] sm:$0xf]
      %v344 = vld [vmem:[%s253 + $0xd4] sm:$0xf]
      %v345 = vld [vmem:[%s253 + $0xd8] sm:$0xf]
      %v346 = vld [vmem:[%s253 + $0xdc] sm:$0xf]
      %v347 = vld [vmem:[%s253 + $0xe0] sm:$0xf]
      %v348 = vld [vmem:[%s253 + $0xe4] sm:$0xf]
      %v349 = vld [vmem:[%s253 + $0xe8] sm:$0xf]
      %v350 = vld [vmem:[%s253 + $0xec] sm:$0xf]
      %v351 = vld [vmem:[%s253 + $0xf0] sm:$0xf]
      %v352 = vld [vmem:[%s253 + $0xf4] sm:$0xf]
      %v353 = vld [vmem:[%s253 + $0xf8] sm:$0xf]
      %v354 = vld [vmem:[%s253 + $0xfc] sm:$0xf]
      %v355 = vld [vmem:[%s253 + $0x100] sm:$0xf]
      %v356 = vld [vmem:[%s253 + $0x104] sm:$0xf]
      %v357 = vld [vmem:[%s253 + $0x108] sm:$0xf]
      %v358 = vld [vmem:[%s253 + $0x10c] sm:$0xf]
      %v359 = vld [vmem:[%s253 + $0x110] sm:$0xf]
      %v360 = vld [vmem:[%s253 + $0x114] sm:$0xf]
      %v361 = vld [vmem:[%s253 + $0x118] sm:$0xf]
      %v362 = vld [vmem:[%s253 + $0x11c] sm:$0xf]
      %v363 = vld [vmem:[%s253 + $0x120] sm:$0xf]
      %v364 = vld [vmem:[%s253 + $0x124] sm:$0xf]
      %v365 = vld [vmem:[%s253 + $0x128] sm:$0xf]
      %v366 = vld [vmem:[%s253 + $0x12c] sm:$0xf]
      %v367 = vld [vmem:[%s253 + $0x130] sm:$0xf]
      %v368 = vld [vmem:[%s253 + $0x134] sm:$0xf]
      %v369 = vld [vmem:[%s253 + $0x138] sm:$0xf]
      %v370 = vld [vmem:[%s253 + $0x13c] sm:$0xf]
      %v371 = vld [vmem:[%s257] sm:$0x1]
      %v373 = vperm.slane %v371, 0
      %v399 = vunpack.c.l.b16 %v267
      %v400 = vunpack.c.h.b16 %v267
      %v401 = vunpack.c.l.b16 %v268
      %v402 = vunpack.c.h.b16 %v268
      %v403 = vunpack.c.l.b16 %v269
      %v404 = vunpack.c.l.b16 %v270
      %v405 = vunpack.c.h.b16 %v270
      %v406 = vunpack.c.l.b16 %v271
      %v407 = vunpack.c.h.b16 %v271
      %v408 = vunpack.c.l.b16 %v272
      %v409 = vunpack.c.l.b16 %v273
      %v410 = vunpack.c.h.b16 %v273
      %v411 = vunpack.c.l.b16 %v274
      %v412 = vunpack.c.h.b16 %v274
      %v413 = vunpack.c.l.b16 %v275
      %v414 = vunpack.c.l.b16 %v276
      %v415 = vunpack.c.h.b16 %v276
      %v416 = vunpack.c.l.b16 %v277
      %v417 = vunpack.c.h.b16 %v277
      %v418 = vunpack.c.l.b16 %v278
      %v419 = vunpack.c.l.b16 %v279
      %v420 = vunpack.c.h.b16 %v279
      %v421 = vunpack.c.l.b16 %v280
      %v422 = vunpack.c.h.b16 %v280
      %v423 = vunpack.c.l.b16 %v281
      %v424 = vunpack.c.l.b16 %v282
      %v425 = vunpack.c.h.b16 %v282
      %v426 = vunpack.c.l.b16 %v283
      %v427 = vunpack.c.h.b16 %v283
      %v428 = vunpack.c.l.b16 %v284
      %v429 = vunpack.c.l.b16 %v285
      %v430 = vunpack.c.h.b16 %v285
      %v431 = vunpack.c.l.b16 %v286
      %v432 = vunpack.c.h.b16 %v286
      %v433 = vunpack.c.l.b16 %v287
      %v434 = vunpack.c.l.b16 %v288
      %v435 = vunpack.c.h.b16 %v288
      %v436 = vunpack.c.l.b16 %v289
      %v437 = vunpack.c.h.b16 %v289
      %v438 = vunpack.c.l.b16 %v290
      %v439 = vpack.c.b16 %v404, %v399
      %v440 = vpack.c.b16 %v405, %v400
      %v441 = vpack.c.b16 %v406, %v401
      %v442 = vpack.c.b16 %v407, %v402
      %v443 = vpack.c.b16 %v408, %v403
      %v444 = vpack.c.b16 %v414, %v409
      %v445 = vpack.c.b16 %v415, %v410
      %v446 = vpack.c.b16 %v416, %v411
      %v447 = vpack.c.b16 %v417, %v412
      %v448 = vpack.c.b16 %v418, %v413
      %v449 = vpack.c.b16 %v424, %v419
      %v450 = vpack.c.b16 %v425, %v420
      %v451 = vpack.c.b16 %v426, %v421
      %v452 = vpack.c.b16 %v427, %v422
      %v453 = vpack.c.b16 %v428, %v423
      %v454 = vpack.c.b16 %v434, %v429
      %v455 = vpack.c.b16 %v435, %v430
      %v456 = vpack.c.b16 %v436, %v431
      %v457 = vpack.c.b16 %v437, %v432
      %v458 = vpack.c.b16 %v438, %v433
      %v559 = vunpack.c.l.b16 %v291
      %v560 = vunpack.c.l.b16 %v292
      %v561 = vunpack.c.l.b16 %v293
      %v562 = vunpack.c.l.b16 %v294
      %v563 = vunpack.c.l.b16 %v295
      %v564 = vunpack.c.l.b16 %v296
      %v565 = vunpack.c.l.b16 %v297
      %v566 = vunpack.c.l.b16 %v298
      %v567 = vunpack.c.l.b16 %v299
      %v568 = vunpack.c.l.b16 %v300
      %v569 = vunpack.c.l.b16 %v301
      %v570 = vunpack.c.l.b16 %v302
      %v571 = vunpack.c.l.b16 %v303
      %v572 = vunpack.c.l.b16 %v304
      %v573 = vunpack.c.l.b16 %v305
      %v574 = vunpack.c.l.b16 %v306
      %v575 = vunpack.c.l.b16 %v307
      %v576 = vunpack.c.l.b16 %v308
      %v577 = vunpack.c.l.b16 %v309
      %v578 = vunpack.c.l.b16 %v310
      %v579 = vunpack.c.l.b16 %v311
      %v580 = vunpack.c.l.b16 %v312
      %v581 = vunpack.c.l.b16 %v313
      %v582 = vunpack.c.l.b16 %v314
      %v583 = vunpack.c.l.b16 %v315
      %v584 = vunpack.c.l.b16 %v316
      %v585 = vunpack.c.l.b16 %v317
      %v586 = vunpack.c.l.b16 %v318
      %v587 = vunpack.c.l.b16 %v319
      %v588 = vunpack.c.l.b16 %v320
      %v589 = vunpack.c.l.b16 %v321
      %v590 = vunpack.c.l.b16 %v322
      %v591 = vunpack.c.l.b16 %v323
      %v592 = vunpack.c.l.b16 %v324
      %v593 = vunpack.c.l.b16 %v325
      %v594 = vunpack.c.l.b16 %v326
      %v595 = vunpack.c.l.b16 %v327
      %v596 = vunpack.c.l.b16 %v328
      %v597 = vunpack.c.l.b16 %v329
      %v598 = vunpack.c.l.b16 %v330
      %v599 = vunpack.c.l.b16 %v331
      %v600 = vunpack.c.l.b16 %v332
      %v601 = vunpack.c.l.b16 %v333
      %v602 = vunpack.c.l.b16 %v334
      %v603 = vunpack.c.l.b16 %v335
      %v604 = vunpack.c.l.b16 %v336
      %v605 = vunpack.c.l.b16 %v337
      %v606 = vunpack.c.l.b16 %v338
      %v607 = vunpack.c.l.b16 %v339
      %v608 = vunpack.c.l.b16 %v340
      %v609 = vunpack.c.l.b16 %v341
      %v610 = vunpack.c.l.b16 %v342
      %v611 = vunpack.c.l.b16 %v343
      %v612 = vunpack.c.l.b16 %v344
      %v613 = vunpack.c.l.b16 %v345
      %v614 = vunpack.c.l.b16 %v346
      %v615 = vunpack.c.l.b16 %v347
      %v616 = vunpack.c.l.b16 %v348
      %v617 = vunpack.c.l.b16 %v349
      %v618 = vunpack.c.l.b16 %v350
      %v619 = vunpack.c.l.b16 %v351
      %v620 = vunpack.c.l.b16 %v352
      %v621 = vunpack.c.l.b16 %v353
      %v622 = vunpack.c.l.b16 %v354
      %v623 = vunpack.c.l.b16 %v355
      %v624 = vunpack.c.l.b16 %v356
      %v625 = vunpack.c.l.b16 %v357
      %v626 = vunpack.c.l.b16 %v358
      %v627 = vunpack.c.l.b16 %v359
      %v628 = vunpack.c.l.b16 %v360
      %v629 = vunpack.c.l.b16 %v361
      %v630 = vunpack.c.l.b16 %v362
      %v631 = vunpack.c.l.b16 %v363
      %v632 = vunpack.c.l.b16 %v364
      %v633 = vunpack.c.l.b16 %v365
      %v634 = vunpack.c.l.b16 %v366
      %v635 = vunpack.c.l.b16 %v367
      %v636 = vunpack.c.l.b16 %v368
      %v637 = vunpack.c.l.b16 %v369
      %v638 = vunpack.c.l.b16 %v370
      %v639 = vpack.c.b16 %v560, %v559
      %v640 = vpack.c.b16 %v562, %v561
      %v641 = vpack.c.b16 %v564, %v563
      %v642 = vpack.c.b16 %v566, %v565
      %v643 = vpack.c.b16 %v568, %v567
      %v644 = vpack.c.b16 %v570, %v569
      %v645 = vpack.c.b16 %v572, %v571
      %v646 = vpack.c.b16 %v574, %v573
      %v647 = vpack.c.b16 %v576, %v575
      %v648 = vpack.c.b16 %v578, %v577
      %v649 = vpack.c.b16 %v580, %v579
      %v650 = vpack.c.b16 %v582, %v581
      %v651 = vpack.c.b16 %v584, %v583
      %v652 = vpack.c.b16 %v586, %v585
      %v653 = vpack.c.b16 %v588, %v587
      %v654 = vpack.c.b16 %v590, %v589
      %v655 = vpack.c.b16 %v592, %v591
      %v656 = vpack.c.b16 %v594, %v593
      %v657 = vpack.c.b16 %v596, %v595
      %v658 = vpack.c.b16 %v598, %v597
      %v659 = vpack.c.b16 %v600, %v599
      %v660 = vpack.c.b16 %v602, %v601
      %v661 = vpack.c.b16 %v604, %v603
      %v662 = vpack.c.b16 %v606, %v605
      %v663 = vpack.c.b16 %v608, %v607
      %v664 = vpack.c.b16 %v610, %v609
      %v665 = vpack.c.b16 %v612, %v611
      %v666 = vpack.c.b16 %v614, %v613
      %v667 = vpack.c.b16 %v616, %v615
      %v668 = vpack.c.b16 %v618, %v617
      %v669 = vpack.c.b16 %v620, %v619
      %v670 = vpack.c.b16 %v622, %v621
      %v671 = vpack.c.b16 %v624, %v623
      %v672 = vpack.c.b16 %v626, %v625
      %v673 = vpack.c.b16 %v628, %v627
      %v674 = vpack.c.b16 %v630, %v629
      %v675 = vpack.c.b16 %v632, %v631
      %v676 = vpack.c.b16 %v634, %v633
      %v677 = vpack.c.b16 %v636, %v635
      %v678 = vpack.c.b16 %v638, %v637
      %719 = vmatpush.bf16.msra.mxu0 %v646
      %720 = vmatpush.bf16.msra.mxu0 %v645
      %721 = vmatpush.bf16.msra.mxu0 %v644
      %722 = vmatpush.bf16.msra.mxu0 %v643
      %723 = vmatpush.bf16.msra.mxu0 %v642
      %724 = vmatpush.bf16.msra.mxu0 %v641
      %725 = vmatpush.bf16.msra.mxu0 %v640
      %726 = vmatpush.bf16.msra.mxu0 %v639
      %727 = vmatmul.bf16.gmra.mxu0 %v439
      %v728 = vpop.f32.mrf.mxu0
      %v729 = vadd.f32 %v373, %v728
      %v730 = vpop.f32.mrf.mxu0
      %v731 = vadd.f32 %v373, %v730
      %732 = vmatmul.bf16.gmra.mxu0 %v444
      %v733 = vpop.f32.mrf.mxu0
      %v734 = vadd.f32 %v373, %v733
      %v735 = vpop.f32.mrf.mxu0
      %v736 = vadd.f32 %v373, %v735
      %737 = vmatmul.bf16.gmra.mxu0 %v449
      %v738 = vpop.f32.mrf.mxu0
      %v739 = vadd.f32 %v373, %v738
      %v740 = vpop.f32.mrf.mxu0
      %v741 = vadd.f32 %v373, %v740
      %742 = vmatmul.bf16.gmra.mxu0 %v454
      %v743 = vpop.f32.mrf.mxu0
      %v744 = vadd.f32 %v373, %v743
      %v745 = vpop.f32.mrf.mxu0
      %v746 = vadd.f32 %v373, %v745
      %747 = vdwg.mxu0
      %748 = vmatpush.bf16.msra.mxu0 %v654
      %749 = vmatpush.bf16.msra.mxu0 %v653
      %750 = vmatpush.bf16.msra.mxu0 %v652
      %751 = vmatpush.bf16.msra.mxu0 %v651
      %752 = vmatpush.bf16.msra.mxu0 %v650
      %753 = vmatpush.bf16.msra.mxu0 %v649
      %754 = vmatpush.bf16.msra.mxu0 %v648
      %755 = vmatpush.bf16.msra.mxu0 %v647
      %756 = vmatmul.bf16.gmra.mxu0 %v440
      %v757 = vpop.f32.mrf.mxu0
      %v758 = vadd.f32 %v729, %v757
      %v759 = vpop.f32.mrf.mxu0
      %v760 = vadd.f32 %v731, %v759
      %761 = vmatmul.bf16.gmra.mxu0 %v445
      %v762 = vpop.f32.mrf.mxu0
      %v763 = vadd.f32 %v734, %v762
      %v764 = vpop.f32.mrf.mxu0
      %v765 = vadd.f32 %v736, %v764
      %766 = vmatmul.bf16.gmra.mxu0 %v450
      %v767 = vpop.f32.mrf.mxu0
      %v768 = vadd.f32 %v739, %v767
      %v769 = vpop.f32.mrf.mxu0
      %v770 = vadd.f32 %v741, %v769
      %771 = vmatmul.bf16.gmra.mxu0 %v455
      %v772 = vpop.f32.mrf.mxu0
      %v773 = vadd.f32 %v744, %v772
      %v774 = vpop.f32.mrf.mxu0
      %v775 = vadd.f32 %v746, %v774
      %776 = vdwg.mxu0
      %777 = vmatpush.bf16.msra.mxu0 %v662
      %778 = vmatpush.bf16.msra.mxu0 %v661
      %779 = vmatpush.bf16.msra.mxu0 %v660
      %780 = vmatpush.bf16.msra.mxu0 %v659
      %781 = vmatpush.bf16.msra.mxu0 %v658
      %782 = vmatpush.bf16.msra.mxu0 %v657
      %783 = vmatpush.bf16.msra.mxu0 %v656
      %784 = vmatpush.bf16.msra.mxu0 %v655
      %785 = vmatmul.bf16.gmra.mxu0 %v441
      %v786 = vpop.f32.mrf.mxu0
      %v787 = vadd.f32 %v758, %v786
      %v788 = vpop.f32.mrf.mxu0
      %v789 = vadd.f32 %v760, %v788
      %790 = vmatmul.bf16.gmra.mxu0 %v446
      %v791 = vpop.f32.mrf.mxu0
      %v792 = vadd.f32 %v763, %v791
      %v793 = vpop.f32.mrf.mxu0
      %v794 = vadd.f32 %v765, %v793
      %795 = vmatmul.bf16.gmra.mxu0 %v451
      %v796 = vpop.f32.mrf.mxu0
      %v797 = vadd.f32 %v768, %v796
      %v798 = vpop.f32.mrf.mxu0
      %v799 = vadd.f32 %v770, %v798
      %800 = vmatmul.bf16.gmra.mxu0 %v456
      %v801 = vpop.f32.mrf.mxu0
      %v802 = vadd.f32 %v773, %v801
      %v803 = vpop.f32.mrf.mxu0
      %v804 = vadd.f32 %v775, %v803
      %805 = vdwg.mxu0
      %806 = vmatpush.bf16.msra.mxu0 %v670
      %807 = vmatpush.bf16.msra.mxu0 %v669
      %808 = vmatpush.bf16.msra.mxu0 %v668
      %809 = vmatpush.bf16.msra.mxu0 %v667
      %810 = vmatpush.bf16.msra.mxu0 %v666
      %811 = vmatpush.bf16.msra.mxu0 %v665
      %812 = vmatpush.bf16.msra.mxu0 %v664
      %813 = vmatpush.bf16.msra.mxu0 %v663
      %814 = vmatmul.bf16.gmra.mxu0 %v442
      %v815 = vpop.f32.mrf.mxu0
      %v816 = vadd.f32 %v787, %v815
      %v817 = vpop.f32.mrf.mxu0
      %v818 = vadd.f32 %v789, %v817
      %819 = vmatmul.bf16.gmra.mxu0 %v447
      %v820 = vpop.f32.mrf.mxu0
      %v821 = vadd.f32 %v792, %v820
      %v822 = vpop.f32.mrf.mxu0
      %v823 = vadd.f32 %v794, %v822
      %824 = vmatmul.bf16.gmra.mxu0 %v452
      %v825 = vpop.f32.mrf.mxu0
      %v826 = vadd.f32 %v797, %v825
      %v827 = vpop.f32.mrf.mxu0
      %v828 = vadd.f32 %v799, %v827
      %829 = vmatmul.bf16.gmra.mxu0 %v457
      %v830 = vpop.f32.mrf.mxu0
      %v831 = vadd.f32 %v802, %v830
      %v832 = vpop.f32.mrf.mxu0
      %v833 = vadd.f32 %v804, %v832
      %834 = vdwg.mxu0
      %835 = vmatpush.bf16.msra.mxu0 %v678
      %836 = vmatpush.bf16.msra.mxu0 %v677
      %837 = vmatpush.bf16.msra.mxu0 %v676
      %838 = vmatpush.bf16.msra.mxu0 %v675
      %839 = vmatpush.bf16.msra.mxu0 %v674
      %840 = vmatpush.bf16.msra.mxu0 %v673
      %841 = vmatpush.bf16.msra.mxu0 %v672
      %842 = vmatpush.bf16.msra.mxu0 %v671
      %843 = vmatmul.bf16.gmra.mxu0 %v443
      %v844 = vpop.f32.mrf.mxu0
      %v845 = vadd.f32 %v816, %v844
      %v846 = vpop.f32.mrf.mxu0
      %v847 = vadd.f32 %v818, %v846
      %848 = vmatmul.bf16.gmra.mxu0 %v448
      %v849 = vpop.f32.mrf.mxu0
      %v850 = vadd.f32 %v821, %v849
      %v851 = vpop.f32.mrf.mxu0
      %v852 = vadd.f32 %v823, %v851
      %853 = vmatmul.bf16.gmra.mxu0 %v453
      %v854 = vpop.f32.mrf.mxu0
      %v855 = vadd.f32 %v826, %v854
      %v856 = vpop.f32.mrf.mxu0
      %v857 = vadd.f32 %v828, %v856
      %858 = vmatmul.bf16.gmra.mxu0 %v458
      %v859 = vpop.f32.mrf.mxu0
      %v860 = vadd.f32 %v831, %v859
      %v861 = vpop.f32.mrf.mxu0
      %v862 = vadd.f32 %v833, %v861
      %863 = vdwg.mxu0
      %v864 = vpack.c.bf16 %v845, %v845
      %v865 = vpack.c.bf16 %v847, %v847
      %v866 = vpack.c.bf16 %v850, %v850
      %v867 = vpack.c.bf16 %v852, %v852
      %v868 = vpack.c.bf16 %v855, %v855
      %v869 = vpack.c.bf16 %v857, %v857
      %v870 = vpack.c.bf16 %v860, %v860
      %v871 = vpack.c.bf16 %v862, %v862
      %872 = vst [vmem:[%s265] sm:$0xf] %v864
      %873 = vst [vmem:[%s265 + $0x4] sm:$0xf] %v865
      %874 = vst [vmem:[%s265 + $0x8] sm:$0xf] %v866
      %875 = vst [vmem:[%s265 + $0xc] sm:$0xf] %v867
      %876 = vst [vmem:[%s265 + $0x10] sm:$0xf] %v868
      %877 = vst [vmem:[%s265 + $0x14] sm:$0xf] %v869
      %878 = vst [vmem:[%s265 + $0x18] sm:$0xf] %v870
      %879 = vst [vmem:[%s265 + $0x1c] sm:$0xf] %v871
      %s880 = smul.u32 8, %s19
      %p881 = scmp.lt.s32.totalorder %s880, 15
      %s882 = scalar_select %p881, %s880, 15
      %p883 = scmp.lt.s32.totalorder %s20, 0
      %s884 = scalar_select %p883, %s20, 0
      %s885 = sadd.s32 %s884, %s882
      %s886 = smul.addr %s885, 4
      %s887 = scalar_lea.vmem %s3, %s886
      // Predicated region
      $region33: #{unet_forward.86} parent=31 // pred_check
        %p888 = pneg %p135
      $region34: #{unet_forward.86} parent=31 // pred_check_branch
        %890 = sbr.rel (%p888) target = $region36
      $region35: #{unet_forward.86} parent=31 // pred_region
        %s891 = smul.u32 8, %s19
      $region36: #{unet_forward.86} parent=31 // pred_fallthru
        _
    $region32: #{unet_forward.86} parent=5 // pred_fallthru
      _
    %p892 = scmp.le.s32.totalorder 2, %s9
    // Predicated region
    $region37: #{unet_forward.86} parent=5 // pred_check
      %p893 = pneg %p892
    $region38: #{unet_forward.86} parent=5 // pred_check_branch
      %895 = sbr.rel (%p893) target = $region40
    $region39: #{unet_forward.86} parent=5 // pred_region
      %s896 = ssub.s32 %s9, 2
      // Predicated region
      $region41: #{unet_forward.86} parent=39 // pred_check
        %p897 = pneg %p141
      $region42: #{unet_forward.86} parent=39 // pred_check_branch
        %899 = sbr.rel (%p897) target = $region44
      $region43: #{unet_forward.86} parent=39 // pred_region
        %s900 = smul.u32 8, %s22
        %p901 = scmp.lt.s32.totalorder %s900, 15
        %s902 = scalar_select %p901, %s900, 15
        %p903 = scmp.lt.s32.totalorder %s23, 0
        %s904 = scalar_select %p903, %s23, 0
        %s905 = sadd.s32 %s904, %s902
        %s906 = smul.addr %s905, 4
        %s907 = scalar_lea.vmem %s3, %s906
      $region44: #{unet_forward.86} parent=39 // pred_fallthru
        _
    $region40: #{unet_forward.86} parent=5 // pred_fallthru
      _
  $region6: #{unet_forward.86} parent=0 // loop_footer
    %s13 = sadd.s32 1, %s9
  $region7: #{unet_forward.86} parent=0 // loop_footer_branch
    %8 = sbr.rel target = $region3
  $region8: #{unet_forward.86} parent=0 // loop_exit
    _

// kernel: unet_forward.88
$region0: #{unet_forward.88}
  #allocation0 [shape = 'u32[]', space=smem, size = 0x4, offset = 0x4, fixed_abs, tag = 'smem constant byte address 0x4 - core index']
  #allocation1 [shape = 'u32[72,128]{1,0:T(1,128)}', space=vmem, size = 0x9000, scoped, tag = 'internal scratch']
  %s0 = inlined_call_operand.vmem [shape: bf16[128,128], index: 0, kind: input, shape index: {}]
  %s1 = inlined_call_operand.vmem [shape: bf16[128,128], index: 1, kind: input, shape index: {}]
  %s2 = inlined_call_operand.vmem [shape: f32[1,128], index: 2, kind: input, shape index: {}]
  %s3 = inlined_call_operand.vmem [shape: bf16[128,128], index: 3, kind: output, shape index: {}]
  %s4 = sld [smem:[#allocation0]]
  $region45: #{unet_forward.88} parent=0
    _
  %s6 = ssub.s32 1, %s4
  %s7 = scalar_select 0, %s6, %s4
  loop: start=0, step=1, limit=4
  $region2: #{unet_forward.88} parent=0 // loop_pre_header
    _
  $region3: #{unet_forward.88} parent=0 // loop_header
    %s9 = sphi 0, %s13
    %p10 = scmp.ge.s32.totalorder %s9, 4
    %s16 = sphi 0, %s35
    %s17 = sphi 0, %s31
    %s18 = sphi 0, %s27
    %s19 = sphi 0, %s16
    %s20 = sphi 0, %s17
    %s21 = sphi 0, %s18
    %s22 = sphi 0, %s19
    %s23 = sphi 0, %s20
    %s24 = sphi 0, %s21
    %s40 = sphi 0, %s42
    %s43 = sphi 0, %s40
    %s44 = sphi 0, %s43
    %s60 = sphi 0, %s44
    %s68 = sphi 0, %s70
    %s71 = sphi 0, %s68
    %s72 = sphi 0, %s71
    %s88 = sphi 0, %s72
    %s94 = sphi 0, %s96
    %s97 = sphi 0, %s94
    %s98 = sphi 0, %s97
    %s114 = sphi 0, %s98
    %s122 = sphi 0, %s124
    %s125 = sphi 0, %s122
    %s126 = sphi 0, %s125
    %s142 = sphi 0, %s126
  $region4: #{unet_forward.88} parent=0 // loop_header_branch
    %12 = sbr.rel (%p10) target = $region8
  $region5: #{unet_forward.88} parent=0 // loop_body
    %s14 = ssub.s32 %s9, 1
    %s15 = ssub.s32 %s9, 2
    %s25 = sadd.s32 1, %s18
    %p26 = scmp.ge.s32.totalorder %s25, 1
    %s27 = scalar_select %p26, 0, %s25
    %s28 = sadd.s32 1, %s17
    %s29 = scalar_select %p26, %s28, %s17
    %p30 = scmp.ge.s32.totalorder %s29, 1
    %s31 = scalar_select %p30, 0, %s29
    %s32 = sadd.s32 1, %s16
    %s33 = scalar_select %p30, %s32, %s16
    %p34 = scmp.ge.s32.totalorder %s33, 2
    %s35 = scalar_select %p34, 0, %s33
    %s36 = ssub.s32 %s16, %s35
    %s37 = ssub.s32 %s18, %s27
    %s38 = sor.u32 %s36, %s37
    %p39 = scmp.eq.s32.totalorder %s38, 0
    %s41 = sadd.s32 %s40, 1
    %s42 = scalar_select %p39, %s40, %s41
    %p45 = pneg %p39
    %p46 = scmp.eq.s32.totalorder %s9, 1
    %p47 = por %p45, %p46
    %p48 = scmp.ne.s32.totalorder %s40, %s43
    %p49 = scmp.eq.s32.totalorder %s9, 0
    %p50 = por %p48, %p49
    %p51 = scmp.ne.s32.totalorder %s40, %s43
    %p52 = scmp.eq.s32.totalorder %s14, 1
    %p53 = por %p51, %p52
    %p54 = scmp.ne.s32.totalorder %s43, %s44
    %p55 = scmp.eq.s32.totalorder %s14, 0
    %p56 = por %p54, %p55
    %p57 = scmp.ne.s32.totalorder %s43, %s44
    %p58 = scmp.eq.s32.totalorder %s15, 1
    %p59 = por %p57, %p58
    %p61 = scmp.ne.s32.totalorder %s44, %s60
    %p62 = scmp.eq.s32.totalorder %s15, 0
    %p63 = por %p61, %p62
    %s64 = ssub.s32 %s18, %s27
    %s65 = ssub.s32 %s17, %s31
    %s66 = sor.u32 %s64, %s65
    %p67 = scmp.eq.s32.totalorder %s66, 0
    %s69 = sadd.s32 %s68, 1
    %s70 = scalar_select %p67, %s68, %s69
    %p73 = pneg %p67
    %p74 = scmp.eq.s32.totalorder %s9, 1
    %p75 = por %p73, %p74
    %p76 = scmp.ne.s32.totalorder %s68, %s71
    %p77 = scmp.eq.s32.totalorder %s9, 0
    %p78 = por %p76, %p77
    %p79 = scmp.ne.s32.totalorder %s68, %s71
    %p80 = scmp.eq.s32.totalorder %s14, 1
    %p81 = por %p79, %p80
    %p82 = scmp.ne.s32.totalorder %s71, %s72
    %p83 = scmp.eq.s32.totalorder %s14, 0
    %p84 = por %p82, %p83
    %p85 = scmp.ne.s32.totalorder %s71, %s72
    %p86 = scmp.eq.s32.totalorder %s15, 1
    %p87 = por %p85, %p86
    %p89 = scmp.ne.s32.totalorder %s72, %s88
    %p90 = scmp.eq.s32.totalorder %s15, 0
    %p91 = por %p89, %p90
    %s92 = ssub.s32 %s17, %s31
    %p93 = scmp.eq.s32.totalorder %s92, 0
    %s95 = sadd.s32 %s94, 1
    %s96 = scalar_select %p93, %s94, %s95
    %p99 = pneg %p93
    %p100 = scmp.eq.s32.totalorder %s9, 1
    %p101 = por %p99, %p100
    %p102 = scmp.ne.s32.totalorder %s94, %s97
    %p103 = scmp.eq.s32.totalorder %s9, 0
    %p104 = por %p102, %p103
    %p105 = scmp.ne.s32.totalorder %s94, %s97
    %p106 = scmp.eq.s32.totalorder %s14, 1
    %p107 = por %p105, %p106
    %p108 = scmp.ne.s32.totalorder %s97, %s98
    %p109 = scmp.eq.s32.totalorder %s14, 0
    %p110 = por %p108, %p109
    %p111 = scmp.ne.s32.totalorder %s97, %s98
    %p112 = scmp.eq.s32.totalorder %s15, 1
    %p113 = por %p111, %p112
    %p115 = scmp.ne.s32.totalorder %s98, %s114
    %p116 = scmp.eq.s32.totalorder %s15, 0
    %p117 = por %p115, %p116
    %s118 = ssub.s32 %s16, %s35
    %s119 = ssub.s32 %s17, %s31
    %s120 = sor.u32 %s118, %s119
    %p121 = scmp.eq.s32.totalorder %s120, 0
    %s123 = sadd.s32 %s122, 1
    %s124 = scalar_select %p121, %s122, %s123
    %p127 = pneg %p121
    %p128 = scmp.eq.s32.totalorder %s9, 1
    %p129 = por %p127, %p128
    %p130 = scmp.ne.s32.totalorder %s122, %s125
    %p131 = scmp.eq.s32.totalorder %s9, 0
    %p132 = por %p130, %p131
    %p133 = scmp.ne.s32.totalorder %s122, %s125
    %p134 = scmp.eq.s32.totalorder %s14, 1
    %p135 = por %p133, %p134
    %p136 = scmp.ne.s32.totalorder %s125, %s126
    %p137 = scmp.eq.s32.totalorder %s14, 0
    %p138 = por %p136, %p137
    %p139 = scmp.ne.s32.totalorder %s125, %s126
    %p140 = scmp.eq.s32.totalorder %s15, 1
    %p141 = por %p139, %p140
    %p143 = scmp.ne.s32.totalorder %s126, %s142
    %p144 = scmp.eq.s32.totalorder %s15, 0
    %p145 = por %p143, %p144
    %p146 = scmp.le.s32.totalorder 1, %s9
    %p147 = scmp.lt.s32.totalorder %s9, 3
    %p148 = pnand %p146, %p147
    %p149 = pneg %p148
    // Predicated region
    $region9: #{unet_forward.88} parent=5 // pred_check
      _
    $region10: #{unet_forward.88} parent=5 // pred_check_branch
      %151 = sbr.rel (%p148) target = $region12
    $region11: #{unet_forward.88} parent=5 // pred_region
      %s152 = ssub.s32 %s9, 1
      // Predicated region
      $region13: #{unet_forward.88} parent=11 // pred_check
        %p153 = pneg %p84
      $region14: #{unet_forward.88} parent=11 // pred_check_branch
        %155 = sbr.rel (%p153) target = $region16
      $region15: #{unet_forward.88} parent=11 // pred_region
        %s156 = smul.u32 16, %s21
        %p157 = scmp.lt.s32.totalorder %s156, 15
        %s158 = scalar_select %p157, %s156, 15
        %p159 = scmp.lt.s32.totalorder %s20, 0
        %s160 = scalar_select %p159, %s20, 0
        %s161 = sadd.s32 %s160, %s158
        %s162 = smul.addr %s161, 4
        %s163 = scalar_lea.vmem %s1, %s162
        %s164 = smul.u32 16, %s21
      $region16: #{unet_forward.88} parent=11 // pred_fallthru
        _
      // Predicated region
      $region17: #{unet_forward.88} parent=11 // pred_check
        %p165 = pneg %p110
      $region18: #{unet_forward.88} parent=11 // pred_check_branch
        %167 = sbr.rel (%p165) target = $region20
      $region19: #{unet_forward.88} parent=11 // pred_region
        %p168 = scmp.lt.s32.totalorder %s20, 0
        %s169 = scalar_select %p168, %s20, 0
        %s170 = scalar_lea.vmem %s2, %s169
      $region20: #{unet_forward.88} parent=11 // pred_fallthru
        _
    $region12: #{unet_forward.88} parent=5 // pred_fallthru
      _
    %p171 = scmp.lt.s32.totalorder %s9, 2
    // Predicated region
    $region21: #{unet_forward.88} parent=5 // pred_check
      %p172 = pneg %p171
    $region22: #{unet_forward.88} parent=5 // pred_check_branch
      %174 = sbr.rel (%p172) target = $region24
    $region23: #{unet_forward.88} parent=5 // pred_region
      // Predicated region
      $region25: #{unet_forward.88} parent=23 // pred_check
        %p175 = pneg %p50
      $region26: #{unet_forward.88} parent=23 // pred_check_branch
        %177 = sbr.rel (%p175) target = $region28
      $region27: #{unet_forward.88} parent=23 // pred_region
        %s178 = smul.u32 8, %s16
        %p179 = scmp.lt.s32.totalorder %s178, 15
        %s180 = scalar_select %p179, %s178, 15
        %p181 = scmp.lt.s32.totalorder %s18, 0
        %s182 = scalar_select %p181, %s18, 0
        %s183 = sadd.s32 %s182, %s180
        %s184 = smul.addr %s183, 4
        %s185 = scalar_lea.vmem %s0, %s184
        %s186 = smul.u32 8, %s16
      $region28: #{unet_forward.88} parent=23 // pred_fallthru
        _
    $region24: #{unet_forward.88} parent=5 // pred_fallthru
      _
    %p187 = scmp.le.s32.totalorder 1, %s9
    %p188 = scmp.lt.s32.totalorder %s9, 3
    %p189 = pnand %p187, %p188
    %p190 = pneg %p189
    // Predicated region
    $region29: #{unet_forward.88} parent=5 // pred_check
      _
    $region30: #{unet_forward.88} parent=5 // pred_check_branch
      %192 = sbr.rel (%p189) target = $region32
    $region31: #{unet_forward.88} parent=5 // pred_region
      %s193 = ssub.s32 %s9, 1
      %s194 = smul.u32 8, %s19
      %p195 = scmp.lt.s32.totalorder %s194, 15
      %s196 = scalar_select %p195, %s194, 15
      %p197 = scmp.lt.s32.totalorder %s21, 0
      %s198 = scalar_select %p197, %s21, 0
      %s199 = sadd.s32 %s198, %s196
      %s200 = smul.addr %s199, 4
      %s201 = scalar_lea.vmem %s0, %s200
      %p202 = pneg %p56
      %p203 = pneg %p53
      %s204 = smul.u32 16, %s21
      %p205 = scmp.lt.s32.totalorder %s204, 15
      %s206 = scalar_select %p205, %s204, 15
      %p207 = scmp.lt.s32.totalorder %s20, 0
      %s208 = scalar_select %p207, %s20, 0
      %s209 = sadd.s32 %s208, %s206
      %s210 = smul.addr %s209, 4
      %s211 = scalar_lea.vmem %s1, %s210
      %p212 = pneg %p84
      %p213 = pneg %p81
      %p214 = scmp.lt.s32.totalorder %s20, 0
      %s215 = scalar_select %p214, %s20, 0
      %s216 = scalar_lea.vmem %s2, %s215
      %p217 = pneg %p110
      %p218 = pneg %p107
      %p219 = pneg %p138
      %p220 = pneg %p135
      %s221 = smul.u32 8, %s19
      %p222 = scmp.lt.s32.totalorder %s221, 15
      %s223 = scalar_select %p222, %s221, 15
      %p224 = scmp.lt.s32.totalorder %s20, 0
      %s225 = scalar_select %p224, %s20, 0
      %s226 = sadd.s32 %s225, %s223
      %s227 = smul.addr %s226, 4
      %s228 = scalar_lea.vmem %s3, %s227
      %s229 = smul.u32 8, %s19
      %p230 = scmp.lt.s32.totalorder %s229, 15
      %s231 = scalar_select %p230, %s229, 15
      %p232 = scmp.lt.s32.totalorder %s21, 0
      %s233 = scalar_select %p232, %s21, 0
      %s234 = sadd.s32 %s233, %s231
      %s235 = smul.addr %s234, 4
      %s236 = scalar_lea.vmem %s0, %s235
      %s237 = smul.u32 8, %s19
      %s238 = smul.u32 16, %s21
      %p239 = scmp.lt.s32.totalorder %s238, 15
      %s240 = scalar_select %p239, %s238, 15
      %p241 = scmp.lt.s32.totalorder %s20, 0
      %s242 = scalar_select %p241, %s20, 0
      %s243 = sadd.s32 %s242, %s240
      %s244 = smul.addr %s243, 4
      %s245 = scalar_lea.vmem %s1, %s244
      %s246 = smul.u32 16, %s21
      %p247 = scmp.lt.s32.totalorder %s20, 0
      %s248 = scalar_select %p247, %s20, 0
      %s249 = scalar_lea.vmem %s2, %s248
      %s250 = smul.u32 8, %s19
      %p251 = scmp.lt.s32.totalorder %s250, 15
      %s252 = scalar_select %p251, %s250, 15
      %p253 = scmp.lt.s32.totalorder %s20, 0
      %s254 = scalar_select %p253, %s20, 0
      %s255 = sadd.s32 %s254, %s252
      %s256 = smul.addr %s255, 4
      %s257 = scalar_lea.vmem %s3, %s256
      %s258 = smul.u32 8, %s19
      %v259 = vld [vmem:[%s236] sm:$0xf]
      %v260 = vld [vmem:[%s236 + $0x4] sm:$0xf]
      %v261 = vld [vmem:[%s236 + $0x8] sm:$0xf]
      %v262 = vld [vmem:[%s236 + $0xc] sm:$0xf]
      %v263 = vld [vmem:[%s236 + $0x10] sm:$0xf]
      %v264 = vld [vmem:[%s236 + $0x14] sm:$0xf]
      %v265 = vld [vmem:[%s236 + $0x18] sm:$0xf]
      %v266 = vld [vmem:[%s236 + $0x1c] sm:$0xf]
      %v267 = vld [vmem:[%s245] sm:$0xf]
      %v268 = vld [vmem:[%s245 + $0x4] sm:$0xf]
      %v269 = vld [vmem:[%s245 + $0x8] sm:$0xf]
      %v270 = vld [vmem:[%s245 + $0xc] sm:$0xf]
      %v271 = vld [vmem:[%s245 + $0x10] sm:$0xf]
      %v272 = vld [vmem:[%s245 + $0x14] sm:$0xf]
      %v273 = vld [vmem:[%s245 + $0x18] sm:$0xf]
      %v274 = vld [vmem:[%s245 + $0x1c] sm:$0xf]
      %v275 = vld [vmem:[%s245 + $0x20] sm:$0xf]
      %v276 = vld [vmem:[%s245 + $0x24] sm:$0xf]
      %v277 = vld [vmem:[%s245 + $0x28] sm:$0xf]
      %v278 = vld [vmem:[%s245 + $0x2c] sm:$0xf]
      %v279 = vld [vmem:[%s245 + $0x30] sm:$0xf]
      %v280 = vld [vmem:[%s245 + $0x34] sm:$0xf]
      %v281 = vld [vmem:[%s245 + $0x38] sm:$0xf]
      %v282 = vld [vmem:[%s245 + $0x3c] sm:$0xf]
      %v283 = vld [vmem:[%s249] sm:$0x1]
      %v285 = vperm.slane %v283, 0
      %v295 = vunpack.c.l.b16 %v259
      %v296 = vunpack.c.l.b16 %v260
      %v297 = vunpack.c.l.b16 %v261
      %v298 = vunpack.c.l.b16 %v262
      %v299 = vunpack.c.l.b16 %v263
      %v300 = vunpack.c.l.b16 %v264
      %v301 = vunpack.c.l.b16 %v265
      %v302 = vunpack.c.l.b16 %v266
      %v303 = vpack.c.b16 %v296, %v295
      %v304 = vpack.c.b16 %v298, %v297
      %v305 = vpack.c.b16 %v300, %v299
      %v306 = vpack.c.b16 %v302, %v301
      %v327 = vunpack.c.l.b16 %v267
      %v328 = vunpack.c.l.b16 %v268
      %v329 = vunpack.c.l.b16 %v269
      %v330 = vunpack.c.l.b16 %v270
      %v331 = vunpack.c.l.b16 %v271
      %v332 = vunpack.c.l.b16 %v272
      %v333 = vunpack.c.l.b16 %v273
      %v334 = vunpack.c.l.b16 %v274
      %v335 = vunpack.c.l.b16 %v275
      %v336 = vunpack.c.l.b16 %v276
      %v337 = vunpack.c.l.b16 %v277
      %v338 = vunpack.c.l.b16 %v278
      %v339 = vunpack.c.l.b16 %v279
      %v340 = vunpack.c.l.b16 %v280
      %v341 = vunpack.c.l.b16 %v281
      %v342 = vunpack.c.l.b16 %v282
      %v343 = vpack.c.b16 %v328, %v327
      %v344 = vpack.c.b16 %v330, %v329
      %v345 = vpack.c.b16 %v332, %v331
      %v346 = vpack.c.b16 %v334, %v333
      %v347 = vpack.c.b16 %v336, %v335
      %v348 = vpack.c.b16 %v338, %v337
      %v349 = vpack.c.b16 %v340, %v339
      %v350 = vpack.c.b16 %v342, %v341
      %359 = vmatpush.bf16.msra.mxu0 %v350
      %360 = vmatpush.bf16.msra.mxu0 %v349
      %361 = vmatpush.bf16.msra.mxu0 %v348
      %362 = vmatpush.bf16.msra.mxu0 %v347
      %363 = vmatpush.bf16.msra.mxu0 %v346
      %364 = vmatpush.bf16.msra.mxu0 %v345
      %365 = vmatpush.bf16.msra.mxu0 %v344
      %366 = vmatpush.bf16.msra.mxu0 %v343
      %367 = vmatmul.bf16.gmra.mxu0 %v303
      %v368 = vpop.f32.mrf.mxu0
      %v369 = vadd.f32 %v285, %v368
      %v370 = vpop.f32.mrf.mxu0
      %v371 = vadd.f32 %v285, %v370
      %372 = vmatmul.bf16.gmra.mxu0 %v304
      %v373 = vpop.f32.mrf.mxu0
      %v374 = vadd.f32 %v285, %v373
      %v375 = vpop.f32.mrf.mxu0
      %v376 = vadd.f32 %v285, %v375
      %377 = vmatmul.bf16.gmra.mxu0 %v305
      %v378 = vpop.f32.mrf.mxu0
      %v379 = vadd.f32 %v285, %v378
      %v380 = vpop.f32.mrf.mxu0
      %v381 = vadd.f32 %v285, %v380
      %382 = vmatmul.bf16.gmra.mxu0 %v306
      %v383 = vpop.f32.mrf.mxu0
      %v384 = vadd.f32 %v285, %v383
      %v385 = vpop.f32.mrf.mxu0
      %v386 = vadd.f32 %v285, %v385
      %387 = vdwg.mxu0
      %v388 = vxor.u32 %v369, 2147483648
      %v389 = vxor.u32 %v371, 2147483648
      %v390 = vxor.u32 %v374, 2147483648
      %v391 = vxor.u32 %v376, 2147483648
      %v392 = vxor.u32 %v379, 2147483648
      %v393 = vxor.u32 %v381, 2147483648
      %v394 = vxor.u32 %v384, 2147483648
      %v395 = vxor.u32 %v386, 2147483648
      %v396 = vmul.f32 %v388, 1.442695
      %v397 = vpow.pop %v396
      %v398 = vmul.f32 %v389, 1.442695
      %v399 = vpow.pop %v398
      %v400 = vmul.f32 %v390, 1.442695
      %v401 = vpow.pop %v400
      %v402 = vmul.f32 %v391, 1.442695
      %v403 = vpow.pop %v402
      %v404 = vmul.f32 %v392, 1.442695
      %v405 = vpow.pop %v404
      %v406 = vmul.f32 %v393, 1.442695
      %v407 = vpow.pop %v406
      %v408 = vmul.f32 %v394, 1.442695
      %v409 = vpow.pop %v408
      %v410 = vmul.f32 %v395, 1.442695
      %v411 = vpow.pop %v410
      %v412 = vadd.f32 %v397, 1.0
      %v413 = vadd.f32 %v399, 1.0
      %v414 = vadd.f32 %v401, 1.0
      %v415 = vadd.f32 %v403, 1.0
      %v416 = vadd.f32 %v405, 1.0
      %v417 = vadd.f32 %v407, 1.0
      %v418 = vadd.f32 %v409, 1.0
      %v419 = vadd.f32 %v411, 1.0
      %v420 = vrcp.pop %v412
      %v421 = vmul.f32 %v412, %v420
      %v422 = vsub.f32 1.0, %v421
      %v423 = vmul.f32 %v420, %v422
      %v424 = vadd.f32 %v420, %v423
      %vm425 = vweird.f32 %v412
      %vm426 = vweird.f32 %v420
      %vm427 = vmor %vm425, %vm426
      %v428 = vsel %vm427, %v420, %v424
      %v429 = vand.u32 2147483647, %v412
      %vm430 = vcmp.eq.f32.partialorder %v429, 8.507059e+37
      %v431 = vand.u32 %v412, 2147483648
      %v432 = vor.u32 1.1754944e-38, %v431
      %v433 = vsel %vm430, %v432, %v428
      %v434 = vmul.f32 1.0, %v433
      %v435 = vrcp.pop %v413
      %v436 = vmul.f32 %v413, %v435
      %v437 = vsub.f32 1.0, %v436
      %v438 = vmul.f32 %v435, %v437
      %v439 = vadd.f32 %v435, %v438
      %vm440 = vweird.f32 %v413
      %vm441 = vweird.f32 %v435
      %vm442 = vmor %vm440, %vm441
      %v443 = vsel %vm442, %v435, %v439
      %v444 = vand.u32 2147483647, %v413
      %vm445 = vcmp.eq.f32.partialorder %v444, 8.507059e+37
      %v446 = vand.u32 %v413, 2147483648
      %v447 = vor.u32 1.1754944e-38, %v446
      %v448 = vsel %vm445, %v447, %v443
      %v449 = vmul.f32 1.0, %v448
      %v450 = vrcp.pop %v414
      %v451 = vmul.f32 %v414, %v450
      %v452 = vsub.f32 1.0, %v451
      %v453 = vmul.f32 %v450, %v452
      %v454 = vadd.f32 %v450, %v453
      %vm455 = vweird.f32 %v414
      %vm456 = vweird.f32 %v450
      %vm457 = vmor %vm455, %vm456
      %v458 = vsel %vm457, %v450, %v454
      %v459 = vand.u32 2147483647, %v414
      %vm460 = vcmp.eq.f32.partialorder %v459, 8.507059e+37
      %v461 = vand.u32 %v414, 2147483648
      %v462 = vor.u32 1.1754944e-38, %v461
      %v463 = vsel %vm460, %v462, %v458
      %v464 = vmul.f32 1.0, %v463
      %v465 = vrcp.pop %v415
      %v466 = vmul.f32 %v415, %v465
      %v467 = vsub.f32 1.0, %v466
      %v468 = vmul.f32 %v465, %v467
      %v469 = vadd.f32 %v465, %v468
      %vm470 = vweird.f32 %v415
      %vm471 = vweird.f32 %v465
      %vm472 = vmor %vm470, %vm471
      %v473 = vsel %vm472, %v465, %v469
      %v474 = vand.u32 2147483647, %v415
      %vm475 = vcmp.eq.f32.partialorder %v474, 8.507059e+37
      %v476 = vand.u32 %v415, 2147483648
      %v477 = vor.u32 1.1754944e-38, %v476
      %v478 = vsel %vm475, %v477, %v473
      %v479 = vmul.f32 1.0, %v478
      %v480 = vrcp.pop %v416
      %v481 = vmul.f32 %v416, %v480
      %v482 = vsub.f32 1.0, %v481
      %v483 = vmul.f32 %v480, %v482
      %v484 = vadd.f32 %v480, %v483
      %vm485 = vweird.f32 %v416
      %vm486 = vweird.f32 %v480
      %vm487 = vmor %vm485, %vm486
      %v488 = vsel %vm487, %v480, %v484
      %v489 = vand.u32 2147483647, %v416
      %vm490 = vcmp.eq.f32.partialorder %v489, 8.507059e+37
      %v491 = vand.u32 %v416, 2147483648
      %v492 = vor.u32 1.1754944e-38, %v491
      %v493 = vsel %vm490, %v492, %v488
      %v494 = vmul.f32 1.0, %v493
      %v495 = vrcp.pop %v417
      %v496 = vmul.f32 %v417, %v495
      %v497 = vsub.f32 1.0, %v496
      %v498 = vmul.f32 %v495, %v497
      %v499 = vadd.f32 %v495, %v498
      %vm500 = vweird.f32 %v417
      %vm501 = vweird.f32 %v495
      %vm502 = vmor %vm500, %vm501
      %v503 = vsel %vm502, %v495, %v499
      %v504 = vand.u32 2147483647, %v417
      %vm505 = vcmp.eq.f32.partialorder %v504, 8.507059e+37
      %v506 = vand.u32 %v417, 2147483648
      %v507 = vor.u32 1.1754944e-38, %v506
      %v508 = vsel %vm505, %v507, %v503
      %v509 = vmul.f32 1.0, %v508
      %v510 = vrcp.pop %v418
      %v511 = vmul.f32 %v418, %v510
      %v512 = vsub.f32 1.0, %v511
      %v513 = vmul.f32 %v510, %v512
      %v514 = vadd.f32 %v510, %v513
      %vm515 = vweird.f32 %v418
      %vm516 = vweird.f32 %v510
      %vm517 = vmor %vm515, %vm516
      %v518 = vsel %vm517, %v510, %v514
      %v519 = vand.u32 2147483647, %v418
      %vm520 = vcmp.eq.f32.partialorder %v519, 8.507059e+37
      %v521 = vand.u32 %v418, 2147483648
      %v522 = vor.u32 1.1754944e-38, %v521
      %v523 = vsel %vm520, %v522, %v518
      %v524 = vmul.f32 1.0, %v523
      %v525 = vrcp.pop %v419
      %v526 = vmul.f32 %v419, %v525
      %v527 = vsub.f32 1.0, %v526
      %v528 = vmul.f32 %v525, %v527
      %v529 = vadd.f32 %v525, %v528
      %vm530 = vweird.f32 %v419
      %vm531 = vweird.f32 %v525
      %vm532 = vmor %vm530, %vm531
      %v533 = vsel %vm532, %v525, %v529
      %v534 = vand.u32 2147483647, %v419
      %vm535 = vcmp.eq.f32.partialorder %v534, 8.507059e+37
      %v536 = vand.u32 %v419, 2147483648
      %v537 = vor.u32 1.1754944e-38, %v536
      %v538 = vsel %vm535, %v537, %v533
      %v539 = vmul.f32 1.0, %v538
      %v540 = vpack.c.bf16 %v434, %v434
      %v541 = vpack.c.bf16 %v449, %v449
      %v542 = vpack.c.bf16 %v464, %v464
      %v543 = vpack.c.bf16 %v479, %v479
      %v544 = vpack.c.bf16 %v494, %v494
      %v545 = vpack.c.bf16 %v509, %v509
      %v546 = vpack.c.bf16 %v524, %v524
      %v547 = vpack.c.bf16 %v539, %v539
      %548 = vst [vmem:[%s257] sm:$0xf] %v540
      %549 = vst [vmem:[%s257 + $0x4] sm:$0xf] %v541
      %550 = vst [vmem:[%s257 + $0x8] sm:$0xf] %v542
      %551 = vst [vmem:[%s257 + $0xc] sm:$0xf] %v543
      %552 = vst [vmem:[%s257 + $0x10] sm:$0xf] %v544
      %553 = vst [vmem:[%s257 + $0x14] sm:$0xf] %v545
      %554 = vst [vmem:[%s257 + $0x18] sm:$0xf] %v546
      %555 = vst [vmem:[%s257 + $0x1c] sm:$0xf] %v547
      %s556 = smul.u32 8, %s19
      %p557 = scmp.lt.s32.totalorder %s556, 15
      %s558 = scalar_select %p557, %s556, 15
      %p559 = scmp.lt.s32.totalorder %s20, 0
      %s560 = scalar_select %p559, %s20, 0
      %s561 = sadd.s32 %s560, %s558
      %s562 = smul.addr %s561, 4
      %s563 = scalar_lea.vmem %s3, %s562
      // Predicated region
      $region33: #{unet_forward.88} parent=31 // pred_check
        %p564 = pneg %p135
      $region34: #{unet_forward.88} parent=31 // pred_check_branch
        %566 = sbr.rel (%p564) target = $region36
      $region35: #{unet_forward.88} parent=31 // pred_region
        %s567 = smul.u32 8, %s19
      $region36: #{unet_forward.88} parent=31 // pred_fallthru
        _
    $region32: #{unet_forward.88} parent=5 // pred_fallthru
      _
    %p568 = scmp.le.s32.totalorder 2, %s9
    // Predicated region
    $region37: #{unet_forward.88} parent=5 // pred_check
      %p569 = pneg %p568
    $region38: #{unet_forward.88} parent=5 // pred_check_branch
      %571 = sbr.rel (%p569) target = $region40
    $region39: #{unet_forward.88} parent=5 // pred_region
      %s572 = ssub.s32 %s9, 2
      // Predicated region
      $region41: #{unet_forward.88} parent=39 // pred_check
        %p573 = pneg %p141
      $region42: #{unet_forward.88} parent=39 // pred_check_branch
        %575 = sbr.rel (%p573) target = $region44
      $region43: #{unet_forward.88} parent=39 // pred_region
        %s576 = smul.u32 8, %s22
        %p577 = scmp.lt.s32.totalorder %s576, 15
        %s578 = scalar_select %p577, %s576, 15
        %p579 = scmp.lt.s32.totalorder %s23, 0
        %s580 = scalar_select %p579, %s23, 0
        %s581 = sadd.s32 %s580, %s578
        %s582 = smul.addr %s581, 4
        %s583 = scalar_lea.vmem %s3, %s582
      $region44: #{unet_forward.88} parent=39 // pred_fallthru
        _
    $region40: #{unet_forward.88} parent=5 // pred_fallthru
      _
  $region6: #{unet_forward.88} parent=0 // loop_footer
    %s13 = sadd.s32 1, %s9
  $region7: #{unet_forward.88} parent=0 // loop_footer_branch
    %8 = sbr.rel target = $region3
  $region8: #{unet_forward.88} parent=0 // loop_exit
    _

// kernel: unet_forward.89
$region0: #{unet_forward.89}
  #allocation0 [shape = 'u32[]', space=smem, size = 0x4, offset = 0x4, fixed_abs, tag = 'smem constant byte address 0x4 - core index']
  #allocation1 [shape = 'u32[72,128]{1,0:T(1,128)}', space=vmem, size = 0x9000, scoped, tag = 'internal scratch']
  %s0 = inlined_call_operand.vmem [shape: bf16[128,128], index: 0, kind: input, shape index: {}]
  %s1 = inlined_call_operand.vmem [shape: bf16[128,128], index: 1, kind: input, shape index: {}]
  %s2 = inlined_call_operand.vmem [shape: f32[1,128], index: 2, kind: input, shape index: {}]
  %s3 = inlined_call_operand.vmem [shape: bf16[128,128], index: 3, kind: input, shape index: {}]
  %s4 = inlined_call_operand.vmem [shape: bf16[128,128], index: 4, kind: output, shape index: {}]
  %s5 = sld [smem:[#allocation0]]
  $region49: #{unet_forward.89} parent=0
    _
  %s7 = ssub.s32 1, %s5
  %s8 = scalar_select 0, %s7, %s5
  loop: start=0, step=1, limit=4
  $region2: #{unet_forward.89} parent=0 // loop_pre_header
    _
  $region3: #{unet_forward.89} parent=0 // loop_header
    %s10 = sphi 0, %s14
    %p11 = scmp.ge.s32.totalorder %s10, 4
    %s17 = sphi 0, %s36
    %s18 = sphi 0, %s32
    %s19 = sphi 0, %s28
    %s20 = sphi 0, %s17
    %s21 = sphi 0, %s18
    %s22 = sphi 0, %s19
    %s23 = sphi 0, %s20
    %s24 = sphi 0, %s21
    %s25 = sphi 0, %s22
    %s41 = sphi 0, %s43
    %s44 = sphi 0, %s41
    %s45 = sphi 0, %s44
    %s61 = sphi 0, %s45
    %s69 = sphi 0, %s71
    %s72 = sphi 0, %s69
    %s73 = sphi 0, %s72
    %s89 = sphi 0, %s73
    %s95 = sphi 0, %s97
    %s98 = sphi 0, %s95
    %s99 = sphi 0, %s98
    %s115 = sphi 0, %s99
    %s123 = sphi 0, %s125
    %s126 = sphi 0, %s123
    %s127 = sphi 0, %s126
    %s143 = sphi 0, %s127
    %s151 = sphi 0, %s153
    %s154 = sphi 0, %s151
    %s155 = sphi 0, %s154
    %s171 = sphi 0, %s155
  $region4: #{unet_forward.89} parent=0 // loop_header_branch
    %13 = sbr.rel (%p11) target = $region8
  $region5: #{unet_forward.89} parent=0 // loop_body
    %s15 = ssub.s32 %s10, 1
    %s16 = ssub.s32 %s10, 2
    %s26 = sadd.s32 1, %s19
    %p27 = scmp.ge.s32.totalorder %s26, 1
    %s28 = scalar_select %p27, 0, %s26
    %s29 = sadd.s32 1, %s18
    %s30 = scalar_select %p27, %s29, %s18
    %p31 = scmp.ge.s32.totalorder %s30, 1
    %s32 = scalar_select %p31, 0, %s30
    %s33 = sadd.s32 1, %s17
    %s34 = scalar_select %p31, %s33, %s17
    %p35 = scmp.ge.s32.totalorder %s34, 2
    %s36 = scalar_select %p35, 0, %s34
    %s37 = ssub.s32 %s17, %s36
    %s38 = ssub.s32 %s19, %s28
    %s39 = sor.u32 %s37, %s38
    %p40 = scmp.eq.s32.totalorder %s39, 0
    %s42 = sadd.s32 %s41, 1
    %s43 = scalar_select %p40, %s41, %s42
    %p46 = pneg %p40
    %p47 = scmp.eq.s32.totalorder %s10, 1
    %p48 = por %p46, %p47
    %p49 = scmp.ne.s32.totalorder %s41, %s44
    %p50 = scmp.eq.s32.totalorder %s10, 0
    %p51 = por %p49, %p50
    %p52 = scmp.ne.s32.totalorder %s41, %s44
    %p53 = scmp.eq.s32.totalorder %s15, 1
    %p54 = por %p52, %p53
    %p55 = scmp.ne.s32.totalorder %s44, %s45
    %p56 = scmp.eq.s32.totalorder %s15, 0
    %p57 = por %p55, %p56
    %p58 = scmp.ne.s32.totalorder %s44, %s45
    %p59 = scmp.eq.s32.totalorder %s16, 1
    %p60 = por %p58, %p59
    %p62 = scmp.ne.s32.totalorder %s45, %s61
    %p63 = scmp.eq.s32.totalorder %s16, 0
    %p64 = por %p62, %p63
    %s65 = ssub.s32 %s19, %s28
    %s66 = ssub.s32 %s18, %s32
    %s67 = sor.u32 %s65, %s66
    %p68 = scmp.eq.s32.totalorder %s67, 0
    %s70 = sadd.s32 %s69, 1
    %s71 = scalar_select %p68, %s69, %s70
    %p74 = pneg %p68
    %p75 = scmp.eq.s32.totalorder %s10, 1
    %p76 = por %p74, %p75
    %p77 = scmp.ne.s32.totalorder %s69, %s72
    %p78 = scmp.eq.s32.totalorder %s10, 0
    %p79 = por %p77, %p78
    %p80 = scmp.ne.s32.totalorder %s69, %s72
    %p81 = scmp.eq.s32.totalorder %s15, 1
    %p82 = por %p80, %p81
    %p83 = scmp.ne.s32.totalorder %s72, %s73
    %p84 = scmp.eq.s32.totalorder %s15, 0
    %p85 = por %p83, %p84
    %p86 = scmp.ne.s32.totalorder %s72, %s73
    %p87 = scmp.eq.s32.totalorder %s16, 1
    %p88 = por %p86, %p87
    %p90 = scmp.ne.s32.totalorder %s73, %s89
    %p91 = scmp.eq.s32.totalorder %s16, 0
    %p92 = por %p90, %p91
    %s93 = ssub.s32 %s18, %s32
    %p94 = scmp.eq.s32.totalorder %s93, 0
    %s96 = sadd.s32 %s95, 1
    %s97 = scalar_select %p94, %s95, %s96
    %p100 = pneg %p94
    %p101 = scmp.eq.s32.totalorder %s10, 1
    %p102 = por %p100, %p101
    %p103 = scmp.ne.s32.totalorder %s95, %s98
    %p104 = scmp.eq.s32.totalorder %s10, 0
    %p105 = por %p103, %p104
    %p106 = scmp.ne.s32.totalorder %s95, %s98
    %p107 = scmp.eq.s32.totalorder %s15, 1
    %p108 = por %p106, %p107
    %p109 = scmp.ne.s32.totalorder %s98, %s99
    %p110 = scmp.eq.s32.totalorder %s15, 0
    %p111 = por %p109, %p110
    %p112 = scmp.ne.s32.totalorder %s98, %s99
    %p113 = scmp.eq.s32.totalorder %s16, 1
    %p114 = por %p112, %p113
    %p116 = scmp.ne.s32.totalorder %s99, %s115
    %p117 = scmp.eq.s32.totalorder %s16, 0
    %p118 = por %p116, %p117
    %s119 = ssub.s32 %s17, %s36
    %s120 = ssub.s32 %s18, %s32
    %s121 = sor.u32 %s119, %s120
    %p122 = scmp.eq.s32.totalorder %s121, 0
    %s124 = sadd.s32 %s123, 1
    %s125 = scalar_select %p122, %s123, %s124
    %p128 = pneg %p122
    %p129 = scmp.eq.s32.totalorder %s10, 1
    %p130 = por %p128, %p129
    %p131 = scmp.ne.s32.totalorder %s123, %s126
    %p132 = scmp.eq.s32.totalorder %s10, 0
    %p133 = por %p131, %p132
    %p134 = scmp.ne.s32.totalorder %s123, %s126
    %p135 = scmp.eq.s32.totalorder %s15, 1
    %p136 = por %p134, %p135
    %p137 = scmp.ne.s32.totalorder %s126, %s127
    %p138 = scmp.eq.s32.totalorder %s15, 0
    %p139 = por %p137, %p138
    %p140 = scmp.ne.s32.totalorder %s126, %s127
    %p141 = scmp.eq.s32.totalorder %s16, 1
    %p142 = por %p140, %p141
    %p144 = scmp.ne.s32.totalorder %s127, %s143
    %p145 = scmp.eq.s32.totalorder %s16, 0
    %p146 = por %p144, %p145
    %s147 = ssub.s32 %s17, %s36
    %s148 = ssub.s32 %s18, %s32
    %s149 = sor.u32 %s147, %s148
    %p150 = scmp.eq.s32.totalorder %s149, 0
    %s152 = sadd.s32 %s151, 1
    %s153 = scalar_select %p150, %s151, %s152
    %p156 = pneg %p150
    %p157 = scmp.eq.s32.totalorder %s10, 1
    %p158 = por %p156, %p157
    %p159 = scmp.ne.s32.totalorder %s151, %s154
    %p160 = scmp.eq.s32.totalorder %s10, 0
    %p161 = por %p159, %p160
    %p162 = scmp.ne.s32.totalorder %s151, %s154
    %p163 = scmp.eq.s32.totalorder %s15, 1
    %p164 = por %p162, %p163
    %p165 = scmp.ne.s32.totalorder %s154, %s155
    %p166 = scmp.eq.s32.totalorder %s15, 0
    %p167 = por %p165, %p166
    %p168 = scmp.ne.s32.totalorder %s154, %s155
    %p169 = scmp.eq.s32.totalorder %s16, 1
    %p170 = por %p168, %p169
    %p172 = scmp.ne.s32.totalorder %s155, %s171
    %p173 = scmp.eq.s32.totalorder %s16, 0
    %p174 = por %p172, %p173
    %p175 = scmp.le.s32.totalorder 1, %s10
    %p176 = scmp.lt.s32.totalorder %s10, 3
    %p177 = pnand %p175, %p176
    %p178 = pneg %p177
    // Predicated region
    $region9: #{unet_forward.89} parent=5 // pred_check
      _
    $region10: #{unet_forward.89} parent=5 // pred_check_branch
      %180 = sbr.rel (%p177) target = $region12
    $region11: #{unet_forward.89} parent=5 // pred_region
      %s181 = ssub.s32 %s10, 1
      // Predicated region
      $region13: #{unet_forward.89} parent=11 // pred_check
        %p182 = pneg %p85
      $region14: #{unet_forward.89} parent=11 // pred_check_branch
        %184 = sbr.rel (%p182) target = $region16
      $region15: #{unet_forward.89} parent=11 // pred_region
        %s185 = smul.u32 16, %s22
        %p186 = scmp.lt.s32.totalorder %s185, 15
        %s187 = scalar_select %p186, %s185, 15
        %p188 = scmp.lt.s32.totalorder %s21, 0
        %s189 = scalar_select %p188, %s21, 0
        %s190 = sadd.s32 %s189, %s187
        %s191 = smul.addr %s190, 4
        %s192 = scalar_lea.vmem %s1, %s191
        %s193 = smul.u32 16, %s22
      $region16: #{unet_forward.89} parent=11 // pred_fallthru
        _
      // Predicated region
      $region17: #{unet_forward.89} parent=11 // pred_check
        %p194 = pneg %p111
      $region18: #{unet_forward.89} parent=11 // pred_check_branch
        %196 = sbr.rel (%p194) target = $region20
      $region19: #{unet_forward.89} parent=11 // pred_region
        %p197 = scmp.lt.s32.totalorder %s21, 0
        %s198 = scalar_select %p197, %s21, 0
        %s199 = scalar_lea.vmem %s2, %s198
      $region20: #{unet_forward.89} parent=11 // pred_fallthru
        _
    $region12: #{unet_forward.89} parent=5 // pred_fallthru
      _
    %p200 = scmp.lt.s32.totalorder %s10, 2
    // Predicated region
    $region21: #{unet_forward.89} parent=5 // pred_check
      %p201 = pneg %p200
    $region22: #{unet_forward.89} parent=5 // pred_check_branch
      %203 = sbr.rel (%p201) target = $region24
    $region23: #{unet_forward.89} parent=5 // pred_region
      // Predicated region
      $region25: #{unet_forward.89} parent=23 // pred_check
        %p204 = pneg %p51
      $region26: #{unet_forward.89} parent=23 // pred_check_branch
        %206 = sbr.rel (%p204) target = $region28
      $region27: #{unet_forward.89} parent=23 // pred_region
        %s207 = smul.u32 8, %s17
        %p208 = scmp.lt.s32.totalorder %s207, 15
        %s209 = scalar_select %p208, %s207, 15
        %p210 = scmp.lt.s32.totalorder %s19, 0
        %s211 = scalar_select %p210, %s19, 0
        %s212 = sadd.s32 %s211, %s209
        %s213 = smul.addr %s212, 4
        %s214 = scalar_lea.vmem %s0, %s213
        %s215 = smul.u32 8, %s17
      $region28: #{unet_forward.89} parent=23 // pred_fallthru
        _
      // Predicated region
      $region29: #{unet_forward.89} parent=23 // pred_check
        %p216 = pneg %p133
      $region30: #{unet_forward.89} parent=23 // pred_check_branch
        %218 = sbr.rel (%p216) target = $region32
      $region31: #{unet_forward.89} parent=23 // pred_region
        %s219 = smul.u32 8, %s17
        %p220 = scmp.lt.s32.totalorder %s219, 15
        %s221 = scalar_select %p220, %s219, 15
        %p222 = scmp.lt.s32.totalorder %s18, 0
        %s223 = scalar_select %p222, %s18, 0
        %s224 = sadd.s32 %s223, %s221
        %s225 = smul.addr %s224, 4
        %s226 = scalar_lea.vmem %s3, %s225
        %s227 = smul.u32 8, %s17
      $region32: #{unet_forward.89} parent=23 // pred_fallthru
        _
    $region24: #{unet_forward.89} parent=5 // pred_fallthru
      _
    %p228 = scmp.le.s32.totalorder 1, %s10
    %p229 = scmp.lt.s32.totalorder %s10, 3
    %p230 = pnand %p228, %p229
    %p231 = pneg %p230
    // Predicated region
    $region33: #{unet_forward.89} parent=5 // pred_check
      _
    $region34: #{unet_forward.89} parent=5 // pred_check_branch
      %233 = sbr.rel (%p230) target = $region36
    $region35: #{unet_forward.89} parent=5 // pred_region
      %s234 = ssub.s32 %s10, 1
      %s235 = smul.u32 8, %s20
      %p236 = scmp.lt.s32.totalorder %s235, 15
      %s237 = scalar_select %p236, %s235, 15
      %p238 = scmp.lt.s32.totalorder %s22, 0
      %s239 = scalar_select %p238, %s22, 0
      %s240 = sadd.s32 %s239, %s237
      %s241 = smul.addr %s240, 4
      %s242 = scalar_lea.vmem %s0, %s241
      %p243 = pneg %p57
      %p244 = pneg %p54
      %s245 = smul.u32 16, %s22
      %p246 = scmp.lt.s32.totalorder %s245, 15
      %s247 = scalar_select %p246, %s245, 15
      %p248 = scmp.lt.s32.totalorder %s21, 0
      %s249 = scalar_select %p248, %s21, 0
      %s250 = sadd.s32 %s249, %s247
      %s251 = smul.addr %s250, 4
      %s252 = scalar_lea.vmem %s1, %s251
      %p253 = pneg %p85
      %p254 = pneg %p82
      %p255 = scmp.lt.s32.totalorder %s21, 0
      %s256 = scalar_select %p255, %s21, 0
      %s257 = scalar_lea.vmem %s2, %s256
      %p258 = pneg %p111
      %p259 = pneg %p108
      %s260 = smul.u32 8, %s20
      %p261 = scmp.lt.s32.totalorder %s260, 15
      %s262 = scalar_select %p261, %s260, 15
      %p263 = scmp.lt.s32.totalorder %s21, 0
      %s264 = scalar_select %p263, %s21, 0
      %s265 = sadd.s32 %s264, %s262
      %s266 = smul.addr %s265, 4
      %s267 = scalar_lea.vmem %s3, %s266
      %p268 = pneg %p139
      %p269 = pneg %p136
      %p270 = pneg %p167
      %p271 = pneg %p164
      %s272 = smul.u32 8, %s20
      %p273 = scmp.lt.s32.totalorder %s272, 15
      %s274 = scalar_select %p273, %s272, 15
      %p275 = scmp.lt.s32.totalorder %s21, 0
      %s276 = scalar_select %p275, %s21, 0
      %s277 = sadd.s32 %s276, %s274
      %s278 = smul.addr %s277, 4
      %s279 = scalar_lea.vmem %s4, %s278
      %s280 = smul.u32 8, %s20
      %p281 = scmp.lt.s32.totalorder %s280, 15
      %s282 = scalar_select %p281, %s280, 15
      %p283 = scmp.lt.s32.totalorder %s22, 0
      %s284 = scalar_select %p283, %s22, 0
      %s285 = sadd.s32 %s284, %s282
      %s286 = smul.addr %s285, 4
      %s287 = scalar_lea.vmem %s0, %s286
      %s288 = smul.u32 8, %s20
      %s289 = smul.u32 16, %s22
      %p290 = scmp.lt.s32.totalorder %s289, 15
      %s291 = scalar_select %p290, %s289, 15
      %p292 = scmp.lt.s32.totalorder %s21, 0
      %s293 = scalar_select %p292, %s21, 0
      %s294 = sadd.s32 %s293, %s291
      %s295 = smul.addr %s294, 4
      %s296 = scalar_lea.vmem %s1, %s295
      %s297 = smul.u32 16, %s22
      %p298 = scmp.lt.s32.totalorder %s21, 0
      %s299 = scalar_select %p298, %s21, 0
      %s300 = scalar_lea.vmem %s2, %s299
      %s301 = smul.u32 8, %s20
      %p302 = scmp.lt.s32.totalorder %s301, 15
      %s303 = scalar_select %p302, %s301, 15
      %p304 = scmp.lt.s32.totalorder %s21, 0
      %s305 = scalar_select %p304, %s21, 0
      %s306 = sadd.s32 %s305, %s303
      %s307 = smul.addr %s306, 4
      %s308 = scalar_lea.vmem %s3, %s307
      %s309 = smul.u32 8, %s20
      %s310 = smul.u32 8, %s20
      %p311 = scmp.lt.s32.totalorder %s310, 15
      %s312 = scalar_select %p311, %s310, 15
      %p313 = scmp.lt.s32.totalorder %s21, 0
      %s314 = scalar_select %p313, %s21, 0
      %s315 = sadd.s32 %s314, %s312
      %s316 = smul.addr %s315, 4
      %s317 = scalar_lea.vmem %s4, %s316
      %s318 = smul.u32 8, %s20
      %v319 = vld [vmem:[%s287] sm:$0xf]
      %v320 = vld [vmem:[%s287 + $0x4] sm:$0xf]
      %v321 = vld [vmem:[%s287 + $0x8] sm:$0xf]
      %v322 = vld [vmem:[%s287 + $0xc] sm:$0xf]
      %v323 = vld [vmem:[%s287 + $0x10] sm:$0xf]
      %v324 = vld [vmem:[%s287 + $0x14] sm:$0xf]
      %v325 = vld [vmem:[%s287 + $0x18] sm:$0xf]
      %v326 = vld [vmem:[%s287 + $0x1c] sm:$0xf]
      %v327 = vld [vmem:[%s296] sm:$0xf]
      %v328 = vld [vmem:[%s296 + $0x4] sm:$0xf]
      %v329 = vld [vmem:[%s296 + $0x8] sm:$0xf]
      %v330 = vld [vmem:[%s296 + $0xc] sm:$0xf]
      %v331 = vld [vmem:[%s296 + $0x10] sm:$0xf]
      %v332 = vld [vmem:[%s296 + $0x14] sm:$0xf]
      %v333 = vld [vmem:[%s296 + $0x18] sm:$0xf]
      %v334 = vld [vmem:[%s296 + $0x1c] sm:$0xf]
      %v335 = vld [vmem:[%s296 + $0x20] sm:$0xf]
      %v336 = vld [vmem:[%s296 + $0x24] sm:$0xf]
      %v337 = vld [vmem:[%s296 + $0x28] sm:$0xf]
      %v338 = vld [vmem:[%s296 + $0x2c] sm:$0xf]
      %v339 = vld [vmem:[%s296 + $0x30] sm:$0xf]
      %v340 = vld [vmem:[%s296 + $0x34] sm:$0xf]
      %v341 = vld [vmem:[%s296 + $0x38] sm:$0xf]
      %v342 = vld [vmem:[%s296 + $0x3c] sm:$0xf]
      %v343 = vld [vmem:[%s300] sm:$0x1]
      %v345 = vperm.slane %v343, 0
      %v355 = vunpack.c.l.b16 %v319
      %v356 = vunpack.c.l.b16 %v320
      %v357 = vunpack.c.l.b16 %v321
      %v358 = vunpack.c.l.b16 %v322
      %v359 = vunpack.c.l.b16 %v323
      %v360 = vunpack.c.l.b16 %v324
      %v361 = vunpack.c.l.b16 %v325
      %v362 = vunpack.c.l.b16 %v326
      %v363 = vpack.c.b16 %v356, %v355
      %v364 = vpack.c.b16 %v358, %v357
      %v365 = vpack.c.b16 %v360, %v359
      %v366 = vpack.c.b16 %v362, %v361
      %v387 = vunpack.c.l.b16 %v327
      %v388 = vunpack.c.l.b16 %v328
      %v389 = vunpack.c.l.b16 %v329
      %v390 = vunpack.c.l.b16 %v330
      %v391 = vunpack.c.l.b16 %v331
      %v392 = vunpack.c.l.b16 %v332
      %v393 = vunpack.c.l.b16 %v333
      %v394 = vunpack.c.l.b16 %v334
      %v395 = vunpack.c.l.b16 %v335
      %v396 = vunpack.c.l.b16 %v336
      %v397 = vunpack.c.l.b16 %v337
      %v398 = vunpack.c.l.b16 %v338
      %v399 = vunpack.c.l.b16 %v339
      %v400 = vunpack.c.l.b16 %v340
      %v401 = vunpack.c.l.b16 %v341
      %v402 = vunpack.c.l.b16 %v342
      %v403 = vpack.c.b16 %v388, %v387
      %v404 = vpack.c.b16 %v390, %v389
      %v405 = vpack.c.b16 %v392, %v391
      %v406 = vpack.c.b16 %v394, %v393
      %v407 = vpack.c.b16 %v396, %v395
      %v408 = vpack.c.b16 %v398, %v397
      %v409 = vpack.c.b16 %v400, %v399
      %v410 = vpack.c.b16 %v402, %v401
      %419 = vmatpush.bf16.msra.mxu0 %v410
      %420 = vmatpush.bf16.msra.mxu0 %v409
      %421 = vmatpush.bf16.msra.mxu0 %v408
      %422 = vmatpush.bf16.msra.mxu0 %v407
      %423 = vmatpush.bf16.msra.mxu0 %v406
      %424 = vmatpush.bf16.msra.mxu0 %v405
      %425 = vmatpush.bf16.msra.mxu0 %v404
      %426 = vmatpush.bf16.msra.mxu0 %v403
      %427 = vmatmul.bf16.gmra.mxu0 %v363
      %v428 = vpop.f32.mrf.mxu0
      %v429 = vadd.f32 %v345, %v428
      %v430 = vpop.f32.mrf.mxu0
      %v431 = vadd.f32 %v345, %v430
      %432 = vmatmul.bf16.gmra.mxu0 %v364
      %v433 = vpop.f32.mrf.mxu0
      %v434 = vadd.f32 %v345, %v433
      %v435 = vpop.f32.mrf.mxu0
      %v436 = vadd.f32 %v345, %v435
      %437 = vmatmul.bf16.gmra.mxu0 %v365
      %v438 = vpop.f32.mrf.mxu0
      %v439 = vadd.f32 %v345, %v438
      %v440 = vpop.f32.mrf.mxu0
      %v441 = vadd.f32 %v345, %v440
      %442 = vmatmul.bf16.gmra.mxu0 %v366
      %v443 = vpop.f32.mrf.mxu0
      %v444 = vadd.f32 %v345, %v443
      %v445 = vpop.f32.mrf.mxu0
      %v446 = vadd.f32 %v345, %v445
      %447 = vdwg.mxu0
      %v448 = vld [vmem:[%s308] sm:$0xf]
      %v449 = vld [vmem:[%s308 + $0x4] sm:$0xf]
      %v450 = vld [vmem:[%s308 + $0x8] sm:$0xf]
      %v451 = vld [vmem:[%s308 + $0xc] sm:$0xf]
      %v452 = vld [vmem:[%s308 + $0x10] sm:$0xf]
      %v453 = vld [vmem:[%s308 + $0x14] sm:$0xf]
      %v454 = vld [vmem:[%s308 + $0x18] sm:$0xf]
      %v455 = vld [vmem:[%s308 + $0x1c] sm:$0xf]
      %v456 = vunpack.c.l.bf16 %v448
      %v457 = vunpack.c.l.bf16 %v449
      %v458 = vunpack.c.l.bf16 %v450
      %v459 = vunpack.c.l.bf16 %v451
      %v460 = vunpack.c.l.bf16 %v452
      %v461 = vunpack.c.l.bf16 %v453
      %v462 = vunpack.c.l.bf16 %v454
      %v463 = vunpack.c.l.bf16 %v455
      %v464 = vadd.f32 %v429, %v456
      %v465 = vadd.f32 %v431, %v457
      %v466 = vadd.f32 %v434, %v458
      %v467 = vadd.f32 %v436, %v459
      %v468 = vadd.f32 %v439, %v460
      %v469 = vadd.f32 %v441, %v461
      %v470 = vadd.f32 %v444, %v462
      %v471 = vadd.f32 %v446, %v463
      %v472 = vpack.c.bf16 %v464, %v464
      %v473 = vpack.c.bf16 %v465, %v465
      %v474 = vpack.c.bf16 %v466, %v466
      %v475 = vpack.c.bf16 %v467, %v467
      %v476 = vpack.c.bf16 %v468, %v468
      %v477 = vpack.c.bf16 %v469, %v469
      %v478 = vpack.c.bf16 %v470, %v470
      %v479 = vpack.c.bf16 %v471, %v471
      %480 = vst [vmem:[%s317] sm:$0xf] %v472
      %481 = vst [vmem:[%s317 + $0x4] sm:$0xf] %v473
      %482 = vst [vmem:[%s317 + $0x8] sm:$0xf] %v474
      %483 = vst [vmem:[%s317 + $0xc] sm:$0xf] %v475
      %484 = vst [vmem:[%s317 + $0x10] sm:$0xf] %v476
      %485 = vst [vmem:[%s317 + $0x14] sm:$0xf] %v477
      %486 = vst [vmem:[%s317 + $0x18] sm:$0xf] %v478
      %487 = vst [vmem:[%s317 + $0x1c] sm:$0xf] %v479
      %s488 = smul.u32 8, %s20
      %p489 = scmp.lt.s32.totalorder %s488, 15
      %s490 = scalar_select %p489, %s488, 15
      %p491 = scmp.lt.s32.totalorder %s21, 0
      %s492 = scalar_select %p491, %s21, 0
      %s493 = sadd.s32 %s492, %s490
      %s494 = smul.addr %s493, 4
      %s495 = scalar_lea.vmem %s4, %s494
      // Predicated region
      $region37: #{unet_forward.89} parent=35 // pred_check
        %p496 = pneg %p164
      $region38: #{unet_forward.89} parent=35 // pred_check_branch
        %498 = sbr.rel (%p496) target = $region40
      $region39: #{unet_forward.89} parent=35 // pred_region
        %s499 = smul.u32 8, %s20
      $region40: #{unet_forward.89} parent=35 // pred_fallthru
        _
    $region36: #{unet_forward.89} parent=5 // pred_fallthru
      _
    %p500 = scmp.le.s32.totalorder 2, %s10
    // Predicated region
    $region41: #{unet_forward.89} parent=5 // pred_check
      %p501 = pneg %p500
    $region42: #{unet_forward.89} parent=5 // pred_check_branch
      %503 = sbr.rel (%p501) target = $region44
    $region43: #{unet_forward.89} parent=5 // pred_region
      %s504 = ssub.s32 %s10, 2
      // Predicated region
      $region45: #{unet_forward.89} parent=43 // pred_check
        %p505 = pneg %p170
      $region46: #{unet_forward.89} parent=43 // pred_check_branch
        %507 = sbr.rel (%p505) target = $region48
      $region47: #{unet_forward.89} parent=43 // pred_region
        %s508 = smul.u32 8, %s23
        %p509 = scmp.lt.s32.totalorder %s508, 15
        %s510 = scalar_select %p509, %s508, 15
        %p511 = scmp.lt.s32.totalorder %s24, 0
        %s512 = scalar_select %p511, %s24, 0
        %s513 = sadd.s32 %s512, %s510
        %s514 = smul.addr %s513, 4
        %s515 = scalar_lea.vmem %s4, %s514
      $region48: #{unet_forward.89} parent=43 // pred_fallthru
        _
    $region44: #{unet_forward.89} parent=5 // pred_fallthru
      _
  $region6: #{unet_forward.89} parent=0 // loop_footer
    %s14 = sadd.s32 1, %s10
  $region7: #{unet_forward.89} parent=0 // loop_footer_branch
    %9 = sbr.rel target = $region3
  $region8: #{unet_forward.89} parent=0 // loop_exit
    _

// kernel: unet_forward.90
$region0: #{unet_forward.90}
  #allocation0 [shape = 'u32[]', space=smem, size = 0x4, offset = 0x4, fixed_abs, tag = 'smem constant byte address 0x4 - core index']
  #allocation1 [shape = 'u32[72,128]{1,0:T(1,128)}', space=vmem, size = 0x9000, scoped, tag = 'internal scratch']
  %s0 = inlined_call_operand.vmem [shape: bf16[32,128], index: 0, kind: input, shape index: {}]
  %s1 = inlined_call_operand.vmem [shape: bf16[128,128], index: 1, kind: input, shape index: {}]
  %s2 = inlined_call_operand.vmem [shape: f32[1,128], index: 2, kind: input, shape index: {}]
  %s3 = inlined_call_operand.vmem [shape: bf16[32,128], index: 3, kind: output, shape index: {}]
  %s4 = sld [smem:[#allocation0]]
  $region45: #{unet_forward.90} parent=0
    _
  %s6 = ssub.s32 1, %s4
  %s7 = scalar_select 0, %s6, %s4
  loop: start=0, step=1, limit=4
  $region2: #{unet_forward.90} parent=0 // loop_pre_header
    _
  $region3: #{unet_forward.90} parent=0 // loop_header
    %s9 = sphi 0, %s13
    %p10 = scmp.ge.s32.totalorder %s9, 4
    %s16 = sphi 0, %s35
    %s17 = sphi 0, %s31
    %s18 = sphi 0, %s27
    %s19 = sphi 0, %s16
    %s20 = sphi 0, %s17
    %s21 = sphi 0, %s18
    %s22 = sphi 0, %s19
    %s23 = sphi 0, %s20
    %s24 = sphi 0, %s21
    %s40 = sphi 0, %s42
    %s43 = sphi 0, %s40
    %s44 = sphi 0, %s43
    %s60 = sphi 0, %s44
    %s68 = sphi 0, %s70
    %s71 = sphi 0, %s68
    %s72 = sphi 0, %s71
    %s88 = sphi 0, %s72
    %s94 = sphi 0, %s96
    %s97 = sphi 0, %s94
    %s98 = sphi 0, %s97
    %s114 = sphi 0, %s98
    %s122 = sphi 0, %s124
    %s125 = sphi 0, %s122
    %s126 = sphi 0, %s125
    %s142 = sphi 0, %s126
  $region4: #{unet_forward.90} parent=0 // loop_header_branch
    %12 = sbr.rel (%p10) target = $region8
  $region5: #{unet_forward.90} parent=0 // loop_body
    %s14 = ssub.s32 %s9, 1
    %s15 = ssub.s32 %s9, 2
    %s25 = sadd.s32 1, %s18
    %p26 = scmp.ge.s32.totalorder %s25, 1
    %s27 = scalar_select %p26, 0, %s25
    %s28 = sadd.s32 1, %s17
    %s29 = scalar_select %p26, %s28, %s17
    %p30 = scmp.ge.s32.totalorder %s29, 1
    %s31 = scalar_select %p30, 0, %s29
    %s32 = sadd.s32 1, %s16
    %s33 = scalar_select %p30, %s32, %s16
    %p34 = scmp.ge.s32.totalorder %s33, 2
    %s35 = scalar_select %p34, 0, %s33
    %s36 = ssub.s32 %s16, %s35
    %s37 = ssub.s32 %s18, %s27
    %s38 = sor.u32 %s36, %s37
    %p39 = scmp.eq.s32.totalorder %s38, 0
    %s41 = sadd.s32 %s40, 1
    %s42 = scalar_select %p39, %s40, %s41
    %p45 = pneg %p39
    %p46 = scmp.eq.s32.totalorder %s9, 1
    %p47 = por %p45, %p46
    %p48 = scmp.ne.s32.totalorder %s40, %s43
    %p49 = scmp.eq.s32.totalorder %s9, 0
    %p50 = por %p48, %p49
    %p51 = scmp.ne.s32.totalorder %s40, %s43
    %p52 = scmp.eq.s32.totalorder %s14, 1
    %p53 = por %p51, %p52
    %p54 = scmp.ne.s32.totalorder %s43, %s44
    %p55 = scmp.eq.s32.totalorder %s14, 0
    %p56 = por %p54, %p55
    %p57 = scmp.ne.s32.totalorder %s43, %s44
    %p58 = scmp.eq.s32.totalorder %s15, 1
    %p59 = por %p57, %p58
    %p61 = scmp.ne.s32.totalorder %s44, %s60
    %p62 = scmp.eq.s32.totalorder %s15, 0
    %p63 = por %p61, %p62
    %s64 = ssub.s32 %s18, %s27
    %s65 = ssub.s32 %s17, %s31
    %s66 = sor.u32 %s64, %s65
    %p67 = scmp.eq.s32.totalorder %s66, 0
    %s69 = sadd.s32 %s68, 1
    %s70 = scalar_select %p67, %s68, %s69
    %p73 = pneg %p67
    %p74 = scmp.eq.s32.totalorder %s9, 1
    %p75 = por %p73, %p74
    %p76 = scmp.ne.s32.totalorder %s68, %s71
    %p77 = scmp.eq.s32.totalorder %s9, 0
    %p78 = por %p76, %p77
    %p79 = scmp.ne.s32.totalorder %s68, %s71
    %p80 = scmp.eq.s32.totalorder %s14, 1
    %p81 = por %p79, %p80
    %p82 = scmp.ne.s32.totalorder %s71, %s72
    %p83 = scmp.eq.s32.totalorder %s14, 0
    %p84 = por %p82, %p83
    %p85 = scmp.ne.s32.totalorder %s71, %s72
    %p86 = scmp.eq.s32.totalorder %s15, 1
    %p87 = por %p85, %p86
    %p89 = scmp.ne.s32.totalorder %s72, %s88
    %p90 = scmp.eq.s32.totalorder %s15, 0
    %p91 = por %p89, %p90
    %s92 = ssub.s32 %s17, %s31
    %p93 = scmp.eq.s32.totalorder %s92, 0
    %s95 = sadd.s32 %s94, 1
    %s96 = scalar_select %p93, %s94, %s95
    %p99 = pneg %p93
    %p100 = scmp.eq.s32.totalorder %s9, 1
    %p101 = por %p99, %p100
    %p102 = scmp.ne.s32.totalorder %s94, %s97
    %p103 = scmp.eq.s32.totalorder %s9, 0
    %p104 = por %p102, %p103
    %p105 = scmp.ne.s32.totalorder %s94, %s97
    %p106 = scmp.eq.s32.totalorder %s14, 1
    %p107 = por %p105, %p106
    %p108 = scmp.ne.s32.totalorder %s97, %s98
    %p109 = scmp.eq.s32.totalorder %s14, 0
    %p110 = por %p108, %p109
    %p111 = scmp.ne.s32.totalorder %s97, %s98
    %p112 = scmp.eq.s32.totalorder %s15, 1
    %p113 = por %p111, %p112
    %p115 = scmp.ne.s32.totalorder %s98, %s114
    %p116 = scmp.eq.s32.totalorder %s15, 0
    %p117 = por %p115, %p116
    %s118 = ssub.s32 %s16, %s35
    %s119 = ssub.s32 %s17, %s31
    %s120 = sor.u32 %s118, %s119
    %p121 = scmp.eq.s32.totalorder %s120, 0
    %s123 = sadd.s32 %s122, 1
    %s124 = scalar_select %p121, %s122, %s123
    %p127 = pneg %p121
    %p128 = scmp.eq.s32.totalorder %s9, 1
    %p129 = por %p127, %p128
    %p130 = scmp.ne.s32.totalorder %s122, %s125
    %p131 = scmp.eq.s32.totalorder %s9, 0
    %p132 = por %p130, %p131
    %p133 = scmp.ne.s32.totalorder %s122, %s125
    %p134 = scmp.eq.s32.totalorder %s14, 1
    %p135 = por %p133, %p134
    %p136 = scmp.ne.s32.totalorder %s125, %s126
    %p137 = scmp.eq.s32.totalorder %s14, 0
    %p138 = por %p136, %p137
    %p139 = scmp.ne.s32.totalorder %s125, %s126
    %p140 = scmp.eq.s32.totalorder %s15, 1
    %p141 = por %p139, %p140
    %p143 = scmp.ne.s32.totalorder %s126, %s142
    %p144 = scmp.eq.s32.totalorder %s15, 0
    %p145 = por %p143, %p144
    %p146 = scmp.le.s32.totalorder 1, %s9
    %p147 = scmp.lt.s32.totalorder %s9, 3
    %p148 = pnand %p146, %p147
    %p149 = pneg %p148
    // Predicated region
    $region9: #{unet_forward.90} parent=5 // pred_check
      _
    $region10: #{unet_forward.90} parent=5 // pred_check_branch
      %151 = sbr.rel (%p148) target = $region12
    $region11: #{unet_forward.90} parent=5 // pred_region
      %s152 = ssub.s32 %s9, 1
      // Predicated region
      $region13: #{unet_forward.90} parent=11 // pred_check
        %p153 = pneg %p84
      $region14: #{unet_forward.90} parent=11 // pred_check_branch
        %155 = sbr.rel (%p153) target = $region16
      $region15: #{unet_forward.90} parent=11 // pred_region
        %s156 = smul.u32 16, %s21
        %p157 = scmp.lt.s32.totalorder %s156, 15
        %s158 = scalar_select %p157, %s156, 15
        %p159 = scmp.lt.s32.totalorder %s20, 0
        %s160 = scalar_select %p159, %s20, 0
        %s161 = sadd.s32 %s160, %s158
        %s162 = smul.addr %s161, 4
        %s163 = scalar_lea.vmem %s1, %s162
        %s164 = smul.u32 16, %s21
      $region16: #{unet_forward.90} parent=11 // pred_fallthru
        _
      // Predicated region
      $region17: #{unet_forward.90} parent=11 // pred_check
        %p165 = pneg %p110
      $region18: #{unet_forward.90} parent=11 // pred_check_branch
        %167 = sbr.rel (%p165) target = $region20
      $region19: #{unet_forward.90} parent=11 // pred_region
        %p168 = scmp.lt.s32.totalorder %s20, 0
        %s169 = scalar_select %p168, %s20, 0
        %s170 = scalar_lea.vmem %s2, %s169
      $region20: #{unet_forward.90} parent=11 // pred_fallthru
        _
    $region12: #{unet_forward.90} parent=5 // pred_fallthru
      _
    %p171 = scmp.lt.s32.totalorder %s9, 2
    // Predicated region
    $region21: #{unet_forward.90} parent=5 // pred_check
      %p172 = pneg %p171
    $region22: #{unet_forward.90} parent=5 // pred_check_branch
      %174 = sbr.rel (%p172) target = $region24
    $region23: #{unet_forward.90} parent=5 // pred_region
      // Predicated region
      $region25: #{unet_forward.90} parent=23 // pred_check
        %p175 = pneg %p50
      $region26: #{unet_forward.90} parent=23 // pred_check_branch
        %177 = sbr.rel (%p175) target = $region28
      $region27: #{unet_forward.90} parent=23 // pred_region
        %s178 = smul.u32 2, %s16
        %p179 = scmp.lt.s32.totalorder %s178, 3
        %s180 = scalar_select %p179, %s178, 3
        %p181 = scmp.lt.s32.totalorder %s18, 0
        %s182 = scalar_select %p181, %s18, 0
        %s183 = sadd.s32 %s182, %s180
        %s184 = smul.addr %s183, 4
        %s185 = scalar_lea.vmem %s0, %s184
        %s186 = smul.u32 2, %s16
      $region28: #{unet_forward.90} parent=23 // pred_fallthru
        _
    $region24: #{unet_forward.90} parent=5 // pred_fallthru
      _
    %p187 = scmp.le.s32.totalorder 1, %s9
    %p188 = scmp.lt.s32.totalorder %s9, 3
    %p189 = pnand %p187, %p188
    %p190 = pneg %p189
    // Predicated region
    $region29: #{unet_forward.90} parent=5 // pred_check
      _
    $region30: #{unet_forward.90} parent=5 // pred_check_branch
      %192 = sbr.rel (%p189) target = $region32
    $region31: #{unet_forward.90} parent=5 // pred_region
      %s193 = ssub.s32 %s9, 1
      %s194 = smul.u32 2, %s19
      %p195 = scmp.lt.s32.totalorder %s194, 3
      %s196 = scalar_select %p195, %s194, 3
      %p197 = scmp.lt.s32.totalorder %s21, 0
      %s198 = scalar_select %p197, %s21, 0
      %s199 = sadd.s32 %s198, %s196
      %s200 = smul.addr %s199, 4
      %s201 = scalar_lea.vmem %s0, %s200
      %p202 = pneg %p56
      %p203 = pneg %p53
      %s204 = smul.u32 16, %s21
      %p205 = scmp.lt.s32.totalorder %s204, 15
      %s206 = scalar_select %p205, %s204, 15
      %p207 = scmp.lt.s32.totalorder %s20, 0
      %s208 = scalar_select %p207, %s20, 0
      %s209 = sadd.s32 %s208, %s206
      %s210 = smul.addr %s209, 4
      %s211 = scalar_lea.vmem %s1, %s210
      %p212 = pneg %p84
      %p213 = pneg %p81
      %p214 = scmp.lt.s32.totalorder %s20, 0
      %s215 = scalar_select %p214, %s20, 0
      %s216 = scalar_lea.vmem %s2, %s215
      %p217 = pneg %p110
      %p218 = pneg %p107
      %p219 = pneg %p138
      %p220 = pneg %p135
      %s221 = smul.u32 2, %s19
      %p222 = scmp.lt.s32.totalorder %s221, 3
      %s223 = scalar_select %p222, %s221, 3
      %p224 = scmp.lt.s32.totalorder %s20, 0
      %s225 = scalar_select %p224, %s20, 0
      %s226 = sadd.s32 %s225, %s223
      %s227 = smul.addr %s226, 4
      %s228 = scalar_lea.vmem %s3, %s227
      %s229 = smul.u32 2, %s19
      %p230 = scmp.lt.s32.totalorder %s229, 3
      %s231 = scalar_select %p230, %s229, 3
      %p232 = scmp.lt.s32.totalorder %s21, 0
      %s233 = scalar_select %p232, %s21, 0
      %s234 = sadd.s32 %s233, %s231
      %s235 = smul.addr %s234, 4
      %s236 = scalar_lea.vmem %s0, %s235
      %s237 = smul.u32 2, %s19
      %s238 = smul.u32 16, %s21
      %p239 = scmp.lt.s32.totalorder %s238, 15
      %s240 = scalar_select %p239, %s238, 15
      %p241 = scmp.lt.s32.totalorder %s20, 0
      %s242 = scalar_select %p241, %s20, 0
      %s243 = sadd.s32 %s242, %s240
      %s244 = smul.addr %s243, 4
      %s245 = scalar_lea.vmem %s1, %s244
      %s246 = smul.u32 16, %s21
      %p247 = scmp.lt.s32.totalorder %s20, 0
      %s248 = scalar_select %p247, %s20, 0
      %s249 = scalar_lea.vmem %s2, %s248
      %s250 = smul.u32 2, %s19
      %p251 = scmp.lt.s32.totalorder %s250, 3
      %s252 = scalar_select %p251, %s250, 3
      %p253 = scmp.lt.s32.totalorder %s20, 0
      %s254 = scalar_select %p253, %s20, 0
      %s255 = sadd.s32 %s254, %s252
      %s256 = smul.addr %s255, 4
      %s257 = scalar_lea.vmem %s3, %s256
      %s258 = smul.u32 2, %s19
      %v259 = vld [vmem:[%s236] sm:$0xf]
      %v260 = vld [vmem:[%s236 + $0x4] sm:$0xf]
      %v261 = vld [vmem:[%s245] sm:$0xf]
      %v262 = vld [vmem:[%s245 + $0x4] sm:$0xf]
      %v263 = vld [vmem:[%s245 + $0x8] sm:$0xf]
      %v264 = vld [vmem:[%s245 + $0xc] sm:$0xf]
      %v265 = vld [vmem:[%s245 + $0x10] sm:$0xf]
      %v266 = vld [vmem:[%s245 + $0x14] sm:$0xf]
      %v267 = vld [vmem:[%s245 + $0x18] sm:$0xf]
      %v268 = vld [vmem:[%s245 + $0x1c] sm:$0xf]
      %v269 = vld [vmem:[%s245 + $0x20] sm:$0xf]
      %v270 = vld [vmem:[%s245 + $0x24] sm:$0xf]
      %v271 = vld [vmem:[%s245 + $0x28] sm:$0xf]
      %v272 = vld [vmem:[%s245 + $0x2c] sm:$0xf]
      %v273 = vld [vmem:[%s245 + $0x30] sm:$0xf]
      %v274 = vld [vmem:[%s245 + $0x34] sm:$0xf]
      %v275 = vld [vmem:[%s245 + $0x38] sm:$0xf]
      %v276 = vld [vmem:[%s245 + $0x3c] sm:$0xf]
      %v277 = vld [vmem:[%s249] sm:$0x1]
      %v279 = vperm.slane %v277, 0
      %v283 = vunpack.c.l.b16 %v259
      %v284 = vunpack.c.l.b16 %v260
      %v285 = vpack.c.b16 %v284, %v283
      %v303 = vunpack.c.l.b16 %v261
      %v304 = vunpack.c.l.b16 %v262
      %v305 = vunpack.c.l.b16 %v263
      %v306 = vunpack.c.l.b16 %v264
      %v307 = vunpack.c.l.b16 %v265
      %v308 = vunpack.c.l.b16 %v266
      %v309 = vunpack.c.l.b16 %v267
      %v310 = vunpack.c.l.b16 %v268
      %v311 = vunpack.c.l.b16 %v269
      %v312 = vunpack.c.l.b16 %v270
      %v313 = vunpack.c.l.b16 %v271
      %v314 = vunpack.c.l.b16 %v272
      %v315 = vunpack.c.l.b16 %v273
      %v316 = vunpack.c.l.b16 %v274
      %v317 = vunpack.c.l.b16 %v275
      %v318 = vunpack.c.l.b16 %v276
      %v319 = vpack.c.b16 %v304, %v303
      %v320 = vpack.c.b16 %v306, %v305
      %v321 = vpack.c.b16 %v308, %v307
      %v322 = vpack.c.b16 %v310, %v309
      %v323 = vpack.c.b16 %v312, %v311
      %v324 = vpack.c.b16 %v314, %v313
      %v325 = vpack.c.b16 %v316, %v315
      %v326 = vpack.c.b16 %v318, %v317
      %335 = vmatpush.bf16.msra.mxu0 %v326
      %336 = vmatpush.bf16.msra.mxu0 %v325
      %337 = vmatpush.bf16.msra.mxu0 %v324
      %338 = vmatpush.bf16.msra.mxu0 %v323
      %339 = vmatpush.bf16.msra.mxu0 %v322
      %340 = vmatpush.bf16.msra.mxu0 %v321
      %341 = vmatpush.bf16.msra.mxu0 %v320
      %342 = vmatpush.bf16.msra.mxu0 %v319
      %343 = vmatmul.bf16.gmra.mxu0 %v285
      %v344 = vpop.f32.mrf.mxu0
      %v345 = vadd.f32 %v279, %v344
      %v346 = vpop.f32.mrf.mxu0
      %v347 = vadd.f32 %v279, %v346
      %348 = vdwg.mxu0
      %v349 = vpack.c.bf16 %v345, %v345
      %v350 = vpack.c.bf16 %v347, %v347
      %351 = vst [vmem:[%s257] sm:$0xf] %v349
      %352 = vst [vmem:[%s257 + $0x4] sm:$0xf] %v350
      %s353 = smul.u32 2, %s19
      %p354 = scmp.lt.s32.totalorder %s353, 3
      %s355 = scalar_select %p354, %s353, 3
      %p356 = scmp.lt.s32.totalorder %s20, 0
      %s357 = scalar_select %p356, %s20, 0
      %s358 = sadd.s32 %s357, %s355
      %s359 = smul.addr %s358, 4
      %s360 = scalar_lea.vmem %s3, %s359
      // Predicated region
      $region33: #{unet_forward.90} parent=31 // pred_check
        %p361 = pneg %p135
      $region34: #{unet_forward.90} parent=31 // pred_check_branch
        %363 = sbr.rel (%p361) target = $region36
      $region35: #{unet_forward.90} parent=31 // pred_region
        %s364 = smul.u32 2, %s19
      $region36: #{unet_forward.90} parent=31 // pred_fallthru
        _
    $region32: #{unet_forward.90} parent=5 // pred_fallthru
      _
    %p365 = scmp.le.s32.totalorder 2, %s9
    // Predicated region
    $region37: #{unet_forward.90} parent=5 // pred_check
      %p366 = pneg %p365
    $region38: #{unet_forward.90} parent=5 // pred_check_branch
      %368 = sbr.rel (%p366) target = $region40
    $region39: #{unet_forward.90} parent=5 // pred_region
      %s369 = ssub.s32 %s9, 2
      // Predicated region
      $region41: #{unet_forward.90} parent=39 // pred_check
        %p370 = pneg %p141
      $region42: #{unet_forward.90} parent=39 // pred_check_branch
        %372 = sbr.rel (%p370) target = $region44
      $region43: #{unet_forward.90} parent=39 // pred_region
        %s373 = smul.u32 2, %s22
        %p374 = scmp.lt.s32.totalorder %s373, 3
        %s375 = scalar_select %p374, %s373, 3
        %p376 = scmp.lt.s32.totalorder %s23, 0
        %s377 = scalar_select %p376, %s23, 0
        %s378 = sadd.s32 %s377, %s375
        %s379 = smul.addr %s378, 4
        %s380 = scalar_lea.vmem %s3, %s379
      $region44: #{unet_forward.90} parent=39 // pred_fallthru
        _
    $region40: #{unet_forward.90} parent=5 // pred_fallthru
      _
  $region6: #{unet_forward.90} parent=0 // loop_footer
    %s13 = sadd.s32 1, %s9
  $region7: #{unet_forward.90} parent=0 // loop_footer_branch
    %8 = sbr.rel target = $region3
  $region8: #{unet_forward.90} parent=0 // loop_exit
    _

// kernel: unet_forward.91
$region0: #{unet_forward.91}
  #allocation0 [shape = 'u32[]', space=smem, size = 0x4, offset = 0x4, fixed_abs, tag = 'smem constant byte address 0x4 - core index']
  #allocation1 [shape = 'u32[72,128]{1,0:T(1,128)}', space=vmem, size = 0x9000, scoped, tag = 'internal scratch']
  %s0 = inlined_call_operand.vmem [shape: bf16[32,640], index: 0, kind: input, shape index: {}]
  %s1 = inlined_call_operand.vmem [shape: bf16[640,128], index: 1, kind: input, shape index: {}]
  %s2 = inlined_call_operand.vmem [shape: f32[1,128], index: 2, kind: input, shape index: {}]
  %s3 = inlined_call_operand.vmem [shape: bf16[32,128], index: 3, kind: output, shape index: {}]
  %s4 = sld [smem:[#allocation0]]
  $region45: #{unet_forward.91} parent=0
    _
  %s6 = ssub.s32 1, %s4
  %s7 = scalar_select 0, %s6, %s4
  loop: start=0, step=1, limit=4
  $region2: #{unet_forward.91} parent=0 // loop_pre_header
    _
  $region3: #{unet_forward.91} parent=0 // loop_header
    %s9 = sphi 0, %s13
    %p10 = scmp.ge.s32.totalorder %s9, 4
    %s16 = sphi 0, %s35
    %s17 = sphi 0, %s31
    %s18 = sphi 0, %s27
    %s19 = sphi 0, %s16
    %s20 = sphi 0, %s17
    %s21 = sphi 0, %s18
    %s22 = sphi 0, %s19
    %s23 = sphi 0, %s20
    %s24 = sphi 0, %s21
    %s40 = sphi 0, %s42
    %s43 = sphi 0, %s40
    %s44 = sphi 0, %s43
    %s60 = sphi 0, %s44
    %s68 = sphi 0, %s70
    %s71 = sphi 0, %s68
    %s72 = sphi 0, %s71
    %s88 = sphi 0, %s72
    %s94 = sphi 0, %s96
    %s97 = sphi 0, %s94
    %s98 = sphi 0, %s97
    %s114 = sphi 0, %s98
    %s122 = sphi 0, %s124
    %s125 = sphi 0, %s122
    %s126 = sphi 0, %s125
    %s142 = sphi 0, %s126
  $region4: #{unet_forward.91} parent=0 // loop_header_branch
    %12 = sbr.rel (%p10) target = $region8
  $region5: #{unet_forward.91} parent=0 // loop_body
    %s14 = ssub.s32 %s9, 1
    %s15 = ssub.s32 %s9, 2
    %s25 = sadd.s32 1, %s18
    %p26 = scmp.ge.s32.totalorder %s25, 1
    %s27 = scalar_select %p26, 0, %s25
    %s28 = sadd.s32 1, %s17
    %s29 = scalar_select %p26, %s28, %s17
    %p30 = scmp.ge.s32.totalorder %s29, 1
    %s31 = scalar_select %p30, 0, %s29
    %s32 = sadd.s32 1, %s16
    %s33 = scalar_select %p30, %s32, %s16
    %p34 = scmp.ge.s32.totalorder %s33, 2
    %s35 = scalar_select %p34, 0, %s33
    %s36 = ssub.s32 %s16, %s35
    %s37 = ssub.s32 %s18, %s27
    %s38 = sor.u32 %s36, %s37
    %p39 = scmp.eq.s32.totalorder %s38, 0
    %s41 = sadd.s32 %s40, 1
    %s42 = scalar_select %p39, %s40, %s41
    %p45 = pneg %p39
    %p46 = scmp.eq.s32.totalorder %s9, 1
    %p47 = por %p45, %p46
    %p48 = scmp.ne.s32.totalorder %s40, %s43
    %p49 = scmp.eq.s32.totalorder %s9, 0
    %p50 = por %p48, %p49
    %p51 = scmp.ne.s32.totalorder %s40, %s43
    %p52 = scmp.eq.s32.totalorder %s14, 1
    %p53 = por %p51, %p52
    %p54 = scmp.ne.s32.totalorder %s43, %s44
    %p55 = scmp.eq.s32.totalorder %s14, 0
    %p56 = por %p54, %p55
    %p57 = scmp.ne.s32.totalorder %s43, %s44
    %p58 = scmp.eq.s32.totalorder %s15, 1
    %p59 = por %p57, %p58
    %p61 = scmp.ne.s32.totalorder %s44, %s60
    %p62 = scmp.eq.s32.totalorder %s15, 0
    %p63 = por %p61, %p62
    %s64 = ssub.s32 %s18, %s27
    %s65 = ssub.s32 %s17, %s31
    %s66 = sor.u32 %s64, %s65
    %p67 = scmp.eq.s32.totalorder %s66, 0
    %s69 = sadd.s32 %s68, 1
    %s70 = scalar_select %p67, %s68, %s69
    %p73 = pneg %p67
    %p74 = scmp.eq.s32.totalorder %s9, 1
    %p75 = por %p73, %p74
    %p76 = scmp.ne.s32.totalorder %s68, %s71
    %p77 = scmp.eq.s32.totalorder %s9, 0
    %p78 = por %p76, %p77
    %p79 = scmp.ne.s32.totalorder %s68, %s71
    %p80 = scmp.eq.s32.totalorder %s14, 1
    %p81 = por %p79, %p80
    %p82 = scmp.ne.s32.totalorder %s71, %s72
    %p83 = scmp.eq.s32.totalorder %s14, 0
    %p84 = por %p82, %p83
    %p85 = scmp.ne.s32.totalorder %s71, %s72
    %p86 = scmp.eq.s32.totalorder %s15, 1
    %p87 = por %p85, %p86
    %p89 = scmp.ne.s32.totalorder %s72, %s88
    %p90 = scmp.eq.s32.totalorder %s15, 0
    %p91 = por %p89, %p90
    %s92 = ssub.s32 %s17, %s31
    %p93 = scmp.eq.s32.totalorder %s92, 0
    %s95 = sadd.s32 %s94, 1
    %s96 = scalar_select %p93, %s94, %s95
    %p99 = pneg %p93
    %p100 = scmp.eq.s32.totalorder %s9, 1
    %p101 = por %p99, %p100
    %p102 = scmp.ne.s32.totalorder %s94, %s97
    %p103 = scmp.eq.s32.totalorder %s9, 0
    %p104 = por %p102, %p103
    %p105 = scmp.ne.s32.totalorder %s94, %s97
    %p106 = scmp.eq.s32.totalorder %s14, 1
    %p107 = por %p105, %p106
    %p108 = scmp.ne.s32.totalorder %s97, %s98
    %p109 = scmp.eq.s32.totalorder %s14, 0
    %p110 = por %p108, %p109
    %p111 = scmp.ne.s32.totalorder %s97, %s98
    %p112 = scmp.eq.s32.totalorder %s15, 1
    %p113 = por %p111, %p112
    %p115 = scmp.ne.s32.totalorder %s98, %s114
    %p116 = scmp.eq.s32.totalorder %s15, 0
    %p117 = por %p115, %p116
    %s118 = ssub.s32 %s16, %s35
    %s119 = ssub.s32 %s17, %s31
    %s120 = sor.u32 %s118, %s119
    %p121 = scmp.eq.s32.totalorder %s120, 0
    %s123 = sadd.s32 %s122, 1
    %s124 = scalar_select %p121, %s122, %s123
    %p127 = pneg %p121
    %p128 = scmp.eq.s32.totalorder %s9, 1
    %p129 = por %p127, %p128
    %p130 = scmp.ne.s32.totalorder %s122, %s125
    %p131 = scmp.eq.s32.totalorder %s9, 0
    %p132 = por %p130, %p131
    %p133 = scmp.ne.s32.totalorder %s122, %s125
    %p134 = scmp.eq.s32.totalorder %s14, 1
    %p135 = por %p133, %p134
    %p136 = scmp.ne.s32.totalorder %s125, %s126
    %p137 = scmp.eq.s32.totalorder %s14, 0
    %p138 = por %p136, %p137
    %p139 = scmp.ne.s32.totalorder %s125, %s126
    %p140 = scmp.eq.s32.totalorder %s15, 1
    %p141 = por %p139, %p140
    %p143 = scmp.ne.s32.totalorder %s126, %s142
    %p144 = scmp.eq.s32.totalorder %s15, 0
    %p145 = por %p143, %p144
    %p146 = scmp.le.s32.totalorder 1, %s9
    %p147 = scmp.lt.s32.totalorder %s9, 3
    %p148 = pnand %p146, %p147
    %p149 = pneg %p148
    // Predicated region
    $region9: #{unet_forward.91} parent=5 // pred_check
      _
    $region10: #{unet_forward.91} parent=5 // pred_check_branch
      %151 = sbr.rel (%p148) target = $region12
    $region11: #{unet_forward.91} parent=5 // pred_region
      %s152 = ssub.s32 %s9, 1
      // Predicated region
      $region13: #{unet_forward.91} parent=11 // pred_check
        %p153 = pneg %p84
      $region14: #{unet_forward.91} parent=11 // pred_check_branch
        %155 = sbr.rel (%p153) target = $region16
      $region15: #{unet_forward.91} parent=11 // pred_region
        %s156 = smul.u32 80, %s21
        %p157 = scmp.lt.s32.totalorder %s156, 79
        %s158 = scalar_select %p157, %s156, 79
        %p159 = scmp.lt.s32.totalorder %s20, 0
        %s160 = scalar_select %p159, %s20, 0
        %s161 = sadd.s32 %s160, %s158
        %s162 = smul.addr %s161, 4
        %s163 = scalar_lea.vmem %s1, %s162
        %s164 = smul.u32 80, %s21
      $region16: #{unet_forward.91} parent=11 // pred_fallthru
        _
      // Predicated region
      $region17: #{unet_forward.91} parent=11 // pred_check
        %p165 = pneg %p110
      $region18: #{unet_forward.91} parent=11 // pred_check_branch
        %167 = sbr.rel (%p165) target = $region20
      $region19: #{unet_forward.91} parent=11 // pred_region
        %p168 = scmp.lt.s32.totalorder %s20, 0
        %s169 = scalar_select %p168, %s20, 0
        %s170 = scalar_lea.vmem %s2, %s169
      $region20: #{unet_forward.91} parent=11 // pred_fallthru
        _
    $region12: #{unet_forward.91} parent=5 // pred_fallthru
      _
    %p171 = scmp.lt.s32.totalorder %s9, 2
    // Predicated region
    $region21: #{unet_forward.91} parent=5 // pred_check
      %p172 = pneg %p171
    $region22: #{unet_forward.91} parent=5 // pred_check_branch
      %174 = sbr.rel (%p172) target = $region24
    $region23: #{unet_forward.91} parent=5 // pred_region
      // Predicated region
      $region25: #{unet_forward.91} parent=23 // pred_check
        %p175 = pneg %p50
      $region26: #{unet_forward.91} parent=23 // pred_check_branch
        %177 = sbr.rel (%p175) target = $region28
      $region27: #{unet_forward.91} parent=23 // pred_region
        %s178 = smul.u32 2, %s16
        %s179 = smul.u32 5, %s18
        %p180 = scmp.lt.s32.totalorder %s178, 3
        %s181 = scalar_select %p180, %s178, 3
        %p182 = scmp.lt.s32.totalorder %s179, 4
        %s183 = scalar_select %p182, %s179, 4
        %s184 = smul.addr %s181, 5
        %s185 = sadd.s32 %s183, %s184
        %s186 = smul.addr %s185, 4
        %s187 = scalar_lea.vmem %s0, %s186
        %s188 = smul.u32 2, %s16
        %s189 = smul.u32 5, %s18
      $region28: #{unet_forward.91} parent=23 // pred_fallthru
        _
    $region24: #{unet_forward.91} parent=5 // pred_fallthru
      _
    %p190 = scmp.le.s32.totalorder 1, %s9
    %p191 = scmp.lt.s32.totalorder %s9, 3
    %p192 = pnand %p190, %p191
    %p193 = pneg %p192
    // Predicated region
    $region29: #{unet_forward.91} parent=5 // pred_check
      _
    $region30: #{unet_forward.91} parent=5 // pred_check_branch
      %195 = sbr.rel (%p192) target = $region32
    $region31: #{unet_forward.91} parent=5 // pred_region
      %s196 = ssub.s32 %s9, 1
      %s197 = smul.u32 2, %s19
      %s198 = smul.u32 5, %s21
      %p199 = scmp.lt.s32.totalorder %s197, 3
      %s200 = scalar_select %p199, %s197, 3
      %p201 = scmp.lt.s32.totalorder %s198, 4
      %s202 = scalar_select %p201, %s198, 4
      %s203 = smul.addr %s200, 5
      %s204 = sadd.s32 %s202, %s203
      %s205 = smul.addr %s204, 4
      %s206 = scalar_lea.vmem %s0, %s205
      %p207 = pneg %p56
      %p208 = pneg %p53
      %s209 = smul.u32 80, %s21
      %p210 = scmp.lt.s32.totalorder %s209, 79
      %s211 = scalar_select %p210, %s209, 79
      %p212 = scmp.lt.s32.totalorder %s20, 0
      %s213 = scalar_select %p212, %s20, 0
      %s214 = sadd.s32 %s213, %s211
      %s215 = smul.addr %s214, 4
      %s216 = scalar_lea.vmem %s1, %s215
      %p217 = pneg %p84
      %p218 = pneg %p81
      %p219 = scmp.lt.s32.totalorder %s20, 0
      %s220 = scalar_select %p219, %s20, 0
      %s221 = scalar_lea.vmem %s2, %s220
      %p222 = pneg %p110
      %p223 = pneg %p107
      %p224 = pneg %p138
      %p225 = pneg %p135
      %s226 = smul.u32 2, %s19
      %p227 = scmp.lt.s32.totalorder %s226, 3
      %s228 = scalar_select %p227, %s226, 3
      %p229 = scmp.lt.s32.totalorder %s20, 0
      %s230 = scalar_select %p229, %s20, 0
      %s231 = sadd.s32 %s230, %s228
      %s232 = smul.addr %s231, 4
      %s233 = scalar_lea.vmem %s3, %s232
      %s234 = smul.u32 2, %s19
      %s235 = smul.u32 5, %s21
      %p236 = scmp.lt.s32.totalorder %s234, 3
      %s237 = scalar_select %p236, %s234, 3
      %p238 = scmp.lt.s32.totalorder %s235, 4
      %s239 = scalar_select %p238, %s235, 4
      %s240 = smul.addr %s237, 5
      %s241 = sadd.s32 %s239, %s240
      %s242 = smul.addr %s241, 4
      %s243 = scalar_lea.vmem %s0, %s242
      %s244 = smul.u32 2, %s19
      %s245 = smul.u32 5, %s21
      %s246 = smul.u32 80, %s21
      %p247 = scmp.lt.s32.totalorder %s246, 79
      %s248 = scalar_select %p247, %s246, 79
      %p249 = scmp.lt.s32.totalorder %s20, 0
      %s250 = scalar_select %p249, %s20, 0
      %s251 = sadd.s32 %s250, %s248
      %s252 = smul.addr %s251, 4
      %s253 = scalar_lea.vmem %s1, %s252
      %s254 = smul.u32 80, %s21
      %p255 = scmp.lt.s32.totalorder %s20, 0
      %s256 = scalar_select %p255, %s20, 0
      %s257 = scalar_lea.vmem %s2, %s256
      %s258 = smul.u32 2, %s19
      %p259 = scmp.lt.s32.totalorder %s258, 3
      %s260 = scalar_select %p259, %s258, 3
      %p261 = scmp.lt.s32.totalorder %s20, 0
      %s262 = scalar_select %p261, %s20, 0
      %s263 = sadd.s32 %s262, %s260
      %s264 = smul.addr %s263, 4
      %s265 = scalar_lea.vmem %s3, %s264
      %s266 = smul.u32 2, %s19
      %v267 = vld [vmem:[%s243] sm:$0xff]
      %v268 = vld [vmem:[%s243 + $0x8] sm:$0xff]
      %v269 = vld [vmem:[%s243 + $0x10] sm:$0xf]
      %v270 = vld [vmem:[%s243 + $0x14] sm:$0xff]
      %v271 = vld [vmem:[%s243 + $0x1c] sm:$0xff]
      %v272 = vld [vmem:[%s243 + $0x24] sm:$0xf]
      %v273 = vld [vmem:[%s253] sm:$0xf]
      %v274 = vld [vmem:[%s253 + $0x4] sm:$0xf]
      %v275 = vld [vmem:[%s253 + $0x8] sm:$0xf]
      %v276 = vld [vmem:[%s253 + $0xc] sm:$0xf]
      %v277 = vld [vmem:[%s253 + $0x10] sm:$0xf]
      %v278 = vld [vmem:[%s253 + $0x14] sm:$0xf]
      %v279 = vld [vmem:[%s253 + $0x18] sm:$0xf]
      %v280 = vld [vmem:[%s253 + $0x1c] sm:$0xf]
      %v281 = vld [vmem:[%s253 + $0x20] sm:$0xf]
      %v282 = vld [vmem:[%s253 + $0x24] sm:$0xf]
      %v283 = vld [vmem:[%s253 + $0x28] sm:$0xf]
      %v284 = vld [vmem:[%s253 + $0x2c] sm:$0xf]
      %v285 = vld [vmem:[%s253 + $0x30] sm:$0xf]
      %v286 = vld [vmem:[%s253 + $0x34] sm:$0xf]
      %v287 = vld [vmem:[%s253 + $0x38] sm:$0xf]
      %v288 = vld [vmem:[%s253 + $0x3c] sm:$0xf]
      %v289 = vld [vmem:[%s253 + $0x40] sm:$0xf]
      %v290 = vld [vmem:[%s253 + $0x44] sm:$0xf]
      %v291 = vld [vmem:[%s253 + $0x48] sm:$0xf]
      %v292 = vld [vmem:[%s253 + $0x4c] sm:$0xf]
      %v293 = vld [vmem:[%s253 + $0x50] sm:$0xf]
      %v294 = vld [vmem:[%s253 + $0x54] sm:$0xf]
      %v295 = vld [vmem:[%s253 + $0x58] sm:$0xf]
      %v296 = vld [vmem:[%s253 + $0x5c] sm:$0xf]
      %v297 = vld [vmem:[%s253 + $0x60] sm:$0xf]
      %v298 = vld [vmem:[%s253 + $0x64] sm:$0xf]
      %v299 = vld [vmem:[%s253 + $0x68] sm:$0xf]
      %v300 = vld [vmem:[%s253 + $0x6c] sm:$0xf]
      %v301 = vld [vmem:[%s253 + $0x70] sm:$0xf]
      %v302 = vld [vmem:[%s253 + $0x74] sm:$0xf]
      %v303 = vld [vmem:[%s253 + $0x78] sm:$0xf]
      %v304 = vld [vmem:[%s253 + $0x7c] sm:$0xf]
      %v305 = vld [vmem:[%s253 + $0x80] sm:$0xf]
      %v306 = vld [vmem:[%s253 + $0x84] sm:$0xf]
      %v307 = vld [vmem:[%s253 + $0x88] sm:$0xf]
      %v308 = vld [vmem:[%s253 + $0x8c] sm:$0xf]
      %v309 = vld [vmem:[%s253 + $0x90] sm:$0xf]
      %v310 = vld [vmem:[%s253 + $0x94] sm:$0xf]
      %v311 = vld [vmem:[%s253 + $0x98] sm:$0xf]
      %v312 = vld [vmem:[%s253 + $0x9c] sm:$0xf]
      %v313 = vld [vmem:[%s253 + $0xa0] sm:$0xf]
      %v314 = vld [vmem:[%s253 + $0xa4] sm:$0xf]
      %v315 = vld [vmem:[%s253 + $0xa8] sm:$0xf]
      %v316 = vld [vmem:[%s253 + $0xac] sm:$0xf]
      %v317 = vld [vmem:[%s253 + $0xb0] sm:$0xf]
      %v318 = vld [vmem:[%s253 + $0xb4] sm:$0xf]
      %v319 = vld [vmem:[%s253 + $0xb8] sm:$0xf]
      %v320 = vld [vmem:[%s253 + $0xbc] sm:$0xf]
      %v321 = vld [vmem:[%s253 + $0xc0] sm:$0xf]
      %v322 = vld [vmem:[%s253 + $0xc4] sm:$0xf]
      %v323 = vld [vmem:[%s253 + $0xc8] sm:$0xf]
      %v324 = vld [vmem:[%s253 + $0xcc] sm:$0xf]
      %v325 = vld [vmem:[%s253 + $0xd0] sm:$0xf]
      %v326 = vld [vmem:[%s253 + $0xd4] sm:$0xf]
      %v327 = vld [vmem:[%s253 + $0xd8] sm:$0xf]
      %v328 = vld [vmem:[%s253 + $0xdc] sm:$0xf]
      %v329 = vld [vmem:[%s253 + $0xe0] sm:$0xf]
      %v330 = vld [vmem:[%s253 + $0xe4] sm:$0xf]
      %v331 = vld [vmem:[%s253 + $0xe8] sm:$0xf]
      %v332 = vld [vmem:[%s253 + $0xec] sm:$0xf]
      %v333 = vld [vmem:[%s253 + $0xf0] sm:$0xf]
      %v334 = vld [vmem:[%s253 + $0xf4] sm:$0xf]
      %v335 = vld [vmem:[%s253 + $0xf8] sm:$0xf]
      %v336 = vld [vmem:[%s253 + $0xfc] sm:$0xf]
      %v337 = vld [vmem:[%s253 + $0x100] sm:$0xf]
      %v338 = vld [vmem:[%s253 + $0x104] sm:$0xf]
      %v339 = vld [vmem:[%s253 + $0x108] sm:$0xf]
      %v340 = vld [vmem:[%s253 + $0x10c] sm:$0xf]
      %v341 = vld [vmem:[%s253 + $0x110] sm:$0xf]
      %v342 = vld [vmem:[%s253 + $0x114] sm:$0xf]
      %v343 = vld [vmem:[%s253 + $0x118] sm:$0xf]
      %v344 = vld [vmem:[%s253 + $0x11c] sm:$0xf]
      %v345 = vld [vmem:[%s253 + $0x120] sm:$0xf]
      %v346 = vld [vmem:[%s253 + $0x124] sm:$0xf]
      %v347 = vld [vmem:[%s253 + $0x128] sm:$0xf]
      %v348 = vld [vmem:[%s253 + $0x12c] sm:$0xf]
      %v349 = vld [vmem:[%s253 + $0x130] sm:$0xf]
      %v350 = vld [vmem:[%s253 + $0x134] sm:$0xf]
      %v351 = vld [vmem:[%s253 + $0x138] sm:$0xf]
      %v352 = vld [vmem:[%s253 + $0x13c] sm:$0xf]
      %v353 = vld [vmem:[%s257] sm:$0x1]
      %v355 = vperm.slane %v353, 0
      %v363 = vunpack.c.l.b16 %v267
      %v364 = vunpack.c.h.b16 %v267
      %v365 = vunpack.c.l.b16 %v268
      %v366 = vunpack.c.h.b16 %v268
      %v367 = vunpack.c.l.b16 %v269
      %v368 = vunpack.c.l.b16 %v270
      %v369 = vunpack.c.h.b16 %v270
      %v370 = vunpack.c.l.b16 %v271
      %v371 = vunpack.c.h.b16 %v271
      %v372 = vunpack.c.l.b16 %v272
      %v373 = vpack.c.b16 %v368, %v363
      %v374 = vpack.c.b16 %v369, %v364
      %v375 = vpack.c.b16 %v370, %v365
      %v376 = vpack.c.b16 %v371, %v366
      %v377 = vpack.c.b16 %v372, %v367
      %v463 = vunpack.c.l.b16 %v273
      %v464 = vunpack.c.l.b16 %v274
      %v465 = vunpack.c.l.b16 %v275
      %v466 = vunpack.c.l.b16 %v276
      %v467 = vunpack.c.l.b16 %v277
      %v468 = vunpack.c.l.b16 %v278
      %v469 = vunpack.c.l.b16 %v279
      %v470 = vunpack.c.l.b16 %v280
      %v471 = vunpack.c.l.b16 %v281
      %v472 = vunpack.c.l.b16 %v282
      %v473 = vunpack.c.l.b16 %v283
      %v474 = vunpack.c.l.b16 %v284
      %v475 = vunpack.c.l.b16 %v285
      %v476 = vunpack.c.l.b16 %v286
      %v477 = vunpack.c.l.b16 %v287
      %v478 = vunpack.c.l.b16 %v288
      %v479 = vunpack.c.l.b16 %v289
      %v480 = vunpack.c.l.b16 %v290
      %v481 = vunpack.c.l.b16 %v291
      %v482 = vunpack.c.l.b16 %v292
      %v483 = vunpack.c.l.b16 %v293
      %v484 = vunpack.c.l.b16 %v294
      %v485 = vunpack.c.l.b16 %v295
      %v486 = vunpack.c.l.b16 %v296
      %v487 = vunpack.c.l.b16 %v297
      %v488 = vunpack.c.l.b16 %v298
      %v489 = vunpack.c.l.b16 %v299
      %v490 = vunpack.c.l.b16 %v300
      %v491 = vunpack.c.l.b16 %v301
      %v492 = vunpack.c.l.b16 %v302
      %v493 = vunpack.c.l.b16 %v303
      %v494 = vunpack.c.l.b16 %v304
      %v495 = vunpack.c.l.b16 %v305
      %v496 = vunpack.c.l.b16 %v306
      %v497 = vunpack.c.l.b16 %v307
      %v498 = vunpack.c.l.b16 %v308
      %v499 = vunpack.c.l.b16 %v309
      %v500 = vunpack.c.l.b16 %v310
      %v501 = vunpack.c.l.b16 %v311
      %v502 = vunpack.c.l.b16 %v312
      %v503 = vunpack.c.l.b16 %v313
      %v504 = vunpack.c.l.b16 %v314
      %v505 = vunpack.c.l.b16 %v315
      %v506 = vunpack.c.l.b16 %v316
      %v507 = vunpack.c.l.b16 %v317
      %v508 = vunpack.c.l.b16 %v318
      %v509 = vunpack.c.l.b16 %v319
      %v510 = vunpack.c.l.b16 %v320
      %v511 = vunpack.c.l.b16 %v321
      %v512 = vunpack.c.l.b16 %v322
      %v513 = vunpack.c.l.b16 %v323
      %v514 = vunpack.c.l.b16 %v324
      %v515 = vunpack.c.l.b16 %v325
      %v516 = vunpack.c.l.b16 %v326
      %v517 = vunpack.c.l.b16 %v327
      %v518 = vunpack.c.l.b16 %v328
      %v519 = vunpack.c.l.b16 %v329
      %v520 = vunpack.c.l.b16 %v330
      %v521 = vunpack.c.l.b16 %v331
      %v522 = vunpack.c.l.b16 %v332
      %v523 = vunpack.c.l.b16 %v333
      %v524 = vunpack.c.l.b16 %v334
      %v525 = vunpack.c.l.b16 %v335
      %v526 = vunpack.c.l.b16 %v336
      %v527 = vunpack.c.l.b16 %v337
      %v528 = vunpack.c.l.b16 %v338
      %v529 = vunpack.c.l.b16 %v339
      %v530 = vunpack.c.l.b16 %v340
      %v531 = vunpack.c.l.b16 %v341
      %v532 = vunpack.c.l.b16 %v342
      %v533 = vunpack.c.l.b16 %v343
      %v534 = vunpack.c.l.b16 %v344
      %v535 = vunpack.c.l.b16 %v345
      %v536 = vunpack.c.l.b16 %v346
      %v537 = vunpack.c.l.b16 %v347
      %v538 = vunpack.c.l.b16 %v348
      %v539 = vunpack.c.l.b16 %v349
      %v540 = vunpack.c.l.b16 %v350
      %v541 = vunpack.c.l.b16 %v351
      %v542 = vunpack.c.l.b16 %v352
      %v543 = vpack.c.b16 %v464, %v463
      %v544 = vpack.c.b16 %v466, %v465
      %v545 = vpack.c.b16 %v468, %v467
      %v546 = vpack.c.b16 %v470, %v469
      %v547 = vpack.c.b16 %v472, %v471
      %v548 = vpack.c.b16 %v474, %v473
      %v549 = vpack.c.b16 %v476, %v475
      %v550 = vpack.c.b16 %v478, %v477
      %v551 = vpack.c.b16 %v480, %v479
      %v552 = vpack.c.b16 %v482, %v481
      %v553 = vpack.c.b16 %v484, %v483
      %v554 = vpack.c.b16 %v486, %v485
      %v555 = vpack.c.b16 %v488, %v487
      %v556 = vpack.c.b16 %v490, %v489
      %v557 = vpack.c.b16 %v492, %v491
      %v558 = vpack.c.b16 %v494, %v493
      %v559 = vpack.c.b16 %v496, %v495
      %v560 = vpack.c.b16 %v498, %v497
      %v561 = vpack.c.b16 %v500, %v499
      %v562 = vpack.c.b16 %v502, %v501
      %v563 = vpack.c.b16 %v504, %v503
      %v564 = vpack.c.b16 %v506, %v505
      %v565 = vpack.c.b16 %v508, %v507
      %v566 = vpack.c.b16 %v510, %v509
      %v567 = vpack.c.b16 %v512, %v511
      %v568 = vpack.c.b16 %v514, %v513
      %v569 = vpack.c.b16 %v516, %v515
      %v570 = vpack.c.b16 %v518, %v517
      %v571 = vpack.c.b16 %v520, %v519
      %v572 = vpack.c.b16 %v522, %v521
      %v573 = vpack.c.b16 %v524, %v523
      %v574 = vpack.c.b16 %v526, %v525
      %v575 = vpack.c.b16 %v528, %v527
      %v576 = vpack.c.b16 %v530, %v529
      %v577 = vpack.c.b16 %v532, %v531
      %v578 = vpack.c.b16 %v534, %v533
      %v579 = vpack.c.b16 %v536, %v535
      %v580 = vpack.c.b16 %v538, %v537
      %v581 = vpack.c.b16 %v540, %v539
      %v582 = vpack.c.b16 %v542, %v541
      %623 = vmatpush.bf16.msra.mxu0 %v550
      %624 = vmatpush.bf16.msra.mxu0 %v549
      %625 = vmatpush.bf16.msra.mxu0 %v548
      %626 = vmatpush.bf16.msra.mxu0 %v547
      %627 = vmatpush.bf16.msra.mxu0 %v546
      %628 = vmatpush.bf16.msra.mxu0 %v545
      %629 = vmatpush.bf16.msra.mxu0 %v544
      %630 = vmatpush.bf16.msra.mxu0 %v543
      %631 = vmatmul.bf16.gmra.mxu0 %v373
      %v632 = vpop.f32.mrf.mxu0
      %v633 = vadd.f32 %v355, %v632
      %v634 = vpop.f32.mrf.mxu0
      %v635 = vadd.f32 %v355, %v634
      %636 = vdwg.mxu0
      %637 = vmatpush.bf16.msra.mxu0 %v558
      %638 = vmatpush.bf16.msra.mxu0 %v557
      %639 = vmatpush.bf16.msra.mxu0 %v556
      %640 = vmatpush.bf16.msra.mxu0 %v555
      %641 = vmatpush.bf16.msra.mxu0 %v554
      %642 = vmatpush.bf16.msra.mxu0 %v553
      %643 = vmatpush.bf16.msra.mxu0 %v552
      %644 = vmatpush.bf16.msra.mxu0 %v551
      %645 = vmatmul.bf16.gmra.mxu0 %v374
      %v646 = vpop.f32.mrf.mxu0
      %v647 = vadd.f32 %v633, %v646
      %v648 = vpop.f32.mrf.mxu0
      %v649 = vadd.f32 %v635, %v648
      %650 = vdwg.mxu0
      %651 = vmatpush.bf16.msra.mxu0 %v566
      %652 = vmatpush.bf16.msra.mxu0 %v565
      %653 = vmatpush.bf16.msra.mxu0 %v564
      %654 = vmatpush.bf16.msra.mxu0 %v563
      %655 = vmatpush.bf16.msra.mxu0 %v562
      %656 = vmatpush.bf16.msra.mxu0 %v561
      %657 = vmatpush.bf16.msra.mxu0 %v560
      %658 = vmatpush.bf16.msra.mxu0 %v559
      %659 = vmatmul.bf16.gmra.mxu0 %v375
      %v660 = vpop.f32.mrf.mxu0
      %v661 = vadd.f32 %v647, %v660
      %v662 = vpop.f32.mrf.mxu0
      %v663 = vadd.f32 %v649, %v662
      %664 = vdwg.mxu0
      %665 = vmatpush.bf16.msra.mxu0 %v574
      %666 = vmatpush.bf16.msra.mxu0 %v573
      %667 = vmatpush.bf16.msra.mxu0 %v572
      %668 = vmatpush.bf16.msra.mxu0 %v571
      %669 = vmatpush.bf16.msra.mxu0 %v570
      %670 = vmatpush.bf16.msra.mxu0 %v569
      %671 = vmatpush.bf16.msra.mxu0 %v568
      %672 = vmatpush.bf16.msra.mxu0 %v567
      %673 = vmatmul.bf16.gmra.mxu0 %v376
      %v674 = vpop.f32.mrf.mxu0
      %v675 = vadd.f32 %v661, %v674
      %v676 = vpop.f32.mrf.mxu0
      %v677 = vadd.f32 %v663, %v676
      %678 = vdwg.mxu0
      %679 = vmatpush.bf16.msra.mxu0 %v582
      %680 = vmatpush.bf16.msra.mxu0 %v581
      %681 = vmatpush.bf16.msra.mxu0 %v580
      %682 = vmatpush.bf16.msra.mxu0 %v579
      %683 = vmatpush.bf16.msra.mxu0 %v578
      %684 = vmatpush.bf16.msra.mxu0 %v577
      %685 = vmatpush.bf16.msra.mxu0 %v576
      %686 = vmatpush.bf16.msra.mxu0 %v575
      %687 = vmatmul.bf16.gmra.mxu0 %v377
      %v688 = vpop.f32.mrf.mxu0
      %v689 = vadd.f32 %v675, %v688
      %v690 = vpop.f32.mrf.mxu0
      %v691 = vadd.f32 %v677, %v690
      %692 = vdwg.mxu0
      %v693 = vpack.c.bf16 %v689, %v689
      %v694 = vpack.c.bf16 %v691, %v691
      %695 = vst [vmem:[%s265] sm:$0xf] %v693
      %696 = vst [vmem:[%s265 + $0x4] sm:$0xf] %v694
      %s697 = smul.u32 2, %s19
      %p698 = scmp.lt.s32.totalorder %s697, 3
      %s699 = scalar_select %p698, %s697, 3
      %p700 = scmp.lt.s32.totalorder %s20, 0
      %s701 = scalar_select %p700, %s20, 0
      %s702 = sadd.s32 %s701, %s699
      %s703 = smul.addr %s702, 4
      %s704 = scalar_lea.vmem %s3, %s703
      // Predicated region
      $region33: #{unet_forward.91} parent=31 // pred_check
        %p705 = pneg %p135
      $region34: #{unet_forward.91} parent=31 // pred_check_branch
        %707 = sbr.rel (%p705) target = $region36
      $region35: #{unet_forward.91} parent=31 // pred_region
        %s708 = smul.u32 2, %s19
      $region36: #{unet_forward.91} parent=31 // pred_fallthru
        _
    $region32: #{unet_forward.91} parent=5 // pred_fallthru
      _
    %p709 = scmp.le.s32.totalorder 2, %s9
    // Predicated region
    $region37: #{unet_forward.91} parent=5 // pred_check
      %p710 = pneg %p709
    $region38: #{unet_forward.91} parent=5 // pred_check_branch
      %712 = sbr.rel (%p710) target = $region40
    $region39: #{unet_forward.91} parent=5 // pred_region
      %s713 = ssub.s32 %s9, 2
      // Predicated region
      $region41: #{unet_forward.91} parent=39 // pred_check
        %p714 = pneg %p141
      $region42: #{unet_forward.91} parent=39 // pred_check_branch
        %716 = sbr.rel (%p714) target = $region44
      $region43: #{unet_forward.91} parent=39 // pred_region
        %s717 = smul.u32 2, %s22
        %p718 = scmp.lt.s32.totalorder %s717, 3
        %s719 = scalar_select %p718, %s717, 3
        %p720 = scmp.lt.s32.totalorder %s23, 0
        %s721 = scalar_select %p720, %s23, 0
        %s722 = sadd.s32 %s721, %s719
        %s723 = smul.addr %s722, 4
        %s724 = scalar_lea.vmem %s3, %s723
      $region44: #{unet_forward.91} parent=39 // pred_fallthru
        _
    $region40: #{unet_forward.91} parent=5 // pred_fallthru
      _
  $region6: #{unet_forward.91} parent=0 // loop_footer
    %s13 = sadd.s32 1, %s9
  $region7: #{unet_forward.91} parent=0 // loop_footer_branch
    %8 = sbr.rel target = $region3
  $region8: #{unet_forward.91} parent=0 // loop_exit
    _

// kernel: unet_forward.93
$region0: #{unet_forward.93}
  #allocation0 [shape = 'u32[]', space=smem, size = 0x4, offset = 0x4, fixed_abs, tag = 'smem constant byte address 0x4 - core index']
  #allocation1 [shape = 'u32[72,128]{1,0:T(1,128)}', space=vmem, size = 0x9000, scoped, tag = 'internal scratch']
  %s0 = inlined_call_operand.vmem [shape: bf16[32,128], index: 0, kind: input, shape index: {}]
  %s1 = inlined_call_operand.vmem [shape: bf16[128,128], index: 1, kind: input, shape index: {}]
  %s2 = inlined_call_operand.vmem [shape: f32[1,128], index: 2, kind: input, shape index: {}]
  %s3 = inlined_call_operand.vmem [shape: bf16[32,128], index: 3, kind: output, shape index: {}]
  %s4 = sld [smem:[#allocation0]]
  $region45: #{unet_forward.93} parent=0
    _
  %s6 = ssub.s32 1, %s4
  %s7 = scalar_select 0, %s6, %s4
  loop: start=0, step=1, limit=4
  $region2: #{unet_forward.93} parent=0 // loop_pre_header
    _
  $region3: #{unet_forward.93} parent=0 // loop_header
    %s9 = sphi 0, %s13
    %p10 = scmp.ge.s32.totalorder %s9, 4
    %s16 = sphi 0, %s35
    %s17 = sphi 0, %s31
    %s18 = sphi 0, %s27
    %s19 = sphi 0, %s16
    %s20 = sphi 0, %s17
    %s21 = sphi 0, %s18
    %s22 = sphi 0, %s19
    %s23 = sphi 0, %s20
    %s24 = sphi 0, %s21
    %s40 = sphi 0, %s42
    %s43 = sphi 0, %s40
    %s44 = sphi 0, %s43
    %s60 = sphi 0, %s44
    %s68 = sphi 0, %s70
    %s71 = sphi 0, %s68
    %s72 = sphi 0, %s71
    %s88 = sphi 0, %s72
    %s94 = sphi 0, %s96
    %s97 = sphi 0, %s94
    %s98 = sphi 0, %s97
    %s114 = sphi 0, %s98
    %s122 = sphi 0, %s124
    %s125 = sphi 0, %s122
    %s126 = sphi 0, %s125
    %s142 = sphi 0, %s126
  $region4: #{unet_forward.93} parent=0 // loop_header_branch
    %12 = sbr.rel (%p10) target = $region8
  $region5: #{unet_forward.93} parent=0 // loop_body
    %s14 = ssub.s32 %s9, 1
    %s15 = ssub.s32 %s9, 2
    %s25 = sadd.s32 1, %s18
    %p26 = scmp.ge.s32.totalorder %s25, 1
    %s27 = scalar_select %p26, 0, %s25
    %s28 = sadd.s32 1, %s17
    %s29 = scalar_select %p26, %s28, %s17
    %p30 = scmp.ge.s32.totalorder %s29, 1
    %s31 = scalar_select %p30, 0, %s29
    %s32 = sadd.s32 1, %s16
    %s33 = scalar_select %p30, %s32, %s16
    %p34 = scmp.ge.s32.totalorder %s33, 2
    %s35 = scalar_select %p34, 0, %s33
    %s36 = ssub.s32 %s16, %s35
    %s37 = ssub.s32 %s18, %s27
    %s38 = sor.u32 %s36, %s37
    %p39 = scmp.eq.s32.totalorder %s38, 0
    %s41 = sadd.s32 %s40, 1
    %s42 = scalar_select %p39, %s40, %s41
    %p45 = pneg %p39
    %p46 = scmp.eq.s32.totalorder %s9, 1
    %p47 = por %p45, %p46
    %p48 = scmp.ne.s32.totalorder %s40, %s43
    %p49 = scmp.eq.s32.totalorder %s9, 0
    %p50 = por %p48, %p49
    %p51 = scmp.ne.s32.totalorder %s40, %s43
    %p52 = scmp.eq.s32.totalorder %s14, 1
    %p53 = por %p51, %p52
    %p54 = scmp.ne.s32.totalorder %s43, %s44
    %p55 = scmp.eq.s32.totalorder %s14, 0
    %p56 = por %p54, %p55
    %p57 = scmp.ne.s32.totalorder %s43, %s44
    %p58 = scmp.eq.s32.totalorder %s15, 1
    %p59 = por %p57, %p58
    %p61 = scmp.ne.s32.totalorder %s44, %s60
    %p62 = scmp.eq.s32.totalorder %s15, 0
    %p63 = por %p61, %p62
    %s64 = ssub.s32 %s18, %s27
    %s65 = ssub.s32 %s17, %s31
    %s66 = sor.u32 %s64, %s65
    %p67 = scmp.eq.s32.totalorder %s66, 0
    %s69 = sadd.s32 %s68, 1
    %s70 = scalar_select %p67, %s68, %s69
    %p73 = pneg %p67
    %p74 = scmp.eq.s32.totalorder %s9, 1
    %p75 = por %p73, %p74
    %p76 = scmp.ne.s32.totalorder %s68, %s71
    %p77 = scmp.eq.s32.totalorder %s9, 0
    %p78 = por %p76, %p77
    %p79 = scmp.ne.s32.totalorder %s68, %s71
    %p80 = scmp.eq.s32.totalorder %s14, 1
    %p81 = por %p79, %p80
    %p82 = scmp.ne.s32.totalorder %s71, %s72
    %p83 = scmp.eq.s32.totalorder %s14, 0
    %p84 = por %p82, %p83
    %p85 = scmp.ne.s32.totalorder %s71, %s72
    %p86 = scmp.eq.s32.totalorder %s15, 1
    %p87 = por %p85, %p86
    %p89 = scmp.ne.s32.totalorder %s72, %s88
    %p90 = scmp.eq.s32.totalorder %s15, 0
    %p91 = por %p89, %p90
    %s92 = ssub.s32 %s17, %s31
    %p93 = scmp.eq.s32.totalorder %s92, 0
    %s95 = sadd.s32 %s94, 1
    %s96 = scalar_select %p93, %s94, %s95
    %p99 = pneg %p93
    %p100 = scmp.eq.s32.totalorder %s9, 1
    %p101 = por %p99, %p100
    %p102 = scmp.ne.s32.totalorder %s94, %s97
    %p103 = scmp.eq.s32.totalorder %s9, 0
    %p104 = por %p102, %p103
    %p105 = scmp.ne.s32.totalorder %s94, %s97
    %p106 = scmp.eq.s32.totalorder %s14, 1
    %p107 = por %p105, %p106
    %p108 = scmp.ne.s32.totalorder %s97, %s98
    %p109 = scmp.eq.s32.totalorder %s14, 0
    %p110 = por %p108, %p109
    %p111 = scmp.ne.s32.totalorder %s97, %s98
    %p112 = scmp.eq.s32.totalorder %s15, 1
    %p113 = por %p111, %p112
    %p115 = scmp.ne.s32.totalorder %s98, %s114
    %p116 = scmp.eq.s32.totalorder %s15, 0
    %p117 = por %p115, %p116
    %s118 = ssub.s32 %s16, %s35
    %s119 = ssub.s32 %s17, %s31
    %s120 = sor.u32 %s118, %s119
    %p121 = scmp.eq.s32.totalorder %s120, 0
    %s123 = sadd.s32 %s122, 1
    %s124 = scalar_select %p121, %s122, %s123
    %p127 = pneg %p121
    %p128 = scmp.eq.s32.totalorder %s9, 1
    %p129 = por %p127, %p128
    %p130 = scmp.ne.s32.totalorder %s122, %s125
    %p131 = scmp.eq.s32.totalorder %s9, 0
    %p132 = por %p130, %p131
    %p133 = scmp.ne.s32.totalorder %s122, %s125
    %p134 = scmp.eq.s32.totalorder %s14, 1
    %p135 = por %p133, %p134
    %p136 = scmp.ne.s32.totalorder %s125, %s126
    %p137 = scmp.eq.s32.totalorder %s14, 0
    %p138 = por %p136, %p137
    %p139 = scmp.ne.s32.totalorder %s125, %s126
    %p140 = scmp.eq.s32.totalorder %s15, 1
    %p141 = por %p139, %p140
    %p143 = scmp.ne.s32.totalorder %s126, %s142
    %p144 = scmp.eq.s32.totalorder %s15, 0
    %p145 = por %p143, %p144
    %p146 = scmp.le.s32.totalorder 1, %s9
    %p147 = scmp.lt.s32.totalorder %s9, 3
    %p148 = pnand %p146, %p147
    %p149 = pneg %p148
    // Predicated region
    $region9: #{unet_forward.93} parent=5 // pred_check
      _
    $region10: #{unet_forward.93} parent=5 // pred_check_branch
      %151 = sbr.rel (%p148) target = $region12
    $region11: #{unet_forward.93} parent=5 // pred_region
      %s152 = ssub.s32 %s9, 1
      // Predicated region
      $region13: #{unet_forward.93} parent=11 // pred_check
        %p153 = pneg %p84
      $region14: #{unet_forward.93} parent=11 // pred_check_branch
        %155 = sbr.rel (%p153) target = $region16
      $region15: #{unet_forward.93} parent=11 // pred_region
        %s156 = smul.u32 16, %s21
        %p157 = scmp.lt.s32.totalorder %s156, 15
        %s158 = scalar_select %p157, %s156, 15
        %p159 = scmp.lt.s32.totalorder %s20, 0
        %s160 = scalar_select %p159, %s20, 0
        %s161 = sadd.s32 %s160, %s158
        %s162 = smul.addr %s161, 4
        %s163 = scalar_lea.vmem %s1, %s162
        %s164 = smul.u32 16, %s21
      $region16: #{unet_forward.93} parent=11 // pred_fallthru
        _
      // Predicated region
      $region17: #{unet_forward.93} parent=11 // pred_check
        %p165 = pneg %p110
      $region18: #{unet_forward.93} parent=11 // pred_check_branch
        %167 = sbr.rel (%p165) target = $region20
      $region19: #{unet_forward.93} parent=11 // pred_region
        %p168 = scmp.lt.s32.totalorder %s20, 0
        %s169 = scalar_select %p168, %s20, 0
        %s170 = scalar_lea.vmem %s2, %s169
      $region20: #{unet_forward.93} parent=11 // pred_fallthru
        _
    $region12: #{unet_forward.93} parent=5 // pred_fallthru
      _
    %p171 = scmp.lt.s32.totalorder %s9, 2
    // Predicated region
    $region21: #{unet_forward.93} parent=5 // pred_check
      %p172 = pneg %p171
    $region22: #{unet_forward.93} parent=5 // pred_check_branch
      %174 = sbr.rel (%p172) target = $region24
    $region23: #{unet_forward.93} parent=5 // pred_region
      // Predicated region
      $region25: #{unet_forward.93} parent=23 // pred_check
        %p175 = pneg %p50
      $region26: #{unet_forward.93} parent=23 // pred_check_branch
        %177 = sbr.rel (%p175) target = $region28
      $region27: #{unet_forward.93} parent=23 // pred_region
        %s178 = smul.u32 2, %s16
        %p179 = scmp.lt.s32.totalorder %s178, 3
        %s180 = scalar_select %p179, %s178, 3
        %p181 = scmp.lt.s32.totalorder %s18, 0
        %s182 = scalar_select %p181, %s18, 0
        %s183 = sadd.s32 %s182, %s180
        %s184 = smul.addr %s183, 4
        %s185 = scalar_lea.vmem %s0, %s184
        %s186 = smul.u32 2, %s16
      $region28: #{unet_forward.93} parent=23 // pred_fallthru
        _
    $region24: #{unet_forward.93} parent=5 // pred_fallthru
      _
    %p187 = scmp.le.s32.totalorder 1, %s9
    %p188 = scmp.lt.s32.totalorder %s9, 3
    %p189 = pnand %p187, %p188
    %p190 = pneg %p189
    // Predicated region
    $region29: #{unet_forward.93} parent=5 // pred_check
      _
    $region30: #{unet_forward.93} parent=5 // pred_check_branch
      %192 = sbr.rel (%p189) target = $region32
    $region31: #{unet_forward.93} parent=5 // pred_region
      %s193 = ssub.s32 %s9, 1
      %s194 = smul.u32 2, %s19
      %p195 = scmp.lt.s32.totalorder %s194, 3
      %s196 = scalar_select %p195, %s194, 3
      %p197 = scmp.lt.s32.totalorder %s21, 0
      %s198 = scalar_select %p197, %s21, 0
      %s199 = sadd.s32 %s198, %s196
      %s200 = smul.addr %s199, 4
      %s201 = scalar_lea.vmem %s0, %s200
      %p202 = pneg %p56
      %p203 = pneg %p53
      %s204 = smul.u32 16, %s21
      %p205 = scmp.lt.s32.totalorder %s204, 15
      %s206 = scalar_select %p205, %s204, 15
      %p207 = scmp.lt.s32.totalorder %s20, 0
      %s208 = scalar_select %p207, %s20, 0
      %s209 = sadd.s32 %s208, %s206
      %s210 = smul.addr %s209, 4
      %s211 = scalar_lea.vmem %s1, %s210
      %p212 = pneg %p84
      %p213 = pneg %p81
      %p214 = scmp.lt.s32.totalorder %s20, 0
      %s215 = scalar_select %p214, %s20, 0
      %s216 = scalar_lea.vmem %s2, %s215
      %p217 = pneg %p110
      %p218 = pneg %p107
      %p219 = pneg %p138
      %p220 = pneg %p135
      %s221 = smul.u32 2, %s19
      %p222 = scmp.lt.s32.totalorder %s221, 3
      %s223 = scalar_select %p222, %s221, 3
      %p224 = scmp.lt.s32.totalorder %s20, 0
      %s225 = scalar_select %p224, %s20, 0
      %s226 = sadd.s32 %s225, %s223
      %s227 = smul.addr %s226, 4
      %s228 = scalar_lea.vmem %s3, %s227
      %s229 = smul.u32 2, %s19
      %p230 = scmp.lt.s32.totalorder %s229, 3
      %s231 = scalar_select %p230, %s229, 3
      %p232 = scmp.lt.s32.totalorder %s21, 0
      %s233 = scalar_select %p232, %s21, 0
      %s234 = sadd.s32 %s233, %s231
      %s235 = smul.addr %s234, 4
      %s236 = scalar_lea.vmem %s0, %s235
      %s237 = smul.u32 2, %s19
      %s238 = smul.u32 16, %s21
      %p239 = scmp.lt.s32.totalorder %s238, 15
      %s240 = scalar_select %p239, %s238, 15
      %p241 = scmp.lt.s32.totalorder %s20, 0
      %s242 = scalar_select %p241, %s20, 0
      %s243 = sadd.s32 %s242, %s240
      %s244 = smul.addr %s243, 4
      %s245 = scalar_lea.vmem %s1, %s244
      %s246 = smul.u32 16, %s21
      %p247 = scmp.lt.s32.totalorder %s20, 0
      %s248 = scalar_select %p247, %s20, 0
      %s249 = scalar_lea.vmem %s2, %s248
      %s250 = smul.u32 2, %s19
      %p251 = scmp.lt.s32.totalorder %s250, 3
      %s252 = scalar_select %p251, %s250, 3
      %p253 = scmp.lt.s32.totalorder %s20, 0
      %s254 = scalar_select %p253, %s20, 0
      %s255 = sadd.s32 %s254, %s252
      %s256 = smul.addr %s255, 4
      %s257 = scalar_lea.vmem %s3, %s256
      %s258 = smul.u32 2, %s19
      %v259 = vld [vmem:[%s236] sm:$0xf]
      %v260 = vld [vmem:[%s236 + $0x4] sm:$0xf]
      %v261 = vld [vmem:[%s245] sm:$0xf]
      %v262 = vld [vmem:[%s245 + $0x4] sm:$0xf]
      %v263 = vld [vmem:[%s245 + $0x8] sm:$0xf]
      %v264 = vld [vmem:[%s245 + $0xc] sm:$0xf]
      %v265 = vld [vmem:[%s245 + $0x10] sm:$0xf]
      %v266 = vld [vmem:[%s245 + $0x14] sm:$0xf]
      %v267 = vld [vmem:[%s245 + $0x18] sm:$0xf]
      %v268 = vld [vmem:[%s245 + $0x1c] sm:$0xf]
      %v269 = vld [vmem:[%s245 + $0x20] sm:$0xf]
      %v270 = vld [vmem:[%s245 + $0x24] sm:$0xf]
      %v271 = vld [vmem:[%s245 + $0x28] sm:$0xf]
      %v272 = vld [vmem:[%s245 + $0x2c] sm:$0xf]
      %v273 = vld [vmem:[%s245 + $0x30] sm:$0xf]
      %v274 = vld [vmem:[%s245 + $0x34] sm:$0xf]
      %v275 = vld [vmem:[%s245 + $0x38] sm:$0xf]
      %v276 = vld [vmem:[%s245 + $0x3c] sm:$0xf]
      %v277 = vld [vmem:[%s249] sm:$0x1]
      %v279 = vperm.slane %v277, 0
      %v283 = vunpack.c.l.b16 %v259
      %v284 = vunpack.c.l.b16 %v260
      %v285 = vpack.c.b16 %v284, %v283
      %v303 = vunpack.c.l.b16 %v261
      %v304 = vunpack.c.l.b16 %v262
      %v305 = vunpack.c.l.b16 %v263
      %v306 = vunpack.c.l.b16 %v264
      %v307 = vunpack.c.l.b16 %v265
      %v308 = vunpack.c.l.b16 %v266
      %v309 = vunpack.c.l.b16 %v267
      %v310 = vunpack.c.l.b16 %v268
      %v311 = vunpack.c.l.b16 %v269
      %v312 = vunpack.c.l.b16 %v270
      %v313 = vunpack.c.l.b16 %v271
      %v314 = vunpack.c.l.b16 %v272
      %v315 = vunpack.c.l.b16 %v273
      %v316 = vunpack.c.l.b16 %v274
      %v317 = vunpack.c.l.b16 %v275
      %v318 = vunpack.c.l.b16 %v276
      %v319 = vpack.c.b16 %v304, %v303
      %v320 = vpack.c.b16 %v306, %v305
      %v321 = vpack.c.b16 %v308, %v307
      %v322 = vpack.c.b16 %v310, %v309
      %v323 = vpack.c.b16 %v312, %v311
      %v324 = vpack.c.b16 %v314, %v313
      %v325 = vpack.c.b16 %v316, %v315
      %v326 = vpack.c.b16 %v318, %v317
      %335 = vmatpush.bf16.msra.mxu0 %v326
      %336 = vmatpush.bf16.msra.mxu0 %v325
      %337 = vmatpush.bf16.msra.mxu0 %v324
      %338 = vmatpush.bf16.msra.mxu0 %v323
      %339 = vmatpush.bf16.msra.mxu0 %v322
      %340 = vmatpush.bf16.msra.mxu0 %v321
      %341 = vmatpush.bf16.msra.mxu0 %v320
      %342 = vmatpush.bf16.msra.mxu0 %v319
      %343 = vmatmul.bf16.gmra.mxu0 %v285
      %v344 = vpop.f32.mrf.mxu0
      %v345 = vadd.f32 %v279, %v344
      %v346 = vpop.f32.mrf.mxu0
      %v347 = vadd.f32 %v279, %v346
      %348 = vdwg.mxu0
      %v349 = vxor.u32 %v345, 2147483648
      %v350 = vxor.u32 %v347, 2147483648
      %v351 = vmul.f32 %v349, 1.442695
      %v352 = vpow.pop %v351
      %v353 = vmul.f32 %v350, 1.442695
      %v354 = vpow.pop %v353
      %v355 = vadd.f32 %v352, 1.0
      %v356 = vadd.f32 %v354, 1.0
      %v357 = vrcp.pop %v355
      %v358 = vmul.f32 %v355, %v357
      %v359 = vsub.f32 1.0, %v358
      %v360 = vmul.f32 %v357, %v359
      %v361 = vadd.f32 %v357, %v360
      %vm362 = vweird.f32 %v355
      %vm363 = vweird.f32 %v357
      %vm364 = vmor %vm362, %vm363
      %v365 = vsel %vm364, %v357, %v361
      %v366 = vand.u32 2147483647, %v355
      %vm367 = vcmp.eq.f32.partialorder %v366, 8.507059e+37
      %v368 = vand.u32 %v355, 2147483648
      %v369 = vor.u32 1.1754944e-38, %v368
      %v370 = vsel %vm367, %v369, %v365
      %v371 = vmul.f32 1.0, %v370
      %v372 = vrcp.pop %v356
      %v373 = vmul.f32 %v356, %v372
      %v374 = vsub.f32 1.0, %v373
      %v375 = vmul.f32 %v372, %v374
      %v376 = vadd.f32 %v372, %v375
      %vm377 = vweird.f32 %v356
      %vm378 = vweird.f32 %v372
      %vm379 = vmor %vm377, %vm378
      %v380 = vsel %vm379, %v372, %v376
      %v381 = vand.u32 2147483647, %v356
      %vm382 = vcmp.eq.f32.partialorder %v381, 8.507059e+37
      %v383 = vand.u32 %v356, 2147483648
      %v384 = vor.u32 1.1754944e-38, %v383
      %v385 = vsel %vm382, %v384, %v380
      %v386 = vmul.f32 1.0, %v385
      %v387 = vpack.c.bf16 %v371, %v371
      %v388 = vpack.c.bf16 %v386, %v386
      %389 = vst [vmem:[%s257] sm:$0xf] %v387
      %390 = vst [vmem:[%s257 + $0x4] sm:$0xf] %v388
      %s391 = smul.u32 2, %s19
      %p392 = scmp.lt.s32.totalorder %s391, 3
      %s393 = scalar_select %p392, %s391, 3
      %p394 = scmp.lt.s32.totalorder %s20, 0
      %s395 = scalar_select %p394, %s20, 0
      %s396 = sadd.s32 %s395, %s393
      %s397 = smul.addr %s396, 4
      %s398 = scalar_lea.vmem %s3, %s397
      // Predicated region
      $region33: #{unet_forward.93} parent=31 // pred_check
        %p399 = pneg %p135
      $region34: #{unet_forward.93} parent=31 // pred_check_branch
        %401 = sbr.rel (%p399) target = $region36
      $region35: #{unet_forward.93} parent=31 // pred_region
        %s402 = smul.u32 2, %s19
      $region36: #{unet_forward.93} parent=31 // pred_fallthru
        _
    $region32: #{unet_forward.93} parent=5 // pred_fallthru
      _
    %p403 = scmp.le.s32.totalorder 2, %s9
    // Predicated region
    $region37: #{unet_forward.93} parent=5 // pred_check
      %p404 = pneg %p403
    $region38: #{unet_forward.93} parent=5 // pred_check_branch
      %406 = sbr.rel (%p404) target = $region40
    $region39: #{unet_forward.93} parent=5 // pred_region
      %s407 = ssub.s32 %s9, 2
      // Predicated region
      $region41: #{unet_forward.93} parent=39 // pred_check
        %p408 = pneg %p141
      $region42: #{unet_forward.93} parent=39 // pred_check_branch
        %410 = sbr.rel (%p408) target = $region44
      $region43: #{unet_forward.93} parent=39 // pred_region
        %s411 = smul.u32 2, %s22
        %p412 = scmp.lt.s32.totalorder %s411, 3
        %s413 = scalar_select %p412, %s411, 3
        %p414 = scmp.lt.s32.totalorder %s23, 0
        %s415 = scalar_select %p414, %s23, 0
        %s416 = sadd.s32 %s415, %s413
        %s417 = smul.addr %s416, 4
        %s418 = scalar_lea.vmem %s3, %s417
      $region44: #{unet_forward.93} parent=39 // pred_fallthru
        _
    $region40: #{unet_forward.93} parent=5 // pred_fallthru
      _
  $region6: #{unet_forward.93} parent=0 // loop_footer
    %s13 = sadd.s32 1, %s9
  $region7: #{unet_forward.93} parent=0 // loop_footer_branch
    %8 = sbr.rel target = $region3
  $region8: #{unet_forward.93} parent=0 // loop_exit
    _

// kernel: unet_forward.94
$region0: #{unet_forward.94}
  #allocation0 [shape = 'u32[]', space=smem, size = 0x4, offset = 0x4, fixed_abs, tag = 'smem constant byte address 0x4 - core index']
  #allocation1 [shape = 'u32[72,128]{1,0:T(1,128)}', space=vmem, size = 0x9000, scoped, tag = 'internal scratch']
  %s0 = inlined_call_operand.vmem [shape: bf16[32,128], index: 0, kind: input, shape index: {}]
  %s1 = inlined_call_operand.vmem [shape: bf16[128,128], index: 1, kind: input, shape index: {}]
  %s2 = inlined_call_operand.vmem [shape: f32[1,128], index: 2, kind: input, shape index: {}]
  %s3 = inlined_call_operand.vmem [shape: bf16[32,128], index: 3, kind: input, shape index: {}]
  %s4 = inlined_call_operand.vmem [shape: bf16[32,128], index: 4, kind: output, shape index: {}]
  %s5 = sld [smem:[#allocation0]]
  $region49: #{unet_forward.94} parent=0
    _
  %s7 = ssub.s32 1, %s5
  %s8 = scalar_select 0, %s7, %s5
  loop: start=0, step=1, limit=4
  $region2: #{unet_forward.94} parent=0 // loop_pre_header
    _
  $region3: #{unet_forward.94} parent=0 // loop_header
    %s10 = sphi 0, %s14
    %p11 = scmp.ge.s32.totalorder %s10, 4
    %s17 = sphi 0, %s36
    %s18 = sphi 0, %s32
    %s19 = sphi 0, %s28
    %s20 = sphi 0, %s17
    %s21 = sphi 0, %s18
    %s22 = sphi 0, %s19
    %s23 = sphi 0, %s20
    %s24 = sphi 0, %s21
    %s25 = sphi 0, %s22
    %s41 = sphi 0, %s43
    %s44 = sphi 0, %s41
    %s45 = sphi 0, %s44
    %s61 = sphi 0, %s45
    %s69 = sphi 0, %s71
    %s72 = sphi 0, %s69
    %s73 = sphi 0, %s72
    %s89 = sphi 0, %s73
    %s95 = sphi 0, %s97
    %s98 = sphi 0, %s95
    %s99 = sphi 0, %s98
    %s115 = sphi 0, %s99
    %s123 = sphi 0, %s125
    %s126 = sphi 0, %s123
    %s127 = sphi 0, %s126
    %s143 = sphi 0, %s127
    %s151 = sphi 0, %s153
    %s154 = sphi 0, %s151
    %s155 = sphi 0, %s154
    %s171 = sphi 0, %s155
  $region4: #{unet_forward.94} parent=0 // loop_header_branch
    %13 = sbr.rel (%p11) target = $region8
  $region5: #{unet_forward.94} parent=0 // loop_body
    %s15 = ssub.s32 %s10, 1
    %s16 = ssub.s32 %s10, 2
    %s26 = sadd.s32 1, %s19
    %p27 = scmp.ge.s32.totalorder %s26, 1
    %s28 = scalar_select %p27, 0, %s26
    %s29 = sadd.s32 1, %s18
    %s30 = scalar_select %p27, %s29, %s18
    %p31 = scmp.ge.s32.totalorder %s30, 1
    %s32 = scalar_select %p31, 0, %s30
    %s33 = sadd.s32 1, %s17
    %s34 = scalar_select %p31, %s33, %s17
    %p35 = scmp.ge.s32.totalorder %s34, 2
    %s36 = scalar_select %p35, 0, %s34
    %s37 = ssub.s32 %s17, %s36
    %s38 = ssub.s32 %s19, %s28
    %s39 = sor.u32 %s37, %s38
    %p40 = scmp.eq.s32.totalorder %s39, 0
    %s42 = sadd.s32 %s41, 1
    %s43 = scalar_select %p40, %s41, %s42
    %p46 = pneg %p40
    %p47 = scmp.eq.s32.totalorder %s10, 1
    %p48 = por %p46, %p47
    %p49 = scmp.ne.s32.totalorder %s41, %s44
    %p50 = scmp.eq.s32.totalorder %s10, 0
    %p51 = por %p49, %p50
    %p52 = scmp.ne.s32.totalorder %s41, %s44
    %p53 = scmp.eq.s32.totalorder %s15, 1
    %p54 = por %p52, %p53
    %p55 = scmp.ne.s32.totalorder %s44, %s45
    %p56 = scmp.eq.s32.totalorder %s15, 0
    %p57 = por %p55, %p56
    %p58 = scmp.ne.s32.totalorder %s44, %s45
    %p59 = scmp.eq.s32.totalorder %s16, 1
    %p60 = por %p58, %p59
    %p62 = scmp.ne.s32.totalorder %s45, %s61
    %p63 = scmp.eq.s32.totalorder %s16, 0
    %p64 = por %p62, %p63
    %s65 = ssub.s32 %s19, %s28
    %s66 = ssub.s32 %s18, %s32
    %s67 = sor.u32 %s65, %s66
    %p68 = scmp.eq.s32.totalorder %s67, 0
    %s70 = sadd.s32 %s69, 1
    %s71 = scalar_select %p68, %s69, %s70
    %p74 = pneg %p68
    %p75 = scmp.eq.s32.totalorder %s10, 1
    %p76 = por %p74, %p75
    %p77 = scmp.ne.s32.totalorder %s69, %s72
    %p78 = scmp.eq.s32.totalorder %s10, 0
    %p79 = por %p77, %p78
    %p80 = scmp.ne.s32.totalorder %s69, %s72
    %p81 = scmp.eq.s32.totalorder %s15, 1
    %p82 = por %p80, %p81
    %p83 = scmp.ne.s32.totalorder %s72, %s73
    %p84 = scmp.eq.s32.totalorder %s15, 0
    %p85 = por %p83, %p84
    %p86 = scmp.ne.s32.totalorder %s72, %s73
    %p87 = scmp.eq.s32.totalorder %s16, 1
    %p88 = por %p86, %p87
    %p90 = scmp.ne.s32.totalorder %s73, %s89
    %p91 = scmp.eq.s32.totalorder %s16, 0
    %p92 = por %p90, %p91
    %s93 = ssub.s32 %s18, %s32
    %p94 = scmp.eq.s32.totalorder %s93, 0
    %s96 = sadd.s32 %s95, 1
    %s97 = scalar_select %p94, %s95, %s96
    %p100 = pneg %p94
    %p101 = scmp.eq.s32.totalorder %s10, 1
    %p102 = por %p100, %p101
    %p103 = scmp.ne.s32.totalorder %s95, %s98
    %p104 = scmp.eq.s32.totalorder %s10, 0
    %p105 = por %p103, %p104
    %p106 = scmp.ne.s32.totalorder %s95, %s98
    %p107 = scmp.eq.s32.totalorder %s15, 1
    %p108 = por %p106, %p107
    %p109 = scmp.ne.s32.totalorder %s98, %s99
    %p110 = scmp.eq.s32.totalorder %s15, 0
    %p111 = por %p109, %p110
    %p112 = scmp.ne.s32.totalorder %s98, %s99
    %p113 = scmp.eq.s32.totalorder %s16, 1
    %p114 = por %p112, %p113
    %p116 = scmp.ne.s32.totalorder %s99, %s115
    %p117 = scmp.eq.s32.totalorder %s16, 0
    %p118 = por %p116, %p117
    %s119 = ssub.s32 %s17, %s36
    %s120 = ssub.s32 %s18, %s32
    %s121 = sor.u32 %s119, %s120
    %p122 = scmp.eq.s32.totalorder %s121, 0
    %s124 = sadd.s32 %s123, 1
    %s125 = scalar_select %p122, %s123, %s124
    %p128 = pneg %p122
    %p129 = scmp.eq.s32.totalorder %s10, 1
    %p130 = por %p128, %p129
    %p131 = scmp.ne.s32.totalorder %s123, %s126
    %p132 = scmp.eq.s32.totalorder %s10, 0
    %p133 = por %p131, %p132
    %p134 = scmp.ne.s32.totalorder %s123, %s126
    %p135 = scmp.eq.s32.totalorder %s15, 1
    %p136 = por %p134, %p135
    %p137 = scmp.ne.s32.totalorder %s126, %s127
    %p138 = scmp.eq.s32.totalorder %s15, 0
    %p139 = por %p137, %p138
    %p140 = scmp.ne.s32.totalorder %s126, %s127
    %p141 = scmp.eq.s32.totalorder %s16, 1
    %p142 = por %p140, %p141
    %p144 = scmp.ne.s32.totalorder %s127, %s143
    %p145 = scmp.eq.s32.totalorder %s16, 0
    %p146 = por %p144, %p145
    %s147 = ssub.s32 %s17, %s36
    %s148 = ssub.s32 %s18, %s32
    %s149 = sor.u32 %s147, %s148
    %p150 = scmp.eq.s32.totalorder %s149, 0
    %s152 = sadd.s32 %s151, 1
    %s153 = scalar_select %p150, %s151, %s152
    %p156 = pneg %p150
    %p157 = scmp.eq.s32.totalorder %s10, 1
    %p158 = por %p156, %p157
    %p159 = scmp.ne.s32.totalorder %s151, %s154
    %p160 = scmp.eq.s32.totalorder %s10, 0
    %p161 = por %p159, %p160
    %p162 = scmp.ne.s32.totalorder %s151, %s154
    %p163 = scmp.eq.s32.totalorder %s15, 1
    %p164 = por %p162, %p163
    %p165 = scmp.ne.s32.totalorder %s154, %s155
    %p166 = scmp.eq.s32.totalorder %s15, 0
    %p167 = por %p165, %p166
    %p168 = scmp.ne.s32.totalorder %s154, %s155
    %p169 = scmp.eq.s32.totalorder %s16, 1
    %p170 = por %p168, %p169
    %p172 = scmp.ne.s32.totalorder %s155, %s171
    %p173 = scmp.eq.s32.totalorder %s16, 0
    %p174 = por %p172, %p173
    %p175 = scmp.le.s32.totalorder 1, %s10
    %p176 = scmp.lt.s32.totalorder %s10, 3
    %p177 = pnand %p175, %p176
    %p178 = pneg %p177
    // Predicated region
    $region9: #{unet_forward.94} parent=5 // pred_check
      _
    $region10: #{unet_forward.94} parent=5 // pred_check_branch
      %180 = sbr.rel (%p177) target = $region12
    $region11: #{unet_forward.94} parent=5 // pred_region
      %s181 = ssub.s32 %s10, 1
      // Predicated region
      $region13: #{unet_forward.94} parent=11 // pred_check
        %p182 = pneg %p85
      $region14: #{unet_forward.94} parent=11 // pred_check_branch
        %184 = sbr.rel (%p182) target = $region16
      $region15: #{unet_forward.94} parent=11 // pred_region
        %s185 = smul.u32 16, %s22
        %p186 = scmp.lt.s32.totalorder %s185, 15
        %s187 = scalar_select %p186, %s185, 15
        %p188 = scmp.lt.s32.totalorder %s21, 0
        %s189 = scalar_select %p188, %s21, 0
        %s190 = sadd.s32 %s189, %s187
        %s191 = smul.addr %s190, 4
        %s192 = scalar_lea.vmem %s1, %s191
        %s193 = smul.u32 16, %s22
      $region16: #{unet_forward.94} parent=11 // pred_fallthru
        _
      // Predicated region
      $region17: #{unet_forward.94} parent=11 // pred_check
        %p194 = pneg %p111
      $region18: #{unet_forward.94} parent=11 // pred_check_branch
        %196 = sbr.rel (%p194) target = $region20
      $region19: #{unet_forward.94} parent=11 // pred_region
        %p197 = scmp.lt.s32.totalorder %s21, 0
        %s198 = scalar_select %p197, %s21, 0
        %s199 = scalar_lea.vmem %s2, %s198
      $region20: #{unet_forward.94} parent=11 // pred_fallthru
        _
    $region12: #{unet_forward.94} parent=5 // pred_fallthru
      _
    %p200 = scmp.lt.s32.totalorder %s10, 2
    // Predicated region
    $region21: #{unet_forward.94} parent=5 // pred_check
      %p201 = pneg %p200
    $region22: #{unet_forward.94} parent=5 // pred_check_branch
      %203 = sbr.rel (%p201) target = $region24
    $region23: #{unet_forward.94} parent=5 // pred_region
      // Predicated region
      $region25: #{unet_forward.94} parent=23 // pred_check
        %p204 = pneg %p51
      $region26: #{unet_forward.94} parent=23 // pred_check_branch
        %206 = sbr.rel (%p204) target = $region28
      $region27: #{unet_forward.94} parent=23 // pred_region
        %s207 = smul.u32 2, %s17
        %p208 = scmp.lt.s32.totalorder %s207, 3
        %s209 = scalar_select %p208, %s207, 3
        %p210 = scmp.lt.s32.totalorder %s19, 0
        %s211 = scalar_select %p210, %s19, 0
        %s212 = sadd.s32 %s211, %s209
        %s213 = smul.addr %s212, 4
        %s214 = scalar_lea.vmem %s0, %s213
        %s215 = smul.u32 2, %s17
      $region28: #{unet_forward.94} parent=23 // pred_fallthru
        _
      // Predicated region
      $region29: #{unet_forward.94} parent=23 // pred_check
        %p216 = pneg %p133
      $region30: #{unet_forward.94} parent=23 // pred_check_branch
        %218 = sbr.rel (%p216) target = $region32
      $region31: #{unet_forward.94} parent=23 // pred_region
        %s219 = smul.u32 2, %s17
        %p220 = scmp.lt.s32.totalorder %s219, 3
        %s221 = scalar_select %p220, %s219, 3
        %p222 = scmp.lt.s32.totalorder %s18, 0
        %s223 = scalar_select %p222, %s18, 0
        %s224 = sadd.s32 %s223, %s221
        %s225 = smul.addr %s224, 4
        %s226 = scalar_lea.vmem %s3, %s225
        %s227 = smul.u32 2, %s17
      $region32: #{unet_forward.94} parent=23 // pred_fallthru
        _
    $region24: #{unet_forward.94} parent=5 // pred_fallthru
      _
    %p228 = scmp.le.s32.totalorder 1, %s10
    %p229 = scmp.lt.s32.totalorder %s10, 3
    %p230 = pnand %p228, %p229
    %p231 = pneg %p230
    // Predicated region
    $region33: #{unet_forward.94} parent=5 // pred_check
      _
    $region34: #{unet_forward.94} parent=5 // pred_check_branch
      %233 = sbr.rel (%p230) target = $region36
    $region35: #{unet_forward.94} parent=5 // pred_region
      %s234 = ssub.s32 %s10, 1
      %s235 = smul.u32 2, %s20
      %p236 = scmp.lt.s32.totalorder %s235, 3
      %s237 = scalar_select %p236, %s235, 3
      %p238 = scmp.lt.s32.totalorder %s22, 0
      %s239 = scalar_select %p238, %s22, 0
      %s240 = sadd.s32 %s239, %s237
      %s241 = smul.addr %s240, 4
      %s242 = scalar_lea.vmem %s0, %s241
      %p243 = pneg %p57
      %p244 = pneg %p54
      %s245 = smul.u32 16, %s22
      %p246 = scmp.lt.s32.totalorder %s245, 15
      %s247 = scalar_select %p246, %s245, 15
      %p248 = scmp.lt.s32.totalorder %s21, 0
      %s249 = scalar_select %p248, %s21, 0
      %s250 = sadd.s32 %s249, %s247
      %s251 = smul.addr %s250, 4
      %s252 = scalar_lea.vmem %s1, %s251
      %p253 = pneg %p85
      %p254 = pneg %p82
      %p255 = scmp.lt.s32.totalorder %s21, 0
      %s256 = scalar_select %p255, %s21, 0
      %s257 = scalar_lea.vmem %s2, %s256
      %p258 = pneg %p111
      %p259 = pneg %p108
      %s260 = smul.u32 2, %s20
      %p261 = scmp.lt.s32.totalorder %s260, 3
      %s262 = scalar_select %p261, %s260, 3
      %p263 = scmp.lt.s32.totalorder %s21, 0
      %s264 = scalar_select %p263, %s21, 0
      %s265 = sadd.s32 %s264, %s262
      %s266 = smul.addr %s265, 4
      %s267 = scalar_lea.vmem %s3, %s266
      %p268 = pneg %p139
      %p269 = pneg %p136
      %p270 = pneg %p167
      %p271 = pneg %p164
      %s272 = smul.u32 2, %s20
      %p273 = scmp.lt.s32.totalorder %s272, 3
      %s274 = scalar_select %p273, %s272, 3
      %p275 = scmp.lt.s32.totalorder %s21, 0
      %s276 = scalar_select %p275, %s21, 0
      %s277 = sadd.s32 %s276, %s274
      %s278 = smul.addr %s277, 4
      %s279 = scalar_lea.vmem %s4, %s278
      %s280 = smul.u32 2, %s20
      %p281 = scmp.lt.s32.totalorder %s280, 3
      %s282 = scalar_select %p281, %s280, 3
      %p283 = scmp.lt.s32.totalorder %s22, 0
      %s284 = scalar_select %p283, %s22, 0
      %s285 = sadd.s32 %s284, %s282
      %s286 = smul.addr %s285, 4
      %s287 = scalar_lea.vmem %s0, %s286
      %s288 = smul.u32 2, %s20
      %s289 = smul.u32 16, %s22
      %p290 = scmp.lt.s32.totalorder %s289, 15
      %s291 = scalar_select %p290, %s289, 15
      %p292 = scmp.lt.s32.totalorder %s21, 0
      %s293 = scalar_select %p292, %s21, 0
      %s294 = sadd.s32 %s293, %s291
      %s295 = smul.addr %s294, 4
      %s296 = scalar_lea.vmem %s1, %s295
      %s297 = smul.u32 16, %s22
      %p298 = scmp.lt.s32.totalorder %s21, 0
      %s299 = scalar_select %p298, %s21, 0
      %s300 = scalar_lea.vmem %s2, %s299
      %s301 = smul.u32 2, %s20
      %p302 = scmp.lt.s32.totalorder %s301, 3
      %s303 = scalar_select %p302, %s301, 3
      %p304 = scmp.lt.s32.totalorder %s21, 0
      %s305 = scalar_select %p304, %s21, 0
      %s306 = sadd.s32 %s305, %s303
      %s307 = smul.addr %s306, 4
      %s308 = scalar_lea.vmem %s3, %s307
      %s309 = smul.u32 2, %s20
      %s310 = smul.u32 2, %s20
      %p311 = scmp.lt.s32.totalorder %s310, 3
      %s312 = scalar_select %p311, %s310, 3
      %p313 = scmp.lt.s32.totalorder %s21, 0
      %s314 = scalar_select %p313, %s21, 0
      %s315 = sadd.s32 %s314, %s312
      %s316 = smul.addr %s315, 4
      %s317 = scalar_lea.vmem %s4, %s316
      %s318 = smul.u32 2, %s20
      %v319 = vld [vmem:[%s287] sm:$0xf]
      %v320 = vld [vmem:[%s287 + $0x4] sm:$0xf]
      %v321 = vld [vmem:[%s296] sm:$0xf]
      %v322 = vld [vmem:[%s296 + $0x4] sm:$0xf]
      %v323 = vld [vmem:[%s296 + $0x8] sm:$0xf]
      %v324 = vld [vmem:[%s296 + $0xc] sm:$0xf]
      %v325 = vld [vmem:[%s296 + $0x10] sm:$0xf]
      %v326 = vld [vmem:[%s296 + $0x14] sm:$0xf]
      %v327 = vld [vmem:[%s296 + $0x18] sm:$0xf]
      %v328 = vld [vmem:[%s296 + $0x1c] sm:$0xf]
      %v329 = vld [vmem:[%s296 + $0x20] sm:$0xf]
      %v330 = vld [vmem:[%s296 + $0x24] sm:$0xf]
      %v331 = vld [vmem:[%s296 + $0x28] sm:$0xf]
      %v332 = vld [vmem:[%s296 + $0x2c] sm:$0xf]
      %v333 = vld [vmem:[%s296 + $0x30] sm:$0xf]
      %v334 = vld [vmem:[%s296 + $0x34] sm:$0xf]
      %v335 = vld [vmem:[%s296 + $0x38] sm:$0xf]
      %v336 = vld [vmem:[%s296 + $0x3c] sm:$0xf]
      %v337 = vld [vmem:[%s300] sm:$0x1]
      %v339 = vperm.slane %v337, 0
      %v343 = vunpack.c.l.b16 %v319
      %v344 = vunpack.c.l.b16 %v320
      %v345 = vpack.c.b16 %v344, %v343
      %v363 = vunpack.c.l.b16 %v321
      %v364 = vunpack.c.l.b16 %v322
      %v365 = vunpack.c.l.b16 %v323
      %v366 = vunpack.c.l.b16 %v324
      %v367 = vunpack.c.l.b16 %v325
      %v368 = vunpack.c.l.b16 %v326
      %v369 = vunpack.c.l.b16 %v327
      %v370 = vunpack.c.l.b16 %v328
      %v371 = vunpack.c.l.b16 %v329
      %v372 = vunpack.c.l.b16 %v330
      %v373 = vunpack.c.l.b16 %v331
      %v374 = vunpack.c.l.b16 %v332
      %v375 = vunpack.c.l.b16 %v333
      %v376 = vunpack.c.l.b16 %v334
      %v377 = vunpack.c.l.b16 %v335
      %v378 = vunpack.c.l.b16 %v336
      %v379 = vpack.c.b16 %v364, %v363
      %v380 = vpack.c.b16 %v366, %v365
      %v381 = vpack.c.b16 %v368, %v367
      %v382 = vpack.c.b16 %v370, %v369
      %v383 = vpack.c.b16 %v372, %v371
      %v384 = vpack.c.b16 %v374, %v373
      %v385 = vpack.c.b16 %v376, %v375
      %v386 = vpack.c.b16 %v378, %v377
      %395 = vmatpush.bf16.msra.mxu0 %v386
      %396 = vmatpush.bf16.msra.mxu0 %v385
      %397 = vmatpush.bf16.msra.mxu0 %v384
      %398 = vmatpush.bf16.msra.mxu0 %v383
      %399 = vmatpush.bf16.msra.mxu0 %v382
      %400 = vmatpush.bf16.msra.mxu0 %v381
      %401 = vmatpush.bf16.msra.mxu0 %v380
      %402 = vmatpush.bf16.msra.mxu0 %v379
      %403 = vmatmul.bf16.gmra.mxu0 %v345
      %v404 = vpop.f32.mrf.mxu0
      %v405 = vadd.f32 %v339, %v404
      %v406 = vpop.f32.mrf.mxu0
      %v407 = vadd.f32 %v339, %v406
      %408 = vdwg.mxu0
      %v409 = vld [vmem:[%s308] sm:$0xf]
      %v410 = vld [vmem:[%s308 + $0x4] sm:$0xf]
      %v411 = vunpack.c.l.bf16 %v409
      %v412 = vunpack.c.l.bf16 %v410
      %v413 = vadd.f32 %v405, %v411
      %v414 = vadd.f32 %v407, %v412
      %v415 = vpack.c.bf16 %v413, %v413
      %v416 = vpack.c.bf16 %v414, %v414
      %417 = vst [vmem:[%s317] sm:$0xf] %v415
      %418 = vst [vmem:[%s317 + $0x4] sm:$0xf] %v416
      %s419 = smul.u32 2, %s20
      %p420 = scmp.lt.s32.totalorder %s419, 3
      %s421 = scalar_select %p420, %s419, 3
      %p422 = scmp.lt.s32.totalorder %s21, 0
      %s423 = scalar_select %p422, %s21, 0
      %s424 = sadd.s32 %s423, %s421
      %s425 = smul.addr %s424, 4
      %s426 = scalar_lea.vmem %s4, %s425
      // Predicated region
      $region37: #{unet_forward.94} parent=35 // pred_check
        %p427 = pneg %p164
      $region38: #{unet_forward.94} parent=35 // pred_check_branch
        %429 = sbr.rel (%p427) target = $region40
      $region39: #{unet_forward.94} parent=35 // pred_region
        %s430 = smul.u32 2, %s20
      $region40: #{unet_forward.94} parent=35 // pred_fallthru
        _
    $region36: #{unet_forward.94} parent=5 // pred_fallthru
      _
    %p431 = scmp.le.s32.totalorder 2, %s10
    // Predicated region
    $region41: #{unet_forward.94} parent=5 // pred_check
      %p432 = pneg %p431
    $region42: #{unet_forward.94} parent=5 // pred_check_branch
      %434 = sbr.rel (%p432) target = $region44
    $region43: #{unet_forward.94} parent=5 // pred_region
      %s435 = ssub.s32 %s10, 2
      // Predicated region
      $region45: #{unet_forward.94} parent=43 // pred_check
        %p436 = pneg %p170
      $region46: #{unet_forward.94} parent=43 // pred_check_branch
        %438 = sbr.rel (%p436) target = $region48
      $region47: #{unet_forward.94} parent=43 // pred_region
        %s439 = smul.u32 2, %s23
        %p440 = scmp.lt.s32.totalorder %s439, 3
        %s441 = scalar_select %p440, %s439, 3
        %p442 = scmp.lt.s32.totalorder %s24, 0
        %s443 = scalar_select %p442, %s24, 0
        %s444 = sadd.s32 %s443, %s441
        %s445 = smul.addr %s444, 4
        %s446 = scalar_lea.vmem %s4, %s445
      $region48: #{unet_forward.94} parent=43 // pred_fallthru
        _
    $region44: #{unet_forward.94} parent=5 // pred_fallthru
      _
  $region6: #{unet_forward.94} parent=0 // loop_footer
    %s14 = sadd.s32 1, %s10
  $region7: #{unet_forward.94} parent=0 // loop_footer_branch
    %9 = sbr.rel target = $region3
  $region8: #{unet_forward.94} parent=0 // loop_exit
    _

// kernel: unet_forward.95
$region0: #{unet_forward.95}
  #allocation0 [shape = 'u32[]', space=smem, size = 0x4, offset = 0x4, fixed_abs, tag = 'smem constant byte address 0x4 - core index']
  #allocation1 [shape = 'u32[72,128]{1,0:T(1,128)}', space=vmem, size = 0x9000, scoped, tag = 'internal scratch']
  %s0 = inlined_call_operand.vmem [shape: bf16[16,128], index: 0, kind: input, shape index: {}]
  %s1 = inlined_call_operand.vmem [shape: bf16[128,256], index: 1, kind: input, shape index: {}]
  %s2 = inlined_call_operand.vmem [shape: f32[1,256], index: 2, kind: input, shape index: {}]
  %s3 = inlined_call_operand.vmem [shape: bf16[16,256], index: 3, kind: output, shape index: {}]
  %s4 = sld [smem:[#allocation0]]
  $region22: #{unet_forward.95} parent=0
    _
  %s6 = ssub.s32 1, %s4
  %s7 = scalar_select 0, %s6, %s4
  // Predicated region
  $region2: #{unet_forward.95} parent=0 // pred_check
    _
  $region3: #{unet_forward.95} parent=0 // pred_check_branch
    %9 = sbr.rel (0) target = $region5
  $region4: #{unet_forward.95} parent=0 // pred_region
    _
  $region5: #{unet_forward.95} parent=0 // pred_fallthru
    _
  // Predicated region
  $region6: #{unet_forward.95} parent=0 // pred_check
    _
  $region7: #{unet_forward.95} parent=0 // pred_check_branch
    %11 = sbr.rel (0) target = $region9
  $region8: #{unet_forward.95} parent=0 // pred_region
    _
  $region9: #{unet_forward.95} parent=0 // pred_fallthru
    _
  // Predicated region
  $region10: #{unet_forward.95} parent=0 // pred_check
    _
  $region11: #{unet_forward.95} parent=0 // pred_check_branch
    %13 = sbr.rel (0) target = $region13
  $region12: #{unet_forward.95} parent=0 // pred_region
    _
  $region13: #{unet_forward.95} parent=0 // pred_fallthru
    _
  %v14 = vld [vmem:[%s0] sm:$0xf]
  %v15 = vld [vmem:[%s0 + $0x4] sm:$0xf]
  %v16 = vld [vmem:[%s1] sm:$0xff]
  %v17 = vld [vmem:[%s1 + $0x8] sm:$0xff]
  %v18 = vld [vmem:[%s1 + $0x10] sm:$0xff]
  %v19 = vld [vmem:[%s1 + $0x18] sm:$0xff]
  %v20 = vld [vmem:[%s1 + $0x20] sm:$0xff]
  %v21 = vld [vmem:[%s1 + $0x28] sm:$0xff]
  %v22 = vld [vmem:[%s1 + $0x30] sm:$0xff]
  %v23 = vld [vmem:[%s1 + $0x38] sm:$0xff]
  %v24 = vld [vmem:[%s1 + $0x40] sm:$0xff]
  %v25 = vld [vmem:[%s1 + $0x48] sm:$0xff]
  %v26 = vld [vmem:[%s1 + $0x50] sm:$0xff]
  %v27 = vld [vmem:[%s1 + $0x58] sm:$0xff]
  %v28 = vld [vmem:[%s1 + $0x60] sm:$0xff]
  %v29 = vld [vmem:[%s1 + $0x68] sm:$0xff]
  %v30 = vld [vmem:[%s1 + $0x70] sm:$0xff]
  %v31 = vld [vmem:[%s1 + $0x78] sm:$0xff]
  %v32 = vld [vmem:[%s2] sm:$0x3]
  %v34 = vperm.slane %v32, 0
  %v35 = vperm.slane %v32, 1
  %v40 = vunpack.c.l.b16 %v14
  %v41 = vunpack.c.l.b16 %v15
  %v42 = vpack.c.b16 %v41, %v40
  %v60 = vunpack.c.l.b16 %v16
  %v61 = vunpack.c.h.b16 %v16
  %v62 = vunpack.c.l.b16 %v17
  %v63 = vunpack.c.h.b16 %v17
  %v64 = vunpack.c.l.b16 %v18
  %v65 = vunpack.c.h.b16 %v18
  %v66 = vunpack.c.l.b16 %v19
  %v67 = vunpack.c.h.b16 %v19
  %v68 = vunpack.c.l.b16 %v20
  %v69 = vunpack.c.h.b16 %v20
  %v70 = vunpack.c.l.b16 %v21
  %v71 = vunpack.c.h.b16 %v21
  %v72 = vunpack.c.l.b16 %v22
  %v73 = vunpack.c.h.b16 %v22
  %v74 = vunpack.c.l.b16 %v23
  %v75 = vunpack.c.h.b16 %v23
  %v76 = vunpack.c.l.b16 %v24
  %v77 = vunpack.c.h.b16 %v24
  %v78 = vunpack.c.l.b16 %v25
  %v79 = vunpack.c.h.b16 %v25
  %v80 = vunpack.c.l.b16 %v26
  %v81 = vunpack.c.h.b16 %v26
  %v82 = vunpack.c.l.b16 %v27
  %v83 = vunpack.c.h.b16 %v27
  %v84 = vunpack.c.l.b16 %v28
  %v85 = vunpack.c.h.b16 %v28
  %v86 = vunpack.c.l.b16 %v29
  %v87 = vunpack.c.h.b16 %v29
  %v88 = vunpack.c.l.b16 %v30
  %v89 = vunpack.c.h.b16 %v30
  %v90 = vunpack.c.l.b16 %v31
  %v91 = vunpack.c.h.b16 %v31
  %v92 = vpack.c.b16 %v62, %v60
  %v93 = vpack.c.b16 %v63, %v61
  %v94 = vpack.c.b16 %v66, %v64
  %v95 = vpack.c.b16 %v67, %v65
  %v96 = vpack.c.b16 %v70, %v68
  %v97 = vpack.c.b16 %v71, %v69
  %v98 = vpack.c.b16 %v74, %v72
  %v99 = vpack.c.b16 %v75, %v73
  %v100 = vpack.c.b16 %v78, %v76
  %v101 = vpack.c.b16 %v79, %v77
  %v102 = vpack.c.b16 %v82, %v80
  %v103 = vpack.c.b16 %v83, %v81
  %v104 = vpack.c.b16 %v86, %v84
  %v105 = vpack.c.b16 %v87, %v85
  %v106 = vpack.c.b16 %v90, %v88
  %v107 = vpack.c.b16 %v91, %v89
  %124 = vmatpush.bf16.msra.mxu0 %v106
  %125 = vmatpush.bf16.msra.mxu0 %v104
  %126 = vmatpush.bf16.msra.mxu0 %v102
  %127 = vmatpush.bf16.msra.mxu0 %v100
  %128 = vmatpush.bf16.msra.mxu0 %v98
  %129 = vmatpush.bf16.msra.mxu0 %v96
  %130 = vmatpush.bf16.msra.mxu0 %v94
  %131 = vmatpush.bf16.msra.mxu0 %v92
  %132 = vmatmul.bf16.gmra.mxu0 %v42
  %v133 = vpop.f32.mrf.mxu0
  %v134 = vadd.f32 %v34, %v133
  %v135 = vpop.f32.mrf.mxu0
  %v136 = vadd.f32 %v34, %v135
  %137 = vdwg.mxu0
  %138 = vmatpush.bf16.msra.mxu0 %v107
  %139 = vmatpush.bf16.msra.mxu0 %v105
  %140 = vmatpush.bf16.msra.mxu0 %v103
  %141 = vmatpush.bf16.msra.mxu0 %v101
  %142 = vmatpush.bf16.msra.mxu0 %v99
  %143 = vmatpush.bf16.msra.mxu0 %v97
  %144 = vmatpush.bf16.msra.mxu0 %v95
  %145 = vmatpush.bf16.msra.mxu0 %v93
  %146 = vmatmul.bf16.gmra.mxu0 %v42
  %v147 = vpop.f32.mrf.mxu0
  %v148 = vadd.f32 %v35, %v147
  %v149 = vpop.f32.mrf.mxu0
  %v150 = vadd.f32 %v35, %v149
  %151 = vdwg.mxu0
  %v152 = vpack.c.bf16 %v148, %v134
  %v153 = vpack.c.bf16 %v150, %v136
  %154 = vst [vmem:[%s3] sm:$0xff] %v152
  %155 = vst [vmem:[%s3 + $0x8] sm:$0xff] %v153
  // Predicated region
  $region14: #{unet_forward.95} parent=0 // pred_check
    _
  $region15: #{unet_forward.95} parent=0 // pred_check_branch
    %157 = sbr.rel (0) target = $region17
  $region16: #{unet_forward.95} parent=0 // pred_region
    _
  $region17: #{unet_forward.95} parent=0 // pred_fallthru
    _
  // Predicated region
  $region18: #{unet_forward.95} parent=0 // pred_check
    _
  $region19: #{unet_forward.95} parent=0 // pred_check_branch
    %159 = sbr.rel (0) target = $region21
  $region20: #{unet_forward.95} parent=0 // pred_region
    _
  $region21: #{unet_forward.95} parent=0 // pred_fallthru
    _

// kernel: unet_forward.96
$region0: #{unet_forward.96}
  #allocation0 [shape = 'u32[]', space=smem, size = 0x4, offset = 0x4, fixed_abs, tag = 'smem constant byte address 0x4 - core index']
  #allocation1 [shape = 'u32[72,128]{1,0:T(1,128)}', space=vmem, size = 0x9000, scoped, tag = 'internal scratch']
  #allocation2 [shape = 'f32[16,128]{1,0:T(8,128)}', space=vmem, size = 0x2000, scoped, tag = 'scratch operand']
  %s0 = inlined_call_operand.vmem [shape: bf16[16,1152], index: 0, kind: input, shape index: {}]
  %s1 = inlined_call_operand.vmem [shape: bf16[1152,128], index: 1, kind: input, shape index: {}]
  %s2 = inlined_call_operand.vmem [shape: f32[1,128], index: 2, kind: input, shape index: {}]
  %s3 = inlined_call_operand.vmem [shape: bf16[16,128], index: 3, kind: output, shape index: {}]
  %s4 = sld [smem:[#allocation0]]
  $region79: #{unet_forward.96} parent=0
    _
  %s6 = ssub.s32 1, %s4
  %s7 = scalar_select 0, %s6, %s4
  $region1: #{unet_forward.96} parent=0
    #allocation3 [shape = 'u8[24576]{0}', space=vmem, size = 0x6000, scoped, tag = 'input window, operand 0']
    loop: start=0, step=1, limit=5
    $region2: #{unet_forward.96} parent=1 // loop_pre_header
      _
    $region3: #{unet_forward.96} parent=1 // loop_header
      %s9 = sphi 0, %s13
      %p10 = scmp.ge.s32.totalorder %s9, 5
      %s16 = sphi 0, %s35
      %s17 = sphi 0, %s31
      %s18 = sphi 0, %s27
      %s19 = sphi 0, %s16
      %s20 = sphi 0, %s17
      %s21 = sphi 0, %s18
      %s22 = sphi 0, %s19
      %s23 = sphi 0, %s20
      %s24 = sphi 0, %s21
      %s40 = sphi 0, %s42
      %s43 = sphi 0, %s40
      %s44 = sphi 0, %s43
      %s60 = sphi 0, %s44
      %s68 = sphi 0, %s70
      %s71 = sphi 0, %s68
      %s72 = sphi 0, %s71
      %s88 = sphi 0, %s72
      %s94 = sphi 0, %s96
      %s97 = sphi 0, %s94
      %s98 = sphi 0, %s97
      %s114 = sphi 0, %s98
      %s122 = sphi 0, %s124
      %s125 = sphi 0, %s122
      %s126 = sphi 0, %s125
      %s142 = sphi 0, %s126
    $region4: #{unet_forward.96} parent=1 // loop_header_branch
      %12 = sbr.rel (%p10) target = $region8
    $region5: #{unet_forward.96} parent=1 // loop_body
      %s14 = ssub.s32 %s9, 1
      %s15 = ssub.s32 %s9, 2
      %s25 = sadd.s32 1, %s18
      %p26 = scmp.ge.s32.totalorder %s25, 3
      %s27 = scalar_select %p26, 0, %s25
      %s28 = sadd.s32 1, %s17
      %s29 = scalar_select %p26, %s28, %s17
      %p30 = scmp.ge.s32.totalorder %s29, 1
      %s31 = scalar_select %p30, 0, %s29
      %s32 = sadd.s32 1, %s16
      %s33 = scalar_select %p30, %s32, %s16
      %p34 = scmp.ge.s32.totalorder %s33, 1
      %s35 = scalar_select %p34, 0, %s33
      %s36 = ssub.s32 %s16, %s35
      %s37 = ssub.s32 %s18, %s27
      %s38 = sor.u32 %s36, %s37
      %p39 = scmp.eq.s32.totalorder %s38, 0
      %s41 = sadd.s32 %s40, 1
      %s42 = scalar_select %p39, %s40, %s41
      %p45 = pneg %p39
      %p46 = scmp.eq.s32.totalorder %s9, 2
      %p47 = por %p45, %p46
      %p48 = scmp.ne.s32.totalorder %s40, %s43
      %p49 = scmp.eq.s32.totalorder %s9, 0
      %p50 = por %p48, %p49
      %p51 = scmp.ne.s32.totalorder %s40, %s43
      %p52 = scmp.eq.s32.totalorder %s14, 2
      %p53 = por %p51, %p52
      %p54 = scmp.ne.s32.totalorder %s43, %s44
      %p55 = scmp.eq.s32.totalorder %s14, 0
      %p56 = por %p54, %p55
      %p57 = scmp.ne.s32.totalorder %s43, %s44
      %p58 = scmp.eq.s32.totalorder %s15, 2
      %p59 = por %p57, %p58
      %p61 = scmp.ne.s32.totalorder %s44, %s60
      %p62 = scmp.eq.s32.totalorder %s15, 0
      %p63 = por %p61, %p62
      %s64 = ssub.s32 %s18, %s27
      %s65 = ssub.s32 %s17, %s31
      %s66 = sor.u32 %s64, %s65
      %p67 = scmp.eq.s32.totalorder %s66, 0
      %s69 = sadd.s32 %s68, 1
      %s70 = scalar_select %p67, %s68, %s69
      %p73 = pneg %p67
      %p74 = scmp.eq.s32.totalorder %s9, 2
      %p75 = por %p73, %p74
      %p76 = scmp.ne.s32.totalorder %s68, %s71
      %p77 = scmp.eq.s32.totalorder %s9, 0
      %p78 = por %p76, %p77
      %p79 = scmp.ne.s32.totalorder %s68, %s71
      %p80 = scmp.eq.s32.totalorder %s14, 2
      %p81 = por %p79, %p80
      %p82 = scmp.ne.s32.totalorder %s71, %s72
      %p83 = scmp.eq.s32.totalorder %s14, 0
      %p84 = por %p82, %p83
      %p85 = scmp.ne.s32.totalorder %s71, %s72
      %p86 = scmp.eq.s32.totalorder %s15, 2
      %p87 = por %p85, %p86
      %p89 = scmp.ne.s32.totalorder %s72, %s88
      %p90 = scmp.eq.s32.totalorder %s15, 0
      %p91 = por %p89, %p90
      %s92 = ssub.s32 %s17, %s31
      %p93 = scmp.eq.s32.totalorder %s92, 0
      %s95 = sadd.s32 %s94, 1
      %s96 = scalar_select %p93, %s94, %s95
      %p99 = pneg %p93
      %p100 = scmp.eq.s32.totalorder %s9, 2
      %p101 = por %p99, %p100
      %p102 = scmp.ne.s32.totalorder %s94, %s97
      %p103 = scmp.eq.s32.totalorder %s9, 0
      %p104 = por %p102, %p103
      %p105 = scmp.ne.s32.totalorder %s94, %s97
      %p106 = scmp.eq.s32.totalorder %s14, 2
      %p107 = por %p105, %p106
      %p108 = scmp.ne.s32.totalorder %s97, %s98
      %p109 = scmp.eq.s32.totalorder %s14, 0
      %p110 = por %p108, %p109
      %p111 = scmp.ne.s32.totalorder %s97, %s98
      %p112 = scmp.eq.s32.totalorder %s15, 2
      %p113 = por %p111, %p112
      %p115 = scmp.ne.s32.totalorder %s98, %s114
      %p116 = scmp.eq.s32.totalorder %s15, 0
      %p117 = por %p115, %p116
      %s118 = ssub.s32 %s16, %s35
      %s119 = ssub.s32 %s17, %s31
      %s120 = sor.u32 %s118, %s119
      %p121 = scmp.eq.s32.totalorder %s120, 0
      %s123 = sadd.s32 %s122, 1
      %s124 = scalar_select %p121, %s122, %s123
      %p127 = pneg %p121
      %p128 = scmp.eq.s32.totalorder %s9, 2
      %p129 = por %p127, %p128
      %p130 = scmp.ne.s32.totalorder %s122, %s125
      %p131 = scmp.eq.s32.totalorder %s9, 0
      %p132 = por %p130, %p131
      %p133 = scmp.ne.s32.totalorder %s122, %s125
      %p134 = scmp.eq.s32.totalorder %s14, 2
      %p135 = por %p133, %p134
      %p136 = scmp.ne.s32.totalorder %s125, %s126
      %p137 = scmp.eq.s32.totalorder %s14, 0
      %p138 = por %p136, %p137
      %p139 = scmp.ne.s32.totalorder %s125, %s126
      %p140 = scmp.eq.s32.totalorder %s15, 2
      %p141 = por %p139, %p140
      %p143 = scmp.ne.s32.totalorder %s126, %s142
      %p144 = scmp.eq.s32.totalorder %s15, 0
      %p145 = por %p143, %p144
      %p146 = scmp.le.s32.totalorder 1, %s9
      %p147 = scmp.lt.s32.totalorder %s9, 4
      %p148 = pnand %p146, %p147
      %p149 = pneg %p148
      // Predicated region
      $region9: #{unet_forward.96} parent=5 // pred_check
        _
      $region10: #{unet_forward.96} parent=5 // pred_check_branch
        %151 = sbr.rel (%p148) target = $region12
      $region11: #{unet_forward.96} parent=5 // pred_region
        %s152 = ssub.s32 %s9, 1
        // Predicated region
        $region13: #{unet_forward.96} parent=11 // pred_check
          %p153 = pneg %p110
        $region14: #{unet_forward.96} parent=11 // pred_check_branch
          %155 = sbr.rel (%p153) target = $region16
        $region15: #{unet_forward.96} parent=11 // pred_region
          %p156 = scmp.lt.s32.totalorder %s20, 0
          %s157 = scalar_select %p156, %s20, 0
          %s158 = scalar_lea.vmem %s2, %s157
        $region16: #{unet_forward.96} parent=11 // pred_fallthru
          _
      $region12: #{unet_forward.96} parent=5 // pred_fallthru
        _
      %p159 = scmp.lt.s32.totalorder %s9, 3
      // Predicated region
      $region17: #{unet_forward.96} parent=5 // pred_check
        %p160 = pneg %p159
      $region18: #{unet_forward.96} parent=5 // pred_check_branch
        %162 = sbr.rel (%p160) target = $region20
      $region19: #{unet_forward.96} parent=5 // pred_region
        // Predicated region
        $region21: #{unet_forward.96} parent=19 // pred_check
          %p163 = pneg %p50
        $region22: #{unet_forward.96} parent=19 // pred_check_branch
          %165 = sbr.rel (%p163) target = $region24
        $region23: #{unet_forward.96} parent=19 // pred_region
          %s166 = sand.u32 %s40, 1
          %s167 = sand.u32 %s40, 1
          %s168 = smul.addr %s167, 24
          %s169 = scalar_lea.vmem [#allocation3], %s168
          %s170 = smul.u32 2, %s16
          %s171 = smul.u32 3, %s18
          %s172 = smul.addr %s170, 9
          %s173 = sadd.s32 %s171, %s172
          %s174 = smul.addr %s173, 4
          %s175 = scalar_lea.vmem %s0, %s174
          // Predicated region
          $region25: #{unet_forward.96} parent=23 // pred_check
            _
          $region26: #{unet_forward.96} parent=23 // pred_check_branch
            %177 = sbr.rel (0) target = $region28
          $region27: #{unet_forward.96} parent=23 // pred_region
            // Predicated region
            $region29: #{unet_forward.96} parent=27 // pred_check
              _
            $region30: #{unet_forward.96} parent=27 // pred_check_branch
              %179 = sbr.rel (0) target = $region32
            $region31: #{unet_forward.96} parent=27 // pred_region
              %s180 = scalar_lea.vmem %s175, 8
              %s181 = scalar_lea.vmem %s169, 8 [#allocation3]
              loop: start=0, step=1, limit=1
              $region33: #{unet_forward.96} parent=31 // loop_pre_header
                _
              $region34: #{unet_forward.96} parent=31 // loop_header
                %s183 = sphi 0, %s187
                %p184 = scmp.ge.s32.totalorder %s183, 1
                %s188 = sphi %s175, %s175
                %s189 = sphi %s169, %s169
              $region35: #{unet_forward.96} parent=31 // loop_header_branch
                %186 = sbr.rel (%p184) target = $region39
              $region36: #{unet_forward.96} parent=31 // loop_body
                %v190 = vld [vmem:[%s188] sm:$0xff]
                %191 = vst [vmem:[%s189] sm:$0xff] %v190
                %v192 = vld [vmem:[%s188 + $0x24] sm:$0xff]
                %193 = vst [vmem:[%s189 + $0xc] sm:$0xff] %v192
              $region37: #{unet_forward.96} parent=31 // loop_footer
                %s187 = sadd.s32 1, %s183
              $region38: #{unet_forward.96} parent=31 // loop_footer_branch
                %182 = sbr.rel target = $region34
              $region39: #{unet_forward.96} parent=31 // loop_exit
                _
              %s195 = ssub.s32 16, 1
              loop: start=0, step=1, limit=1
              $region40: #{unet_forward.96} parent=31 // loop_pre_header
                _
              $region41: #{unet_forward.96} parent=31 // loop_header
                %s197 = sphi 0, %s201
                %p198 = scmp.ge.s32.totalorder %s197, 1
                %s202 = sphi %s180, %s180
                %s203 = sphi %s181, %s181
              $region42: #{unet_forward.96} parent=31 // loop_header_branch
                %200 = sbr.rel (%p198) target = $region46
              $region43: #{unet_forward.96} parent=31 // loop_body
                %v204 = vld [vmem:[%s202] sm:%s195]
                %205 = vst [vmem:[%s203] sm:%s195] %v204
                %v206 = vld [vmem:[%s202 + $0x24] sm:%s195]
                %207 = vst [vmem:[%s203 + $0xc] sm:%s195] %v206
              $region44: #{unet_forward.96} parent=31 // loop_footer
                %s201 = sadd.s32 1, %s197
              $region45: #{unet_forward.96} parent=31 // loop_footer_branch
                %196 = sbr.rel target = $region41
              $region46: #{unet_forward.96} parent=31 // loop_exit
                _
            $region32: #{unet_forward.96} parent=27 // pred_fallthru
              _
          $region28: #{unet_forward.96} parent=23 // pred_fallthru
            _
          %208 = vnop
        $region24: #{unet_forward.96} parent=19 // pred_fallthru
          _
        // Predicated region
        $region47: #{unet_forward.96} parent=19 // pred_check
          %p209 = pneg %p78
        $region48: #{unet_forward.96} parent=19 // pred_check_branch
          %211 = sbr.rel (%p209) target = $region50
        $region49: #{unet_forward.96} parent=19 // pred_region
          %s212 = smul.u32 48, %s18
          %p213 = scmp.lt.s32.totalorder %s212, 143
          %s214 = scalar_select %p213, %s212, 143
          %p215 = scmp.lt.s32.totalorder %s17, 0
          %s216 = scalar_select %p215, %s17, 0
          %s217 = sadd.s32 %s216, %s214
          %s218 = smul.addr %s217, 4
          %s219 = scalar_lea.vmem %s1, %s218
          %s220 = smul.u32 48, %s18
        $region50: #{unet_forward.96} parent=19 // pred_fallthru
          _
      $region20: #{unet_forward.96} parent=5 // pred_fallthru
        _
      %p221 = scmp.le.s32.totalorder 1, %s9
      %p222 = scmp.lt.s32.totalorder %s9, 4
      %p223 = pnand %p221, %p222
      %p224 = pneg %p223
      // Predicated region
      $region51: #{unet_forward.96} parent=5 // pred_check
        _
      $region52: #{unet_forward.96} parent=5 // pred_check_branch
        %226 = sbr.rel (%p223) target = $region54
      $region53: #{unet_forward.96} parent=5 // pred_region
        %s227 = ssub.s32 %s9, 1
        %s228 = sand.u32 %s43, 1
        %s229 = sand.u32 %s43, 1
        %s230 = smul.addr %s229, 24
        %s231 = scalar_lea.vmem [#allocation3], %s230
        // Predicated region
        $region55: #{unet_forward.96} parent=53 // pred_check
          %p232 = pneg %p56
        $region56: #{unet_forward.96} parent=53 // pred_check_branch
          %234 = sbr.rel (%p232) target = $region58
        $region57: #{unet_forward.96} parent=53 // pred_region
          _
        $region58: #{unet_forward.96} parent=53 // pred_fallthru
          _
        %s235 = sand.u32 %s43, 1
        %s236 = sand.u32 %s43, 1
        %s237 = smul.addr %s236, 24
        %s238 = scalar_lea.vmem [#allocation3], %s237
        %p239 = pneg %p56
        %p240 = pneg %p53
        %s241 = smul.u32 48, %s21
        %p242 = scmp.lt.s32.totalorder %s241, 143
        %s243 = scalar_select %p242, %s241, 143
        %p244 = scmp.lt.s32.totalorder %s20, 0
        %s245 = scalar_select %p244, %s20, 0
        %s246 = sadd.s32 %s245, %s243
        %s247 = smul.addr %s246, 4
        %s248 = scalar_lea.vmem %s1, %s247
        %p249 = pneg %p84
        %p250 = pneg %p81
        %p251 = scmp.lt.s32.totalorder %s20, 0
        %s252 = scalar_select %p251, %s20, 0
        %s253 = scalar_lea.vmem %s2, %s252
        %p254 = pneg %p110
        %p255 = pneg %p107
        %p256 = pneg %p138
        %p257 = pneg %p135
        %s258 = smul.u32 2, %s19
        %p259 = scmp.lt.s32.totalorder %s258, 1
        %s260 = scalar_select %p259, %s258, 1
        %p261 = scmp.lt.s32.totalorder %s20, 0
        %s262 = scalar_select %p261, %s20, 0
        %s263 = sadd.s32 %s262, %s260
        %s264 = smul.addr %s263, 4
        %s265 = scalar_lea.vmem %s3, %s264
        %s266 = smul.u32 2, %s19
        %s267 = smul.u32 3, %s21
        %s268 = smul.u32 48, %s21
        %p269 = scmp.lt.s32.totalorder %s268, 143
        %s270 = scalar_select %p269, %s268, 143
        %p271 = scmp.lt.s32.totalorder %s20, 0
        %s272 = scalar_select %p271, %s20, 0
        %s273 = sadd.s32 %s272, %s270
        %s274 = smul.addr %s273, 4
        %s275 = scalar_lea.vmem %s1, %s274
        %s276 = smul.u32 48, %s21
        %p277 = scmp.lt.s32.totalorder %s20, 0
        %s278 = scalar_select %p277, %s20, 0
        %s279 = scalar_lea.vmem %s2, %s278
        %s280 = smul.u32 2, %s19
        %p281 = scmp.lt.s32.totalorder %s280, 1
        %s282 = scalar_select %p281, %s280, 1
        %p283 = scmp.lt.s32.totalorder %s20, 0
        %s284 = scalar_select %p283, %s20, 0
        %s285 = sadd.s32 %s284, %s282
        %s286 = smul.addr %s285, 4
        %s287 = scalar_lea.vmem %s3, %s286
        %s288 = smul.u32 2, %s19
        %p289 = scmp.eq.s32.totalorder %s21, 0
        // Predicated region
        $region59: #{unet_forward.96} parent=53 // pred_check
          %p290 = pneg %p289
        $region60: #{unet_forward.96} parent=53 // pred_check_branch
          %292 = sbr.rel (%p290) target = $region62
        $region61: #{unet_forward.96} parent=53 // pred_region
          %293 = vst [vmem:[#allocation2] sm:$0xff] 0.0
          %294 = vst [vmem:[#allocation2 + $0x8] sm:$0xff] 0.0
        $region62: #{unet_forward.96} parent=53 // pred_fallthru
          _
        %v295 = vld [vmem:[#allocation2] sm:$0xff]
        %v296 = vld [vmem:[#allocation2 + $0x8] sm:$0xff]
        %v297 = vld [vmem:[%s231] sm:$0xff]
        %v298 = vld [vmem:[%s231 + $0x8] sm:$0xf]
        %v299 = vld [vmem:[%s231 + $0xc] sm:$0xff]
        %v300 = vld [vmem:[%s231 + $0x14] sm:$0xf]
        %v301 = vld [vmem:[%s275] sm:$0xf]
        %v302 = vld [vmem:[%s275 + $0x4] sm:$0xf]
        %v303 = vld [vmem:[%s275 + $0x8] sm:$0xf]
        %v304 = vld [vmem:[%s275 + $0xc] sm:$0xf]
        %v305 = vld [vmem:[%s275 + $0x10] sm:$0xf]
        %v306 = vld [vmem:[%s275 + $0x14] sm:$0xf]
        %v307 = vld [vmem:[%s275 + $0x18] sm:$0xf]
        %v308 = vld [vmem:[%s275 + $0x1c] sm:$0xf]
        %v309 = vld [vmem:[%s275 + $0x20] sm:$0xf]
        %v310 = vld [vmem:[%s275 + $0x24] sm:$0xf]
        %v311 = vld [vmem:[%s275 + $0x28] sm:$0xf]
        %v312 = vld [vmem:[%s275 + $0x2c] sm:$0xf]
        %v313 = vld [vmem:[%s275 + $0x30] sm:$0xf]
        %v314 = vld [vmem:[%s275 + $0x34] sm:$0xf]
        %v315 = vld [vmem:[%s275 + $0x38] sm:$0xf]
        %v316 = vld [vmem:[%s275 + $0x3c] sm:$0xf]
        %v317 = vld [vmem:[%s275 + $0x40] sm:$0xf]
        %v318 = vld [vmem:[%s275 + $0x44] sm:$0xf]
        %v319 = vld [vmem:[%s275 + $0x48] sm:$0xf]
        %v320 = vld [vmem:[%s275 + $0x4c] sm:$0xf]
        %v321 = vld [vmem:[%s275 + $0x50] sm:$0xf]
        %v322 = vld [vmem:[%s275 + $0x54] sm:$0xf]
        %v323 = vld [vmem:[%s275 + $0x58] sm:$0xf]
        %v324 = vld [vmem:[%s275 + $0x5c] sm:$0xf]
        %v325 = vld [vmem:[%s275 + $0x60] sm:$0xf]
        %v326 = vld [vmem:[%s275 + $0x64] sm:$0xf]
        %v327 = vld [vmem:[%s275 + $0x68] sm:$0xf]
        %v328 = vld [vmem:[%s275 + $0x6c] sm:$0xf]
        %v329 = vld [vmem:[%s275 + $0x70] sm:$0xf]
        %v330 = vld [vmem:[%s275 + $0x74] sm:$0xf]
        %v331 = vld [vmem:[%s275 + $0x78] sm:$0xf]
        %v332 = vld [vmem:[%s275 + $0x7c] sm:$0xf]
        %v333 = vld [vmem:[%s275 + $0x80] sm:$0xf]
        %v334 = vld [vmem:[%s275 + $0x84] sm:$0xf]
        %v335 = vld [vmem:[%s275 + $0x88] sm:$0xf]
        %v336 = vld [vmem:[%s275 + $0x8c] sm:$0xf]
        %v337 = vld [vmem:[%s275 + $0x90] sm:$0xf]
        %v338 = vld [vmem:[%s275 + $0x94] sm:$0xf]
        %v339 = vld [vmem:[%s275 + $0x98] sm:$0xf]
        %v340 = vld [vmem:[%s275 + $0x9c] sm:$0xf]
        %v341 = vld [vmem:[%s275 + $0xa0] sm:$0xf]
        %v342 = vld [vmem:[%s275 + $0xa4] sm:$0xf]
        %v343 = vld [vmem:[%s275 + $0xa8] sm:$0xf]
        %v344 = vld [vmem:[%s275 + $0xac] sm:$0xf]
        %v345 = vld [vmem:[%s275 + $0xb0] sm:$0xf]
        %v346 = vld [vmem:[%s275 + $0xb4] sm:$0xf]
        %v347 = vld [vmem:[%s275 + $0xb8] sm:$0xf]
        %v348 = vld [vmem:[%s275 + $0xbc] sm:$0xf]
        %v353 = vunpack.c.l.b16 %v297
        %v354 = vunpack.c.h.b16 %v297
        %v355 = vunpack.c.l.b16 %v298
        %v356 = vunpack.c.l.b16 %v299
        %v357 = vunpack.c.h.b16 %v299
        %v358 = vunpack.c.l.b16 %v300
        %v359 = vpack.c.b16 %v356, %v353
        %v360 = vpack.c.b16 %v357, %v354
        %v361 = vpack.c.b16 %v358, %v355
        %v413 = vunpack.c.l.b16 %v301
        %v414 = vunpack.c.l.b16 %v302
        %v415 = vunpack.c.l.b16 %v303
        %v416 = vunpack.c.l.b16 %v304
        %v417 = vunpack.c.l.b16 %v305
        %v418 = vunpack.c.l.b16 %v306
        %v419 = vunpack.c.l.b16 %v307
        %v420 = vunpack.c.l.b16 %v308
        %v421 = vunpack.c.l.b16 %v309
        %v422 = vunpack.c.l.b16 %v310
        %v423 = vunpack.c.l.b16 %v311
        %v424 = vunpack.c.l.b16 %v312
        %v425 = vunpack.c.l.b16 %v313
        %v426 = vunpack.c.l.b16 %v314
        %v427 = vunpack.c.l.b16 %v315
        %v428 = vunpack.c.l.b16 %v316
        %v429 = vunpack.c.l.b16 %v317
        %v430 = vunpack.c.l.b16 %v318
        %v431 = vunpack.c.l.b16 %v319
        %v432 = vunpack.c.l.b16 %v320
        %v433 = vunpack.c.l.b16 %v321
        %v434 = vunpack.c.l.b16 %v322
        %v435 = vunpack.c.l.b16 %v323
        %v436 = vunpack.c.l.b16 %v324
        %v437 = vunpack.c.l.b16 %v325
        %v438 = vunpack.c.l.b16 %v326
        %v439 = vunpack.c.l.b16 %v327
        %v440 = vunpack.c.l.b16 %v328
        %v441 = vunpack.c.l.b16 %v329
        %v442 = vunpack.c.l.b16 %v330
        %v443 = vunpack.c.l.b16 %v331
        %v444 = vunpack.c.l.b16 %v332
        %v445 = vunpack.c.l.b16 %v333
        %v446 = vunpack.c.l.b16 %v334
        %v447 = vunpack.c.l.b16 %v335
        %v448 = vunpack.c.l.b16 %v336
        %v449 = vunpack.c.l.b16 %v337
        %v450 = vunpack.c.l.b16 %v338
        %v451 = vunpack.c.l.b16 %v339
        %v452 = vunpack.c.l.b16 %v340
        %v453 = vunpack.c.l.b16 %v341
        %v454 = vunpack.c.l.b16 %v342
        %v455 = vunpack.c.l.b16 %v343
        %v456 = vunpack.c.l.b16 %v344
        %v457 = vunpack.c.l.b16 %v345
        %v458 = vunpack.c.l.b16 %v346
        %v459 = vunpack.c.l.b16 %v347
        %v460 = vunpack.c.l.b16 %v348
        %v461 = vpack.c.b16 %v414, %v413
        %v462 = vpack.c.b16 %v416, %v415
        %v463 = vpack.c.b16 %v418, %v417
        %v464 = vpack.c.b16 %v420, %v419
        %v465 = vpack.c.b16 %v422, %v421
        %v466 = vpack.c.b16 %v424, %v423
        %v467 = vpack.c.b16 %v426, %v425
        %v468 = vpack.c.b16 %v428, %v427
        %v469 = vpack.c.b16 %v430, %v429
        %v470 = vpack.c.b16 %v432, %v431
        %v471 = vpack.c.b16 %v434, %v433
        %v472 = vpack.c.b16 %v436, %v435
        %v473 = vpack.c.b16 %v438, %v437
        %v474 = vpack.c.b16 %v440, %v439
        %v475 = vpack.c.b16 %v442, %v441
        %v476 = vpack.c.b16 %v444, %v443
        %v477 = vpack.c.b16 %v446, %v445
        %v478 = vpack.c.b16 %v448, %v447
        %v479 = vpack.c.b16 %v450, %v449
        %v480 = vpack.c.b16 %v452, %v451
        %v481 = vpack.c.b16 %v454, %v453
        %v482 = vpack.c.b16 %v456, %v455
        %v483 = vpack.c.b16 %v458, %v457
        %v484 = vpack.c.b16 %v460, %v459
        %509 = vmatpush.bf16.msra.mxu0 %v468
        %510 = vmatpush.bf16.msra.mxu0 %v467
        %511 = vmatpush.bf16.msra.mxu0 %v466
        %512 = vmatpush.bf16.msra.mxu0 %v465
        %513 = vmatpush.bf16.msra.mxu0 %v464
        %514 = vmatpush.bf16.msra.mxu0 %v463
        %515 = vmatpush.bf16.msra.mxu0 %v462
        %516 = vmatpush.bf16.msra.mxu0 %v461
        %517 = vmatmul.bf16.gmra.mxu0 %v359
        %v518 = vpop.f32.mrf.mxu0
        %v519 = vadd.f32 0.0, %v518
        %v520 = vpop.f32.mrf.mxu0
        %v521 = vadd.f32 0.0, %v520
        %522 = vdwg.mxu0
        %523 = vmatpush.bf16.msra.mxu0 %v476
        %524 = vmatpush.bf16.msra.mxu0 %v475
        %525 = vmatpush.bf16.msra.mxu0 %v474
        %526 = vmatpush.bf16.msra.mxu0 %v473
        %527 = vmatpush.bf16.msra.mxu0 %v472
        %528 = vmatpush.bf16.msra.mxu0 %v471
        %529 = vmatpush.bf16.msra.mxu0 %v470
        %530 = vmatpush.bf16.msra.mxu0 %v469
        %531 = vmatmul.bf16.gmra.mxu0 %v360
        %v532 = vpop.f32.mrf.mxu0
        %v533 = vadd.f32 %v519, %v532
        %v534 = vpop.f32.mrf.mxu0
        %v535 = vadd.f32 %v521, %v534
        %536 = vdwg.mxu0
        %537 = vmatpush.bf16.msra.mxu0 %v484
        %538 = vmatpush.bf16.msra.mxu0 %v483
        %539 = vmatpush.bf16.msra.mxu0 %v482
        %540 = vmatpush.bf16.msra.mxu0 %v481
        %541 = vmatpush.bf16.msra.mxu0 %v480
        %542 = vmatpush.bf16.msra.mxu0 %v479
        %543 = vmatpush.bf16.msra.mxu0 %v478
        %544 = vmatpush.bf16.msra.mxu0 %v477
        %545 = vmatmul.bf16.gmra.mxu0 %v361
        %v546 = vpop.f32.mrf.mxu0
        %v547 = vadd.f32 %v533, %v546
        %v548 = vpop.f32.mrf.mxu0
        %v549 = vadd.f32 %v535, %v548
        %550 = vdwg.mxu0
        %v551 = vadd.f32 %v295, %v547
        %v552 = vadd.f32 %v296, %v549
        %553 = vst [vmem:[#allocation2] sm:$0xff] %v551
        %554 = vst [vmem:[#allocation2 + $0x8] sm:$0xff] %v552
        %p555 = scmp.eq.s32.totalorder %s21, 2
        // Predicated region
        $region63: #{unet_forward.96} parent=53 // pred_check
          %p556 = pneg %p555
        $region64: #{unet_forward.96} parent=53 // pred_check_branch
          %558 = sbr.rel (%p556) target = $region66
        $region65: #{unet_forward.96} parent=53 // pred_region
          %v559 = vld [vmem:[#allocation2] sm:$0xff]
          %v560 = vld [vmem:[#allocation2 + $0x8] sm:$0xff]
          %v561 = vld [vmem:[%s279] sm:$0x1]
          %v563 = vperm.slane %v561, 0
          %v565 = vadd.f32 %v559, %v563
          %v566 = vadd.f32 %v560, %v563
          %v567 = vpack.c.bf16 %v565, %v565
          %v568 = vpack.c.bf16 %v566, %v566
          %569 = vst [vmem:[%s287] sm:$0xf] %v567
          %570 = vst [vmem:[%s287 + $0x4] sm:$0xf] %v568
        $region66: #{unet_forward.96} parent=53 // pred_fallthru
          _
        %s571 = smul.u32 2, %s19
        %p572 = scmp.lt.s32.totalorder %s571, 1
        %s573 = scalar_select %p572, %s571, 1
        %p574 = scmp.lt.s32.totalorder %s20, 0
        %s575 = scalar_select %p574, %s20, 0
        %s576 = sadd.s32 %s575, %s573
        %s577 = smul.addr %s576, 4
        %s578 = scalar_lea.vmem %s3, %s577
        // Predicated region
        $region67: #{unet_forward.96} parent=53 // pred_check
          %p579 = pneg %p135
        $region68: #{unet_forward.96} parent=53 // pred_check_branch
          %581 = sbr.rel (%p579) target = $region70
        $region69: #{unet_forward.96} parent=53 // pred_region
          %s582 = smul.u32 2, %s19
        $region70: #{unet_forward.96} parent=53 // pred_fallthru
          _
        // Predicated region
        $region71: #{unet_forward.96} parent=53 // pred_check
          %p583 = pneg %p135
        $region72: #{unet_forward.96} parent=53 // pred_check_branch
          %585 = sbr.rel (%p583) target = $region74
        $region73: #{unet_forward.96} parent=53 // pred_region
          %s586 = smul.u32 2, %s19
          %p587 = scmp.lt.s32.totalorder %s586, 1
          %s588 = scalar_select %p587, %s586, 1
          %p589 = scmp.lt.s32.totalorder %s20, 0
          %s590 = scalar_select %p589, %s20, 0
          %s591 = sadd.s32 %s590, %s588
          %s592 = smul.addr %s591, 4
          %s593 = scalar_lea.vmem %s3, %s592
        $region74: #{unet_forward.96} parent=53 // pred_fallthru
          _
      $region54: #{unet_forward.96} parent=5 // pred_fallthru
        _
      %p594 = scmp.le.s32.totalorder 2, %s9
      // Predicated region
      $region75: #{unet_forward.96} parent=5 // pred_check
        %p595 = pneg %p594
      $region76: #{unet_forward.96} parent=5 // pred_check_branch
        %597 = sbr.rel (%p595) target = $region78
      $region77: #{unet_forward.96} parent=5 // pred_region
        %s598 = ssub.s32 %s9, 2
      $region78: #{unet_forward.96} parent=5 // pred_fallthru
        _
    $region6: #{unet_forward.96} parent=1 // loop_footer
      %s13 = sadd.s32 1, %s9
    $region7: #{unet_forward.96} parent=1 // loop_footer_branch
      %8 = sbr.rel target = $region3
    $region8: #{unet_forward.96} parent=1 // loop_exit
      _

// kernel: unet_forward.98
$region0: #{unet_forward.98}
  #allocation0 [shape = 'u32[]', space=smem, size = 0x4, offset = 0x4, fixed_abs, tag = 'smem constant byte address 0x4 - core index']
  #allocation1 [shape = 'u32[72,128]{1,0:T(1,128)}', space=vmem, size = 0x9000, scoped, tag = 'internal scratch']
  %s0 = inlined_call_operand.vmem [shape: bf16[16,128], index: 0, kind: input, shape index: {}]
  %s1 = inlined_call_operand.vmem [shape: bf16[128,128], index: 1, kind: input, shape index: {}]
  %s2 = inlined_call_operand.vmem [shape: f32[1,128], index: 2, kind: input, shape index: {}]
  %s3 = inlined_call_operand.vmem [shape: bf16[16,128], index: 3, kind: output, shape index: {}]
  %s4 = sld [smem:[#allocation0]]
  $region22: #{unet_forward.98} parent=0
    _
  %s6 = ssub.s32 1, %s4
  %s7 = scalar_select 0, %s6, %s4
  // Predicated region
  $region2: #{unet_forward.98} parent=0 // pred_check
    _
  $region3: #{unet_forward.98} parent=0 // pred_check_branch
    %9 = sbr.rel (0) target = $region5
  $region4: #{unet_forward.98} parent=0 // pred_region
    _
  $region5: #{unet_forward.98} parent=0 // pred_fallthru
    _
  // Predicated region
  $region6: #{unet_forward.98} parent=0 // pred_check
    _
  $region7: #{unet_forward.98} parent=0 // pred_check_branch
    %11 = sbr.rel (0) target = $region9
  $region8: #{unet_forward.98} parent=0 // pred_region
    _
  $region9: #{unet_forward.98} parent=0 // pred_fallthru
    _
  // Predicated region
  $region10: #{unet_forward.98} parent=0 // pred_check
    _
  $region11: #{unet_forward.98} parent=0 // pred_check_branch
    %13 = sbr.rel (0) target = $region13
  $region12: #{unet_forward.98} parent=0 // pred_region
    _
  $region13: #{unet_forward.98} parent=0 // pred_fallthru
    _
  %v14 = vld [vmem:[%s0] sm:$0xf]
  %v15 = vld [vmem:[%s0 + $0x4] sm:$0xf]
  %v16 = vld [vmem:[%s1] sm:$0xf]
  %v17 = vld [vmem:[%s1 + $0x4] sm:$0xf]
  %v18 = vld [vmem:[%s1 + $0x8] sm:$0xf]
  %v19 = vld [vmem:[%s1 + $0xc] sm:$0xf]
  %v20 = vld [vmem:[%s1 + $0x10] sm:$0xf]
  %v21 = vld [vmem:[%s1 + $0x14] sm:$0xf]
  %v22 = vld [vmem:[%s1 + $0x18] sm:$0xf]
  %v23 = vld [vmem:[%s1 + $0x1c] sm:$0xf]
  %v24 = vld [vmem:[%s1 + $0x20] sm:$0xf]
  %v25 = vld [vmem:[%s1 + $0x24] sm:$0xf]
  %v26 = vld [vmem:[%s1 + $0x28] sm:$0xf]
  %v27 = vld [vmem:[%s1 + $0x2c] sm:$0xf]
  %v28 = vld [vmem:[%s1 + $0x30] sm:$0xf]
  %v29 = vld [vmem:[%s1 + $0x34] sm:$0xf]
  %v30 = vld [vmem:[%s1 + $0x38] sm:$0xf]
  %v31 = vld [vmem:[%s1 + $0x3c] sm:$0xf]
  %v32 = vld [vmem:[%s2] sm:$0x1]
  %v34 = vperm.slane %v32, 0
  %v38 = vunpack.c.l.b16 %v14
  %v39 = vunpack.c.l.b16 %v15
  %v40 = vpack.c.b16 %v39, %v38
  %v58 = vunpack.c.l.b16 %v16
  %v59 = vunpack.c.l.b16 %v17
  %v60 = vunpack.c.l.b16 %v18
  %v61 = vunpack.c.l.b16 %v19
  %v62 = vunpack.c.l.b16 %v20
  %v63 = vunpack.c.l.b16 %v21
  %v64 = vunpack.c.l.b16 %v22
  %v65 = vunpack.c.l.b16 %v23
  %v66 = vunpack.c.l.b16 %v24
  %v67 = vunpack.c.l.b16 %v25
  %v68 = vunpack.c.l.b16 %v26
  %v69 = vunpack.c.l.b16 %v27
  %v70 = vunpack.c.l.b16 %v28
  %v71 = vunpack.c.l.b16 %v29
  %v72 = vunpack.c.l.b16 %v30
  %v73 = vunpack.c.l.b16 %v31
  %v74 = vpack.c.b16 %v59, %v58
  %v75 = vpack.c.b16 %v61, %v60
  %v76 = vpack.c.b16 %v63, %v62
  %v77 = vpack.c.b16 %v65, %v64
  %v78 = vpack.c.b16 %v67, %v66
  %v79 = vpack.c.b16 %v69, %v68
  %v80 = vpack.c.b16 %v71, %v70
  %v81 = vpack.c.b16 %v73, %v72
  %90 = vmatpush.bf16.msra.mxu0 %v81
  %91 = vmatpush.bf16.msra.mxu0 %v80
  %92 = vmatpush.bf16.msra.mxu0 %v79
  %93 = vmatpush.bf16.msra.mxu0 %v78
  %94 = vmatpush.bf16.msra.mxu0 %v77
  %95 = vmatpush.bf16.msra.mxu0 %v76
  %96 = vmatpush.bf16.msra.mxu0 %v75
  %97 = vmatpush.bf16.msra.mxu0 %v74
  %98 = vmatmul.bf16.gmra.mxu0 %v40
  %v99 = vpop.f32.mrf.mxu0
  %v100 = vadd.f32 %v34, %v99
  %v101 = vpop.f32.mrf.mxu0
  %v102 = vadd.f32 %v34, %v101
  %103 = vdwg.mxu0
  %v104 = vxor.u32 %v100, 2147483648
  %v105 = vxor.u32 %v102, 2147483648
  %v106 = vmul.f32 %v104, 1.442695
  %v107 = vpow.pop %v106
  %v108 = vmul.f32 %v105, 1.442695
  %v109 = vpow.pop %v108
  %v110 = vadd.f32 %v107, 1.0
  %v111 = vadd.f32 %v109, 1.0
  %v112 = vrcp.pop %v110
  %v113 = vmul.f32 %v110, %v112
  %v114 = vsub.f32 1.0, %v113
  %v115 = vmul.f32 %v112, %v114
  %v116 = vadd.f32 %v112, %v115
  %vm117 = vweird.f32 %v110
  %vm118 = vweird.f32 %v112
  %vm119 = vmor %vm117, %vm118
  %v120 = vsel %vm119, %v112, %v116
  %v121 = vand.u32 2147483647, %v110
  %vm122 = vcmp.eq.f32.partialorder %v121, 8.507059e+37
  %v123 = vand.u32 %v110, 2147483648
  %v124 = vor.u32 1.1754944e-38, %v123
  %v125 = vsel %vm122, %v124, %v120
  %v126 = vmul.f32 1.0, %v125
  %v127 = vrcp.pop %v111
  %v128 = vmul.f32 %v111, %v127
  %v129 = vsub.f32 1.0, %v128
  %v130 = vmul.f32 %v127, %v129
  %v131 = vadd.f32 %v127, %v130
  %vm132 = vweird.f32 %v111
  %vm133 = vweird.f32 %v127
  %vm134 = vmor %vm132, %vm133
  %v135 = vsel %vm134, %v127, %v131
  %v136 = vand.u32 2147483647, %v111
  %vm137 = vcmp.eq.f32.partialorder %v136, 8.507059e+37
  %v138 = vand.u32 %v111, 2147483648
  %v139 = vor.u32 1.1754944e-38, %v138
  %v140 = vsel %vm137, %v139, %v135
  %v141 = vmul.f32 1.0, %v140
  %v142 = vpack.c.bf16 %v126, %v126
  %v143 = vpack.c.bf16 %v141, %v141
  %144 = vst [vmem:[%s3] sm:$0xf] %v142
  %145 = vst [vmem:[%s3 + $0x4] sm:$0xf] %v143
  // Predicated region
  $region14: #{unet_forward.98} parent=0 // pred_check
    _
  $region15: #{unet_forward.98} parent=0 // pred_check_branch
    %147 = sbr.rel (0) target = $region17
  $region16: #{unet_forward.98} parent=0 // pred_region
    _
  $region17: #{unet_forward.98} parent=0 // pred_fallthru
    _
  // Predicated region
  $region18: #{unet_forward.98} parent=0 // pred_check
    _
  $region19: #{unet_forward.98} parent=0 // pred_check_branch
    %149 = sbr.rel (0) target = $region21
  $region20: #{unet_forward.98} parent=0 // pred_region
    _
  $region21: #{unet_forward.98} parent=0 // pred_fallthru
    _

// kernel: unet_forward.99
$region0: #{unet_forward.99}
  #allocation0 [shape = 'u32[]', space=smem, size = 0x4, offset = 0x4, fixed_abs, tag = 'smem constant byte address 0x4 - core index']
  #allocation1 [shape = 'u32[72,128]{1,0:T(1,128)}', space=vmem, size = 0x9000, scoped, tag = 'internal scratch']
  %s0 = inlined_call_operand.vmem [shape: bf16[16,128], index: 0, kind: input, shape index: {}]
  %s1 = inlined_call_operand.vmem [shape: bf16[128,128], index: 1, kind: input, shape index: {}]
  %s2 = inlined_call_operand.vmem [shape: f32[1,128], index: 2, kind: input, shape index: {}]
  %s3 = inlined_call_operand.vmem [shape: bf16[16,128], index: 3, kind: input, shape index: {}]
  %s4 = inlined_call_operand.vmem [shape: bf16[16,128], index: 4, kind: output, shape index: {}]
  %s5 = sld [smem:[#allocation0]]
  $region26: #{unet_forward.99} parent=0
    _
  %s7 = ssub.s32 1, %s5
  %s8 = scalar_select 0, %s7, %s5
  // Predicated region
  $region2: #{unet_forward.99} parent=0 // pred_check
    _
  $region3: #{unet_forward.99} parent=0 // pred_check_branch
    %10 = sbr.rel (0) target = $region5
  $region4: #{unet_forward.99} parent=0 // pred_region
    _
  $region5: #{unet_forward.99} parent=0 // pred_fallthru
    _
  // Predicated region
  $region6: #{unet_forward.99} parent=0 // pred_check
    _
  $region7: #{unet_forward.99} parent=0 // pred_check_branch
    %12 = sbr.rel (0) target = $region9
  $region8: #{unet_forward.99} parent=0 // pred_region
    _
  $region9: #{unet_forward.99} parent=0 // pred_fallthru
    _
  // Predicated region
  $region10: #{unet_forward.99} parent=0 // pred_check
    _
  $region11: #{unet_forward.99} parent=0 // pred_check_branch
    %14 = sbr.rel (0) target = $region13
  $region12: #{unet_forward.99} parent=0 // pred_region
    _
  $region13: #{unet_forward.99} parent=0 // pred_fallthru
    _
  // Predicated region
  $region14: #{unet_forward.99} parent=0 // pred_check
    _
  $region15: #{unet_forward.99} parent=0 // pred_check_branch
    %16 = sbr.rel (0) target = $region17
  $region16: #{unet_forward.99} parent=0 // pred_region
    _
  $region17: #{unet_forward.99} parent=0 // pred_fallthru
    _
  %v17 = vld [vmem:[%s0] sm:$0xf]
  %v18 = vld [vmem:[%s0 + $0x4] sm:$0xf]
  %v19 = vld [vmem:[%s1] sm:$0xf]
  %v20 = vld [vmem:[%s1 + $0x4] sm:$0xf]
  %v21 = vld [vmem:[%s1 + $0x8] sm:$0xf]
  %v22 = vld [vmem:[%s1 + $0xc] sm:$0xf]
  %v23 = vld [vmem:[%s1 + $0x10] sm:$0xf]
  %v24 = vld [vmem:[%s1 + $0x14] sm:$0xf]
  %v25 = vld [vmem:[%s1 + $0x18] sm:$0xf]
  %v26 = vld [vmem:[%s1 + $0x1c] sm:$0xf]
  %v27 = vld [vmem:[%s1 + $0x20] sm:$0xf]
  %v28 = vld [vmem:[%s1 + $0x24] sm:$0xf]
  %v29 = vld [vmem:[%s1 + $0x28] sm:$0xf]
  %v30 = vld [vmem:[%s1 + $0x2c] sm:$0xf]
  %v31 = vld [vmem:[%s1 + $0x30] sm:$0xf]
  %v32 = vld [vmem:[%s1 + $0x34] sm:$0xf]
  %v33 = vld [vmem:[%s1 + $0x38] sm:$0xf]
  %v34 = vld [vmem:[%s1 + $0x3c] sm:$0xf]
  %v35 = vld [vmem:[%s2] sm:$0x1]
  %v37 = vperm.slane %v35, 0
  %v41 = vunpack.c.l.b16 %v17
  %v42 = vunpack.c.l.b16 %v18
  %v43 = vpack.c.b16 %v42, %v41
  %v61 = vunpack.c.l.b16 %v19
  %v62 = vunpack.c.l.b16 %v20
  %v63 = vunpack.c.l.b16 %v21
  %v64 = vunpack.c.l.b16 %v22
  %v65 = vunpack.c.l.b16 %v23
  %v66 = vunpack.c.l.b16 %v24
  %v67 = vunpack.c.l.b16 %v25
  %v68 = vunpack.c.l.b16 %v26
  %v69 = vunpack.c.l.b16 %v27
  %v70 = vunpack.c.l.b16 %v28
  %v71 = vunpack.c.l.b16 %v29
  %v72 = vunpack.c.l.b16 %v30
  %v73 = vunpack.c.l.b16 %v31
  %v74 = vunpack.c.l.b16 %v32
  %v75 = vunpack.c.l.b16 %v33
  %v76 = vunpack.c.l.b16 %v34
  %v77 = vpack.c.b16 %v62, %v61
  %v78 = vpack.c.b16 %v64, %v63
  %v79 = vpack.c.b16 %v66, %v65
  %v80 = vpack.c.b16 %v68, %v67
  %v81 = vpack.c.b16 %v70, %v69
  %v82 = vpack.c.b16 %v72, %v71
  %v83 = vpack.c.b16 %v74, %v73
  %v84 = vpack.c.b16 %v76, %v75
  %93 = vmatpush.bf16.msra.mxu0 %v84
  %94 = vmatpush.bf16.msra.mxu0 %v83
  %95 = vmatpush.bf16.msra.mxu0 %v82
  %96 = vmatpush.bf16.msra.mxu0 %v81
  %97 = vmatpush.bf16.msra.mxu0 %v80
  %98 = vmatpush.bf16.msra.mxu0 %v79
  %99 = vmatpush.bf16.msra.mxu0 %v78
  %100 = vmatpush.bf16.msra.mxu0 %v77
  %101 = vmatmul.bf16.gmra.mxu0 %v43
  %v102 = vpop.f32.mrf.mxu0
  %v103 = vadd.f32 %v37, %v102
  %v104 = vpop.f32.mrf.mxu0
  %v105 = vadd.f32 %v37, %v104
  %106 = vdwg.mxu0
  %v107 = vld [vmem:[%s3] sm:$0xf]
  %v108 = vld [vmem:[%s3 + $0x4] sm:$0xf]
  %v109 = vunpack.c.l.bf16 %v107
  %v110 = vunpack.c.l.bf16 %v108
  %v111 = vadd.f32 %v103, %v109
  %v112 = vadd.f32 %v105, %v110
  %v113 = vpack.c.bf16 %v111, %v111
  %v114 = vpack.c.bf16 %v112, %v112
  %115 = vst [vmem:[%s4] sm:$0xf] %v113
  %116 = vst [vmem:[%s4 + $0x4] sm:$0xf] %v114
  // Predicated region
  $region18: #{unet_forward.99} parent=0 // pred_check
    _
  $region19: #{unet_forward.99} parent=0 // pred_check_branch
    %118 = sbr.rel (0) target = $region21
  $region20: #{unet_forward.99} parent=0 // pred_region
    _
  $region21: #{unet_forward.99} parent=0 // pred_fallthru
    _
  // Predicated region
  $region22: #{unet_forward.99} parent=0 // pred_check
    _
  $region23: #{unet_forward.99} parent=0 // pred_check_branch
    %120 = sbr.rel (0) target = $region25
  $region24: #{unet_forward.99} parent=0 // pred_region
    _
  $region25: #{unet_forward.99} parent=0 // pred_fallthru
    _

// kernel: unet_forward.116
$region0: #{unet_forward.116}
  #allocation0 [shape = 'u32[]', space=smem, size = 0x4, offset = 0x4, fixed_abs, tag = 'smem constant byte address 0x4 - core index']
  #allocation1 [shape = 'u32[72,128]{1,0:T(1,128)}', space=vmem, size = 0x9000, scoped, tag = 'internal scratch']
  %s0 = inlined_call_operand.vmem [shape: bf16[16,128], index: 0, kind: input, shape index: {}]
  %s1 = inlined_call_operand.vmem [shape: bf16[128,128], index: 1, kind: input, shape index: {}]
  %s2 = inlined_call_operand.vmem [shape: f32[1,128], index: 2, kind: input, shape index: {}]
  %s3 = inlined_call_operand.vmem [shape: bf16[16,128], index: 3, kind: output, shape index: {}]
  %s4 = sld [smem:[#allocation0]]
  $region22: #{unet_forward.116} parent=0
    _
  %s6 = ssub.s32 1, %s4
  %s7 = scalar_select 0, %s6, %s4
  // Predicated region
  $region2: #{unet_forward.116} parent=0 // pred_check
    _
  $region3: #{unet_forward.116} parent=0 // pred_check_branch
    %9 = sbr.rel (0) target = $region5
  $region4: #{unet_forward.116} parent=0 // pred_region
    _
  $region5: #{unet_forward.116} parent=0 // pred_fallthru
    _
  // Predicated region
  $region6: #{unet_forward.116} parent=0 // pred_check
    _
  $region7: #{unet_forward.116} parent=0 // pred_check_branch
    %11 = sbr.rel (0) target = $region9
  $region8: #{unet_forward.116} parent=0 // pred_region
    _
  $region9: #{unet_forward.116} parent=0 // pred_fallthru
    _
  // Predicated region
  $region10: #{unet_forward.116} parent=0 // pred_check
    _
  $region11: #{unet_forward.116} parent=0 // pred_check_branch
    %13 = sbr.rel (0) target = $region13
  $region12: #{unet_forward.116} parent=0 // pred_region
    _
  $region13: #{unet_forward.116} parent=0 // pred_fallthru
    _
  %v14 = vld [vmem:[%s0] sm:$0xf]
  %v15 = vld [vmem:[%s0 + $0x4] sm:$0xf]
  %v16 = vld [vmem:[%s1] sm:$0xf]
  %v17 = vld [vmem:[%s1 + $0x4] sm:$0xf]
  %v18 = vld [vmem:[%s1 + $0x8] sm:$0xf]
  %v19 = vld [vmem:[%s1 + $0xc] sm:$0xf]
  %v20 = vld [vmem:[%s1 + $0x10] sm:$0xf]
  %v21 = vld [vmem:[%s1 + $0x14] sm:$0xf]
  %v22 = vld [vmem:[%s1 + $0x18] sm:$0xf]
  %v23 = vld [vmem:[%s1 + $0x1c] sm:$0xf]
  %v24 = vld [vmem:[%s1 + $0x20] sm:$0xf]
  %v25 = vld [vmem:[%s1 + $0x24] sm:$0xf]
  %v26 = vld [vmem:[%s1 + $0x28] sm:$0xf]
  %v27 = vld [vmem:[%s1 + $0x2c] sm:$0xf]
  %v28 = vld [vmem:[%s1 + $0x30] sm:$0xf]
  %v29 = vld [vmem:[%s1 + $0x34] sm:$0xf]
  %v30 = vld [vmem:[%s1 + $0x38] sm:$0xf]
  %v31 = vld [vmem:[%s1 + $0x3c] sm:$0xf]
  %v32 = vld [vmem:[%s2] sm:$0x1]
  %v34 = vperm.slane %v32, 0
  %v38 = vunpack.c.l.b16 %v14
  %v39 = vunpack.c.l.b16 %v15
  %v40 = vpack.c.b16 %v39, %v38
  %v58 = vunpack.c.l.b16 %v16
  %v59 = vunpack.c.l.b16 %v17
  %v60 = vunpack.c.l.b16 %v18
  %v61 = vunpack.c.l.b16 %v19
  %v62 = vunpack.c.l.b16 %v20
  %v63 = vunpack.c.l.b16 %v21
  %v64 = vunpack.c.l.b16 %v22
  %v65 = vunpack.c.l.b16 %v23
  %v66 = vunpack.c.l.b16 %v24
  %v67 = vunpack.c.l.b16 %v25
  %v68 = vunpack.c.l.b16 %v26
  %v69 = vunpack.c.l.b16 %v27
  %v70 = vunpack.c.l.b16 %v28
  %v71 = vunpack.c.l.b16 %v29
  %v72 = vunpack.c.l.b16 %v30
  %v73 = vunpack.c.l.b16 %v31
  %v74 = vpack.c.b16 %v59, %v58
  %v75 = vpack.c.b16 %v61, %v60
  %v76 = vpack.c.b16 %v63, %v62
  %v77 = vpack.c.b16 %v65, %v64
  %v78 = vpack.c.b16 %v67, %v66
  %v79 = vpack.c.b16 %v69, %v68
  %v80 = vpack.c.b16 %v71, %v70
  %v81 = vpack.c.b16 %v73, %v72
  %90 = vmatpush.bf16.msra.mxu0 %v81
  %91 = vmatpush.bf16.msra.mxu0 %v80
  %92 = vmatpush.bf16.msra.mxu0 %v79
  %93 = vmatpush.bf16.msra.mxu0 %v78
  %94 = vmatpush.bf16.msra.mxu0 %v77
  %95 = vmatpush.bf16.msra.mxu0 %v76
  %96 = vmatpush.bf16.msra.mxu0 %v75
  %97 = vmatpush.bf16.msra.mxu0 %v74
  %98 = vmatmul.bf16.gmra.mxu0 %v40
  %v99 = vpop.f32.mrf.mxu0
  %v100 = vadd.f32 %v34, %v99
  %v101 = vpop.f32.mrf.mxu0
  %v102 = vadd.f32 %v34, %v101
  %103 = vdwg.mxu0
  %v104 = vpack.c.bf16 %v100, %v100
  %v105 = vpack.c.bf16 %v102, %v102
  %106 = vst [vmem:[%s3] sm:$0xf] %v104
  %107 = vst [vmem:[%s3 + $0x4] sm:$0xf] %v105
  // Predicated region
  $region14: #{unet_forward.116} parent=0 // pred_check
    _
  $region15: #{unet_forward.116} parent=0 // pred_check_branch
    %109 = sbr.rel (0) target = $region17
  $region16: #{unet_forward.116} parent=0 // pred_region
    _
  $region17: #{unet_forward.116} parent=0 // pred_fallthru
    _
  // Predicated region
  $region18: #{unet_forward.116} parent=0 // pred_check
    _
  $region19: #{unet_forward.116} parent=0 // pred_check_branch
    %111 = sbr.rel (0) target = $region21
  $region20: #{unet_forward.116} parent=0 // pred_region
    _
  $region21: #{unet_forward.116} parent=0 // pred_fallthru
    _

// kernel: div.125
$region0: #{div.125}
  %s0 = inlined_call_operand.vmem [shape: f32[512], index: 0, kind: input, shape index: {}]
  %s1 = inlined_call_operand.vmem [shape: f32[2,16,16], index: 1, kind: output, shape index: {}]
  $region1: #{div.125} parent=0
    #allocation0 [shape = 'u8[4096]{0}', space=vmem, size = 0x1000, scoped, tag = 'scoped mem for input reshape']
    %s3 = ssub.s32 16, 1
    %v4 = vld [vmem:[%s0] sm:%s3]
    %5 = vst [vmem:[#allocation0] sm:%s3] %v4
    %v6 = vld [vmem:[#allocation0] sm:$0xf]
    %vm7 = vcmask 130048
    %8 = vst.msk [vmem:[%s1] ss:$8 sm:$0xf] %vm7, %v6
    %v9 = vld [vmem:[#allocation0] sm:$0xf]
    %10 = vrot.lane.b32.xlu0 %v9, 112
    %v11 = vpop.permute.xlu0 %10
    %vm12 = vcmask 130048
    %s13 = scalar_lea.vmem %s1, 1
    %14 = vst.msk [vmem:[%s13] ss:$8 sm:$0xf] %vm12, %v11
    %v15 = vld [vmem:[#allocation0] sm:$0xf]
    %16 = vrot.lane.b32.xlu0 %v15, 96
    %v17 = vpop.permute.xlu0 %16
    %vm18 = vcmask 130048
    %s19 = scalar_lea.vmem %s1, 2
    %20 = vst.msk [vmem:[%s19] ss:$8 sm:$0xf] %vm18, %v17
    %v21 = vld [vmem:[#allocation0] sm:$0xf]
    %22 = vrot.lane.b32.xlu0 %v21, 80
    %v23 = vpop.permute.xlu0 %22
    %vm24 = vcmask 130048
    %s25 = scalar_lea.vmem %s1, 3
    %26 = vst.msk [vmem:[%s25] ss:$8 sm:$0xf] %vm24, %v23
    %v27 = vld [vmem:[#allocation0] sm:$0xf]
    %28 = vrot.lane.b32.xlu0 %v27, 64
    %v29 = vpop.permute.xlu0 %28
    %vm30 = vcmask 130048
    %s31 = scalar_lea.vmem %s1, 4
    %32 = vst.msk [vmem:[%s31] ss:$8 sm:$0xf] %vm30, %v29
    %v33 = vld [vmem:[#allocation0] sm:$0xf]
    %34 = vrot.lane.b32.xlu0 %v33, 48
    %v35 = vpop.permute.xlu0 %34
    %vm36 = vcmask 130048
    %s37 = scalar_lea.vmem %s1, 5
    %38 = vst.msk [vmem:[%s37] ss:$8 sm:$0xf] %vm36, %v35
    %v39 = vld [vmem:[#allocation0] sm:$0xf]
    %40 = vrot.lane.b32.xlu0 %v39, 32
    %v41 = vpop.permute.xlu0 %40
    %vm42 = vcmask 130048
    %s43 = scalar_lea.vmem %s1, 6
    %44 = vst.msk [vmem:[%s43] ss:$8 sm:$0xf] %vm42, %v41
    %v45 = vld [vmem:[#allocation0] sm:$0xf]
    %46 = vrot.lane.b32.xlu0 %v45, 16
    %v47 = vpop.permute.xlu0 %46
    %vm48 = vcmask 130048
    %s49 = scalar_lea.vmem %s1, 7
    %50 = vst.msk [vmem:[%s49] ss:$8 sm:$0xf] %vm48, %v47

</llo_original>
